<compile_context>
chip_gen: v7x
topology: tpu7x:2x2x1
jax: 0.10.0
libtpu: 0.0.40
codegen_flags: <defaults>
</compile_context>

<pallas_src>
import functools

import jax
import jax.numpy as jnp
from jax.experimental import pallas as pl
from jax.experimental.pallas import tpu as pltpu

HIDDEN = 256      # fixed by the module: Linear(enc, 256)
N_HEADS = 3


def _fused_heads_kernel(x_ref, w1_ref, b1_ref, w2_ref, b2_ref, o_ref, *,
                        head_offsets, head_sizes):
    """x(TM,D) -> Linear+ReLU -> h(TM,3H) -> packed Linear -> s(TM,OUT_W)
    -> per-head (segmented) softmax -> o(TM,OUT_W)."""
    x = x_ref[...].astype(jnp.bfloat16)
    h = jnp.dot(x, w1_ref[...], preferred_element_type=jnp.float32)
    h = jnp.maximum(h + b1_ref[...], 0.0)                       # bias + ReLU (f32)
    s = jnp.dot(h.astype(jnp.bfloat16), w2_ref[...],
                preferred_element_type=jnp.float32)
    s = s + b2_ref[...]                                         # unused lanes -> -1e30

    out_w = o_ref.shape[-1]
    lane = jax.lax.broadcasted_iota(jnp.int32, (1, out_w), 1)
    masks = [(lane >= off) & (lane < off + c)
             for off, c in zip(head_offsets, head_sizes)]

    # Segmented numerically-stable softmax: per-head masked max -> single exp
    # over the slab -> per-head masked sum -> per-head reciprocal scale.
    m_lane = jnp.zeros_like(s)
    for mask in masks:
        m_i = jnp.max(jnp.where(mask, s, -jnp.inf), axis=-1, keepdims=True)
        m_lane = jnp.where(mask, m_i, m_lane)
    e = jnp.exp(s - m_lane)                                     # unused lanes -> 0
    inv_lane = jnp.zeros_like(s)
    for mask in masks:
        d_i = jnp.sum(jnp.where(mask, e, 0.0), axis=-1, keepdims=True)
        inv_lane = jnp.where(mask, pl.reciprocal(d_i, approx=False), inv_lane)
    o_ref[...] = e * inv_lane


def prepare_fused_params(params, *, hidden=HIDDEN):
    """Fuse the three heads once, at parameter-load time (hoisted out of forward).

    W1s are concatenated to (D, 3H); W2s are packed into a single (3H, OUT_W)
    matrix whose columns [off_i, off_i + C_i) hold head i's second linear, with
    OUT_W = max(128, ceil(sum(C_i)/128)*128).  Unused output lanes get bias -1e30
    so their softmax probability is exactly 0.
    """
    heads = [params["target_pos"], params["cat"], params["sense"]]
    w1 = jnp.concatenate([h[0] for h in heads], axis=1)          # (D, 3H)
    b1 = jnp.concatenate([h[1] for h in heads], axis=1)          # (1, 3H)
    c_sizes = tuple(int(h[2].shape[1]) for h in heads)
    offsets, off = [], 0
    for c in c_sizes:
        offsets.append(off)
        off += c
    total_c = off
    out_w = max(128, -(-total_c // 128) * 128)                   # lane-dense
    # Note: if total classes ever exceed 128, the packed W2 carries structural
    # zeros across heads; for very large class counts a per-head split of the
    # second GEMM would be more MXU-efficient (not needed at these sizes).
    w2 = jnp.zeros((len(heads) * hidden, out_w), jnp.float32)
    b2 = jnp.full((1, out_w), -1e30, jnp.float32)
    for i, (o, c, (_, _, w2_i, b2_i)) in enumerate(zip(offsets, c_sizes, heads)):
        w2 = w2.at[i * hidden:(i + 1) * hidden, o:o + c].set(w2_i)
        b2 = b2.at[:, o:o + c].set(b2_i)
    return dict(w1=w1.astype(jnp.bfloat16), b1=b1,
                w2=w2.astype(jnp.bfloat16), b2=b2,
                c_sizes=c_sizes, offsets=tuple(offsets), out_w=out_w)


def _pallas_forward(x, fused, *, block_rows, weight_pipeline_mode):
    n, d = x.shape
    w1, b1, w2, b2 = fused["w1"], fused["b1"], fused["w2"], fused["b2"]
    hidden3 = w1.shape[1]
    out_w = w2.shape[1]
    grid = (pl.cdiv(n, block_rows),)

    def wspec(shape):
        # Grid-invariant weights: single-buffer when supported (halves their
        # VMEM footprint -- matters on v7x's 64 MiB VMEM for large enc_size).
        if weight_pipeline_mode is None:
            return pl.BlockSpec(shape, lambda i: (0, 0))
        return pl.BlockSpec(shape, lambda i: (0, 0),
                            pipeline_mode=weight_pipeline_mode)

    kernel = functools.partial(_fused_heads_kernel,
                               head_offsets=fused["offsets"],
                               head_sizes=fused["c_sizes"])

    return pl.pallas_call(
        kernel,
        out_shape=jax.ShapeDtypeStruct((n, out_w), jnp.float32),
        grid_spec=pltpu.PrefetchScalarGridSpec(
            num_scalar_prefetch=0,
            grid=grid,
            in_specs=[
                pl.BlockSpec((block_rows, d), lambda i: (i, 0)),   # x row block
                wspec((d, hidden3)),                               # fused W1 (resident)
                wspec((1, hidden3)),                               # fused b1
                wspec((hidden3, out_w)),                           # packed W2
                wspec((1, out_w)),                                 # packed b2 (+ -1e30 pads)
            ],
            out_specs=pl.BlockSpec((block_rows, out_w), lambda i: (i, 0)),
        ),
        compiler_params=pltpu.CompilerParams(
            dimension_semantics=("parallel",),   # grid >= 2 splits across v7x TCs
        ),
        cost_estimate=pl.CostEstimate(
            flops=2 * n * (d * hidden3 + hidden3 * out_w),
            transcendentals=n * out_w,
            bytes_accessed=(n * d * 4 + w1.size * 2 + b1.size * 4
                            + w2.size * 2 + b2.size * 4 + n * out_w * 4),
        ),
    )(x, w1, b1, w2, b2)


def dm_concept_classifier_forward(src_enc_data, fused_params, *, block_rows=256):
    """JAX/Pallas equivalent of DM_Concept_Classifier.forward (eval mode).

    src_enc_data: (N_tokens, concept_src_enc_size) -- PackedSequence.data
    fused_params: output of prepare_fused_params (precomputed once).
    Returns (target_pos_prob, cat_prob, sense_prob); PackedSequence.batch_sizes
    is carried through unchanged by the caller, as in the PyTorch module.
    """
    try:
        out = _pallas_forward(src_enc_data, fused_params, block_rows=block_rows,
                              weight_pipeline_mode=pl.Buffered(1))
    except Exception:
        # This jax build does not accept pipeline_mode on pallas_call BlockSpecs;
        # fall back to default (double) buffering of the grid-invariant weights.
        out = _pallas_forward(src_enc_data, fused_params, block_rows=block_rows,
                              weight_pipeline_mode=None)
    offs, sizes = fused_params["offsets"], fused_params["c_sizes"]
    return tuple(out[:, o:o + c] for o, c in zip(offs, sizes))


def _init_linear(key, fan_in, fan_out, use_bias):
    # deterministic uniform init (PyTorch-style bound 1/sqrt(fan_in))
    kw, kb = jax.random.split(key)
    bound = 1.0 / jnp.sqrt(jnp.float32(fan_in))
    w = jax.random.uniform(kw, (fan_in, fan_out), jnp.float32, -bound, bound)
    if use_bias:
        b = jax.random.uniform(kb, (1, fan_out), jnp.float32, -bound, bound)
    else:
        b = jnp.zeros((1, fan_out), jnp.float32)
    return w, b


def make_params(key, enc_size, hidden, n_target_pos, n_cat_high, n_sense,
                target_pos_bias=True, cat_bias=True, sense_bias=True):
    keys = jax.random.split(key, 6)
    params = {}
    w1, b1 = _init_linear(keys[0], enc_size, hidden, True)
    w2, b2 = _init_linear(keys[1], hidden, n_target_pos, target_pos_bias)
    params["target_pos"] = (w1, b1, w2, b2)
    w1, b1 = _init_linear(keys[2], enc_size, hidden, True)
    w2, b2 = _init_linear(keys[3], hidden, n_cat_high + 1, cat_bias)
    params["cat"] = (w1, b1, w2, b2)
    w1, b1 = _init_linear(keys[4], enc_size, hidden, True)
    w2, b2 = _init_linear(keys[5], hidden, n_sense, sense_bias)
    params["sense"] = (w1, b1, w2, b2)
    return params


def _reference(x, params):
    def head(x, w1, b1, w2, b2):
        h = jnp.maximum(x @ w1 + b1, 0.0)
        return jax.nn.softmax(h @ w2 + b2, axis=-1)
    return (head(x, *params["target_pos"]),
            head(x, *params["cat"]),
            head(x, *params["sense"]))


if __name__ == "__main__":
    key = jax.random.PRNGKey(0)
    k_x, k_p = jax.random.split(key)

    # Small, module-consistent shapes; N_TOKENS chosen so the grid has a ragged
    # final block (tests the no-padding path) and >= 2 steps for megacore.
    N_TOKENS = 300           # total packed tokens (PackedSequence.data rows)
    ENC_SIZE = 32            # concept_src_enc_size
    N_TARGET_POS = 8
    N_CAT_HIGH = 6           # cat head outputs N_CAT_HIGH + 1 = 7 classes
    N_SENSE = 10

    src_enc_data = jax.random.normal(k_x, (N_TOKENS, ENC_SIZE), jnp.float32)
    params = make_params(k_p, ENC_SIZE, HIDDEN, N_TARGET_POS, N_CAT_HIGH, N_SENSE)

    # TODO(synk): Dropout is modeled as identity (inference mode); training-mode
    # stochastic dropout would require pltpu.prng_* inside the kernel.

    fused = prepare_fused_params(params)      # hoisted: done once, not per call
    outs = jax.block_until_ready(
        dm_concept_classifier_forward(src_enc_data, fused, block_rows=256))
    refs = _reference(src_enc_data, params)

    for o, r in zip(outs, refs):
        assert o.shape == r.shape
        # bf16 matmul inputs -> loosened tolerance vs f32 reference
        assert jnp.allclose(o, r, atol=2e-2, rtol=2e-2), "mismatch vs reference"
        # exact reciprocal: each row is a probability distribution
        assert jnp.allclose(jnp.sum(o, axis=-1), 1.0, atol=1e-3)

    print("KERNEL_OK")
</pallas_src>

<mosaic_0001>
module attributes {stable_mosaic.version = 11 : i64} {
  func.func @_fused_heads_kernel(%arg0: i32, %arg1: memref<256x32xf32, #tpu.memory_space<vmem>>, %arg2: memref<32x768xbf16, #tpu.memory_space<vmem>>, %arg3: memref<1x768xf32, #tpu.memory_space<vmem>>, %arg4: memref<768x128xbf16, #tpu.memory_space<vmem>>, %arg5: memref<1x128xf32, #tpu.memory_space<vmem>>, %arg6: memref<256x128xf32, #tpu.memory_space<vmem>>) attributes {dimension_semantics = [#tpu.dimension_semantics<parallel>], iteration_bounds = array<i64: 2>, scalar_prefetch = 0 : i64, scratch_operands = 0 : i64, tpu.core_type = #tpu.core_type<tc>, window_params = [{transform_indices = @transform_0, window_bounds = array<i64: 256, 32>}, {pipeline_mode = #tpu.pipeline_mode<synchronous>, transform_indices = @transform_1, window_bounds = array<i64: 32, 768>}, {pipeline_mode = #tpu.pipeline_mode<synchronous>, transform_indices = @transform_2, window_bounds = array<i64: 1, 768>}, {pipeline_mode = #tpu.pipeline_mode<synchronous>, transform_indices = @transform_3, window_bounds = array<i64: 768, 128>}, {pipeline_mode = #tpu.pipeline_mode<synchronous>, transform_indices = @transform_4, window_bounds = array<i64: 1, 128>}, {transform_indices = @transform_5, window_bounds = array<i64: 256, 128>}]} {
    %c0 = arith.constant 0 : index
    %c0_0 = arith.constant 0 : index
    %0 = vector.load %arg1[%c0, %c0_0] : memref<256x32xf32, #tpu.memory_space<vmem>>, vector<256x32xf32>
    %1 = arith.truncf %0 : vector<256x32xf32> to vector<256x32xbf16>
    %c0_1 = arith.constant 0 : index
    %c0_2 = arith.constant 0 : index
    %2 = vector.load %arg2[%c0_1, %c0_2] : memref<32x768xbf16, #tpu.memory_space<vmem>>, vector<32x768xbf16>
    %cst = arith.constant dense<0.000000e+00> : vector<256x768xf32>
    %3 = tpu.matmul %1, %2, %cst {dimension_numbers = #tpu.dot_dimension_numbers<[1], [0], [0], [1], [0, 0, 1, 1], [], []>} : vector<256x32xbf16>, vector<32x768xbf16>, vector<256x768xf32> -> vector<256x768xf32>
    %c0_3 = arith.constant 0 : index
    %c0_4 = arith.constant 0 : index
    %4 = vector.load %arg3[%c0_3, %c0_4] : memref<1x768xf32, #tpu.memory_space<vmem>>, vector<1x768xf32>
    %5 = vector.broadcast %4 : vector<1x768xf32> to vector<256x768xf32>
    %6 = arith.addf %3, %5 : vector<256x768xf32>
    %cst_5 = arith.constant 0.000000e+00 : f32
    %7 = vector.broadcast %cst_5 : f32 to vector<256x768xf32>
    %8 = arith.maximumf %6, %7 : vector<256x768xf32>
    %9 = arith.truncf %8 : vector<256x768xf32> to vector<256x768xbf16>
    %c0_6 = arith.constant 0 : index
    %c0_7 = arith.constant 0 : index
    %10 = vector.load %arg4[%c0_6, %c0_7] : memref<768x128xbf16, #tpu.memory_space<vmem>>, vector<768x128xbf16>
    %cst_8 = arith.constant dense<0.000000e+00> : vector<256x128xf32>
    %11 = tpu.matmul %9, %10, %cst_8 {dimension_numbers = #tpu.dot_dimension_numbers<[1], [0], [0], [1], [0, 0, 1, 1], [], []>} : vector<256x768xbf16>, vector<768x128xbf16>, vector<256x128xf32> -> vector<256x128xf32>
    %c0_9 = arith.constant 0 : index
    %c0_10 = arith.constant 0 : index
    %12 = vector.load %arg5[%c0_9, %c0_10] : memref<1x128xf32, #tpu.memory_space<vmem>>, vector<1x128xf32>
    %13 = vector.broadcast %12 : vector<1x128xf32> to vector<256x128xf32>
    %14 = arith.addf %11, %13 : vector<256x128xf32>
    %15 = tpu.iota {dimensions = array<i32: 1>} : vector<1x128xi32>
    %c0_i32 = arith.constant 0 : i32
    %16 = vector.broadcast %c0_i32 : i32 to vector<1x128xi32>
    %17 = arith.cmpi sge, %15, %16 : vector<1x128xi32>
    %c8_i32 = arith.constant 8 : i32
    %18 = vector.broadcast %c8_i32 : i32 to vector<1x128xi32>
    %19 = arith.cmpi slt, %15, %18 : vector<1x128xi32>
    %20 = arith.andi %17, %19 : vector<1x128xi1>
    %c8_i32_11 = arith.constant 8 : i32
    %21 = vector.broadcast %c8_i32_11 : i32 to vector<1x128xi32>
    %22 = arith.cmpi sge, %15, %21 : vector<1x128xi32>
    %c15_i32 = arith.constant 15 : i32
    %23 = vector.broadcast %c15_i32 : i32 to vector<1x128xi32>
    %24 = arith.cmpi slt, %15, %23 : vector<1x128xi32>
    %25 = arith.andi %22, %24 : vector<1x128xi1>
    %c15_i32_12 = arith.constant 15 : i32
    %26 = vector.broadcast %c15_i32_12 : i32 to vector<1x128xi32>
    %27 = arith.cmpi sge, %15, %26 : vector<1x128xi32>
    %c25_i32 = arith.constant 25 : i32
    %28 = vector.broadcast %c25_i32 : i32 to vector<1x128xi32>
    %29 = arith.cmpi slt, %15, %28 : vector<1x128xi32>
    %30 = arith.andi %27, %29 : vector<1x128xi1>
    %cst_13 = arith.constant 0.000000e+00 : f32
    %31 = vector.broadcast %cst_13 : f32 to vector<256x128xf32>
    %cst_14 = arith.constant 0xFF800000 : f32
    %32 = vector.shape_cast %20 : vector<1x128xi1> to vector<1x128xi1>
    %33 = vector.broadcast %32 : vector<1x128xi1> to vector<256x128xi1>
    %34 = vector.broadcast %cst_14 : f32 to vector<256x128xf32>
    %35 = arith.select %33, %14, %34 : vector<256x128xi1>, vector<256x128xf32>
    %cst_15 = arith.constant dense<0xFF800000> : vector<256xf32>
    %36 = vector.multi_reduction <maximumf>, %35, %cst_15 [1] : vector<256x128xf32> to vector<256xf32>
    %37 = vector.shape_cast %36 : vector<256xf32> to vector<256x1xf32>
    %38 = vector.shape_cast %20 : vector<1x128xi1> to vector<1x128xi1>
    %39 = vector.broadcast %38 : vector<1x128xi1> to vector<256x128xi1>
    %40 = vector.shape_cast %37 : vector<256x1xf32> to vector<256x1xf32>
    %41 = vector.broadcast %40 : vector<256x1xf32> to vector<256x128xf32>
    %42 = arith.select %39, %41, %31 : vector<256x128xi1>, vector<256x128xf32>
    %cst_16 = arith.constant 0xFF800000 : f32
    %43 = vector.shape_cast %25 : vector<1x128xi1> to vector<1x128xi1>
    %44 = vector.broadcast %43 : vector<1x128xi1> to vector<256x128xi1>
    %45 = vector.broadcast %cst_16 : f32 to vector<256x128xf32>
    %46 = arith.select %44, %14, %45 : vector<256x128xi1>, vector<256x128xf32>
    %cst_17 = arith.constant dense<0xFF800000> : vector<256xf32>
    %47 = vector.multi_reduction <maximumf>, %46, %cst_17 [1] : vector<256x128xf32> to vector<256xf32>
    %48 = vector.shape_cast %47 : vector<256xf32> to vector<256x1xf32>
    %49 = vector.shape_cast %25 : vector<1x128xi1> to vector<1x128xi1>
    %50 = vector.broadcast %49 : vector<1x128xi1> to vector<256x128xi1>
    %51 = vector.shape_cast %48 : vector<256x1xf32> to vector<256x1xf32>
    %52 = vector.broadcast %51 : vector<256x1xf32> to vector<256x128xf32>
    %53 = arith.select %50, %52, %42 : vector<256x128xi1>, vector<256x128xf32>
    %cst_18 = arith.constant 0xFF800000 : f32
    %54 = vector.shape_cast %30 : vector<1x128xi1> to vector<1x128xi1>
    %55 = vector.broadcast %54 : vector<1x128xi1> to vector<256x128xi1>
    %56 = vector.broadcast %cst_18 : f32 to vector<256x128xf32>
    %57 = arith.select %55, %14, %56 : vector<256x128xi1>, vector<256x128xf32>
    %cst_19 = arith.constant dense<0xFF800000> : vector<256xf32>
    %58 = vector.multi_reduction <maximumf>, %57, %cst_19 [1] : vector<256x128xf32> to vector<256xf32>
    %59 = vector.shape_cast %58 : vector<256xf32> to vector<256x1xf32>
    %60 = vector.shape_cast %30 : vector<1x128xi1> to vector<1x128xi1>
    %61 = vector.broadcast %60 : vector<1x128xi1> to vector<256x128xi1>
    %62 = vector.shape_cast %59 : vector<256x1xf32> to vector<256x1xf32>
    %63 = vector.broadcast %62 : vector<256x1xf32> to vector<256x128xf32>
    %64 = arith.select %61, %63, %53 : vector<256x128xi1>, vector<256x128xf32>
    %65 = arith.subf %14, %64 : vector<256x128xf32>
    %66 = math.exp %65 : vector<256x128xf32>
    %cst_20 = arith.constant 0.000000e+00 : f32
    %67 = vector.broadcast %cst_20 : f32 to vector<256x128xf32>
    %cst_21 = arith.constant 0.000000e+00 : f32
    %68 = vector.shape_cast %20 : vector<1x128xi1> to vector<1x128xi1>
    %69 = vector.broadcast %68 : vector<1x128xi1> to vector<256x128xi1>
    %70 = vector.broadcast %cst_21 : f32 to vector<256x128xf32>
    %71 = arith.select %69, %66, %70 : vector<256x128xi1>, vector<256x128xf32>
    %cst_22 = arith.constant dense<0.000000e+00> : vector<256xf32>
    %72 = vector.multi_reduction <add>, %71, %cst_22 [1] : vector<256x128xf32> to vector<256xf32>
    %73 = vector.shape_cast %72 : vector<256xf32> to vector<256x1xf32>
    %74 = tpu.reciprocal %73 : vector<256x1xf32> -> vector<256x1xf32>
    %75 = vector.shape_cast %20 : vector<1x128xi1> to vector<1x128xi1>
    %76 = vector.broadcast %75 : vector<1x128xi1> to vector<256x128xi1>
    %77 = vector.shape_cast %74 : vector<256x1xf32> to vector<256x1xf32>
    %78 = vector.broadcast %77 : vector<256x1xf32> to vector<256x128xf32>
    %79 = arith.select %76, %78, %67 : vector<256x128xi1>, vector<256x128xf32>
    %cst_23 = arith.constant 0.000000e+00 : f32
    %80 = vector.shape_cast %25 : vector<1x128xi1> to vector<1x128xi1>
    %81 = vector.broadcast %80 : vector<1x128xi1> to vector<256x128xi1>
    %82 = vector.broadcast %cst_23 : f32 to vector<256x128xf32>
    %83 = arith.select %81, %66, %82 : vector<256x128xi1>, vector<256x128xf32>
    %cst_24 = arith.constant dense<0.000000e+00> : vector<256xf32>
    %84 = vector.multi_reduction <add>, %83, %cst_24 [1] : vector<256x128xf32> to vector<256xf32>
    %85 = vector.shape_cast %84 : vector<256xf32> to vector<256x1xf32>
    %86 = tpu.reciprocal %85 : vector<256x1xf32> -> vector<256x1xf32>
    %87 = vector.shape_cast %25 : vector<1x128xi1> to vector<1x128xi1>
    %88 = vector.broadcast %87 : vector<1x128xi1> to vector<256x128xi1>
    %89 = vector.shape_cast %86 : vector<256x1xf32> to vector<256x1xf32>
    %90 = vector.broadcast %89 : vector<256x1xf32> to vector<256x128xf32>
    %91 = arith.select %88, %90, %79 : vector<256x128xi1>, vector<256x128xf32>
    %cst_25 = arith.constant 0.000000e+00 : f32
    %92 = vector.shape_cast %30 : vector<1x128xi1> to vector<1x128xi1>
    %93 = vector.broadcast %92 : vector<1x128xi1> to vector<256x128xi1>
    %94 = vector.broadcast %cst_25 : f32 to vector<256x128xf32>
    %95 = arith.select %93, %66, %94 : vector<256x128xi1>, vector<256x128xf32>
    %cst_26 = arith.constant dense<0.000000e+00> : vector<256xf32>
    %96 = vector.multi_reduction <add>, %95, %cst_26 [1] : vector<256x128xf32> to vector<256xf32>
    %97 = vector.shape_cast %96 : vector<256xf32> to vector<256x1xf32>
    %98 = tpu.reciprocal %97 : vector<256x1xf32> -> vector<256x1xf32>
    %99 = vector.shape_cast %30 : vector<1x128xi1> to vector<1x128xi1>
    %100 = vector.broadcast %99 : vector<1x128xi1> to vector<256x128xi1>
    %101 = vector.shape_cast %98 : vector<256x1xf32> to vector<256x1xf32>
    %102 = vector.broadcast %101 : vector<256x1xf32> to vector<256x128xf32>
    %103 = arith.select %100, %102, %91 : vector<256x128xi1>, vector<256x128xf32>
    %104 = arith.mulf %66, %103 : vector<256x128xf32>
    %c0_27 = arith.constant 0 : index
    %c0_28 = arith.constant 0 : index
    %105 = vector.load %arg6[%c0_27, %c0_28] : memref<256x128xf32, #tpu.memory_space<vmem>>, vector<256x128xf32>
    tpu.vector_store %arg6[%c0_27, %c0_28], %104 {strides = array<i32>} : memref<256x128xf32, #tpu.memory_space<vmem>>, vector<256x128xf32>,
    return
  }
  func.func @transform_0(%arg0: i32) -> (i32, i32) {
    %c0_i32 = arith.constant 0 : i32
    %c0_i32_0 = arith.constant 0 : i32
    return %arg0, %c0_i32 : i32, i32
  }
  func.func @transform_1(%arg0: i32) -> (i32, i32) {
    %c0_i32 = arith.constant 0 : i32
    %c0_i32_0 = arith.constant 0 : i32
    %c0_i32_1 = arith.constant 0 : i32
    return %c0_i32, %c0_i32_0 : i32, i32
  }
  func.func @transform_2(%arg0: i32) -> (i32, i32) {
    %c0_i32 = arith.constant 0 : i32
    %c0_i32_0 = arith.constant 0 : i32
    %c0_i32_1 = arith.constant 0 : i32
    return %c0_i32, %c0_i32_0 : i32, i32
  }
  func.func @transform_3(%arg0: i32) -> (i32, i32) {
    %c0_i32 = arith.constant 0 : i32
    %c0_i32_0 = arith.constant 0 : i32
    %c0_i32_1 = arith.constant 0 : i32
    return %c0_i32, %c0_i32_0 : i32, i32
  }
  func.func @transform_4(%arg0: i32) -> (i32, i32) {
    %c0_i32 = arith.constant 0 : i32
    %c0_i32_0 = arith.constant 0 : i32
    %c0_i32_1 = arith.constant 0 : i32
    return %c0_i32, %c0_i32_0 : i32, i32
  }
  func.func @transform_5(%arg0: i32) -> (i32, i32) {
    %c0_i32 = arith.constant 0 : i32
    %c0_i32_0 = arith.constant 0 : i32
    return %arg0, %c0_i32 : i32, i32
  }
}

module attributes {stable_mosaic.version = 11 : i64} {
  func.func @_fused_heads_kernel(%arg0: i32, %arg1: memref<256x32xf32, #tpu.memory_space<vmem>>, %arg2: memref<32x768xbf16, #tpu.memory_space<vmem>>, %arg3: memref<1x768xf32, #tpu.memory_space<vmem>>, %arg4: memref<768x128xbf16, #tpu.memory_space<vmem>>, %arg5: memref<1x128xf32, #tpu.memory_space<vmem>>, %arg6: memref<256x128xf32, #tpu.memory_space<vmem>>) attributes {dimension_semantics = [#tpu.dimension_semantics<parallel>], iteration_bounds = array<i64: 2>, scalar_prefetch = 0 : i64, scratch_operands = 0 : i64, tpu.core_type = #tpu.core_type<tc>, window_params = [{transform_indices = @transform_0, window_bounds = array<i64: 256, 32>}, {pipeline_mode = #tpu.pipeline_mode<synchronous>, transform_indices = @transform_1, window_bounds = array<i64: 32, 768>}, {pipeline_mode = #tpu.pipeline_mode<synchronous>, transform_indices = @transform_2, window_bounds = array<i64: 1, 768>}, {pipeline_mode = #tpu.pipeline_mode<synchronous>, transform_indices = @transform_3, window_bounds = array<i64: 768, 128>}, {pipeline_mode = #tpu.pipeline_mode<synchronous>, transform_indices = @transform_4, window_bounds = array<i64: 1, 128>}, {transform_indices = @transform_5, window_bounds = array<i64: 256, 128>}]} {
    %c0 = arith.constant 0 : index
    %c0_0 = arith.constant 0 : index
    %0 = vector.load %arg1[%c0, %c0_0] : memref<256x32xf32, #tpu.memory_space<vmem>>, vector<256x32xf32>
    %1 = arith.truncf %0 : vector<256x32xf32> to vector<256x32xbf16>
    %c0_1 = arith.constant 0 : index
    %c0_2 = arith.constant 0 : index
    %2 = vector.load %arg2[%c0_1, %c0_2] : memref<32x768xbf16, #tpu.memory_space<vmem>>, vector<32x768xbf16>
    %cst = arith.constant dense<0.000000e+00> : vector<256x768xf32>
    %3 = tpu.matmul %1, %2, %cst {dimension_numbers = #tpu.dot_dimension_numbers<[1], [0], [0], [1], [0, 0, 1, 1], [], []>} : vector<256x32xbf16>, vector<32x768xbf16>, vector<256x768xf32> -> vector<256x768xf32>
    %c0_3 = arith.constant 0 : index
    %c0_4 = arith.constant 0 : index
    %4 = vector.load %arg3[%c0_3, %c0_4] : memref<1x768xf32, #tpu.memory_space<vmem>>, vector<1x768xf32>
    %5 = vector.broadcast %4 : vector<1x768xf32> to vector<256x768xf32>
    %6 = arith.addf %3, %5 : vector<256x768xf32>
    %cst_5 = arith.constant 0.000000e+00 : f32
    %7 = vector.broadcast %cst_5 : f32 to vector<256x768xf32>
    %8 = arith.maximumf %6, %7 : vector<256x768xf32>
    %9 = arith.truncf %8 : vector<256x768xf32> to vector<256x768xbf16>
    %c0_6 = arith.constant 0 : index
    %c0_7 = arith.constant 0 : index
    %10 = vector.load %arg4[%c0_6, %c0_7] : memref<768x128xbf16, #tpu.memory_space<vmem>>, vector<768x128xbf16>
    %cst_8 = arith.constant dense<0.000000e+00> : vector<256x128xf32>
    %11 = tpu.matmul %9, %10, %cst_8 {dimension_numbers = #tpu.dot_dimension_numbers<[1], [0], [0], [1], [0, 0, 1, 1], [], []>} : vector<256x768xbf16>, vector<768x128xbf16>, vector<256x128xf32> -> vector<256x128xf32>
    %c0_9 = arith.constant 0 : index
    %c0_10 = arith.constant 0 : index
    %12 = vector.load %arg5[%c0_9, %c0_10] : memref<1x128xf32, #tpu.memory_space<vmem>>, vector<1x128xf32>
    %13 = vector.broadcast %12 : vector<1x128xf32> to vector<256x128xf32>
    %14 = arith.addf %11, %13 : vector<256x128xf32>
    %15 = tpu.iota {dimensions = array<i32: 1>} : vector<1x128xi32>
    %c0_i32 = arith.constant 0 : i32
    %16 = vector.broadcast %c0_i32 : i32 to vector<1x128xi32>
    %17 = arith.cmpi sge, %15, %16 : vector<1x128xi32>
    %c8_i32 = arith.constant 8 : i32
    %18 = vector.broadcast %c8_i32 : i32 to vector<1x128xi32>
    %19 = arith.cmpi slt, %15, %18 : vector<1x128xi32>
    %20 = arith.andi %17, %19 : vector<1x128xi1>
    %c8_i32_11 = arith.constant 8 : i32
    %21 = vector.broadcast %c8_i32_11 : i32 to vector<1x128xi32>
    %22 = arith.cmpi sge, %15, %21 : vector<1x128xi32>
    %c15_i32 = arith.constant 15 : i32
    %23 = vector.broadcast %c15_i32 : i32 to vector<1x128xi32>
    %24 = arith.cmpi slt, %15, %23 : vector<1x128xi32>
    %25 = arith.andi %22, %24 : vector<1x128xi1>
    %c15_i32_12 = arith.constant 15 : i32
    %26 = vector.broadcast %c15_i32_12 : i32 to vector<1x128xi32>
    %27 = arith.cmpi sge, %15, %26 : vector<1x128xi32>
    %c25_i32 = arith.constant 25 : i32
    %28 = vector.broadcast %c25_i32 : i32 to vector<1x128xi32>
    %29 = arith.cmpi slt, %15, %28 : vector<1x128xi32>
    %30 = arith.andi %27, %29 : vector<1x128xi1>
    %cst_13 = arith.constant 0.000000e+00 : f32
    %31 = vector.broadcast %cst_13 : f32 to vector<256x128xf32>
    %cst_14 = arith.constant 0xFF800000 : f32
    %32 = vector.shape_cast %20 : vector<1x128xi1> to vector<1x128xi1>
    %33 = vector.broadcast %32 : vector<1x128xi1> to vector<256x128xi1>
    %34 = vector.broadcast %cst_14 : f32 to vector<256x128xf32>
    %35 = arith.select %33, %14, %34 : vector<256x128xi1>, vector<256x128xf32>
    %cst_15 = arith.constant dense<0xFF800000> : vector<256xf32>
    %36 = vector.multi_reduction <maximumf>, %35, %cst_15 [1] : vector<256x128xf32> to vector<256xf32>
    %37 = vector.shape_cast %36 : vector<256xf32> to vector<256x1xf32>
    %38 = vector.shape_cast %20 : vector<1x128xi1> to vector<1x128xi1>
    %39 = vector.broadcast %38 : vector<1x128xi1> to vector<256x128xi1>
    %40 = vector.shape_cast %37 : vector<256x1xf32> to vector<256x1xf32>
    %41 = vector.broadcast %40 : vector<256x1xf32> to vector<256x128xf32>
    %42 = arith.select %39, %41, %31 : vector<256x128xi1>, vector<256x128xf32>
    %cst_16 = arith.constant 0xFF800000 : f32
    %43 = vector.shape_cast %25 : vector<1x128xi1> to vector<1x128xi1>
    %44 = vector.broadcast %43 : vector<1x128xi1> to vector<256x128xi1>
    %45 = vector.broadcast %cst_16 : f32 to vector<256x128xf32>
    %46 = arith.select %44, %14, %45 : vector<256x128xi1>, vector<256x128xf32>
    %cst_17 = arith.constant dense<0xFF800000> : vector<256xf32>
    %47 = vector.multi_reduction <maximumf>, %46, %cst_17 [1] : vector<256x128xf32> to vector<256xf32>
    %48 = vector.shape_cast %47 : vector<256xf32> to vector<256x1xf32>
    %49 = vector.shape_cast %25 : vector<1x128xi1> to vector<1x128xi1>
    %50 = vector.broadcast %49 : vector<1x128xi1> to vector<256x128xi1>
    %51 = vector.shape_cast %48 : vector<256x1xf32> to vector<256x1xf32>
    %52 = vector.broadcast %51 : vector<256x1xf32> to vector<256x128xf32>
    %53 = arith.select %50, %52, %42 : vector<256x128xi1>, vector<256x128xf32>
    %cst_18 = arith.constant 0xFF800000 : f32
    %54 = vector.shape_cast %30 : vector<1x128xi1> to vector<1x128xi1>
    %55 = vector.broadcast %54 : vector<1x128xi1> to vector<256x128xi1>
    %56 = vector.broadcast %cst_18 : f32 to vector<256x128xf32>
    %57 = arith.select %55, %14, %56 : vector<256x128xi1>, vector<256x128xf32>
    %cst_19 = arith.constant dense<0xFF800000> : vector<256xf32>
    %58 = vector.multi_reduction <maximumf>, %57, %cst_19 [1] : vector<256x128xf32> to vector<256xf32>
    %59 = vector.shape_cast %58 : vector<256xf32> to vector<256x1xf32>
    %60 = vector.shape_cast %30 : vector<1x128xi1> to vector<1x128xi1>
    %61 = vector.broadcast %60 : vector<1x128xi1> to vector<256x128xi1>
    %62 = vector.shape_cast %59 : vector<256x1xf32> to vector<256x1xf32>
    %63 = vector.broadcast %62 : vector<256x1xf32> to vector<256x128xf32>
    %64 = arith.select %61, %63, %53 : vector<256x128xi1>, vector<256x128xf32>
    %65 = arith.subf %14, %64 : vector<256x128xf32>
    %66 = math.exp %65 : vector<256x128xf32>
    %cst_20 = arith.constant 0.000000e+00 : f32
    %67 = vector.broadcast %cst_20 : f32 to vector<256x128xf32>
    %cst_21 = arith.constant 0.000000e+00 : f32
    %68 = vector.shape_cast %20 : vector<1x128xi1> to vector<1x128xi1>
    %69 = vector.broadcast %68 : vector<1x128xi1> to vector<256x128xi1>
    %70 = vector.broadcast %cst_21 : f32 to vector<256x128xf32>
    %71 = arith.select %69, %66, %70 : vector<256x128xi1>, vector<256x128xf32>
    %cst_22 = arith.constant dense<0.000000e+00> : vector<256xf32>
    %72 = vector.multi_reduction <add>, %71, %cst_22 [1] : vector<256x128xf32> to vector<256xf32>
    %73 = vector.shape_cast %72 : vector<256xf32> to vector<256x1xf32>
    %74 = tpu.reciprocal %73 : vector<256x1xf32> -> vector<256x1xf32>
    %75 = vector.shape_cast %20 : vector<1x128xi1> to vector<1x128xi1>
    %76 = vector.broadcast %75 : vector<1x128xi1> to vector<256x128xi1>
    %77 = vector.shape_cast %74 : vector<256x1xf32> to vector<256x1xf32>
    %78 = vector.broadcast %77 : vector<256x1xf32> to vector<256x128xf32>
    %79 = arith.select %76, %78, %67 : vector<256x128xi1>, vector<256x128xf32>
    %cst_23 = arith.constant 0.000000e+00 : f32
    %80 = vector.shape_cast %25 : vector<1x128xi1> to vector<1x128xi1>
    %81 = vector.broadcast %80 : vector<1x128xi1> to vector<256x128xi1>
    %82 = vector.broadcast %cst_23 : f32 to vector<256x128xf32>
    %83 = arith.select %81, %66, %82 : vector<256x128xi1>, vector<256x128xf32>
    %cst_24 = arith.constant dense<0.000000e+00> : vector<256xf32>
    %84 = vector.multi_reduction <add>, %83, %cst_24 [1] : vector<256x128xf32> to vector<256xf32>
    %85 = vector.shape_cast %84 : vector<256xf32> to vector<256x1xf32>
    %86 = tpu.reciprocal %85 : vector<256x1xf32> -> vector<256x1xf32>
    %87 = vector.shape_cast %25 : vector<1x128xi1> to vector<1x128xi1>
    %88 = vector.broadcast %87 : vector<1x128xi1> to vector<256x128xi1>
    %89 = vector.shape_cast %86 : vector<256x1xf32> to vector<256x1xf32>
    %90 = vector.broadcast %89 : vector<256x1xf32> to vector<256x128xf32>
    %91 = arith.select %88, %90, %79 : vector<256x128xi1>, vector<256x128xf32>
    %cst_25 = arith.constant 0.000000e+00 : f32
    %92 = vector.shape_cast %30 : vector<1x128xi1> to vector<1x128xi1>
    %93 = vector.broadcast %92 : vector<1x128xi1> to vector<256x128xi1>
    %94 = vector.broadcast %cst_25 : f32 to vector<256x128xf32>
    %95 = arith.select %93, %66, %94 : vector<256x128xi1>, vector<256x128xf32>
    %cst_26 = arith.constant dense<0.000000e+00> : vector<256xf32>
    %96 = vector.multi_reduction <add>, %95, %cst_26 [1] : vector<256x128xf32> to vector<256xf32>
    %97 = vector.shape_cast %96 : vector<256xf32> to vector<256x1xf32>
    %98 = tpu.reciprocal %97 : vector<256x1xf32> -> vector<256x1xf32>
    %99 = vector.shape_cast %30 : vector<1x128xi1> to vector<1x128xi1>
    %100 = vector.broadcast %99 : vector<1x128xi1> to vector<256x128xi1>
    %101 = vector.shape_cast %98 : vector<256x1xf32> to vector<256x1xf32>
    %102 = vector.broadcast %101 : vector<256x1xf32> to vector<256x128xf32>
    %103 = arith.select %100, %102, %91 : vector<256x128xi1>, vector<256x128xf32>
    %104 = arith.mulf %66, %103 : vector<256x128xf32>
    %c0_27 = arith.constant 0 : index
    %c0_28 = arith.constant 0 : index
    %105 = vector.load %arg6[%c0_27, %c0_28] : memref<256x128xf32, #tpu.memory_space<vmem>>, vector<256x128xf32>
    tpu.vector_store %arg6[%c0_27, %c0_28], %104 {strides = array<i32>} : memref<256x128xf32, #tpu.memory_space<vmem>>, vector<256x128xf32>,
    return
  }
  func.func @transform_0(%arg0: i32) -> (i32, i32) {
    %c0_i32 = arith.constant 0 : i32
    %c0_i32_0 = arith.constant 0 : i32
    return %arg0, %c0_i32 : i32, i32
  }
  func.func @transform_1(%arg0: i32) -> (i32, i32) {
    %c0_i32 = arith.constant 0 : i32
    %c0_i32_0 = arith.constant 0 : i32
    %c0_i32_1 = arith.constant 0 : i32
    return %c0_i32, %c0_i32_0 : i32, i32
  }
  func.func @transform_2(%arg0: i32) -> (i32, i32) {
    %c0_i32 = arith.constant 0 : i32
    %c0_i32_0 = arith.constant 0 : i32
    %c0_i32_1 = arith.constant 0 : i32
    return %c0_i32, %c0_i32_0 : i32, i32
  }
  func.func @transform_3(%arg0: i32) -> (i32, i32) {
    %c0_i32 = arith.constant 0 : i32
    %c0_i32_0 = arith.constant 0 : i32
    %c0_i32_1 = arith.constant 0 : i32
    return %c0_i32, %c0_i32_0 : i32, i32
  }
  func.func @transform_4(%arg0: i32) -> (i32, i32) {
    %c0_i32 = arith.constant 0 : i32
    %c0_i32_0 = arith.constant 0 : i32
    %c0_i32_1 = arith.constant 0 : i32
    return %c0_i32, %c0_i32_0 : i32, i32
  }
  func.func @transform_5(%arg0: i32) -> (i32, i32) {
    %c0_i32 = arith.constant 0 : i32
    %c0_i32_0 = arith.constant 0 : i32
    return %arg0, %c0_i32 : i32, i32
  }
}

</mosaic_0001>

<llo_original>
// kernel: tpu_custom_call.1
$region0: #{tpu_custom_call.1}
  #allocation0 [shape = 'u32[]', space=smem, size = 0x4, offset = 0x4, fixed_abs, tag = 'smem constant byte address 0x4 - core index']
  #allocation1 [shape = 'u32[144,128]{1,0:T(1,128)}', space=vmem, size = 0x12000, scoped, tag = 'internal scratch']
  %s0 = inlined_call_operand.vmem [shape: f32[300,32], index: 0, kind: input, shape index: {}]
  %s1 = inlined_call_operand.hbm [shape: bf16[32,768], index: 1, kind: input, shape index: {}]
  %s2 = inlined_call_operand.vmem [shape: f32[1,768], index: 2, kind: input, shape index: {}]
  %s3 = inlined_call_operand.vmem [shape: bf16[768,128], index: 3, kind: input, shape index: {}]
  %s4 = inlined_call_operand.vmem [shape: f32[1,128], index: 4, kind: input, shape index: {}]
  %s5 = inlined_call_operand.hbm [shape: f32[300,128], index: 5, kind: output, shape index: {}]
  %s6 = sld [smem:[#allocation0]]
  $region57: #{tpu_custom_call.1} parent=0
    _
  %s8 = ssub.s32 1, %s6
  %s9 = scalar_select 0, %s8, %s6
  $region1: #{tpu_custom_call.1} parent=0
    #allocation2 [shape = 'u8[49152]{0}', space=vmem, size = 0xc000, scoped, tag = 'input window, operand 1, single buffered']
    #allocation3 [shape = 's32[2]{0}', space=sflag, size = 0x8, scoped, tag = 'scoped memory for tpu_custom_call.1']
    #allocation4 [shape = 's32[2]{0}', space=sflag, size = 0x8, scoped, tag = 'scoped memory for tpu_custom_call.1']
    #allocation5 [shape = 'u8[262144]{0}', space=vmem, size = 0x40000, scoped, tag = 'output window, operand 0']
    %10 = vsyncpa [#allocation3], 0
    %11 = vsyncpa [#allocation4], 0
    %s12 = scalar_lea.sflag [#allocation4], 1
    %13 = vsyncpa %s12, 0
    loop: start=0, step=1, limit=4
    $region2: #{tpu_custom_call.1} parent=1 // loop_pre_header
      _
    $region3: #{tpu_custom_call.1} parent=1 // loop_header
      %s15 = sphi 0, %s19
      %p16 = scmp.ge.s32.totalorder %s15, 4
      %s25 = sphi 0, %s27
      %s28 = sphi 0, %s25
      %s29 = sphi 0, %s28
      %s45 = sphi 0, %s29
      %s49 = sphi 0, %s49
      %s51 = sphi 0, %s49
      %s52 = sphi 0, %s51
      %s66 = sphi 0, %s52
      %s70 = sphi 0, %s70
      %s72 = sphi 0, %s70
      %s73 = sphi 0, %s72
      %s87 = sphi 0, %s73
      %s91 = sphi 0, %s91
      %s93 = sphi 0, %s91
      %s94 = sphi 0, %s93
      %s108 = sphi 0, %s94
      %s112 = sphi 0, %s112
      %s114 = sphi 0, %s112
      %s115 = sphi 0, %s114
      %s129 = sphi 0, %s115
      %s135 = sphi 0, %s137
      %s138 = sphi 0, %s135
      %s139 = sphi 0, %s138
      %s155 = sphi 0, %s139
    $region4: #{tpu_custom_call.1} parent=1 // loop_header_branch
      %18 = sbr.rel (%p16) target = $region8
    $region5: #{tpu_custom_call.1} parent=1 // loop_body
      %s20 = ssub.s32 %s15, 1
      %s21 = ssub.s32 %s15, 2
      %s22 = sadd.s32 %s15, 1
      %s23 = ssub.s32 %s15, %s22
      %p24 = scmp.eq.s32.totalorder %s23, 0
      %s26 = sadd.s32 %s25, 1
      %s27 = scalar_select %p24, %s25, %s26
      %p30 = pneg %p24
      %p31 = scmp.eq.s32.totalorder %s15, 1
      %p32 = por %p30, %p31
      %p33 = scmp.ne.s32.totalorder %s25, %s28
      %p34 = scmp.eq.s32.totalorder %s15, 0
      %p35 = por %p33, %p34
      %p36 = scmp.ne.s32.totalorder %s25, %s28
      %p37 = scmp.eq.s32.totalorder %s20, 1
      %p38 = por %p36, %p37
      %p39 = scmp.ne.s32.totalorder %s28, %s29
      %p40 = scmp.eq.s32.totalorder %s20, 0
      %p41 = por %p39, %p40
      %p42 = scmp.ne.s32.totalorder %s28, %s29
      %p43 = scmp.eq.s32.totalorder %s21, 1
      %p44 = por %p42, %p43
      %p46 = scmp.ne.s32.totalorder %s29, %s45
      %p47 = scmp.eq.s32.totalorder %s21, 0
      %p48 = por %p46, %p47
      %s50 = sadd.s32 %s49, 1
      %p53 = scmp.eq.s32.totalorder %s15, 1
      %p54 = scmp.ne.s32.totalorder %s49, %s51
      %p55 = scmp.eq.s32.totalorder %s15, 0
      %p56 = por %p54, %p55
      %p57 = scmp.ne.s32.totalorder %s49, %s51
      %p58 = scmp.eq.s32.totalorder %s20, 1
      %p59 = por %p57, %p58
      %p60 = scmp.ne.s32.totalorder %s51, %s52
      %p61 = scmp.eq.s32.totalorder %s20, 0
      %p62 = por %p60, %p61
      %p63 = scmp.ne.s32.totalorder %s51, %s52
      %p64 = scmp.eq.s32.totalorder %s21, 1
      %p65 = por %p63, %p64
      %p67 = scmp.ne.s32.totalorder %s52, %s66
      %p68 = scmp.eq.s32.totalorder %s21, 0
      %p69 = por %p67, %p68
      %s71 = sadd.s32 %s70, 1
      %p74 = scmp.eq.s32.totalorder %s15, 1
      %p75 = scmp.ne.s32.totalorder %s70, %s72
      %p76 = scmp.eq.s32.totalorder %s15, 0
      %p77 = por %p75, %p76
      %p78 = scmp.ne.s32.totalorder %s70, %s72
      %p79 = scmp.eq.s32.totalorder %s20, 1
      %p80 = por %p78, %p79
      %p81 = scmp.ne.s32.totalorder %s72, %s73
      %p82 = scmp.eq.s32.totalorder %s20, 0
      %p83 = por %p81, %p82
      %p84 = scmp.ne.s32.totalorder %s72, %s73
      %p85 = scmp.eq.s32.totalorder %s21, 1
      %p86 = por %p84, %p85
      %p88 = scmp.ne.s32.totalorder %s73, %s87
      %p89 = scmp.eq.s32.totalorder %s21, 0
      %p90 = por %p88, %p89
      %s92 = sadd.s32 %s91, 1
      %p95 = scmp.eq.s32.totalorder %s15, 1
      %p96 = scmp.ne.s32.totalorder %s91, %s93
      %p97 = scmp.eq.s32.totalorder %s15, 0
      %p98 = por %p96, %p97
      %p99 = scmp.ne.s32.totalorder %s91, %s93
      %p100 = scmp.eq.s32.totalorder %s20, 1
      %p101 = por %p99, %p100
      %p102 = scmp.ne.s32.totalorder %s93, %s94
      %p103 = scmp.eq.s32.totalorder %s20, 0
      %p104 = por %p102, %p103
      %p105 = scmp.ne.s32.totalorder %s93, %s94
      %p106 = scmp.eq.s32.totalorder %s21, 1
      %p107 = por %p105, %p106
      %p109 = scmp.ne.s32.totalorder %s94, %s108
      %p110 = scmp.eq.s32.totalorder %s21, 0
      %p111 = por %p109, %p110
      %s113 = sadd.s32 %s112, 1
      %p116 = scmp.eq.s32.totalorder %s15, 1
      %p117 = scmp.ne.s32.totalorder %s112, %s114
      %p118 = scmp.eq.s32.totalorder %s15, 0
      %p119 = por %p117, %p118
      %p120 = scmp.ne.s32.totalorder %s112, %s114
      %p121 = scmp.eq.s32.totalorder %s20, 1
      %p122 = por %p120, %p121
      %p123 = scmp.ne.s32.totalorder %s114, %s115
      %p124 = scmp.eq.s32.totalorder %s20, 0
      %p125 = por %p123, %p124
      %p126 = scmp.ne.s32.totalorder %s114, %s115
      %p127 = scmp.eq.s32.totalorder %s21, 1
      %p128 = por %p126, %p127
      %p130 = scmp.ne.s32.totalorder %s115, %s129
      %p131 = scmp.eq.s32.totalorder %s21, 0
      %p132 = por %p130, %p131
      %s133 = ssub.s32 %s15, %s22
      %p134 = scmp.eq.s32.totalorder %s133, 0
      %s136 = sadd.s32 %s135, 1
      %s137 = scalar_select %p134, %s135, %s136
      %p140 = pneg %p134
      %p141 = scmp.eq.s32.totalorder %s15, 1
      %p142 = por %p140, %p141
      %p143 = scmp.ne.s32.totalorder %s135, %s138
      %p144 = scmp.eq.s32.totalorder %s15, 0
      %p145 = por %p143, %p144
      %p146 = scmp.ne.s32.totalorder %s135, %s138
      %p147 = scmp.eq.s32.totalorder %s20, 1
      %p148 = por %p146, %p147
      %p149 = scmp.ne.s32.totalorder %s138, %s139
      %p150 = scmp.eq.s32.totalorder %s20, 0
      %p151 = por %p149, %p150
      %p152 = scmp.ne.s32.totalorder %s138, %s139
      %p153 = scmp.eq.s32.totalorder %s21, 1
      %p154 = por %p152, %p153
      %p156 = scmp.ne.s32.totalorder %s139, %s155
      %p157 = scmp.eq.s32.totalorder %s21, 0
      %p158 = por %p156, %p157
      %p159 = scmp.le.s32.totalorder 1, %s15
      %p160 = scmp.lt.s32.totalorder %s15, 3
      %p161 = pnand %p159, %p160
      %p162 = pneg %p161
      // Predicated region
      $region9: #{tpu_custom_call.1} parent=5 // pred_check
        _
      $region10: #{tpu_custom_call.1} parent=5 // pred_check_branch
        %164 = sbr.rel (%p161) target = $region12
      $region11: #{tpu_custom_call.1} parent=5 // pred_region
        %s165 = ssub.s32 %s15, 1
        // Predicated region
        $region13: #{tpu_custom_call.1} parent=11 // pred_check
          %p166 = pneg %p62
        $region14: #{tpu_custom_call.1} parent=11 // pred_check_branch
          %168 = sbr.rel (%p166) target = $region16
        $region15: #{tpu_custom_call.1} parent=11 // pred_region
          %s170 = ssub.s32 1536, 1536
          %171 = vsyncadd [#allocation3], %s170
          %s172 = sshll.u32 [#allocation2], 4
          %s173 = int_to_ptr.vmem [resolvable:$true] %s172
          %178 = dma.hbm_to_vmem [thread:$0]  %s1, 1536, %s173, [#allocation3], 384, 384, 24
        $region16: #{tpu_custom_call.1} parent=11 // pred_fallthru
          _
        // Predicated region
        $region17: #{tpu_custom_call.1} parent=11 // pred_check
          %p179 = pneg %p83
        $region18: #{tpu_custom_call.1} parent=11 // pred_check_branch
          %181 = sbr.rel (%p179) target = $region20
        $region19: #{tpu_custom_call.1} parent=11 // pred_region
          _
        $region20: #{tpu_custom_call.1} parent=11 // pred_fallthru
          _
        // Predicated region
        $region21: #{tpu_custom_call.1} parent=11 // pred_check
          %p182 = pneg %p104
        $region22: #{tpu_custom_call.1} parent=11 // pred_check_branch
          %184 = sbr.rel (%p182) target = $region24
        $region23: #{tpu_custom_call.1} parent=11 // pred_region
          _
        $region24: #{tpu_custom_call.1} parent=11 // pred_fallthru
          _
        // Predicated region
        $region25: #{tpu_custom_call.1} parent=11 // pred_check
          %p185 = pneg %p125
        $region26: #{tpu_custom_call.1} parent=11 // pred_check_branch
          %187 = sbr.rel (%p185) target = $region28
        $region27: #{tpu_custom_call.1} parent=11 // pred_region
          _
        $region28: #{tpu_custom_call.1} parent=11 // pred_fallthru
          _
      $region12: #{tpu_custom_call.1} parent=5 // pred_fallthru
        _
      %p188 = scmp.lt.s32.totalorder %s15, 2
      // Predicated region
      $region29: #{tpu_custom_call.1} parent=5 // pred_check
        %p189 = pneg %p188
      $region30: #{tpu_custom_call.1} parent=5 // pred_check_branch
        %191 = sbr.rel (%p189) target = $region32
      $region31: #{tpu_custom_call.1} parent=5 // pred_region
        // Predicated region
        $region33: #{tpu_custom_call.1} parent=31 // pred_check
          %p192 = pneg %p35
        $region34: #{tpu_custom_call.1} parent=31 // pred_check_branch
          %194 = sbr.rel (%p192) target = $region36
        $region35: #{tpu_custom_call.1} parent=31 // pred_region
          %s195 = smul.u32 32, %s15
          %s196 = ssub.s32 38, %s195
          %p197 = scmp.lt.s32.totalorder %s196, 32
          %s198 = scalar_select %p197, %s196, 32
          %s199 = smul.u32 128, %s198
          %p200 = scmp.lt.s32.totalorder %s195, 37
          %s201 = scalar_select %p200, %s195, 37
          %s202 = smul.addr %s201, 8
          %s203 = scalar_lea.vmem %s0, %s202
          %s204 = smul.u32 32, %s15
          %s205 = ssub.s32 38, %s204
          %p206 = scmp.lt.s32.totalorder %s205, 32
          %s207 = scalar_select %p206, %s205, 32
          %s208 = smul.u32 128, %s207
        $region36: #{tpu_custom_call.1} parent=31 // pred_fallthru
          _
      $region32: #{tpu_custom_call.1} parent=5 // pred_fallthru
        _
      %p209 = scmp.le.s32.totalorder 1, %s15
      %p210 = scmp.lt.s32.totalorder %s15, 3
      %p211 = pnand %p209, %p210
      %p212 = pneg %p211
      // Predicated region
      $region37: #{tpu_custom_call.1} parent=5 // pred_check
        _
      $region38: #{tpu_custom_call.1} parent=5 // pred_check_branch
        %214 = sbr.rel (%p211) target = $region40
      $region39: #{tpu_custom_call.1} parent=5 // pred_region
        %s215 = ssub.s32 %s15, 1
        // Predicated region
        $region41: #{tpu_custom_call.1} parent=39 // pred_check
          %p216 = pneg %p62
        $region42: #{tpu_custom_call.1} parent=39 // pred_check_branch
          %218 = sbr.rel (%p216) target = $region44
        $region43: #{tpu_custom_call.1} parent=39 // pred_region
          %219 = dma.done [#allocation3], 1536
        $region44: #{tpu_custom_call.1} parent=39 // pred_fallthru
          _
        %s220 = smul.u32 32, %s20
        %s221 = ssub.s32 38, %s220
        %p222 = scmp.lt.s32.totalorder %s221, 32
        %s223 = scalar_select %p222, %s221, 32
        %s224 = smul.u32 128, %s223
        %p225 = scmp.lt.s32.totalorder %s220, 37
        %s226 = scalar_select %p225, %s220, 37
        %s227 = smul.addr %s226, 8
        %s228 = scalar_lea.vmem %s0, %s227
        %p229 = pneg %p41
        %p230 = pneg %p38
        %p231 = pneg %p62
        %p232 = pneg %p59
        %p233 = pneg %p83
        %p234 = pneg %p80
        %p235 = pneg %p104
        %p236 = pneg %p101
        %p237 = pneg %p125
        %p238 = pneg %p122
        %p239 = pneg %p151
        %p240 = pneg %p148
        %s241 = sand.u32 %s138, 1
        %s242 = scalar_lea.sflag [#allocation4], %s241
        %s243 = sand.u32 %s138, 1
        %s244 = smul.addr %s243, 256
        %s245 = scalar_lea.vmem [#allocation5], %s244
        %s246 = smul.u32 32, %s20
        %s247 = ssub.s32 38, %s246
        %p248 = scmp.lt.s32.totalorder %s247, 32
        %s249 = scalar_select %p248, %s247, 32
        %s250 = smul.u32 128, %s249
        %p251 = scmp.lt.s32.totalorder %s246, 37
        %s252 = scalar_select %p251, %s246, 37
        %s253 = smul.addr %s252, 8
        %s254 = scalar_lea.vmem %s0, %s253
        %s255 = smul.u32 32, %s20
        %s256 = ssub.s32 38, %s255
        %p257 = scmp.lt.s32.totalorder %s256, 32
        %s258 = scalar_select %p257, %s256, 32
        %s259 = smul.u32 128, %s258
        %s260 = smul.u32 32, %s20
        %s261 = ssub.s32 38, %s260
        %p262 = scmp.lt.s32.totalorder %s261, 32
        %s263 = scalar_select %p262, %s261, 32
        %s264 = smul.u32 128, %s263
        %v266 = vld [vmem:[%s254] sm:$0xff]
        %v267 = vld [vmem:[%s254 + $0x8] sm:$0xff]
        %v268 = vld [vmem:[%s254 + $0x10] sm:$0xff]
        %v269 = vld [vmem:[%s254 + $0x18] sm:$0xff]
        %v270 = vld [vmem:[%s254 + $0x20] sm:$0xff]
        %v271 = vld [vmem:[%s254 + $0x28] sm:$0xff]
        %v272 = vld [vmem:[%s254 + $0x30] sm:$0xff]
        %v273 = vld [vmem:[%s254 + $0x38] sm:$0xff]
        %v274 = vld [vmem:[%s254 + $0x40] sm:$0xff]
        %v275 = vld [vmem:[%s254 + $0x48] sm:$0xff]
        %v276 = vld [vmem:[%s254 + $0x50] sm:$0xff]
        %v277 = vld [vmem:[%s254 + $0x58] sm:$0xff]
        %v278 = vld [vmem:[%s254 + $0x60] sm:$0xff]
        %v279 = vld [vmem:[%s254 + $0x68] sm:$0xff]
        %v280 = vld [vmem:[%s254 + $0x70] sm:$0xff]
        %v281 = vld [vmem:[%s254 + $0x78] sm:$0xff]
        %v282 = vld [vmem:[%s254 + $0x80] sm:$0xff]
        %v283 = vld [vmem:[%s254 + $0x88] sm:$0xff]
        %v284 = vld [vmem:[%s254 + $0x90] sm:$0xff]
        %v285 = vld [vmem:[%s254 + $0x98] sm:$0xff]
        %v286 = vld [vmem:[%s254 + $0xa0] sm:$0xff]
        %v287 = vld [vmem:[%s254 + $0xa8] sm:$0xff]
        %v288 = vld [vmem:[%s254 + $0xb0] sm:$0xff]
        %v289 = vld [vmem:[%s254 + $0xb8] sm:$0xff]
        %v290 = vld [vmem:[%s254 + $0xc0] sm:$0xff]
        %v291 = vld [vmem:[%s254 + $0xc8] sm:$0xff]
        %v292 = vld [vmem:[%s254 + $0xd0] sm:$0xff]
        %v293 = vld [vmem:[%s254 + $0xd8] sm:$0xff]
        %v294 = vld [vmem:[%s254 + $0xe0] sm:$0xff]
        %v295 = vld [vmem:[%s254 + $0xe8] sm:$0xff]
        %v296 = vld [vmem:[%s254 + $0xf0] sm:$0xff]
        %v297 = vld [vmem:[%s254 + $0xf8] sm:$0xff]
        %v298 = vpack.c.bf16 %v267, %v266
        %v299 = vpack.c.bf16 %v269, %v268
        %v300 = vpack.c.bf16 %v271, %v270
        %v301 = vpack.c.bf16 %v273, %v272
        %v302 = vpack.c.bf16 %v275, %v274
        %v303 = vpack.c.bf16 %v277, %v276
        %v304 = vpack.c.bf16 %v279, %v278
        %v305 = vpack.c.bf16 %v281, %v280
        %v306 = vpack.c.bf16 %v283, %v282
        %v307 = vpack.c.bf16 %v285, %v284
        %v308 = vpack.c.bf16 %v287, %v286
        %v309 = vpack.c.bf16 %v289, %v288
        %v310 = vpack.c.bf16 %v291, %v290
        %v311 = vpack.c.bf16 %v293, %v292
        %v312 = vpack.c.bf16 %v295, %v294
        %v313 = vpack.c.bf16 %v297, %v296
        %v314 = vld [vmem:[#allocation2] sm:$0xff]
        %v315 = vld [vmem:[#allocation2 + $0x8] sm:$0xff]
        %v316 = vld [vmem:[#allocation2 + $0x10] sm:$0xff]
        %v317 = vld [vmem:[#allocation2 + $0x18] sm:$0xff]
        %v318 = vld [vmem:[#allocation2 + $0x20] sm:$0xff]
        %v319 = vld [vmem:[#allocation2 + $0x28] sm:$0xff]
        %v320 = vld [vmem:[#allocation2 + $0x30] sm:$0xff]
        %v321 = vld [vmem:[#allocation2 + $0x38] sm:$0xff]
        %v322 = vld [vmem:[#allocation2 + $0x40] sm:$0xff]
        %v323 = vld [vmem:[#allocation2 + $0x48] sm:$0xff]
        %v324 = vld [vmem:[#allocation2 + $0x50] sm:$0xff]
        %v325 = vld [vmem:[#allocation2 + $0x58] sm:$0xff]
        %v326 = vld [vmem:[%s2] sm:$0x3f]
        %v328 = vlaneseq
        %v329 = vshrl.u32 %v328, 7
        %v330 = vsub.s32 0, %v329
        %v331 = vrot.slane %v326, %v330
        %v332 = vlaneseq
        %v333 = vshrl.u32 %v332, 7
        %v334 = vsub.s32 1, %v333
        %v335 = vrot.slane %v326, %v334
        %v336 = vlaneseq
        %v337 = vshrl.u32 %v336, 7
        %v338 = vsub.s32 2, %v337
        %v339 = vrot.slane %v326, %v338
        %v340 = vlaneseq
        %v341 = vshrl.u32 %v340, 7
        %v342 = vsub.s32 3, %v341
        %v343 = vrot.slane %v326, %v342
        %v344 = vlaneseq
        %v345 = vshrl.u32 %v344, 7
        %v346 = vsub.s32 4, %v345
        %v347 = vrot.slane %v326, %v346
        %v348 = vlaneseq
        %v349 = vshrl.u32 %v348, 7
        %v350 = vsub.s32 5, %v349
        %v351 = vrot.slane %v326, %v350
        %v370 = vunpack.c.l.b16 %v314
        %v371 = vunpack.c.h.b16 %v314
        %v372 = vunpack.c.l.b16 %v315
        %v373 = vunpack.c.h.b16 %v315
        %v374 = vunpack.c.l.b16 %v316
        %v375 = vunpack.c.h.b16 %v316
        %v376 = vunpack.c.l.b16 %v317
        %v377 = vunpack.c.h.b16 %v317
        %v378 = vunpack.c.l.b16 %v318
        %v379 = vunpack.c.h.b16 %v318
        %v380 = vunpack.c.l.b16 %v319
        %v381 = vunpack.c.h.b16 %v319
        %v382 = vunpack.c.l.b16 %v320
        %v383 = vunpack.c.h.b16 %v320
        %v384 = vunpack.c.l.b16 %v321
        %v385 = vunpack.c.h.b16 %v321
        %v386 = vunpack.c.l.b16 %v322
        %v387 = vunpack.c.h.b16 %v322
        %v388 = vunpack.c.l.b16 %v323
        %v389 = vunpack.c.h.b16 %v323
        %v390 = vunpack.c.l.b16 %v324
        %v391 = vunpack.c.h.b16 %v324
        %v392 = vunpack.c.l.b16 %v325
        %v393 = vunpack.c.h.b16 %v325
        %v394 = vpack.c.b16 %v376, %v370
        %v395 = vpack.c.b16 %v377, %v371
        %v396 = vpack.c.b16 %v378, %v372
        %v397 = vpack.c.b16 %v379, %v373
        %v398 = vpack.c.b16 %v380, %v374
        %v399 = vpack.c.b16 %v381, %v375
        %v400 = vpack.c.b16 %v388, %v382
        %v401 = vpack.c.b16 %v389, %v383
        %v402 = vpack.c.b16 %v390, %v384
        %v403 = vpack.c.b16 %v391, %v385
        %v404 = vpack.c.b16 %v392, %v386
        %v405 = vpack.c.b16 %v393, %v387
        %vm418 = vcmask 261120
        %v420 = vsel %vm418, %v298, 0
        %v423 = vsel %vm418, %v299, 0
        %v426 = vsel %vm418, %v300, 0
        %v429 = vsel %vm418, %v301, 0
        %v432 = vsel %vm418, %v302, 0
        %v435 = vsel %vm418, %v303, 0
        %v438 = vsel %vm418, %v304, 0
        %v441 = vsel %vm418, %v305, 0
        %v444 = vsel %vm418, %v306, 0
        %v447 = vsel %vm418, %v307, 0
        %v450 = vsel %vm418, %v308, 0
        %v453 = vsel %vm418, %v309, 0
        %v456 = vsel %vm418, %v310, 0
        %v459 = vsel %vm418, %v311, 0
        %v462 = vsel %vm418, %v312, 0
        %v465 = vsel %vm418, %v313, 0
        %467 = vmatprep.subr.bf16.mxu0 %v395
        %468 = vmatpush1.bf16.msra.mxu0 %v394
        %469 = vmatprep.subr.bf16.mxu0 %v401
        %470 = vmatpush1.bf16.msra.mxu0 %v400
        %471 = vmatprep.subr.bf16.mxu0 0
        %472 = vmatpush1.bf16.msra.mxu0 0
        %473 = vmatprep.subr.bf16.mxu0 0
        %474 = vmatpush1.bf16.msra.mxu0 0
        %475 = vmatprep.subr.bf16.mxu0 0
        %476 = vmatpush1.bf16.msra.mxu0 0
        %477 = vmatprep.subr.bf16.mxu0 0
        %478 = vmatpush1.bf16.msra.mxu0 0
        %479 = vmatprep.subr.bf16.mxu0 0
        %480 = vmatpush1.bf16.msra.mxu0 0
        %481 = vmatprep.subr.bf16.mxu0 0
        %482 = vmatpush1.bf16.msra.mxu0 0
        %483 = vmatprep.subr.bf16.mxu0 0
        %484 = vmatpush1.bf16.msra.mxu0 0
        %485 = vmatprep.subr.bf16.mxu0 0
        %486 = vmatpush1.bf16.msra.mxu0 0
        %487 = vmatprep.subr.bf16.mxu0 0
        %488 = vmatpush1.bf16.msra.mxu0 0
        %489 = vmatprep.subr.bf16.mxu0 0
        %490 = vmatpush1.bf16.msra.mxu0 0
        %491 = vmatprep.subr.bf16.mxu0 0
        %492 = vmatpush1.bf16.msra.mxu0 0
        %493 = vmatprep.subr.bf16.mxu0 0
        %494 = vmatpush1.bf16.msra.mxu0 0
        %495 = vmatprep.subr.bf16.mxu0 0
        %496 = vmatpush1.bf16.msra.mxu0 0
        %497 = vmatprep.subr.bf16.mxu0 0
        %498 = vmatpush1.bf16.msra.mxu0 0
        %499 = vmatprep.mubr.bf16.mxu0 0
        %500 = vmatmul.mubr.bf16.gmra.mrb[0].mxu0 %v420
        %v501 = vpop.f32.mrb[0].mxu0
        %v502 = vadd.f32 %v331, %v501
        %v503 = vpop.f32.mrb[0].mxu0
        %v504 = vadd.f32 %v335, %v503
        %v505 = vpop.f32.mrb[0].mxu0
        %v506 = vadd.f32 %v331, %v505
        %v507 = vpop.f32.mrb[0].mxu0
        %v508 = vadd.f32 %v335, %v507
        %509 = vmatprep.mubr.bf16.mxu0 0
        %510 = vmatmul.mubr.bf16.gmra.mrb[0].mxu0 %v423
        %v511 = vpop.f32.mrb[0].mxu0
        %v512 = vadd.f32 %v331, %v511
        %v513 = vpop.f32.mrb[0].mxu0
        %v514 = vadd.f32 %v335, %v513
        %v515 = vpop.f32.mrb[0].mxu0
        %v516 = vadd.f32 %v331, %v515
        %v517 = vpop.f32.mrb[0].mxu0
        %v518 = vadd.f32 %v335, %v517
        %519 = vmatprep.mubr.bf16.mxu0 0
        %520 = vmatmul.mubr.bf16.gmra.mrb[0].mxu0 %v426
        %v521 = vpop.f32.mrb[0].mxu0
        %v522 = vadd.f32 %v331, %v521
        %v523 = vpop.f32.mrb[0].mxu0
        %v524 = vadd.f32 %v335, %v523
        %v525 = vpop.f32.mrb[0].mxu0
        %v526 = vadd.f32 %v331, %v525
        %v527 = vpop.f32.mrb[0].mxu0
        %v528 = vadd.f32 %v335, %v527
        %529 = vmatprep.mubr.bf16.mxu0 0
        %530 = vmatmul.mubr.bf16.gmra.mrb[0].mxu0 %v429
        %v531 = vpop.f32.mrb[0].mxu0
        %v532 = vadd.f32 %v331, %v531
        %v533 = vpop.f32.mrb[0].mxu0
        %v534 = vadd.f32 %v335, %v533
        %v535 = vpop.f32.mrb[0].mxu0
        %v536 = vadd.f32 %v331, %v535
        %v537 = vpop.f32.mrb[0].mxu0
        %v538 = vadd.f32 %v335, %v537
        %539 = vmatprep.mubr.bf16.mxu0 0
        %540 = vmatmul.mubr.bf16.gmra.mrb[0].mxu0 %v432
        %v541 = vpop.f32.mrb[0].mxu0
        %v542 = vadd.f32 %v331, %v541
        %v543 = vpop.f32.mrb[0].mxu0
        %v544 = vadd.f32 %v335, %v543
        %v545 = vpop.f32.mrb[0].mxu0
        %v546 = vadd.f32 %v331, %v545
        %v547 = vpop.f32.mrb[0].mxu0
        %v548 = vadd.f32 %v335, %v547
        %549 = vmatprep.mubr.bf16.mxu0 0
        %550 = vmatmul.mubr.bf16.gmra.mrb[0].mxu0 %v435
        %v551 = vpop.f32.mrb[0].mxu0
        %v552 = vadd.f32 %v331, %v551
        %v553 = vpop.f32.mrb[0].mxu0
        %v554 = vadd.f32 %v335, %v553
        %v555 = vpop.f32.mrb[0].mxu0
        %v556 = vadd.f32 %v331, %v555
        %v557 = vpop.f32.mrb[0].mxu0
        %v558 = vadd.f32 %v335, %v557
        %559 = vmatprep.mubr.bf16.mxu0 0
        %560 = vmatmul.mubr.bf16.gmra.mrb[0].mxu0 %v438
        %v561 = vpop.f32.mrb[0].mxu0
        %v562 = vadd.f32 %v331, %v561
        %v563 = vpop.f32.mrb[0].mxu0
        %v564 = vadd.f32 %v335, %v563
        %v565 = vpop.f32.mrb[0].mxu0
        %v566 = vadd.f32 %v331, %v565
        %v567 = vpop.f32.mrb[0].mxu0
        %v568 = vadd.f32 %v335, %v567
        %569 = vmatprep.mubr.bf16.mxu0 0
        %570 = vmatmul.mubr.bf16.gmra.mrb[0].mxu0 %v441
        %v571 = vpop.f32.mrb[0].mxu0
        %v572 = vadd.f32 %v331, %v571
        %v573 = vpop.f32.mrb[0].mxu0
        %v574 = vadd.f32 %v335, %v573
        %v575 = vpop.f32.mrb[0].mxu0
        %v576 = vadd.f32 %v331, %v575
        %v577 = vpop.f32.mrb[0].mxu0
        %v578 = vadd.f32 %v335, %v577
        %579 = vmatprep.mubr.bf16.mxu0 0
        %580 = vmatmul.mubr.bf16.gmra.mrb[0].mxu0 %v444
        %v581 = vpop.f32.mrb[0].mxu0
        %v582 = vadd.f32 %v331, %v581
        %v583 = vpop.f32.mrb[0].mxu0
        %v584 = vadd.f32 %v335, %v583
        %v585 = vpop.f32.mrb[0].mxu0
        %v586 = vadd.f32 %v331, %v585
        %v587 = vpop.f32.mrb[0].mxu0
        %v588 = vadd.f32 %v335, %v587
        %589 = vmatprep.mubr.bf16.mxu0 0
        %590 = vmatmul.mubr.bf16.gmra.mrb[0].mxu0 %v447
        %v591 = vpop.f32.mrb[0].mxu0
        %v592 = vadd.f32 %v331, %v591
        %v593 = vpop.f32.mrb[0].mxu0
        %v594 = vadd.f32 %v335, %v593
        %v595 = vpop.f32.mrb[0].mxu0
        %v596 = vadd.f32 %v331, %v595
        %v597 = vpop.f32.mrb[0].mxu0
        %v598 = vadd.f32 %v335, %v597
        %599 = vmatprep.mubr.bf16.mxu0 0
        %600 = vmatmul.mubr.bf16.gmra.mrb[0].mxu0 %v450
        %v601 = vpop.f32.mrb[0].mxu0
        %v602 = vadd.f32 %v331, %v601
        %v603 = vpop.f32.mrb[0].mxu0
        %v604 = vadd.f32 %v335, %v603
        %v605 = vpop.f32.mrb[0].mxu0
        %v606 = vadd.f32 %v331, %v605
        %v607 = vpop.f32.mrb[0].mxu0
        %v608 = vadd.f32 %v335, %v607
        %609 = vmatprep.mubr.bf16.mxu0 0
        %610 = vmatmul.mubr.bf16.gmra.mrb[0].mxu0 %v453
        %v611 = vpop.f32.mrb[0].mxu0
        %v612 = vadd.f32 %v331, %v611
        %v613 = vpop.f32.mrb[0].mxu0
        %v614 = vadd.f32 %v335, %v613
        %v615 = vpop.f32.mrb[0].mxu0
        %v616 = vadd.f32 %v331, %v615
        %v617 = vpop.f32.mrb[0].mxu0
        %v618 = vadd.f32 %v335, %v617
        %619 = vmatprep.mubr.bf16.mxu0 0
        %620 = vmatmul.mubr.bf16.gmra.mrb[0].mxu0 %v456
        %v621 = vpop.f32.mrb[0].mxu0
        %v622 = vadd.f32 %v331, %v621
        %v623 = vpop.f32.mrb[0].mxu0
        %v624 = vadd.f32 %v335, %v623
        %v625 = vpop.f32.mrb[0].mxu0
        %v626 = vadd.f32 %v331, %v625
        %v627 = vpop.f32.mrb[0].mxu0
        %v628 = vadd.f32 %v335, %v627
        %629 = vmatprep.mubr.bf16.mxu0 0
        %630 = vmatmul.mubr.bf16.gmra.mrb[0].mxu0 %v459
        %v631 = vpop.f32.mrb[0].mxu0
        %v632 = vadd.f32 %v331, %v631
        %v633 = vpop.f32.mrb[0].mxu0
        %v634 = vadd.f32 %v335, %v633
        %v635 = vpop.f32.mrb[0].mxu0
        %v636 = vadd.f32 %v331, %v635
        %v637 = vpop.f32.mrb[0].mxu0
        %v638 = vadd.f32 %v335, %v637
        %639 = vmatprep.mubr.bf16.mxu0 0
        %640 = vmatmul.mubr.bf16.gmra.mrb[0].mxu0 %v462
        %v641 = vpop.f32.mrb[0].mxu0
        %v642 = vadd.f32 %v331, %v641
        %v643 = vpop.f32.mrb[0].mxu0
        %v644 = vadd.f32 %v335, %v643
        %v645 = vpop.f32.mrb[0].mxu0
        %v646 = vadd.f32 %v331, %v645
        %v647 = vpop.f32.mrb[0].mxu0
        %v648 = vadd.f32 %v335, %v647
        %649 = vmatprep.mubr.bf16.mxu0 0
        %650 = vmatmul.mubr.bf16.gmra.mrb[0].mxu0 %v465
        %v651 = vpop.f32.mrb[0].mxu0
        %v652 = vadd.f32 %v331, %v651
        %v653 = vpop.f32.mrb[0].mxu0
        %v654 = vadd.f32 %v335, %v653
        %v655 = vpop.f32.mrb[0].mxu0
        %v656 = vadd.f32 %v331, %v655
        %v657 = vpop.f32.mrb[0].mxu0
        %v658 = vadd.f32 %v335, %v657
        %659 = vdwg.mxu0
        %660 = vmatprep.subr.bf16.mxu0 %v397
        %661 = vmatpush1.bf16.msra.mxu0 %v396
        %662 = vmatprep.subr.bf16.mxu0 %v403
        %663 = vmatpush1.bf16.msra.mxu0 %v402
        %664 = vmatprep.subr.bf16.mxu0 0
        %665 = vmatpush1.bf16.msra.mxu0 0
        %666 = vmatprep.subr.bf16.mxu0 0
        %667 = vmatpush1.bf16.msra.mxu0 0
        %668 = vmatprep.subr.bf16.mxu0 0
        %669 = vmatpush1.bf16.msra.mxu0 0
        %670 = vmatprep.subr.bf16.mxu0 0
        %671 = vmatpush1.bf16.msra.mxu0 0
        %672 = vmatprep.subr.bf16.mxu0 0
        %673 = vmatpush1.bf16.msra.mxu0 0
        %674 = vmatprep.subr.bf16.mxu0 0
        %675 = vmatpush1.bf16.msra.mxu0 0
        %676 = vmatprep.subr.bf16.mxu0 0
        %677 = vmatpush1.bf16.msra.mxu0 0
        %678 = vmatprep.subr.bf16.mxu0 0
        %679 = vmatpush1.bf16.msra.mxu0 0
        %680 = vmatprep.subr.bf16.mxu0 0
        %681 = vmatpush1.bf16.msra.mxu0 0
        %682 = vmatprep.subr.bf16.mxu0 0
        %683 = vmatpush1.bf16.msra.mxu0 0
        %684 = vmatprep.subr.bf16.mxu0 0
        %685 = vmatpush1.bf16.msra.mxu0 0
        %686 = vmatprep.subr.bf16.mxu0 0
        %687 = vmatpush1.bf16.msra.mxu0 0
        %688 = vmatprep.subr.bf16.mxu0 0
        %689 = vmatpush1.bf16.msra.mxu0 0
        %690 = vmatprep.subr.bf16.mxu0 0
        %691 = vmatpush1.bf16.msra.mxu0 0
        %692 = vmatprep.mubr.bf16.mxu0 0
        %693 = vmatmul.mubr.bf16.gmra.mrb[0].mxu0 %v420
        %v694 = vpop.f32.mrb[0].mxu0
        %v695 = vadd.f32 %v339, %v694
        %v696 = vpop.f32.mrb[0].mxu0
        %v697 = vadd.f32 %v343, %v696
        %v698 = vpop.f32.mrb[0].mxu0
        %v699 = vadd.f32 %v339, %v698
        %v700 = vpop.f32.mrb[0].mxu0
        %v701 = vadd.f32 %v343, %v700
        %702 = vmatprep.mubr.bf16.mxu0 0
        %703 = vmatmul.mubr.bf16.gmra.mrb[0].mxu0 %v423
        %v704 = vpop.f32.mrb[0].mxu0
        %v705 = vadd.f32 %v339, %v704
        %v706 = vpop.f32.mrb[0].mxu0
        %v707 = vadd.f32 %v343, %v706
        %v708 = vpop.f32.mrb[0].mxu0
        %v709 = vadd.f32 %v339, %v708
        %v710 = vpop.f32.mrb[0].mxu0
        %v711 = vadd.f32 %v343, %v710
        %712 = vmatprep.mubr.bf16.mxu0 0
        %713 = vmatmul.mubr.bf16.gmra.mrb[0].mxu0 %v426
        %v714 = vpop.f32.mrb[0].mxu0
        %v715 = vadd.f32 %v339, %v714
        %v716 = vpop.f32.mrb[0].mxu0
        %v717 = vadd.f32 %v343, %v716
        %v718 = vpop.f32.mrb[0].mxu0
        %v719 = vadd.f32 %v339, %v718
        %v720 = vpop.f32.mrb[0].mxu0
        %v721 = vadd.f32 %v343, %v720
        %722 = vmatprep.mubr.bf16.mxu0 0
        %723 = vmatmul.mubr.bf16.gmra.mrb[0].mxu0 %v429
        %v724 = vpop.f32.mrb[0].mxu0
        %v725 = vadd.f32 %v339, %v724
        %v726 = vpop.f32.mrb[0].mxu0
        %v727 = vadd.f32 %v343, %v726
        %v728 = vpop.f32.mrb[0].mxu0
        %v729 = vadd.f32 %v339, %v728
        %v730 = vpop.f32.mrb[0].mxu0
        %v731 = vadd.f32 %v343, %v730
        %732 = vmatprep.mubr.bf16.mxu0 0
        %733 = vmatmul.mubr.bf16.gmra.mrb[0].mxu0 %v432
        %v734 = vpop.f32.mrb[0].mxu0
        %v735 = vadd.f32 %v339, %v734
        %v736 = vpop.f32.mrb[0].mxu0
        %v737 = vadd.f32 %v343, %v736
        %v738 = vpop.f32.mrb[0].mxu0
        %v739 = vadd.f32 %v339, %v738
        %v740 = vpop.f32.mrb[0].mxu0
        %v741 = vadd.f32 %v343, %v740
        %742 = vmatprep.mubr.bf16.mxu0 0
        %743 = vmatmul.mubr.bf16.gmra.mrb[0].mxu0 %v435
        %v744 = vpop.f32.mrb[0].mxu0
        %v745 = vadd.f32 %v339, %v744
        %v746 = vpop.f32.mrb[0].mxu0
        %v747 = vadd.f32 %v343, %v746
        %v748 = vpop.f32.mrb[0].mxu0
        %v749 = vadd.f32 %v339, %v748
        %v750 = vpop.f32.mrb[0].mxu0
        %v751 = vadd.f32 %v343, %v750
        %752 = vmatprep.mubr.bf16.mxu0 0
        %753 = vmatmul.mubr.bf16.gmra.mrb[0].mxu0 %v438
        %v754 = vpop.f32.mrb[0].mxu0
        %v755 = vadd.f32 %v339, %v754
        %v756 = vpop.f32.mrb[0].mxu0
        %v757 = vadd.f32 %v343, %v756
        %v758 = vpop.f32.mrb[0].mxu0
        %v759 = vadd.f32 %v339, %v758
        %v760 = vpop.f32.mrb[0].mxu0
        %v761 = vadd.f32 %v343, %v760
        %762 = vmatprep.mubr.bf16.mxu0 0
        %763 = vmatmul.mubr.bf16.gmra.mrb[0].mxu0 %v441
        %v764 = vpop.f32.mrb[0].mxu0
        %v765 = vadd.f32 %v339, %v764
        %v766 = vpop.f32.mrb[0].mxu0
        %v767 = vadd.f32 %v343, %v766
        %v768 = vpop.f32.mrb[0].mxu0
        %v769 = vadd.f32 %v339, %v768
        %v770 = vpop.f32.mrb[0].mxu0
        %v771 = vadd.f32 %v343, %v770
        %772 = vmatprep.mubr.bf16.mxu0 0
        %773 = vmatmul.mubr.bf16.gmra.mrb[0].mxu0 %v444
        %v774 = vpop.f32.mrb[0].mxu0
        %v775 = vadd.f32 %v339, %v774
        %v776 = vpop.f32.mrb[0].mxu0
        %v777 = vadd.f32 %v343, %v776
        %v778 = vpop.f32.mrb[0].mxu0
        %v779 = vadd.f32 %v339, %v778
        %v780 = vpop.f32.mrb[0].mxu0
        %v781 = vadd.f32 %v343, %v780
        %782 = vmatprep.mubr.bf16.mxu0 0
        %783 = vmatmul.mubr.bf16.gmra.mrb[0].mxu0 %v447
        %v784 = vpop.f32.mrb[0].mxu0
        %v785 = vadd.f32 %v339, %v784
        %v786 = vpop.f32.mrb[0].mxu0
        %v787 = vadd.f32 %v343, %v786
        %v788 = vpop.f32.mrb[0].mxu0
        %v789 = vadd.f32 %v339, %v788
        %v790 = vpop.f32.mrb[0].mxu0
        %v791 = vadd.f32 %v343, %v790
        %792 = vmatprep.mubr.bf16.mxu0 0
        %793 = vmatmul.mubr.bf16.gmra.mrb[0].mxu0 %v450
        %v794 = vpop.f32.mrb[0].mxu0
        %v795 = vadd.f32 %v339, %v794
        %v796 = vpop.f32.mrb[0].mxu0
        %v797 = vadd.f32 %v343, %v796
        %v798 = vpop.f32.mrb[0].mxu0
        %v799 = vadd.f32 %v339, %v798
        %v800 = vpop.f32.mrb[0].mxu0
        %v801 = vadd.f32 %v343, %v800
        %802 = vmatprep.mubr.bf16.mxu0 0
        %803 = vmatmul.mubr.bf16.gmra.mrb[0].mxu0 %v453
        %v804 = vpop.f32.mrb[0].mxu0
        %v805 = vadd.f32 %v339, %v804
        %v806 = vpop.f32.mrb[0].mxu0
        %v807 = vadd.f32 %v343, %v806
        %v808 = vpop.f32.mrb[0].mxu0
        %v809 = vadd.f32 %v339, %v808
        %v810 = vpop.f32.mrb[0].mxu0
        %v811 = vadd.f32 %v343, %v810
        %812 = vmatprep.mubr.bf16.mxu0 0
        %813 = vmatmul.mubr.bf16.gmra.mrb[0].mxu0 %v456
        %v814 = vpop.f32.mrb[0].mxu0
        %v815 = vadd.f32 %v339, %v814
        %v816 = vpop.f32.mrb[0].mxu0
        %v817 = vadd.f32 %v343, %v816
        %v818 = vpop.f32.mrb[0].mxu0
        %v819 = vadd.f32 %v339, %v818
        %v820 = vpop.f32.mrb[0].mxu0
        %v821 = vadd.f32 %v343, %v820
        %822 = vmatprep.mubr.bf16.mxu0 0
        %823 = vmatmul.mubr.bf16.gmra.mrb[0].mxu0 %v459
        %v824 = vpop.f32.mrb[0].mxu0
        %v825 = vadd.f32 %v339, %v824
        %v826 = vpop.f32.mrb[0].mxu0
        %v827 = vadd.f32 %v343, %v826
        %v828 = vpop.f32.mrb[0].mxu0
        %v829 = vadd.f32 %v339, %v828
        %v830 = vpop.f32.mrb[0].mxu0
        %v831 = vadd.f32 %v343, %v830
        %832 = vmatprep.mubr.bf16.mxu0 0
        %833 = vmatmul.mubr.bf16.gmra.mrb[0].mxu0 %v462
        %v834 = vpop.f32.mrb[0].mxu0
        %v835 = vadd.f32 %v339, %v834
        %v836 = vpop.f32.mrb[0].mxu0
        %v837 = vadd.f32 %v343, %v836
        %v838 = vpop.f32.mrb[0].mxu0
        %v839 = vadd.f32 %v339, %v838
        %v840 = vpop.f32.mrb[0].mxu0
        %v841 = vadd.f32 %v343, %v840
        %842 = vmatprep.mubr.bf16.mxu0 0
        %843 = vmatmul.mubr.bf16.gmra.mrb[0].mxu0 %v465
        %v844 = vpop.f32.mrb[0].mxu0
        %v845 = vadd.f32 %v339, %v844
        %v846 = vpop.f32.mrb[0].mxu0
        %v847 = vadd.f32 %v343, %v846
        %v848 = vpop.f32.mrb[0].mxu0
        %v849 = vadd.f32 %v339, %v848
        %v850 = vpop.f32.mrb[0].mxu0
        %v851 = vadd.f32 %v343, %v850
        %852 = vdwg.mxu0
        %853 = vmatprep.subr.bf16.mxu0 %v399
        %854 = vmatpush1.bf16.msra.mxu0 %v398
        %855 = vmatprep.subr.bf16.mxu0 %v405
        %856 = vmatpush1.bf16.msra.mxu0 %v404
        %857 = vmatprep.subr.bf16.mxu0 0
        %858 = vmatpush1.bf16.msra.mxu0 0
        %859 = vmatprep.subr.bf16.mxu0 0
        %860 = vmatpush1.bf16.msra.mxu0 0
        %861 = vmatprep.subr.bf16.mxu0 0
        %862 = vmatpush1.bf16.msra.mxu0 0
        %863 = vmatprep.subr.bf16.mxu0 0
        %864 = vmatpush1.bf16.msra.mxu0 0
        %865 = vmatprep.subr.bf16.mxu0 0
        %866 = vmatpush1.bf16.msra.mxu0 0
        %867 = vmatprep.subr.bf16.mxu0 0
        %868 = vmatpush1.bf16.msra.mxu0 0
        %869 = vmatprep.subr.bf16.mxu0 0
        %870 = vmatpush1.bf16.msra.mxu0 0
        %871 = vmatprep.subr.bf16.mxu0 0
        %872 = vmatpush1.bf16.msra.mxu0 0
        %873 = vmatprep.subr.bf16.mxu0 0
        %874 = vmatpush1.bf16.msra.mxu0 0
        %875 = vmatprep.subr.bf16.mxu0 0
        %876 = vmatpush1.bf16.msra.mxu0 0
        %877 = vmatprep.subr.bf16.mxu0 0
        %878 = vmatpush1.bf16.msra.mxu0 0
        %879 = vmatprep.subr.bf16.mxu0 0
        %880 = vmatpush1.bf16.msra.mxu0 0
        %881 = vmatprep.subr.bf16.mxu0 0
        %882 = vmatpush1.bf16.msra.mxu0 0
        %883 = vmatprep.subr.bf16.mxu0 0
        %884 = vmatpush1.bf16.msra.mxu0 0
        %885 = vmatprep.mubr.bf16.mxu0 0
        %886 = vmatmul.mubr.bf16.gmra.mrb[0].mxu0 %v420
        %v887 = vpop.f32.mrb[0].mxu0
        %v888 = vadd.f32 %v347, %v887
        %v889 = vpop.f32.mrb[0].mxu0
        %v890 = vadd.f32 %v351, %v889
        %v891 = vpop.f32.mrb[0].mxu0
        %v892 = vadd.f32 %v347, %v891
        %v893 = vpop.f32.mrb[0].mxu0
        %v894 = vadd.f32 %v351, %v893
        %895 = vmatprep.mubr.bf16.mxu0 0
        %896 = vmatmul.mubr.bf16.gmra.mrb[0].mxu0 %v423
        %v897 = vpop.f32.mrb[0].mxu0
        %v898 = vadd.f32 %v347, %v897
        %v899 = vpop.f32.mrb[0].mxu0
        %v900 = vadd.f32 %v351, %v899
        %v901 = vpop.f32.mrb[0].mxu0
        %v902 = vadd.f32 %v347, %v901
        %v903 = vpop.f32.mrb[0].mxu0
        %v904 = vadd.f32 %v351, %v903
        %905 = vmatprep.mubr.bf16.mxu0 0
        %906 = vmatmul.mubr.bf16.gmra.mrb[0].mxu0 %v426
        %v907 = vpop.f32.mrb[0].mxu0
        %v908 = vadd.f32 %v347, %v907
        %v909 = vpop.f32.mrb[0].mxu0
        %v910 = vadd.f32 %v351, %v909
        %v911 = vpop.f32.mrb[0].mxu0
        %v912 = vadd.f32 %v347, %v911
        %v913 = vpop.f32.mrb[0].mxu0
        %v914 = vadd.f32 %v351, %v913
        %915 = vmatprep.mubr.bf16.mxu0 0
        %916 = vmatmul.mubr.bf16.gmra.mrb[0].mxu0 %v429
        %v917 = vpop.f32.mrb[0].mxu0
        %v918 = vadd.f32 %v347, %v917
        %v919 = vpop.f32.mrb[0].mxu0
        %v920 = vadd.f32 %v351, %v919
        %v921 = vpop.f32.mrb[0].mxu0
        %v922 = vadd.f32 %v347, %v921
        %v923 = vpop.f32.mrb[0].mxu0
        %v924 = vadd.f32 %v351, %v923
        %925 = vmatprep.mubr.bf16.mxu0 0
        %926 = vmatmul.mubr.bf16.gmra.mrb[0].mxu0 %v432
        %v927 = vpop.f32.mrb[0].mxu0
        %v928 = vadd.f32 %v347, %v927
        %v929 = vpop.f32.mrb[0].mxu0
        %v930 = vadd.f32 %v351, %v929
        %v931 = vpop.f32.mrb[0].mxu0
        %v932 = vadd.f32 %v347, %v931
        %v933 = vpop.f32.mrb[0].mxu0
        %v934 = vadd.f32 %v351, %v933
        %935 = vmatprep.mubr.bf16.mxu0 0
        %936 = vmatmul.mubr.bf16.gmra.mrb[0].mxu0 %v435
        %v937 = vpop.f32.mrb[0].mxu0
        %v938 = vadd.f32 %v347, %v937
        %v939 = vpop.f32.mrb[0].mxu0
        %v940 = vadd.f32 %v351, %v939
        %v941 = vpop.f32.mrb[0].mxu0
        %v942 = vadd.f32 %v347, %v941
        %v943 = vpop.f32.mrb[0].mxu0
        %v944 = vadd.f32 %v351, %v943
        %945 = vmatprep.mubr.bf16.mxu0 0
        %946 = vmatmul.mubr.bf16.gmra.mrb[0].mxu0 %v438
        %v947 = vpop.f32.mrb[0].mxu0
        %v948 = vadd.f32 %v347, %v947
        %v949 = vpop.f32.mrb[0].mxu0
        %v950 = vadd.f32 %v351, %v949
        %v951 = vpop.f32.mrb[0].mxu0
        %v952 = vadd.f32 %v347, %v951
        %v953 = vpop.f32.mrb[0].mxu0
        %v954 = vadd.f32 %v351, %v953
        %955 = vmatprep.mubr.bf16.mxu0 0
        %956 = vmatmul.mubr.bf16.gmra.mrb[0].mxu0 %v441
        %v957 = vpop.f32.mrb[0].mxu0
        %v958 = vadd.f32 %v347, %v957
        %v959 = vpop.f32.mrb[0].mxu0
        %v960 = vadd.f32 %v351, %v959
        %v961 = vpop.f32.mrb[0].mxu0
        %v962 = vadd.f32 %v347, %v961
        %v963 = vpop.f32.mrb[0].mxu0
        %v964 = vadd.f32 %v351, %v963
        %965 = vmatprep.mubr.bf16.mxu0 0
        %966 = vmatmul.mubr.bf16.gmra.mrb[0].mxu0 %v444
        %v967 = vpop.f32.mrb[0].mxu0
        %v968 = vadd.f32 %v347, %v967
        %v969 = vpop.f32.mrb[0].mxu0
        %v970 = vadd.f32 %v351, %v969
        %v971 = vpop.f32.mrb[0].mxu0
        %v972 = vadd.f32 %v347, %v971
        %v973 = vpop.f32.mrb[0].mxu0
        %v974 = vadd.f32 %v351, %v973
        %975 = vmatprep.mubr.bf16.mxu0 0
        %976 = vmatmul.mubr.bf16.gmra.mrb[0].mxu0 %v447
        %v977 = vpop.f32.mrb[0].mxu0
        %v978 = vadd.f32 %v347, %v977
        %v979 = vpop.f32.mrb[0].mxu0
        %v980 = vadd.f32 %v351, %v979
        %v981 = vpop.f32.mrb[0].mxu0
        %v982 = vadd.f32 %v347, %v981
        %v983 = vpop.f32.mrb[0].mxu0
        %v984 = vadd.f32 %v351, %v983
        %985 = vmatprep.mubr.bf16.mxu0 0
        %986 = vmatmul.mubr.bf16.gmra.mrb[0].mxu0 %v450
        %v987 = vpop.f32.mrb[0].mxu0
        %v988 = vadd.f32 %v347, %v987
        %v989 = vpop.f32.mrb[0].mxu0
        %v990 = vadd.f32 %v351, %v989
        %v991 = vpop.f32.mrb[0].mxu0
        %v992 = vadd.f32 %v347, %v991
        %v993 = vpop.f32.mrb[0].mxu0
        %v994 = vadd.f32 %v351, %v993
        %995 = vmatprep.mubr.bf16.mxu0 0
        %996 = vmatmul.mubr.bf16.gmra.mrb[0].mxu0 %v453
        %v997 = vpop.f32.mrb[0].mxu0
        %v998 = vadd.f32 %v347, %v997
        %v999 = vpop.f32.mrb[0].mxu0
        %v1000 = vadd.f32 %v351, %v999
        %v1001 = vpop.f32.mrb[0].mxu0
        %v1002 = vadd.f32 %v347, %v1001
        %v1003 = vpop.f32.mrb[0].mxu0
        %v1004 = vadd.f32 %v351, %v1003
        %1005 = vmatprep.mubr.bf16.mxu0 0
        %1006 = vmatmul.mubr.bf16.gmra.mrb[0].mxu0 %v456
        %v1007 = vpop.f32.mrb[0].mxu0
        %v1008 = vadd.f32 %v347, %v1007
        %v1009 = vpop.f32.mrb[0].mxu0
        %v1010 = vadd.f32 %v351, %v1009
        %v1011 = vpop.f32.mrb[0].mxu0
        %v1012 = vadd.f32 %v347, %v1011
        %v1013 = vpop.f32.mrb[0].mxu0
        %v1014 = vadd.f32 %v351, %v1013
        %1015 = vmatprep.mubr.bf16.mxu0 0
        %1016 = vmatmul.mubr.bf16.gmra.mrb[0].mxu0 %v459
        %v1017 = vpop.f32.mrb[0].mxu0
        %v1018 = vadd.f32 %v347, %v1017
        %v1019 = vpop.f32.mrb[0].mxu0
        %v1020 = vadd.f32 %v351, %v1019
        %v1021 = vpop.f32.mrb[0].mxu0
        %v1022 = vadd.f32 %v347, %v1021
        %v1023 = vpop.f32.mrb[0].mxu0
        %v1024 = vadd.f32 %v351, %v1023
        %1025 = vmatprep.mubr.bf16.mxu0 0
        %1026 = vmatmul.mubr.bf16.gmra.mrb[0].mxu0 %v462
        %v1027 = vpop.f32.mrb[0].mxu0
        %v1028 = vadd.f32 %v347, %v1027
        %v1029 = vpop.f32.mrb[0].mxu0
        %v1030 = vadd.f32 %v351, %v1029
        %v1031 = vpop.f32.mrb[0].mxu0
        %v1032 = vadd.f32 %v347, %v1031
        %v1033 = vpop.f32.mrb[0].mxu0
        %v1034 = vadd.f32 %v351, %v1033
        %1035 = vmatprep.mubr.bf16.mxu0 0
        %1036 = vmatmul.mubr.bf16.gmra.mrb[0].mxu0 %v465
        %v1037 = vpop.f32.mrb[0].mxu0
        %v1038 = vadd.f32 %v347, %v1037
        %v1039 = vpop.f32.mrb[0].mxu0
        %v1040 = vadd.f32 %v351, %v1039
        %v1041 = vpop.f32.mrb[0].mxu0
        %v1042 = vadd.f32 %v347, %v1041
        %v1043 = vpop.f32.mrb[0].mxu0
        %v1044 = vadd.f32 %v351, %v1043
        %1045 = vdwg.mxu0
        %v1046 = vmax.f32 %v502, 0.0
        %v1047 = vmax.f32 %v504, 0.0
        %v1048 = vmax.f32 %v695, 0.0
        %v1049 = vmax.f32 %v697, 0.0
        %v1050 = vmax.f32 %v888, 0.0
        %v1051 = vmax.f32 %v890, 0.0
        %v1052 = vmax.f32 %v506, 0.0
        %v1053 = vmax.f32 %v508, 0.0
        %v1054 = vmax.f32 %v699, 0.0
        %v1055 = vmax.f32 %v701, 0.0
        %v1056 = vmax.f32 %v892, 0.0
        %v1057 = vmax.f32 %v894, 0.0
        %v1058 = vmax.f32 %v512, 0.0
        %v1059 = vmax.f32 %v514, 0.0
        %v1060 = vmax.f32 %v705, 0.0
        %v1061 = vmax.f32 %v707, 0.0
        %v1062 = vmax.f32 %v898, 0.0
        %v1063 = vmax.f32 %v900, 0.0
        %v1064 = vmax.f32 %v516, 0.0
        %v1065 = vmax.f32 %v518, 0.0
        %v1066 = vmax.f32 %v709, 0.0
        %v1067 = vmax.f32 %v711, 0.0
        %v1068 = vmax.f32 %v902, 0.0
        %v1069 = vmax.f32 %v904, 0.0
        %v1070 = vmax.f32 %v522, 0.0
        %v1071 = vmax.f32 %v524, 0.0
        %v1072 = vmax.f32 %v715, 0.0
        %v1073 = vmax.f32 %v717, 0.0
        %v1074 = vmax.f32 %v908, 0.0
        %v1075 = vmax.f32 %v910, 0.0
        %v1076 = vmax.f32 %v526, 0.0
        %v1077 = vmax.f32 %v528, 0.0
        %v1078 = vmax.f32 %v719, 0.0
        %v1079 = vmax.f32 %v721, 0.0
        %v1080 = vmax.f32 %v912, 0.0
        %v1081 = vmax.f32 %v914, 0.0
        %v1082 = vmax.f32 %v532, 0.0
        %v1083 = vmax.f32 %v534, 0.0
        %v1084 = vmax.f32 %v725, 0.0
        %v1085 = vmax.f32 %v727, 0.0
        %v1086 = vmax.f32 %v918, 0.0
        %v1087 = vmax.f32 %v920, 0.0
        %v1088 = vmax.f32 %v536, 0.0
        %v1089 = vmax.f32 %v538, 0.0
        %v1090 = vmax.f32 %v729, 0.0
        %v1091 = vmax.f32 %v731, 0.0
        %v1092 = vmax.f32 %v922, 0.0
        %v1093 = vmax.f32 %v924, 0.0
        %v1094 = vmax.f32 %v542, 0.0
        %v1095 = vmax.f32 %v544, 0.0
        %v1096 = vmax.f32 %v735, 0.0
        %v1097 = vmax.f32 %v737, 0.0
        %v1098 = vmax.f32 %v928, 0.0
        %v1099 = vmax.f32 %v930, 0.0
        %v1100 = vmax.f32 %v546, 0.0
        %v1101 = vmax.f32 %v548, 0.0
        %v1102 = vmax.f32 %v739, 0.0
        %v1103 = vmax.f32 %v741, 0.0
        %v1104 = vmax.f32 %v932, 0.0
        %v1105 = vmax.f32 %v934, 0.0
        %v1106 = vmax.f32 %v552, 0.0
        %v1107 = vmax.f32 %v554, 0.0
        %v1108 = vmax.f32 %v745, 0.0
        %v1109 = vmax.f32 %v747, 0.0
        %v1110 = vmax.f32 %v938, 0.0
        %v1111 = vmax.f32 %v940, 0.0
        %v1112 = vmax.f32 %v556, 0.0
        %v1113 = vmax.f32 %v558, 0.0
        %v1114 = vmax.f32 %v749, 0.0
        %v1115 = vmax.f32 %v751, 0.0
        %v1116 = vmax.f32 %v942, 0.0
        %v1117 = vmax.f32 %v944, 0.0
        %v1118 = vmax.f32 %v562, 0.0
        %v1119 = vmax.f32 %v564, 0.0
        %v1120 = vmax.f32 %v755, 0.0
        %v1121 = vmax.f32 %v757, 0.0
        %v1122 = vmax.f32 %v948, 0.0
        %v1123 = vmax.f32 %v950, 0.0
        %v1124 = vmax.f32 %v566, 0.0
        %v1125 = vmax.f32 %v568, 0.0
        %v1126 = vmax.f32 %v759, 0.0
        %v1127 = vmax.f32 %v761, 0.0
        %v1128 = vmax.f32 %v952, 0.0
        %v1129 = vmax.f32 %v954, 0.0
        %v1130 = vmax.f32 %v572, 0.0
        %v1131 = vmax.f32 %v574, 0.0
        %v1132 = vmax.f32 %v765, 0.0
        %v1133 = vmax.f32 %v767, 0.0
        %v1134 = vmax.f32 %v958, 0.0
        %v1135 = vmax.f32 %v960, 0.0
        %v1136 = vmax.f32 %v576, 0.0
        %v1137 = vmax.f32 %v578, 0.0
        %v1138 = vmax.f32 %v769, 0.0
        %v1139 = vmax.f32 %v771, 0.0
        %v1140 = vmax.f32 %v962, 0.0
        %v1141 = vmax.f32 %v964, 0.0
        %v1142 = vmax.f32 %v582, 0.0
        %v1143 = vmax.f32 %v584, 0.0
        %v1144 = vmax.f32 %v775, 0.0
        %v1145 = vmax.f32 %v777, 0.0
        %v1146 = vmax.f32 %v968, 0.0
        %v1147 = vmax.f32 %v970, 0.0
        %v1148 = vmax.f32 %v586, 0.0
        %v1149 = vmax.f32 %v588, 0.0
        %v1150 = vmax.f32 %v779, 0.0
        %v1151 = vmax.f32 %v781, 0.0
        %v1152 = vmax.f32 %v972, 0.0
        %v1153 = vmax.f32 %v974, 0.0
        %v1154 = vmax.f32 %v592, 0.0
        %v1155 = vmax.f32 %v594, 0.0
        %v1156 = vmax.f32 %v785, 0.0
        %v1157 = vmax.f32 %v787, 0.0
        %v1158 = vmax.f32 %v978, 0.0
        %v1159 = vmax.f32 %v980, 0.0
        %v1160 = vmax.f32 %v596, 0.0
        %v1161 = vmax.f32 %v598, 0.0
        %v1162 = vmax.f32 %v789, 0.0
        %v1163 = vmax.f32 %v791, 0.0
        %v1164 = vmax.f32 %v982, 0.0
        %v1165 = vmax.f32 %v984, 0.0
        %v1166 = vmax.f32 %v602, 0.0
        %v1167 = vmax.f32 %v604, 0.0
        %v1168 = vmax.f32 %v795, 0.0
        %v1169 = vmax.f32 %v797, 0.0
        %v1170 = vmax.f32 %v988, 0.0
        %v1171 = vmax.f32 %v990, 0.0
        %v1172 = vmax.f32 %v606, 0.0
        %v1173 = vmax.f32 %v608, 0.0
        %v1174 = vmax.f32 %v799, 0.0
        %v1175 = vmax.f32 %v801, 0.0
        %v1176 = vmax.f32 %v992, 0.0
        %v1177 = vmax.f32 %v994, 0.0
        %v1178 = vmax.f32 %v612, 0.0
        %v1179 = vmax.f32 %v614, 0.0
        %v1180 = vmax.f32 %v805, 0.0
        %v1181 = vmax.f32 %v807, 0.0
        %v1182 = vmax.f32 %v998, 0.0
        %v1183 = vmax.f32 %v1000, 0.0
        %v1184 = vmax.f32 %v616, 0.0
        %v1185 = vmax.f32 %v618, 0.0
        %v1186 = vmax.f32 %v809, 0.0
        %v1187 = vmax.f32 %v811, 0.0
        %v1188 = vmax.f32 %v1002, 0.0
        %v1189 = vmax.f32 %v1004, 0.0
        %v1190 = vmax.f32 %v622, 0.0
        %v1191 = vmax.f32 %v624, 0.0
        %v1192 = vmax.f32 %v815, 0.0
        %v1193 = vmax.f32 %v817, 0.0
        %v1194 = vmax.f32 %v1008, 0.0
        %v1195 = vmax.f32 %v1010, 0.0
        %v1196 = vmax.f32 %v626, 0.0
        %v1197 = vmax.f32 %v628, 0.0
        %v1198 = vmax.f32 %v819, 0.0
        %v1199 = vmax.f32 %v821, 0.0
        %v1200 = vmax.f32 %v1012, 0.0
        %v1201 = vmax.f32 %v1014, 0.0
        %v1202 = vmax.f32 %v632, 0.0
        %v1203 = vmax.f32 %v634, 0.0
        %v1204 = vmax.f32 %v825, 0.0
        %v1205 = vmax.f32 %v827, 0.0
        %v1206 = vmax.f32 %v1018, 0.0
        %v1207 = vmax.f32 %v1020, 0.0
        %v1208 = vmax.f32 %v636, 0.0
        %v1209 = vmax.f32 %v638, 0.0
        %v1210 = vmax.f32 %v829, 0.0
        %v1211 = vmax.f32 %v831, 0.0
        %v1212 = vmax.f32 %v1022, 0.0
        %v1213 = vmax.f32 %v1024, 0.0
        %v1214 = vmax.f32 %v642, 0.0
        %v1215 = vmax.f32 %v644, 0.0
        %v1216 = vmax.f32 %v835, 0.0
        %v1217 = vmax.f32 %v837, 0.0
        %v1218 = vmax.f32 %v1028, 0.0
        %v1219 = vmax.f32 %v1030, 0.0
        %v1220 = vmax.f32 %v646, 0.0
        %v1221 = vmax.f32 %v648, 0.0
        %v1222 = vmax.f32 %v839, 0.0
        %v1223 = vmax.f32 %v841, 0.0
        %v1224 = vmax.f32 %v1032, 0.0
        %v1225 = vmax.f32 %v1034, 0.0
        %v1226 = vmax.f32 %v652, 0.0
        %v1227 = vmax.f32 %v654, 0.0
        %v1228 = vmax.f32 %v845, 0.0
        %v1229 = vmax.f32 %v847, 0.0
        %v1230 = vmax.f32 %v1038, 0.0
        %v1231 = vmax.f32 %v1040, 0.0
        %v1232 = vmax.f32 %v656, 0.0
        %v1233 = vmax.f32 %v658, 0.0
        %v1234 = vmax.f32 %v849, 0.0
        %v1235 = vmax.f32 %v851, 0.0
        %v1236 = vmax.f32 %v1042, 0.0
        %v1237 = vmax.f32 %v1044, 0.0
        %v1238 = vpack.c.bf16 %v1052, %v1046
        %v1239 = vpack.c.bf16 %v1053, %v1047
        %v1240 = vpack.c.bf16 %v1054, %v1048
        %v1241 = vpack.c.bf16 %v1055, %v1049
        %v1242 = vpack.c.bf16 %v1056, %v1050
        %v1243 = vpack.c.bf16 %v1057, %v1051
        %v1244 = vpack.c.bf16 %v1064, %v1058
        %v1245 = vpack.c.bf16 %v1065, %v1059
        %v1246 = vpack.c.bf16 %v1066, %v1060
        %v1247 = vpack.c.bf16 %v1067, %v1061
        %v1248 = vpack.c.bf16 %v1068, %v1062
        %v1249 = vpack.c.bf16 %v1069, %v1063
        %v1250 = vpack.c.bf16 %v1076, %v1070
        %v1251 = vpack.c.bf16 %v1077, %v1071
        %v1252 = vpack.c.bf16 %v1078, %v1072
        %v1253 = vpack.c.bf16 %v1079, %v1073
        %v1254 = vpack.c.bf16 %v1080, %v1074
        %v1255 = vpack.c.bf16 %v1081, %v1075
        %v1256 = vpack.c.bf16 %v1088, %v1082
        %v1257 = vpack.c.bf16 %v1089, %v1083
        %v1258 = vpack.c.bf16 %v1090, %v1084
        %v1259 = vpack.c.bf16 %v1091, %v1085
        %v1260 = vpack.c.bf16 %v1092, %v1086
        %v1261 = vpack.c.bf16 %v1093, %v1087
        %v1262 = vpack.c.bf16 %v1100, %v1094
        %v1263 = vpack.c.bf16 %v1101, %v1095
        %v1264 = vpack.c.bf16 %v1102, %v1096
        %v1265 = vpack.c.bf16 %v1103, %v1097
        %v1266 = vpack.c.bf16 %v1104, %v1098
        %v1267 = vpack.c.bf16 %v1105, %v1099
        %v1268 = vpack.c.bf16 %v1112, %v1106
        %v1269 = vpack.c.bf16 %v1113, %v1107
        %v1270 = vpack.c.bf16 %v1114, %v1108
        %v1271 = vpack.c.bf16 %v1115, %v1109
        %v1272 = vpack.c.bf16 %v1116, %v1110
        %v1273 = vpack.c.bf16 %v1117, %v1111
        %v1274 = vpack.c.bf16 %v1124, %v1118
        %v1275 = vpack.c.bf16 %v1125, %v1119
        %v1276 = vpack.c.bf16 %v1126, %v1120
        %v1277 = vpack.c.bf16 %v1127, %v1121
        %v1278 = vpack.c.bf16 %v1128, %v1122
        %v1279 = vpack.c.bf16 %v1129, %v1123
        %v1280 = vpack.c.bf16 %v1136, %v1130
        %v1281 = vpack.c.bf16 %v1137, %v1131
        %v1282 = vpack.c.bf16 %v1138, %v1132
        %v1283 = vpack.c.bf16 %v1139, %v1133
        %v1284 = vpack.c.bf16 %v1140, %v1134
        %v1285 = vpack.c.bf16 %v1141, %v1135
        %v1286 = vpack.c.bf16 %v1148, %v1142
        %v1287 = vpack.c.bf16 %v1149, %v1143
        %v1288 = vpack.c.bf16 %v1150, %v1144
        %v1289 = vpack.c.bf16 %v1151, %v1145
        %v1290 = vpack.c.bf16 %v1152, %v1146
        %v1291 = vpack.c.bf16 %v1153, %v1147
        %v1292 = vpack.c.bf16 %v1160, %v1154
        %v1293 = vpack.c.bf16 %v1161, %v1155
        %v1294 = vpack.c.bf16 %v1162, %v1156
        %v1295 = vpack.c.bf16 %v1163, %v1157
        %v1296 = vpack.c.bf16 %v1164, %v1158
        %v1297 = vpack.c.bf16 %v1165, %v1159
        %v1298 = vpack.c.bf16 %v1172, %v1166
        %v1299 = vpack.c.bf16 %v1173, %v1167
        %v1300 = vpack.c.bf16 %v1174, %v1168
        %v1301 = vpack.c.bf16 %v1175, %v1169
        %v1302 = vpack.c.bf16 %v1176, %v1170
        %v1303 = vpack.c.bf16 %v1177, %v1171
        %v1304 = vpack.c.bf16 %v1184, %v1178
        %v1305 = vpack.c.bf16 %v1185, %v1179
        %v1306 = vpack.c.bf16 %v1186, %v1180
        %v1307 = vpack.c.bf16 %v1187, %v1181
        %v1308 = vpack.c.bf16 %v1188, %v1182
        %v1309 = vpack.c.bf16 %v1189, %v1183
        %v1310 = vpack.c.bf16 %v1196, %v1190
        %v1311 = vpack.c.bf16 %v1197, %v1191
        %v1312 = vpack.c.bf16 %v1198, %v1192
        %v1313 = vpack.c.bf16 %v1199, %v1193
        %v1314 = vpack.c.bf16 %v1200, %v1194
        %v1315 = vpack.c.bf16 %v1201, %v1195
        %v1316 = vpack.c.bf16 %v1208, %v1202
        %v1317 = vpack.c.bf16 %v1209, %v1203
        %v1318 = vpack.c.bf16 %v1210, %v1204
        %v1319 = vpack.c.bf16 %v1211, %v1205
        %v1320 = vpack.c.bf16 %v1212, %v1206
        %v1321 = vpack.c.bf16 %v1213, %v1207
        %v1322 = vpack.c.bf16 %v1220, %v1214
        %v1323 = vpack.c.bf16 %v1221, %v1215
        %v1324 = vpack.c.bf16 %v1222, %v1216
        %v1325 = vpack.c.bf16 %v1223, %v1217
        %v1326 = vpack.c.bf16 %v1224, %v1218
        %v1327 = vpack.c.bf16 %v1225, %v1219
        %v1328 = vpack.c.bf16 %v1232, %v1226
        %v1329 = vpack.c.bf16 %v1233, %v1227
        %v1330 = vpack.c.bf16 %v1234, %v1228
        %v1331 = vpack.c.bf16 %v1235, %v1229
        %v1332 = vpack.c.bf16 %v1236, %v1230
        %v1333 = vpack.c.bf16 %v1237, %v1231
        %v1334 = vld [vmem:[%s3] sm:$0xf]
        %v1335 = vld [vmem:[%s3 + $0x4] sm:$0xf]
        %v1336 = vld [vmem:[%s3 + $0x8] sm:$0xf]
        %v1337 = vld [vmem:[%s3 + $0xc] sm:$0xf]
        %v1338 = vld [vmem:[%s3 + $0x10] sm:$0xf]
        %v1339 = vld [vmem:[%s3 + $0x14] sm:$0xf]
        %v1340 = vld [vmem:[%s3 + $0x18] sm:$0xf]
        %v1341 = vld [vmem:[%s3 + $0x1c] sm:$0xf]
        %v1342 = vld [vmem:[%s3 + $0x20] sm:$0xf]
        %v1343 = vld [vmem:[%s3 + $0x24] sm:$0xf]
        %v1344 = vld [vmem:[%s3 + $0x28] sm:$0xf]
        %v1345 = vld [vmem:[%s3 + $0x2c] sm:$0xf]
        %v1346 = vld [vmem:[%s3 + $0x30] sm:$0xf]
        %v1347 = vld [vmem:[%s3 + $0x34] sm:$0xf]
        %v1348 = vld [vmem:[%s3 + $0x38] sm:$0xf]
        %v1349 = vld [vmem:[%s3 + $0x3c] sm:$0xf]
        %v1350 = vld [vmem:[%s3 + $0x40] sm:$0xf]
        %v1351 = vld [vmem:[%s3 + $0x44] sm:$0xf]
        %v1352 = vld [vmem:[%s3 + $0x48] sm:$0xf]
        %v1353 = vld [vmem:[%s3 + $0x4c] sm:$0xf]
        %v1354 = vld [vmem:[%s3 + $0x50] sm:$0xf]
        %v1355 = vld [vmem:[%s3 + $0x54] sm:$0xf]
        %v1356 = vld [vmem:[%s3 + $0x58] sm:$0xf]
        %v1357 = vld [vmem:[%s3 + $0x5c] sm:$0xf]
        %v1358 = vld [vmem:[%s3 + $0x60] sm:$0xf]
        %v1359 = vld [vmem:[%s3 + $0x64] sm:$0xf]
        %v1360 = vld [vmem:[%s3 + $0x68] sm:$0xf]
        %v1361 = vld [vmem:[%s3 + $0x6c] sm:$0xf]
        %v1362 = vld [vmem:[%s3 + $0x70] sm:$0xf]
        %v1363 = vld [vmem:[%s3 + $0x74] sm:$0xf]
        %v1364 = vld [vmem:[%s3 + $0x78] sm:$0xf]
        %v1365 = vld [vmem:[%s3 + $0x7c] sm:$0xf]
        %v1366 = vld [vmem:[%s3 + $0x80] sm:$0xf]
        %v1367 = vld [vmem:[%s3 + $0x84] sm:$0xf]
        %v1368 = vld [vmem:[%s3 + $0x88] sm:$0xf]
        %v1369 = vld [vmem:[%s3 + $0x8c] sm:$0xf]
        %v1370 = vld [vmem:[%s3 + $0x90] sm:$0xf]
        %v1371 = vld [vmem:[%s3 + $0x94] sm:$0xf]
        %v1372 = vld [vmem:[%s3 + $0x98] sm:$0xf]
        %v1373 = vld [vmem:[%s3 + $0x9c] sm:$0xf]
        %v1374 = vld [vmem:[%s3 + $0xa0] sm:$0xf]
        %v1375 = vld [vmem:[%s3 + $0xa4] sm:$0xf]
        %v1376 = vld [vmem:[%s3 + $0xa8] sm:$0xf]
        %v1377 = vld [vmem:[%s3 + $0xac] sm:$0xf]
        %v1378 = vld [vmem:[%s3 + $0xb0] sm:$0xf]
        %v1379 = vld [vmem:[%s3 + $0xb4] sm:$0xf]
        %v1380 = vld [vmem:[%s3 + $0xb8] sm:$0xf]
        %v1381 = vld [vmem:[%s3 + $0xbc] sm:$0xf]
        %v1382 = vld [vmem:[%s3 + $0xc0] sm:$0xf]
        %v1383 = vld [vmem:[%s3 + $0xc4] sm:$0xf]
        %v1384 = vld [vmem:[%s3 + $0xc8] sm:$0xf]
        %v1385 = vld [vmem:[%s3 + $0xcc] sm:$0xf]
        %v1386 = vld [vmem:[%s3 + $0xd0] sm:$0xf]
        %v1387 = vld [vmem:[%s3 + $0xd4] sm:$0xf]
        %v1388 = vld [vmem:[%s3 + $0xd8] sm:$0xf]
        %v1389 = vld [vmem:[%s3 + $0xdc] sm:$0xf]
        %v1390 = vld [vmem:[%s3 + $0xe0] sm:$0xf]
        %v1391 = vld [vmem:[%s3 + $0xe4] sm:$0xf]
        %v1392 = vld [vmem:[%s3 + $0xe8] sm:$0xf]
        %v1393 = vld [vmem:[%s3 + $0xec] sm:$0xf]
        %v1394 = vld [vmem:[%s3 + $0xf0] sm:$0xf]
        %v1395 = vld [vmem:[%s3 + $0xf4] sm:$0xf]
        %v1396 = vld [vmem:[%s3 + $0xf8] sm:$0xf]
        %v1397 = vld [vmem:[%s3 + $0xfc] sm:$0xf]
        %v1398 = vld [vmem:[%s3 + $0x100] sm:$0xf]
        %v1399 = vld [vmem:[%s3 + $0x104] sm:$0xf]
        %v1400 = vld [vmem:[%s3 + $0x108] sm:$0xf]
        %v1401 = vld [vmem:[%s3 + $0x10c] sm:$0xf]
        %v1402 = vld [vmem:[%s3 + $0x110] sm:$0xf]
        %v1403 = vld [vmem:[%s3 + $0x114] sm:$0xf]
        %v1404 = vld [vmem:[%s3 + $0x118] sm:$0xf]
        %v1405 = vld [vmem:[%s3 + $0x11c] sm:$0xf]
        %v1406 = vld [vmem:[%s3 + $0x120] sm:$0xf]
        %v1407 = vld [vmem:[%s3 + $0x124] sm:$0xf]
        %v1408 = vld [vmem:[%s3 + $0x128] sm:$0xf]
        %v1409 = vld [vmem:[%s3 + $0x12c] sm:$0xf]
        %v1410 = vld [vmem:[%s3 + $0x130] sm:$0xf]
        %v1411 = vld [vmem:[%s3 + $0x134] sm:$0xf]
        %v1412 = vld [vmem:[%s3 + $0x138] sm:$0xf]
        %v1413 = vld [vmem:[%s3 + $0x13c] sm:$0xf]
        %v1414 = vld [vmem:[%s3 + $0x140] sm:$0xf]
        %v1415 = vld [vmem:[%s3 + $0x144] sm:$0xf]
        %v1416 = vld [vmem:[%s3 + $0x148] sm:$0xf]
        %v1417 = vld [vmem:[%s3 + $0x14c] sm:$0xf]
        %v1418 = vld [vmem:[%s3 + $0x150] sm:$0xf]
        %v1419 = vld [vmem:[%s3 + $0x154] sm:$0xf]
        %v1420 = vld [vmem:[%s3 + $0x158] sm:$0xf]
        %v1421 = vld [vmem:[%s3 + $0x15c] sm:$0xf]
        %v1422 = vld [vmem:[%s3 + $0x160] sm:$0xf]
        %v1423 = vld [vmem:[%s3 + $0x164] sm:$0xf]
        %v1424 = vld [vmem:[%s3 + $0x168] sm:$0xf]
        %v1425 = vld [vmem:[%s3 + $0x16c] sm:$0xf]
        %v1426 = vld [vmem:[%s3 + $0x170] sm:$0xf]
        %v1427 = vld [vmem:[%s3 + $0x174] sm:$0xf]
        %v1428 = vld [vmem:[%s3 + $0x178] sm:$0xf]
        %v1429 = vld [vmem:[%s3 + $0x17c] sm:$0xf]
        %v1430 = vld [vmem:[%s4] sm:$0x1]
        %v1432 = vlaneseq
        %v1433 = vshrl.u32 %v1432, 7
        %v1434 = vsub.s32 0, %v1433
        %v1435 = vrot.slane %v1430, %v1434
        %v1533 = vunpack.c.l.b16 %v1334
        %v1534 = vunpack.c.l.b16 %v1335
        %v1535 = vunpack.c.l.b16 %v1336
        %v1536 = vunpack.c.l.b16 %v1337
        %v1537 = vunpack.c.l.b16 %v1338
        %v1538 = vunpack.c.l.b16 %v1339
        %v1539 = vunpack.c.l.b16 %v1340
        %v1540 = vunpack.c.l.b16 %v1341
        %v1541 = vunpack.c.l.b16 %v1342
        %v1542 = vunpack.c.l.b16 %v1343
        %v1543 = vunpack.c.l.b16 %v1344
        %v1544 = vunpack.c.l.b16 %v1345
        %v1545 = vunpack.c.l.b16 %v1346
        %v1546 = vunpack.c.l.b16 %v1347
        %v1547 = vunpack.c.l.b16 %v1348
        %v1548 = vunpack.c.l.b16 %v1349
        %v1549 = vunpack.c.l.b16 %v1350
        %v1550 = vunpack.c.l.b16 %v1351
        %v1551 = vunpack.c.l.b16 %v1352
        %v1552 = vunpack.c.l.b16 %v1353
        %v1553 = vunpack.c.l.b16 %v1354
        %v1554 = vunpack.c.l.b16 %v1355
        %v1555 = vunpack.c.l.b16 %v1356
        %v1556 = vunpack.c.l.b16 %v1357
        %v1557 = vunpack.c.l.b16 %v1358
        %v1558 = vunpack.c.l.b16 %v1359
        %v1559 = vunpack.c.l.b16 %v1360
        %v1560 = vunpack.c.l.b16 %v1361
        %v1561 = vunpack.c.l.b16 %v1362
        %v1562 = vunpack.c.l.b16 %v1363
        %v1563 = vunpack.c.l.b16 %v1364
        %v1564 = vunpack.c.l.b16 %v1365
        %v1565 = vunpack.c.l.b16 %v1366
        %v1566 = vunpack.c.l.b16 %v1367
        %v1567 = vunpack.c.l.b16 %v1368
        %v1568 = vunpack.c.l.b16 %v1369
        %v1569 = vunpack.c.l.b16 %v1370
        %v1570 = vunpack.c.l.b16 %v1371
        %v1571 = vunpack.c.l.b16 %v1372
        %v1572 = vunpack.c.l.b16 %v1373
        %v1573 = vunpack.c.l.b16 %v1374
        %v1574 = vunpack.c.l.b16 %v1375
        %v1575 = vunpack.c.l.b16 %v1376
        %v1576 = vunpack.c.l.b16 %v1377
        %v1577 = vunpack.c.l.b16 %v1378
        %v1578 = vunpack.c.l.b16 %v1379
        %v1579 = vunpack.c.l.b16 %v1380
        %v1580 = vunpack.c.l.b16 %v1381
        %v1581 = vunpack.c.l.b16 %v1382
        %v1582 = vunpack.c.l.b16 %v1383
        %v1583 = vunpack.c.l.b16 %v1384
        %v1584 = vunpack.c.l.b16 %v1385
        %v1585 = vunpack.c.l.b16 %v1386
        %v1586 = vunpack.c.l.b16 %v1387
        %v1587 = vunpack.c.l.b16 %v1388
        %v1588 = vunpack.c.l.b16 %v1389
        %v1589 = vunpack.c.l.b16 %v1390
        %v1590 = vunpack.c.l.b16 %v1391
        %v1591 = vunpack.c.l.b16 %v1392
        %v1592 = vunpack.c.l.b16 %v1393
        %v1593 = vunpack.c.l.b16 %v1394
        %v1594 = vunpack.c.l.b16 %v1395
        %v1595 = vunpack.c.l.b16 %v1396
        %v1596 = vunpack.c.l.b16 %v1397
        %v1597 = vunpack.c.l.b16 %v1398
        %v1598 = vunpack.c.l.b16 %v1399
        %v1599 = vunpack.c.l.b16 %v1400
        %v1600 = vunpack.c.l.b16 %v1401
        %v1601 = vunpack.c.l.b16 %v1402
        %v1602 = vunpack.c.l.b16 %v1403
        %v1603 = vunpack.c.l.b16 %v1404
        %v1604 = vunpack.c.l.b16 %v1405
        %v1605 = vunpack.c.l.b16 %v1406
        %v1606 = vunpack.c.l.b16 %v1407
        %v1607 = vunpack.c.l.b16 %v1408
        %v1608 = vunpack.c.l.b16 %v1409
        %v1609 = vunpack.c.l.b16 %v1410
        %v1610 = vunpack.c.l.b16 %v1411
        %v1611 = vunpack.c.l.b16 %v1412
        %v1612 = vunpack.c.l.b16 %v1413
        %v1613 = vunpack.c.l.b16 %v1414
        %v1614 = vunpack.c.l.b16 %v1415
        %v1615 = vunpack.c.l.b16 %v1416
        %v1616 = vunpack.c.l.b16 %v1417
        %v1617 = vunpack.c.l.b16 %v1418
        %v1618 = vunpack.c.l.b16 %v1419
        %v1619 = vunpack.c.l.b16 %v1420
        %v1620 = vunpack.c.l.b16 %v1421
        %v1621 = vunpack.c.l.b16 %v1422
        %v1622 = vunpack.c.l.b16 %v1423
        %v1623 = vunpack.c.l.b16 %v1424
        %v1624 = vunpack.c.l.b16 %v1425
        %v1625 = vunpack.c.l.b16 %v1426
        %v1626 = vunpack.c.l.b16 %v1427
        %v1627 = vunpack.c.l.b16 %v1428
        %v1628 = vunpack.c.l.b16 %v1429
        %v1629 = vpack.c.b16 %v1534, %v1533
        %v1630 = vpack.c.b16 %v1536, %v1535
        %v1631 = vpack.c.b16 %v1538, %v1537
        %v1632 = vpack.c.b16 %v1540, %v1539
        %v1633 = vpack.c.b16 %v1542, %v1541
        %v1634 = vpack.c.b16 %v1544, %v1543
        %v1635 = vpack.c.b16 %v1546, %v1545
        %v1636 = vpack.c.b16 %v1548, %v1547
        %v1637 = vpack.c.b16 %v1550, %v1549
        %v1638 = vpack.c.b16 %v1552, %v1551
        %v1639 = vpack.c.b16 %v1554, %v1553
        %v1640 = vpack.c.b16 %v1556, %v1555
        %v1641 = vpack.c.b16 %v1558, %v1557
        %v1642 = vpack.c.b16 %v1560, %v1559
        %v1643 = vpack.c.b16 %v1562, %v1561
        %v1644 = vpack.c.b16 %v1564, %v1563
        %v1645 = vpack.c.b16 %v1566, %v1565
        %v1646 = vpack.c.b16 %v1568, %v1567
        %v1647 = vpack.c.b16 %v1570, %v1569
        %v1648 = vpack.c.b16 %v1572, %v1571
        %v1649 = vpack.c.b16 %v1574, %v1573
        %v1650 = vpack.c.b16 %v1576, %v1575
        %v1651 = vpack.c.b16 %v1578, %v1577
        %v1652 = vpack.c.b16 %v1580, %v1579
        %v1653 = vpack.c.b16 %v1582, %v1581
        %v1654 = vpack.c.b16 %v1584, %v1583
        %v1655 = vpack.c.b16 %v1586, %v1585
        %v1656 = vpack.c.b16 %v1588, %v1587
        %v1657 = vpack.c.b16 %v1590, %v1589
        %v1658 = vpack.c.b16 %v1592, %v1591
        %v1659 = vpack.c.b16 %v1594, %v1593
        %v1660 = vpack.c.b16 %v1596, %v1595
        %v1661 = vpack.c.b16 %v1598, %v1597
        %v1662 = vpack.c.b16 %v1600, %v1599
        %v1663 = vpack.c.b16 %v1602, %v1601
        %v1664 = vpack.c.b16 %v1604, %v1603
        %v1665 = vpack.c.b16 %v1606, %v1605
        %v1666 = vpack.c.b16 %v1608, %v1607
        %v1667 = vpack.c.b16 %v1610, %v1609
        %v1668 = vpack.c.b16 %v1612, %v1611
        %v1669 = vpack.c.b16 %v1614, %v1613
        %v1670 = vpack.c.b16 %v1616, %v1615
        %v1671 = vpack.c.b16 %v1618, %v1617
        %v1672 = vpack.c.b16 %v1620, %v1619
        %v1673 = vpack.c.b16 %v1622, %v1621
        %v1674 = vpack.c.b16 %v1624, %v1623
        %v1675 = vpack.c.b16 %v1626, %v1625
        %v1676 = vpack.c.b16 %v1628, %v1627
        %1725 = vmatprep.subr.bf16.mxu0 0
        %1726 = vmatpush1.bf16.msra.mxu0 %v1629
        %1727 = vmatprep.subr.bf16.mxu0 0
        %1728 = vmatpush1.bf16.msra.mxu0 %v1630
        %1729 = vmatprep.subr.bf16.mxu0 0
        %1730 = vmatpush1.bf16.msra.mxu0 %v1631
        %1731 = vmatprep.subr.bf16.mxu0 0
        %1732 = vmatpush1.bf16.msra.mxu0 %v1632
        %1733 = vmatprep.subr.bf16.mxu0 0
        %1734 = vmatpush1.bf16.msra.mxu0 %v1633
        %1735 = vmatprep.subr.bf16.mxu0 0
        %1736 = vmatpush1.bf16.msra.mxu0 %v1634
        %1737 = vmatprep.subr.bf16.mxu0 0
        %1738 = vmatpush1.bf16.msra.mxu0 %v1635
        %1739 = vmatprep.subr.bf16.mxu0 0
        %1740 = vmatpush1.bf16.msra.mxu0 %v1636
        %1741 = vmatprep.subr.bf16.mxu0 0
        %1742 = vmatpush1.bf16.msra.mxu0 %v1637
        %1743 = vmatprep.subr.bf16.mxu0 0
        %1744 = vmatpush1.bf16.msra.mxu0 %v1638
        %1745 = vmatprep.subr.bf16.mxu0 0
        %1746 = vmatpush1.bf16.msra.mxu0 %v1639
        %1747 = vmatprep.subr.bf16.mxu0 0
        %1748 = vmatpush1.bf16.msra.mxu0 %v1640
        %1749 = vmatprep.subr.bf16.mxu0 0
        %1750 = vmatpush1.bf16.msra.mxu0 %v1641
        %1751 = vmatprep.subr.bf16.mxu0 0
        %1752 = vmatpush1.bf16.msra.mxu0 %v1642
        %1753 = vmatprep.subr.bf16.mxu0 0
        %1754 = vmatpush1.bf16.msra.mxu0 %v1643
        %1755 = vmatprep.subr.bf16.mxu0 0
        %1756 = vmatpush1.bf16.msra.mxu0 %v1644
        %1757 = vmatprep.mubr.bf16.mxu0 %v1239
        %1758 = vmatmul.mubr.bf16.gmra.mrb[0].mxu0 %v1238
        %v1759 = vpop.f32.mrb[0].mxu0
        %v1760 = vadd.f32 %v1435, %v1759
        %v1761 = vpop.f32.mrb[0].mxu0
        %v1762 = vpop.f32.mrb[0].mxu0
        %v1763 = vadd.f32 %v1435, %v1762
        %v1764 = vpop.f32.mrb[0].mxu0
        %1765 = vmatprep.mubr.bf16.mxu0 %v1245
        %1766 = vmatmul.mubr.bf16.gmra.mrb[0].mxu0 %v1244
        %v1767 = vpop.f32.mrb[0].mxu0
        %v1768 = vadd.f32 %v1435, %v1767
        %v1769 = vpop.f32.mrb[0].mxu0
        %v1770 = vpop.f32.mrb[0].mxu0
        %v1771 = vadd.f32 %v1435, %v1770
        %v1772 = vpop.f32.mrb[0].mxu0
        %1773 = vmatprep.mubr.bf16.mxu0 %v1251
        %1774 = vmatmul.mubr.bf16.gmra.mrb[0].mxu0 %v1250
        %v1775 = vpop.f32.mrb[0].mxu0
        %v1776 = vadd.f32 %v1435, %v1775
        %v1777 = vpop.f32.mrb[0].mxu0
        %v1778 = vpop.f32.mrb[0].mxu0
        %v1779 = vadd.f32 %v1435, %v1778
        %v1780 = vpop.f32.mrb[0].mxu0
        %1781 = vmatprep.mubr.bf16.mxu0 %v1257
        %1782 = vmatmul.mubr.bf16.gmra.mrb[0].mxu0 %v1256
        %v1783 = vpop.f32.mrb[0].mxu0
        %v1784 = vadd.f32 %v1435, %v1783
        %v1785 = vpop.f32.mrb[0].mxu0
        %v1786 = vpop.f32.mrb[0].mxu0
        %v1787 = vadd.f32 %v1435, %v1786
        %v1788 = vpop.f32.mrb[0].mxu0
        %1789 = vmatprep.mubr.bf16.mxu0 %v1263
        %1790 = vmatmul.mubr.bf16.gmra.mrb[0].mxu0 %v1262
        %v1791 = vpop.f32.mrb[0].mxu0
        %v1792 = vadd.f32 %v1435, %v1791
        %v1793 = vpop.f32.mrb[0].mxu0
        %v1794 = vpop.f32.mrb[0].mxu0
        %v1795 = vadd.f32 %v1435, %v1794
        %v1796 = vpop.f32.mrb[0].mxu0
        %1797 = vmatprep.mubr.bf16.mxu0 %v1269
        %1798 = vmatmul.mubr.bf16.gmra.mrb[0].mxu0 %v1268
        %v1799 = vpop.f32.mrb[0].mxu0
        %v1800 = vadd.f32 %v1435, %v1799
        %v1801 = vpop.f32.mrb[0].mxu0
        %v1802 = vpop.f32.mrb[0].mxu0
        %v1803 = vadd.f32 %v1435, %v1802
        %v1804 = vpop.f32.mrb[0].mxu0
        %1805 = vmatprep.mubr.bf16.mxu0 %v1275
        %1806 = vmatmul.mubr.bf16.gmra.mrb[0].mxu0 %v1274
        %v1807 = vpop.f32.mrb[0].mxu0
        %v1808 = vadd.f32 %v1435, %v1807
        %v1809 = vpop.f32.mrb[0].mxu0
        %v1810 = vpop.f32.mrb[0].mxu0
        %v1811 = vadd.f32 %v1435, %v1810
        %v1812 = vpop.f32.mrb[0].mxu0
        %1813 = vmatprep.mubr.bf16.mxu0 %v1281
        %1814 = vmatmul.mubr.bf16.gmra.mrb[0].mxu0 %v1280
        %v1815 = vpop.f32.mrb[0].mxu0
        %v1816 = vadd.f32 %v1435, %v1815
        %v1817 = vpop.f32.mrb[0].mxu0
        %v1818 = vpop.f32.mrb[0].mxu0
        %v1819 = vadd.f32 %v1435, %v1818
        %v1820 = vpop.f32.mrb[0].mxu0
        %1821 = vmatprep.mubr.bf16.mxu0 %v1287
        %1822 = vmatmul.mubr.bf16.gmra.mrb[0].mxu0 %v1286
        %v1823 = vpop.f32.mrb[0].mxu0
        %v1824 = vadd.f32 %v1435, %v1823
        %v1825 = vpop.f32.mrb[0].mxu0
        %v1826 = vpop.f32.mrb[0].mxu0
        %v1827 = vadd.f32 %v1435, %v1826
        %v1828 = vpop.f32.mrb[0].mxu0
        %1829 = vmatprep.mubr.bf16.mxu0 %v1293
        %1830 = vmatmul.mubr.bf16.gmra.mrb[0].mxu0 %v1292
        %v1831 = vpop.f32.mrb[0].mxu0
        %v1832 = vadd.f32 %v1435, %v1831
        %v1833 = vpop.f32.mrb[0].mxu0
        %v1834 = vpop.f32.mrb[0].mxu0
        %v1835 = vadd.f32 %v1435, %v1834
        %v1836 = vpop.f32.mrb[0].mxu0
        %1837 = vmatprep.mubr.bf16.mxu0 %v1299
        %1838 = vmatmul.mubr.bf16.gmra.mrb[0].mxu0 %v1298
        %v1839 = vpop.f32.mrb[0].mxu0
        %v1840 = vadd.f32 %v1435, %v1839
        %v1841 = vpop.f32.mrb[0].mxu0
        %v1842 = vpop.f32.mrb[0].mxu0
        %v1843 = vadd.f32 %v1435, %v1842
        %v1844 = vpop.f32.mrb[0].mxu0
        %1845 = vmatprep.mubr.bf16.mxu0 %v1305
        %1846 = vmatmul.mubr.bf16.gmra.mrb[0].mxu0 %v1304
        %v1847 = vpop.f32.mrb[0].mxu0
        %v1848 = vadd.f32 %v1435, %v1847
        %v1849 = vpop.f32.mrb[0].mxu0
        %v1850 = vpop.f32.mrb[0].mxu0
        %v1851 = vadd.f32 %v1435, %v1850
        %v1852 = vpop.f32.mrb[0].mxu0
        %1853 = vmatprep.mubr.bf16.mxu0 %v1311
        %1854 = vmatmul.mubr.bf16.gmra.mrb[0].mxu0 %v1310
        %v1855 = vpop.f32.mrb[0].mxu0
        %v1856 = vadd.f32 %v1435, %v1855
        %v1857 = vpop.f32.mrb[0].mxu0
        %v1858 = vpop.f32.mrb[0].mxu0
        %v1859 = vadd.f32 %v1435, %v1858
        %v1860 = vpop.f32.mrb[0].mxu0
        %1861 = vmatprep.mubr.bf16.mxu0 %v1317
        %1862 = vmatmul.mubr.bf16.gmra.mrb[0].mxu0 %v1316
        %v1863 = vpop.f32.mrb[0].mxu0
        %v1864 = vadd.f32 %v1435, %v1863
        %v1865 = vpop.f32.mrb[0].mxu0
        %v1866 = vpop.f32.mrb[0].mxu0
        %v1867 = vadd.f32 %v1435, %v1866
        %v1868 = vpop.f32.mrb[0].mxu0
        %1869 = vmatprep.mubr.bf16.mxu0 %v1323
        %1870 = vmatmul.mubr.bf16.gmra.mrb[0].mxu0 %v1322
        %v1871 = vpop.f32.mrb[0].mxu0
        %v1872 = vadd.f32 %v1435, %v1871
        %v1873 = vpop.f32.mrb[0].mxu0
        %v1874 = vpop.f32.mrb[0].mxu0
        %v1875 = vadd.f32 %v1435, %v1874
        %v1876 = vpop.f32.mrb[0].mxu0
        %1877 = vmatprep.mubr.bf16.mxu0 %v1329
        %1878 = vmatmul.mubr.bf16.gmra.mrb[0].mxu0 %v1328
        %v1879 = vpop.f32.mrb[0].mxu0
        %v1880 = vadd.f32 %v1435, %v1879
        %v1881 = vpop.f32.mrb[0].mxu0
        %v1882 = vpop.f32.mrb[0].mxu0
        %v1883 = vadd.f32 %v1435, %v1882
        %v1884 = vpop.f32.mrb[0].mxu0
        %1885 = vdwg.mxu0
        %1886 = vmatprep.subr.bf16.mxu0 0
        %1887 = vmatpush1.bf16.msra.mxu0 %v1645
        %1888 = vmatprep.subr.bf16.mxu0 0
        %1889 = vmatpush1.bf16.msra.mxu0 %v1646
        %1890 = vmatprep.subr.bf16.mxu0 0
        %1891 = vmatpush1.bf16.msra.mxu0 %v1647
        %1892 = vmatprep.subr.bf16.mxu0 0
        %1893 = vmatpush1.bf16.msra.mxu0 %v1648
        %1894 = vmatprep.subr.bf16.mxu0 0
        %1895 = vmatpush1.bf16.msra.mxu0 %v1649
        %1896 = vmatprep.subr.bf16.mxu0 0
        %1897 = vmatpush1.bf16.msra.mxu0 %v1650
        %1898 = vmatprep.subr.bf16.mxu0 0
        %1899 = vmatpush1.bf16.msra.mxu0 %v1651
        %1900 = vmatprep.subr.bf16.mxu0 0
        %1901 = vmatpush1.bf16.msra.mxu0 %v1652
        %1902 = vmatprep.subr.bf16.mxu0 0
        %1903 = vmatpush1.bf16.msra.mxu0 %v1653
        %1904 = vmatprep.subr.bf16.mxu0 0
        %1905 = vmatpush1.bf16.msra.mxu0 %v1654
        %1906 = vmatprep.subr.bf16.mxu0 0
        %1907 = vmatpush1.bf16.msra.mxu0 %v1655
        %1908 = vmatprep.subr.bf16.mxu0 0
        %1909 = vmatpush1.bf16.msra.mxu0 %v1656
        %1910 = vmatprep.subr.bf16.mxu0 0
        %1911 = vmatpush1.bf16.msra.mxu0 %v1657
        %1912 = vmatprep.subr.bf16.mxu0 0
        %1913 = vmatpush1.bf16.msra.mxu0 %v1658
        %1914 = vmatprep.subr.bf16.mxu0 0
        %1915 = vmatpush1.bf16.msra.mxu0 %v1659
        %1916 = vmatprep.subr.bf16.mxu0 0
        %1917 = vmatpush1.bf16.msra.mxu0 %v1660
        %1918 = vmatprep.mubr.bf16.mxu0 %v1241
        %1919 = vmatmul.mubr.bf16.gmra.mrb[0].mxu0 %v1240
        %v1920 = vpop.f32.mrb[0].mxu0
        %v1921 = vadd.f32 %v1760, %v1920
        %v1922 = vpop.f32.mrb[0].mxu0
        %v1923 = vpop.f32.mrb[0].mxu0
        %v1924 = vadd.f32 %v1763, %v1923
        %v1925 = vpop.f32.mrb[0].mxu0
        %1926 = vmatprep.mubr.bf16.mxu0 %v1247
        %1927 = vmatmul.mubr.bf16.gmra.mrb[0].mxu0 %v1246
        %v1928 = vpop.f32.mrb[0].mxu0
        %v1929 = vadd.f32 %v1768, %v1928
        %v1930 = vpop.f32.mrb[0].mxu0
        %v1931 = vpop.f32.mrb[0].mxu0
        %v1932 = vadd.f32 %v1771, %v1931
        %v1933 = vpop.f32.mrb[0].mxu0
        %1934 = vmatprep.mubr.bf16.mxu0 %v1253
        %1935 = vmatmul.mubr.bf16.gmra.mrb[0].mxu0 %v1252
        %v1936 = vpop.f32.mrb[0].mxu0
        %v1937 = vadd.f32 %v1776, %v1936
        %v1938 = vpop.f32.mrb[0].mxu0
        %v1939 = vpop.f32.mrb[0].mxu0
        %v1940 = vadd.f32 %v1779, %v1939
        %v1941 = vpop.f32.mrb[0].mxu0
        %1942 = vmatprep.mubr.bf16.mxu0 %v1259
        %1943 = vmatmul.mubr.bf16.gmra.mrb[0].mxu0 %v1258
        %v1944 = vpop.f32.mrb[0].mxu0
        %v1945 = vadd.f32 %v1784, %v1944
        %v1946 = vpop.f32.mrb[0].mxu0
        %v1947 = vpop.f32.mrb[0].mxu0
        %v1948 = vadd.f32 %v1787, %v1947
        %v1949 = vpop.f32.mrb[0].mxu0
        %1950 = vmatprep.mubr.bf16.mxu0 %v1265
        %1951 = vmatmul.mubr.bf16.gmra.mrb[0].mxu0 %v1264
        %v1952 = vpop.f32.mrb[0].mxu0
        %v1953 = vadd.f32 %v1792, %v1952
        %v1954 = vpop.f32.mrb[0].mxu0
        %v1955 = vpop.f32.mrb[0].mxu0
        %v1956 = vadd.f32 %v1795, %v1955
        %v1957 = vpop.f32.mrb[0].mxu0
        %1958 = vmatprep.mubr.bf16.mxu0 %v1271
        %1959 = vmatmul.mubr.bf16.gmra.mrb[0].mxu0 %v1270
        %v1960 = vpop.f32.mrb[0].mxu0
        %v1961 = vadd.f32 %v1800, %v1960
        %v1962 = vpop.f32.mrb[0].mxu0
        %v1963 = vpop.f32.mrb[0].mxu0
        %v1964 = vadd.f32 %v1803, %v1963
        %v1965 = vpop.f32.mrb[0].mxu0
        %1966 = vmatprep.mubr.bf16.mxu0 %v1277
        %1967 = vmatmul.mubr.bf16.gmra.mrb[0].mxu0 %v1276
        %v1968 = vpop.f32.mrb[0].mxu0
        %v1969 = vadd.f32 %v1808, %v1968
        %v1970 = vpop.f32.mrb[0].mxu0
        %v1971 = vpop.f32.mrb[0].mxu0
        %v1972 = vadd.f32 %v1811, %v1971
        %v1973 = vpop.f32.mrb[0].mxu0
        %1974 = vmatprep.mubr.bf16.mxu0 %v1283
        %1975 = vmatmul.mubr.bf16.gmra.mrb[0].mxu0 %v1282
        %v1976 = vpop.f32.mrb[0].mxu0
        %v1977 = vadd.f32 %v1816, %v1976
        %v1978 = vpop.f32.mrb[0].mxu0
        %v1979 = vpop.f32.mrb[0].mxu0
        %v1980 = vadd.f32 %v1819, %v1979
        %v1981 = vpop.f32.mrb[0].mxu0
        %1982 = vmatprep.mubr.bf16.mxu0 %v1289
        %1983 = vmatmul.mubr.bf16.gmra.mrb[0].mxu0 %v1288
        %v1984 = vpop.f32.mrb[0].mxu0
        %v1985 = vadd.f32 %v1824, %v1984
        %v1986 = vpop.f32.mrb[0].mxu0
        %v1987 = vpop.f32.mrb[0].mxu0
        %v1988 = vadd.f32 %v1827, %v1987
        %v1989 = vpop.f32.mrb[0].mxu0
        %1990 = vmatprep.mubr.bf16.mxu0 %v1295
        %1991 = vmatmul.mubr.bf16.gmra.mrb[0].mxu0 %v1294
        %v1992 = vpop.f32.mrb[0].mxu0
        %v1993 = vadd.f32 %v1832, %v1992
        %v1994 = vpop.f32.mrb[0].mxu0
        %v1995 = vpop.f32.mrb[0].mxu0
        %v1996 = vadd.f32 %v1835, %v1995
        %v1997 = vpop.f32.mrb[0].mxu0
        %1998 = vmatprep.mubr.bf16.mxu0 %v1301
        %1999 = vmatmul.mubr.bf16.gmra.mrb[0].mxu0 %v1300
        %v2000 = vpop.f32.mrb[0].mxu0
        %v2001 = vadd.f32 %v1840, %v2000
        %v2002 = vpop.f32.mrb[0].mxu0
        %v2003 = vpop.f32.mrb[0].mxu0
        %v2004 = vadd.f32 %v1843, %v2003
        %v2005 = vpop.f32.mrb[0].mxu0
        %2006 = vmatprep.mubr.bf16.mxu0 %v1307
        %2007 = vmatmul.mubr.bf16.gmra.mrb[0].mxu0 %v1306
        %v2008 = vpop.f32.mrb[0].mxu0
        %v2009 = vadd.f32 %v1848, %v2008
        %v2010 = vpop.f32.mrb[0].mxu0
        %v2011 = vpop.f32.mrb[0].mxu0
        %v2012 = vadd.f32 %v1851, %v2011
        %v2013 = vpop.f32.mrb[0].mxu0
        %2014 = vmatprep.mubr.bf16.mxu0 %v1313
        %2015 = vmatmul.mubr.bf16.gmra.mrb[0].mxu0 %v1312
        %v2016 = vpop.f32.mrb[0].mxu0
        %v2017 = vadd.f32 %v1856, %v2016
        %v2018 = vpop.f32.mrb[0].mxu0
        %v2019 = vpop.f32.mrb[0].mxu0
        %v2020 = vadd.f32 %v1859, %v2019
        %v2021 = vpop.f32.mrb[0].mxu0
        %2022 = vmatprep.mubr.bf16.mxu0 %v1319
        %2023 = vmatmul.mubr.bf16.gmra.mrb[0].mxu0 %v1318
        %v2024 = vpop.f32.mrb[0].mxu0
        %v2025 = vadd.f32 %v1864, %v2024
        %v2026 = vpop.f32.mrb[0].mxu0
        %v2027 = vpop.f32.mrb[0].mxu0
        %v2028 = vadd.f32 %v1867, %v2027
        %v2029 = vpop.f32.mrb[0].mxu0
        %2030 = vmatprep.mubr.bf16.mxu0 %v1325
        %2031 = vmatmul.mubr.bf16.gmra.mrb[0].mxu0 %v1324
        %v2032 = vpop.f32.mrb[0].mxu0
        %v2033 = vadd.f32 %v1872, %v2032
        %v2034 = vpop.f32.mrb[0].mxu0
        %v2035 = vpop.f32.mrb[0].mxu0
        %v2036 = vadd.f32 %v1875, %v2035
        %v2037 = vpop.f32.mrb[0].mxu0
        %2038 = vmatprep.mubr.bf16.mxu0 %v1331
        %2039 = vmatmul.mubr.bf16.gmra.mrb[0].mxu0 %v1330
        %v2040 = vpop.f32.mrb[0].mxu0
        %v2041 = vadd.f32 %v1880, %v2040
        %v2042 = vpop.f32.mrb[0].mxu0
        %v2043 = vpop.f32.mrb[0].mxu0
        %v2044 = vadd.f32 %v1883, %v2043
        %v2045 = vpop.f32.mrb[0].mxu0
        %2046 = vdwg.mxu0
        %2047 = vmatprep.subr.bf16.mxu0 0
        %2048 = vmatpush1.bf16.msra.mxu0 %v1661
        %2049 = vmatprep.subr.bf16.mxu0 0
        %2050 = vmatpush1.bf16.msra.mxu0 %v1662
        %2051 = vmatprep.subr.bf16.mxu0 0
        %2052 = vmatpush1.bf16.msra.mxu0 %v1663
        %2053 = vmatprep.subr.bf16.mxu0 0
        %2054 = vmatpush1.bf16.msra.mxu0 %v1664
        %2055 = vmatprep.subr.bf16.mxu0 0
        %2056 = vmatpush1.bf16.msra.mxu0 %v1665
        %2057 = vmatprep.subr.bf16.mxu0 0
        %2058 = vmatpush1.bf16.msra.mxu0 %v1666
        %2059 = vmatprep.subr.bf16.mxu0 0
        %2060 = vmatpush1.bf16.msra.mxu0 %v1667
        %2061 = vmatprep.subr.bf16.mxu0 0
        %2062 = vmatpush1.bf16.msra.mxu0 %v1668
        %2063 = vmatprep.subr.bf16.mxu0 0
        %2064 = vmatpush1.bf16.msra.mxu0 %v1669
        %2065 = vmatprep.subr.bf16.mxu0 0
        %2066 = vmatpush1.bf16.msra.mxu0 %v1670
        %2067 = vmatprep.subr.bf16.mxu0 0
        %2068 = vmatpush1.bf16.msra.mxu0 %v1671
        %2069 = vmatprep.subr.bf16.mxu0 0
        %2070 = vmatpush1.bf16.msra.mxu0 %v1672
        %2071 = vmatprep.subr.bf16.mxu0 0
        %2072 = vmatpush1.bf16.msra.mxu0 %v1673
        %2073 = vmatprep.subr.bf16.mxu0 0
        %2074 = vmatpush1.bf16.msra.mxu0 %v1674
        %2075 = vmatprep.subr.bf16.mxu0 0
        %2076 = vmatpush1.bf16.msra.mxu0 %v1675
        %2077 = vmatprep.subr.bf16.mxu0 0
        %2078 = vmatpush1.bf16.msra.mxu0 %v1676
        %2079 = vmatprep.mubr.bf16.mxu0 %v1243
        %2080 = vmatmul.mubr.bf16.gmra.mrb[0].mxu0 %v1242
        %v2081 = vpop.f32.mrb[0].mxu0
        %v2082 = vadd.f32 %v1921, %v2081
        %v2083 = vpop.f32.mrb[0].mxu0
        %v2084 = vpop.f32.mrb[0].mxu0
        %v2085 = vadd.f32 %v1924, %v2084
        %v2086 = vpop.f32.mrb[0].mxu0
        %2087 = vmatprep.mubr.bf16.mxu0 %v1249
        %2088 = vmatmul.mubr.bf16.gmra.mrb[0].mxu0 %v1248
        %v2089 = vpop.f32.mrb[0].mxu0
        %v2090 = vadd.f32 %v1929, %v2089
        %v2091 = vpop.f32.mrb[0].mxu0
        %v2092 = vpop.f32.mrb[0].mxu0
        %v2093 = vadd.f32 %v1932, %v2092
        %v2094 = vpop.f32.mrb[0].mxu0
        %2095 = vmatprep.mubr.bf16.mxu0 %v1255
        %2096 = vmatmul.mubr.bf16.gmra.mrb[0].mxu0 %v1254
        %v2097 = vpop.f32.mrb[0].mxu0
        %v2098 = vadd.f32 %v1937, %v2097
        %v2099 = vpop.f32.mrb[0].mxu0
        %v2100 = vpop.f32.mrb[0].mxu0
        %v2101 = vadd.f32 %v1940, %v2100
        %v2102 = vpop.f32.mrb[0].mxu0
        %2103 = vmatprep.mubr.bf16.mxu0 %v1261
        %2104 = vmatmul.mubr.bf16.gmra.mrb[0].mxu0 %v1260
        %v2105 = vpop.f32.mrb[0].mxu0
        %v2106 = vadd.f32 %v1945, %v2105
        %v2107 = vpop.f32.mrb[0].mxu0
        %v2108 = vpop.f32.mrb[0].mxu0
        %v2109 = vadd.f32 %v1948, %v2108
        %v2110 = vpop.f32.mrb[0].mxu0
        %2111 = vmatprep.mubr.bf16.mxu0 %v1267
        %2112 = vmatmul.mubr.bf16.gmra.mrb[0].mxu0 %v1266
        %v2113 = vpop.f32.mrb[0].mxu0
        %v2114 = vadd.f32 %v1953, %v2113
        %v2115 = vpop.f32.mrb[0].mxu0
        %v2116 = vpop.f32.mrb[0].mxu0
        %v2117 = vadd.f32 %v1956, %v2116
        %v2118 = vpop.f32.mrb[0].mxu0
        %2119 = vmatprep.mubr.bf16.mxu0 %v1273
        %2120 = vmatmul.mubr.bf16.gmra.mrb[0].mxu0 %v1272
        %v2121 = vpop.f32.mrb[0].mxu0
        %v2122 = vadd.f32 %v1961, %v2121
        %v2123 = vpop.f32.mrb[0].mxu0
        %v2124 = vpop.f32.mrb[0].mxu0
        %v2125 = vadd.f32 %v1964, %v2124
        %v2126 = vpop.f32.mrb[0].mxu0
        %2127 = vmatprep.mubr.bf16.mxu0 %v1279
        %2128 = vmatmul.mubr.bf16.gmra.mrb[0].mxu0 %v1278
        %v2129 = vpop.f32.mrb[0].mxu0
        %v2130 = vadd.f32 %v1969, %v2129
        %v2131 = vpop.f32.mrb[0].mxu0
        %v2132 = vpop.f32.mrb[0].mxu0
        %v2133 = vadd.f32 %v1972, %v2132
        %v2134 = vpop.f32.mrb[0].mxu0
        %2135 = vmatprep.mubr.bf16.mxu0 %v1285
        %2136 = vmatmul.mubr.bf16.gmra.mrb[0].mxu0 %v1284
        %v2137 = vpop.f32.mrb[0].mxu0
        %v2138 = vadd.f32 %v1977, %v2137
        %v2139 = vpop.f32.mrb[0].mxu0
        %v2140 = vpop.f32.mrb[0].mxu0
        %v2141 = vadd.f32 %v1980, %v2140
        %v2142 = vpop.f32.mrb[0].mxu0
        %2143 = vmatprep.mubr.bf16.mxu0 %v1291
        %2144 = vmatmul.mubr.bf16.gmra.mrb[0].mxu0 %v1290
        %v2145 = vpop.f32.mrb[0].mxu0
        %v2146 = vadd.f32 %v1985, %v2145
        %v2147 = vpop.f32.mrb[0].mxu0
        %v2148 = vpop.f32.mrb[0].mxu0
        %v2149 = vadd.f32 %v1988, %v2148
        %v2150 = vpop.f32.mrb[0].mxu0
        %2151 = vmatprep.mubr.bf16.mxu0 %v1297
        %2152 = vmatmul.mubr.bf16.gmra.mrb[0].mxu0 %v1296
        %v2153 = vpop.f32.mrb[0].mxu0
        %v2154 = vadd.f32 %v1993, %v2153
        %v2155 = vpop.f32.mrb[0].mxu0
        %v2156 = vpop.f32.mrb[0].mxu0
        %v2157 = vadd.f32 %v1996, %v2156
        %v2158 = vpop.f32.mrb[0].mxu0
        %2159 = vmatprep.mubr.bf16.mxu0 %v1303
        %2160 = vmatmul.mubr.bf16.gmra.mrb[0].mxu0 %v1302
        %v2161 = vpop.f32.mrb[0].mxu0
        %v2162 = vadd.f32 %v2001, %v2161
        %v2163 = vpop.f32.mrb[0].mxu0
        %v2164 = vpop.f32.mrb[0].mxu0
        %v2165 = vadd.f32 %v2004, %v2164
        %v2166 = vpop.f32.mrb[0].mxu0
        %2167 = vmatprep.mubr.bf16.mxu0 %v1309
        %2168 = vmatmul.mubr.bf16.gmra.mrb[0].mxu0 %v1308
        %v2169 = vpop.f32.mrb[0].mxu0
        %v2170 = vadd.f32 %v2009, %v2169
        %v2171 = vpop.f32.mrb[0].mxu0
        %v2172 = vpop.f32.mrb[0].mxu0
        %v2173 = vadd.f32 %v2012, %v2172
        %v2174 = vpop.f32.mrb[0].mxu0
        %2175 = vmatprep.mubr.bf16.mxu0 %v1315
        %2176 = vmatmul.mubr.bf16.gmra.mrb[0].mxu0 %v1314
        %v2177 = vpop.f32.mrb[0].mxu0
        %v2178 = vadd.f32 %v2017, %v2177
        %v2179 = vpop.f32.mrb[0].mxu0
        %v2180 = vpop.f32.mrb[0].mxu0
        %v2181 = vadd.f32 %v2020, %v2180
        %v2182 = vpop.f32.mrb[0].mxu0
        %2183 = vmatprep.mubr.bf16.mxu0 %v1321
        %2184 = vmatmul.mubr.bf16.gmra.mrb[0].mxu0 %v1320
        %v2185 = vpop.f32.mrb[0].mxu0
        %v2186 = vadd.f32 %v2025, %v2185
        %v2187 = vpop.f32.mrb[0].mxu0
        %v2188 = vpop.f32.mrb[0].mxu0
        %v2189 = vadd.f32 %v2028, %v2188
        %v2190 = vpop.f32.mrb[0].mxu0
        %2191 = vmatprep.mubr.bf16.mxu0 %v1327
        %2192 = vmatmul.mubr.bf16.gmra.mrb[0].mxu0 %v1326
        %v2193 = vpop.f32.mrb[0].mxu0
        %v2194 = vadd.f32 %v2033, %v2193
        %v2195 = vpop.f32.mrb[0].mxu0
        %v2196 = vpop.f32.mrb[0].mxu0
        %v2197 = vadd.f32 %v2036, %v2196
        %v2198 = vpop.f32.mrb[0].mxu0
        %2199 = vmatprep.mubr.bf16.mxu0 %v1333
        %2200 = vmatmul.mubr.bf16.gmra.mrb[0].mxu0 %v1332
        %v2201 = vpop.f32.mrb[0].mxu0
        %v2202 = vadd.f32 %v2041, %v2201
        %v2203 = vpop.f32.mrb[0].mxu0
        %v2204 = vpop.f32.mrb[0].mxu0
        %v2205 = vadd.f32 %v2044, %v2204
        %v2206 = vpop.f32.mrb[0].mxu0
        %2207 = vdwg.mxu0
        %v2208 = vlaneseq
        %v2209 = vand.u32 %v2208, 127
        %vm2210 = vcmp.ge.s32.totalorder %v2209, 0
        %vm2211 = vcmp.lt.s32.totalorder %v2209, 8
        %vm2212 = vmand %vm2210, %vm2211
        %vm2213 = vcmp.ge.s32.totalorder %v2209, 8
        %vm2214 = vcmp.lt.s32.totalorder %v2209, 15
        %vm2215 = vmand %vm2213, %vm2214
        %vm2216 = vcmp.ge.s32.totalorder %v2209, 15
        %vm2217 = vcmp.lt.s32.totalorder %v2209, 25
        %vm2218 = vmand %vm2216, %vm2217
        %v2219 = vsel %vm2212, 1, 0
        %vm2220 = vcmp.eq.s32.totalorder %v2219, 1
        %v2221 = vsel %vm2220, %v2082, -inf
        %v2222 = vsel %vm2220, %v2085, -inf
        %v2223 = vsel %vm2220, %v2090, -inf
        %v2224 = vsel %vm2220, %v2093, -inf
        %v2225 = vsel %vm2220, %v2098, -inf
        %v2226 = vsel %vm2220, %v2101, -inf
        %v2227 = vsel %vm2220, %v2106, -inf
        %v2228 = vsel %vm2220, %v2109, -inf
        %v2229 = vsel %vm2220, %v2114, -inf
        %v2230 = vsel %vm2220, %v2117, -inf
        %v2231 = vsel %vm2220, %v2122, -inf
        %v2232 = vsel %vm2220, %v2125, -inf
        %v2233 = vsel %vm2220, %v2130, -inf
        %v2234 = vsel %vm2220, %v2133, -inf
        %v2235 = vsel %vm2220, %v2138, -inf
        %v2236 = vsel %vm2220, %v2141, -inf
        %v2237 = vsel %vm2220, %v2146, -inf
        %v2238 = vsel %vm2220, %v2149, -inf
        %v2239 = vsel %vm2220, %v2154, -inf
        %v2240 = vsel %vm2220, %v2157, -inf
        %v2241 = vsel %vm2220, %v2162, -inf
        %v2242 = vsel %vm2220, %v2165, -inf
        %v2243 = vsel %vm2220, %v2170, -inf
        %v2244 = vsel %vm2220, %v2173, -inf
        %v2245 = vsel %vm2220, %v2178, -inf
        %v2246 = vsel %vm2220, %v2181, -inf
        %v2247 = vsel %vm2220, %v2186, -inf
        %v2248 = vsel %vm2220, %v2189, -inf
        %v2249 = vsel %vm2220, %v2194, -inf
        %v2250 = vsel %vm2220, %v2197, -inf
        %v2251 = vsel %vm2220, %v2202, -inf
        %v2252 = vsel %vm2220, %v2205, -inf
        %2253 = vmax.xlane.f32.xlu0 %v2221
        %v2254 = vpop.xlane.xlu0 %2253
        %2255 = vmax.xlane.f32.xlu0 %v2222
        %v2256 = vpop.xlane.xlu0 %2255
        %2257 = vmax.xlane.f32.xlu0 %v2223
        %v2258 = vpop.xlane.xlu0 %2257
        %2259 = vmax.xlane.f32.xlu0 %v2224
        %v2260 = vpop.xlane.xlu0 %2259
        %2261 = vmax.xlane.f32.xlu0 %v2225
        %v2262 = vpop.xlane.xlu0 %2261
        %2263 = vmax.xlane.f32.xlu0 %v2226
        %v2264 = vpop.xlane.xlu0 %2263
        %2265 = vmax.xlane.f32.xlu0 %v2227
        %v2266 = vpop.xlane.xlu0 %2265
        %2267 = vmax.xlane.f32.xlu0 %v2228
        %v2268 = vpop.xlane.xlu0 %2267
        %2269 = vmax.xlane.f32.xlu0 %v2229
        %v2270 = vpop.xlane.xlu0 %2269
        %2271 = vmax.xlane.f32.xlu0 %v2230
        %v2272 = vpop.xlane.xlu0 %2271
        %2273 = vmax.xlane.f32.xlu0 %v2231
        %v2274 = vpop.xlane.xlu0 %2273
        %2275 = vmax.xlane.f32.xlu0 %v2232
        %v2276 = vpop.xlane.xlu0 %2275
        %2277 = vmax.xlane.f32.xlu0 %v2233
        %v2278 = vpop.xlane.xlu0 %2277
        %2279 = vmax.xlane.f32.xlu0 %v2234
        %v2280 = vpop.xlane.xlu0 %2279
        %2281 = vmax.xlane.f32.xlu0 %v2235
        %v2282 = vpop.xlane.xlu0 %2281
        %2283 = vmax.xlane.f32.xlu0 %v2236
        %v2284 = vpop.xlane.xlu0 %2283
        %2285 = vmax.xlane.f32.xlu0 %v2237
        %v2286 = vpop.xlane.xlu0 %2285
        %2287 = vmax.xlane.f32.xlu0 %v2238
        %v2288 = vpop.xlane.xlu0 %2287
        %2289 = vmax.xlane.f32.xlu0 %v2239
        %v2290 = vpop.xlane.xlu0 %2289
        %2291 = vmax.xlane.f32.xlu0 %v2240
        %v2292 = vpop.xlane.xlu0 %2291
        %2293 = vmax.xlane.f32.xlu0 %v2241
        %v2294 = vpop.xlane.xlu0 %2293
        %2295 = vmax.xlane.f32.xlu0 %v2242
        %v2296 = vpop.xlane.xlu0 %2295
        %2297 = vmax.xlane.f32.xlu0 %v2243
        %v2298 = vpop.xlane.xlu0 %2297
        %2299 = vmax.xlane.f32.xlu0 %v2244
        %v2300 = vpop.xlane.xlu0 %2299
        %2301 = vmax.xlane.f32.xlu0 %v2245
        %v2302 = vpop.xlane.xlu0 %2301
        %2303 = vmax.xlane.f32.xlu0 %v2246
        %v2304 = vpop.xlane.xlu0 %2303
        %2305 = vmax.xlane.f32.xlu0 %v2247
        %v2306 = vpop.xlane.xlu0 %2305
        %2307 = vmax.xlane.f32.xlu0 %v2248
        %v2308 = vpop.xlane.xlu0 %2307
        %2309 = vmax.xlane.f32.xlu0 %v2249
        %v2310 = vpop.xlane.xlu0 %2309
        %2311 = vmax.xlane.f32.xlu0 %v2250
        %v2312 = vpop.xlane.xlu0 %2311
        %2313 = vmax.xlane.f32.xlu0 %v2251
        %v2314 = vpop.xlane.xlu0 %2313
        %2315 = vmax.xlane.f32.xlu0 %v2252
        %v2316 = vpop.xlane.xlu0 %2315
        %v2317 = vsel %vm2220, %v2254, 0.0
        %v2318 = vsel %vm2220, %v2256, 0.0
        %v2319 = vsel %vm2220, %v2258, 0.0
        %v2320 = vsel %vm2220, %v2260, 0.0
        %v2321 = vsel %vm2220, %v2262, 0.0
        %v2322 = vsel %vm2220, %v2264, 0.0
        %v2323 = vsel %vm2220, %v2266, 0.0
        %v2324 = vsel %vm2220, %v2268, 0.0
        %v2325 = vsel %vm2220, %v2270, 0.0
        %v2326 = vsel %vm2220, %v2272, 0.0
        %v2327 = vsel %vm2220, %v2274, 0.0
        %v2328 = vsel %vm2220, %v2276, 0.0
        %v2329 = vsel %vm2220, %v2278, 0.0
        %v2330 = vsel %vm2220, %v2280, 0.0
        %v2331 = vsel %vm2220, %v2282, 0.0
        %v2332 = vsel %vm2220, %v2284, 0.0
        %v2333 = vsel %vm2220, %v2286, 0.0
        %v2334 = vsel %vm2220, %v2288, 0.0
        %v2335 = vsel %vm2220, %v2290, 0.0
        %v2336 = vsel %vm2220, %v2292, 0.0
        %v2337 = vsel %vm2220, %v2294, 0.0
        %v2338 = vsel %vm2220, %v2296, 0.0
        %v2339 = vsel %vm2220, %v2298, 0.0
        %v2340 = vsel %vm2220, %v2300, 0.0
        %v2341 = vsel %vm2220, %v2302, 0.0
        %v2342 = vsel %vm2220, %v2304, 0.0
        %v2343 = vsel %vm2220, %v2306, 0.0
        %v2344 = vsel %vm2220, %v2308, 0.0
        %v2345 = vsel %vm2220, %v2310, 0.0
        %v2346 = vsel %vm2220, %v2312, 0.0
        %v2347 = vsel %vm2220, %v2314, 0.0
        %v2348 = vsel %vm2220, %v2316, 0.0
        %v2349 = vsel %vm2215, 1, 0
        %vm2350 = vcmp.eq.s32.totalorder %v2349, 1
        %v2351 = vsel %vm2350, %v2082, -inf
        %v2352 = vsel %vm2350, %v2085, -inf
        %v2353 = vsel %vm2350, %v2090, -inf
        %v2354 = vsel %vm2350, %v2093, -inf
        %v2355 = vsel %vm2350, %v2098, -inf
        %v2356 = vsel %vm2350, %v2101, -inf
        %v2357 = vsel %vm2350, %v2106, -inf
        %v2358 = vsel %vm2350, %v2109, -inf
        %v2359 = vsel %vm2350, %v2114, -inf
        %v2360 = vsel %vm2350, %v2117, -inf
        %v2361 = vsel %vm2350, %v2122, -inf
        %v2362 = vsel %vm2350, %v2125, -inf
        %v2363 = vsel %vm2350, %v2130, -inf
        %v2364 = vsel %vm2350, %v2133, -inf
        %v2365 = vsel %vm2350, %v2138, -inf
        %v2366 = vsel %vm2350, %v2141, -inf
        %v2367 = vsel %vm2350, %v2146, -inf
        %v2368 = vsel %vm2350, %v2149, -inf
        %v2369 = vsel %vm2350, %v2154, -inf
        %v2370 = vsel %vm2350, %v2157, -inf
        %v2371 = vsel %vm2350, %v2162, -inf
        %v2372 = vsel %vm2350, %v2165, -inf
        %v2373 = vsel %vm2350, %v2170, -inf
        %v2374 = vsel %vm2350, %v2173, -inf
        %v2375 = vsel %vm2350, %v2178, -inf
        %v2376 = vsel %vm2350, %v2181, -inf
        %v2377 = vsel %vm2350, %v2186, -inf
        %v2378 = vsel %vm2350, %v2189, -inf
        %v2379 = vsel %vm2350, %v2194, -inf
        %v2380 = vsel %vm2350, %v2197, -inf
        %v2381 = vsel %vm2350, %v2202, -inf
        %v2382 = vsel %vm2350, %v2205, -inf
        %2383 = vmax.xlane.f32.xlu0 %v2351
        %v2384 = vpop.xlane.xlu0 %2383
        %2385 = vmax.xlane.f32.xlu0 %v2352
        %v2386 = vpop.xlane.xlu0 %2385
        %2387 = vmax.xlane.f32.xlu0 %v2353
        %v2388 = vpop.xlane.xlu0 %2387
        %2389 = vmax.xlane.f32.xlu0 %v2354
        %v2390 = vpop.xlane.xlu0 %2389
        %2391 = vmax.xlane.f32.xlu0 %v2355
        %v2392 = vpop.xlane.xlu0 %2391
        %2393 = vmax.xlane.f32.xlu0 %v2356
        %v2394 = vpop.xlane.xlu0 %2393
        %2395 = vmax.xlane.f32.xlu0 %v2357
        %v2396 = vpop.xlane.xlu0 %2395
        %2397 = vmax.xlane.f32.xlu0 %v2358
        %v2398 = vpop.xlane.xlu0 %2397
        %2399 = vmax.xlane.f32.xlu0 %v2359
        %v2400 = vpop.xlane.xlu0 %2399
        %2401 = vmax.xlane.f32.xlu0 %v2360
        %v2402 = vpop.xlane.xlu0 %2401
        %2403 = vmax.xlane.f32.xlu0 %v2361
        %v2404 = vpop.xlane.xlu0 %2403
        %2405 = vmax.xlane.f32.xlu0 %v2362
        %v2406 = vpop.xlane.xlu0 %2405
        %2407 = vmax.xlane.f32.xlu0 %v2363
        %v2408 = vpop.xlane.xlu0 %2407
        %2409 = vmax.xlane.f32.xlu0 %v2364
        %v2410 = vpop.xlane.xlu0 %2409
        %2411 = vmax.xlane.f32.xlu0 %v2365
        %v2412 = vpop.xlane.xlu0 %2411
        %2413 = vmax.xlane.f32.xlu0 %v2366
        %v2414 = vpop.xlane.xlu0 %2413
        %2415 = vmax.xlane.f32.xlu0 %v2367
        %v2416 = vpop.xlane.xlu0 %2415
        %2417 = vmax.xlane.f32.xlu0 %v2368
        %v2418 = vpop.xlane.xlu0 %2417
        %2419 = vmax.xlane.f32.xlu0 %v2369
        %v2420 = vpop.xlane.xlu0 %2419
        %2421 = vmax.xlane.f32.xlu0 %v2370
        %v2422 = vpop.xlane.xlu0 %2421
        %2423 = vmax.xlane.f32.xlu0 %v2371
        %v2424 = vpop.xlane.xlu0 %2423
        %2425 = vmax.xlane.f32.xlu0 %v2372
        %v2426 = vpop.xlane.xlu0 %2425
        %2427 = vmax.xlane.f32.xlu0 %v2373
        %v2428 = vpop.xlane.xlu0 %2427
        %2429 = vmax.xlane.f32.xlu0 %v2374
        %v2430 = vpop.xlane.xlu0 %2429
        %2431 = vmax.xlane.f32.xlu0 %v2375
        %v2432 = vpop.xlane.xlu0 %2431
        %2433 = vmax.xlane.f32.xlu0 %v2376
        %v2434 = vpop.xlane.xlu0 %2433
        %2435 = vmax.xlane.f32.xlu0 %v2377
        %v2436 = vpop.xlane.xlu0 %2435
        %2437 = vmax.xlane.f32.xlu0 %v2378
        %v2438 = vpop.xlane.xlu0 %2437
        %2439 = vmax.xlane.f32.xlu0 %v2379
        %v2440 = vpop.xlane.xlu0 %2439
        %2441 = vmax.xlane.f32.xlu0 %v2380
        %v2442 = vpop.xlane.xlu0 %2441
        %2443 = vmax.xlane.f32.xlu0 %v2381
        %v2444 = vpop.xlane.xlu0 %2443
        %2445 = vmax.xlane.f32.xlu0 %v2382
        %v2446 = vpop.xlane.xlu0 %2445
        %v2447 = vsel %vm2350, %v2384, %v2317
        %v2448 = vsel %vm2350, %v2386, %v2318
        %v2449 = vsel %vm2350, %v2388, %v2319
        %v2450 = vsel %vm2350, %v2390, %v2320
        %v2451 = vsel %vm2350, %v2392, %v2321
        %v2452 = vsel %vm2350, %v2394, %v2322
        %v2453 = vsel %vm2350, %v2396, %v2323
        %v2454 = vsel %vm2350, %v2398, %v2324
        %v2455 = vsel %vm2350, %v2400, %v2325
        %v2456 = vsel %vm2350, %v2402, %v2326
        %v2457 = vsel %vm2350, %v2404, %v2327
        %v2458 = vsel %vm2350, %v2406, %v2328
        %v2459 = vsel %vm2350, %v2408, %v2329
        %v2460 = vsel %vm2350, %v2410, %v2330
        %v2461 = vsel %vm2350, %v2412, %v2331
        %v2462 = vsel %vm2350, %v2414, %v2332
        %v2463 = vsel %vm2350, %v2416, %v2333
        %v2464 = vsel %vm2350, %v2418, %v2334
        %v2465 = vsel %vm2350, %v2420, %v2335
        %v2466 = vsel %vm2350, %v2422, %v2336
        %v2467 = vsel %vm2350, %v2424, %v2337
        %v2468 = vsel %vm2350, %v2426, %v2338
        %v2469 = vsel %vm2350, %v2428, %v2339
        %v2470 = vsel %vm2350, %v2430, %v2340
        %v2471 = vsel %vm2350, %v2432, %v2341
        %v2472 = vsel %vm2350, %v2434, %v2342
        %v2473 = vsel %vm2350, %v2436, %v2343
        %v2474 = vsel %vm2350, %v2438, %v2344
        %v2475 = vsel %vm2350, %v2440, %v2345
        %v2476 = vsel %vm2350, %v2442, %v2346
        %v2477 = vsel %vm2350, %v2444, %v2347
        %v2478 = vsel %vm2350, %v2446, %v2348
        %v2479 = vsel %vm2218, 1, 0
        %vm2480 = vcmp.eq.s32.totalorder %v2479, 1
        %v2481 = vsel %vm2480, %v2082, -inf
        %v2482 = vsel %vm2480, %v2085, -inf
        %v2483 = vsel %vm2480, %v2090, -inf
        %v2484 = vsel %vm2480, %v2093, -inf
        %v2485 = vsel %vm2480, %v2098, -inf
        %v2486 = vsel %vm2480, %v2101, -inf
        %v2487 = vsel %vm2480, %v2106, -inf
        %v2488 = vsel %vm2480, %v2109, -inf
        %v2489 = vsel %vm2480, %v2114, -inf
        %v2490 = vsel %vm2480, %v2117, -inf
        %v2491 = vsel %vm2480, %v2122, -inf
        %v2492 = vsel %vm2480, %v2125, -inf
        %v2493 = vsel %vm2480, %v2130, -inf
        %v2494 = vsel %vm2480, %v2133, -inf
        %v2495 = vsel %vm2480, %v2138, -inf
        %v2496 = vsel %vm2480, %v2141, -inf
        %v2497 = vsel %vm2480, %v2146, -inf
        %v2498 = vsel %vm2480, %v2149, -inf
        %v2499 = vsel %vm2480, %v2154, -inf
        %v2500 = vsel %vm2480, %v2157, -inf
        %v2501 = vsel %vm2480, %v2162, -inf
        %v2502 = vsel %vm2480, %v2165, -inf
        %v2503 = vsel %vm2480, %v2170, -inf
        %v2504 = vsel %vm2480, %v2173, -inf
        %v2505 = vsel %vm2480, %v2178, -inf
        %v2506 = vsel %vm2480, %v2181, -inf
        %v2507 = vsel %vm2480, %v2186, -inf
        %v2508 = vsel %vm2480, %v2189, -inf
        %v2509 = vsel %vm2480, %v2194, -inf
        %v2510 = vsel %vm2480, %v2197, -inf
        %v2511 = vsel %vm2480, %v2202, -inf
        %v2512 = vsel %vm2480, %v2205, -inf
        %2513 = vmax.xlane.f32.xlu0 %v2481
        %v2514 = vpop.xlane.xlu0 %2513
        %2515 = vmax.xlane.f32.xlu0 %v2482
        %v2516 = vpop.xlane.xlu0 %2515
        %2517 = vmax.xlane.f32.xlu0 %v2483
        %v2518 = vpop.xlane.xlu0 %2517
        %2519 = vmax.xlane.f32.xlu0 %v2484
        %v2520 = vpop.xlane.xlu0 %2519
        %2521 = vmax.xlane.f32.xlu0 %v2485
        %v2522 = vpop.xlane.xlu0 %2521
        %2523 = vmax.xlane.f32.xlu0 %v2486
        %v2524 = vpop.xlane.xlu0 %2523
        %2525 = vmax.xlane.f32.xlu0 %v2487
        %v2526 = vpop.xlane.xlu0 %2525
        %2527 = vmax.xlane.f32.xlu0 %v2488
        %v2528 = vpop.xlane.xlu0 %2527
        %2529 = vmax.xlane.f32.xlu0 %v2489
        %v2530 = vpop.xlane.xlu0 %2529
        %2531 = vmax.xlane.f32.xlu0 %v2490
        %v2532 = vpop.xlane.xlu0 %2531
        %2533 = vmax.xlane.f32.xlu0 %v2491
        %v2534 = vpop.xlane.xlu0 %2533
        %2535 = vmax.xlane.f32.xlu0 %v2492
        %v2536 = vpop.xlane.xlu0 %2535
        %2537 = vmax.xlane.f32.xlu0 %v2493
        %v2538 = vpop.xlane.xlu0 %2537
        %2539 = vmax.xlane.f32.xlu0 %v2494
        %v2540 = vpop.xlane.xlu0 %2539
        %2541 = vmax.xlane.f32.xlu0 %v2495
        %v2542 = vpop.xlane.xlu0 %2541
        %2543 = vmax.xlane.f32.xlu0 %v2496
        %v2544 = vpop.xlane.xlu0 %2543
        %2545 = vmax.xlane.f32.xlu0 %v2497
        %v2546 = vpop.xlane.xlu0 %2545
        %2547 = vmax.xlane.f32.xlu0 %v2498
        %v2548 = vpop.xlane.xlu0 %2547
        %2549 = vmax.xlane.f32.xlu0 %v2499
        %v2550 = vpop.xlane.xlu0 %2549
        %2551 = vmax.xlane.f32.xlu0 %v2500
        %v2552 = vpop.xlane.xlu0 %2551
        %2553 = vmax.xlane.f32.xlu0 %v2501
        %v2554 = vpop.xlane.xlu0 %2553
        %2555 = vmax.xlane.f32.xlu0 %v2502
        %v2556 = vpop.xlane.xlu0 %2555
        %2557 = vmax.xlane.f32.xlu0 %v2503
        %v2558 = vpop.xlane.xlu0 %2557
        %2559 = vmax.xlane.f32.xlu0 %v2504
        %v2560 = vpop.xlane.xlu0 %2559
        %2561 = vmax.xlane.f32.xlu0 %v2505
        %v2562 = vpop.xlane.xlu0 %2561
        %2563 = vmax.xlane.f32.xlu0 %v2506
        %v2564 = vpop.xlane.xlu0 %2563
        %2565 = vmax.xlane.f32.xlu0 %v2507
        %v2566 = vpop.xlane.xlu0 %2565
        %2567 = vmax.xlane.f32.xlu0 %v2508
        %v2568 = vpop.xlane.xlu0 %2567
        %2569 = vmax.xlane.f32.xlu0 %v2509
        %v2570 = vpop.xlane.xlu0 %2569
        %2571 = vmax.xlane.f32.xlu0 %v2510
        %v2572 = vpop.xlane.xlu0 %2571
        %2573 = vmax.xlane.f32.xlu0 %v2511
        %v2574 = vpop.xlane.xlu0 %2573
        %2575 = vmax.xlane.f32.xlu0 %v2512
        %v2576 = vpop.xlane.xlu0 %2575
        %v2577 = vsel %vm2480, %v2514, %v2447
        %v2578 = vsel %vm2480, %v2516, %v2448
        %v2579 = vsel %vm2480, %v2518, %v2449
        %v2580 = vsel %vm2480, %v2520, %v2450
        %v2581 = vsel %vm2480, %v2522, %v2451
        %v2582 = vsel %vm2480, %v2524, %v2452
        %v2583 = vsel %vm2480, %v2526, %v2453
        %v2584 = vsel %vm2480, %v2528, %v2454
        %v2585 = vsel %vm2480, %v2530, %v2455
        %v2586 = vsel %vm2480, %v2532, %v2456
        %v2587 = vsel %vm2480, %v2534, %v2457
        %v2588 = vsel %vm2480, %v2536, %v2458
        %v2589 = vsel %vm2480, %v2538, %v2459
        %v2590 = vsel %vm2480, %v2540, %v2460
        %v2591 = vsel %vm2480, %v2542, %v2461
        %v2592 = vsel %vm2480, %v2544, %v2462
        %v2593 = vsel %vm2480, %v2546, %v2463
        %v2594 = vsel %vm2480, %v2548, %v2464
        %v2595 = vsel %vm2480, %v2550, %v2465
        %v2596 = vsel %vm2480, %v2552, %v2466
        %v2597 = vsel %vm2480, %v2554, %v2467
        %v2598 = vsel %vm2480, %v2556, %v2468
        %v2599 = vsel %vm2480, %v2558, %v2469
        %v2600 = vsel %vm2480, %v2560, %v2470
        %v2601 = vsel %vm2480, %v2562, %v2471
        %v2602 = vsel %vm2480, %v2564, %v2472
        %v2603 = vsel %vm2480, %v2566, %v2473
        %v2604 = vsel %vm2480, %v2568, %v2474
        %v2605 = vsel %vm2480, %v2570, %v2475
        %v2606 = vsel %vm2480, %v2572, %v2476
        %v2607 = vsel %vm2480, %v2574, %v2477
        %v2608 = vsel %vm2480, %v2576, %v2478
        %v2609 = vsub.f32 %v2082, %v2577
        %v2610 = vsub.f32 %v2085, %v2578
        %v2611 = vsub.f32 %v2090, %v2579
        %v2612 = vsub.f32 %v2093, %v2580
        %v2613 = vsub.f32 %v2098, %v2581
        %v2614 = vsub.f32 %v2101, %v2582
        %v2615 = vsub.f32 %v2106, %v2583
        %v2616 = vsub.f32 %v2109, %v2584
        %v2617 = vsub.f32 %v2114, %v2585
        %v2618 = vsub.f32 %v2117, %v2586
        %v2619 = vsub.f32 %v2122, %v2587
        %v2620 = vsub.f32 %v2125, %v2588
        %v2621 = vsub.f32 %v2130, %v2589
        %v2622 = vsub.f32 %v2133, %v2590
        %v2623 = vsub.f32 %v2138, %v2591
        %v2624 = vsub.f32 %v2141, %v2592
        %v2625 = vsub.f32 %v2146, %v2593
        %v2626 = vsub.f32 %v2149, %v2594
        %v2627 = vsub.f32 %v2154, %v2595
        %v2628 = vsub.f32 %v2157, %v2596
        %v2629 = vsub.f32 %v2162, %v2597
        %v2630 = vsub.f32 %v2165, %v2598
        %v2631 = vsub.f32 %v2170, %v2599
        %v2632 = vsub.f32 %v2173, %v2600
        %v2633 = vsub.f32 %v2178, %v2601
        %v2634 = vsub.f32 %v2181, %v2602
        %v2635 = vsub.f32 %v2186, %v2603
        %v2636 = vsub.f32 %v2189, %v2604
        %v2637 = vsub.f32 %v2194, %v2605
        %v2638 = vsub.f32 %v2197, %v2606
        %v2639 = vsub.f32 %v2202, %v2607
        %v2640 = vsub.f32 %v2205, %v2608
        %v2641 = vmul.f32 %v2609, 1.442695
        %v2642 = vpow.pop %v2641
        %v2643 = vmul.f32 %v2610, 1.442695
        %v2644 = vpow.pop %v2643
        %v2645 = vmul.f32 %v2611, 1.442695
        %v2646 = vpow.pop %v2645
        %v2647 = vmul.f32 %v2612, 1.442695
        %v2648 = vpow.pop %v2647
        %v2649 = vmul.f32 %v2613, 1.442695
        %v2650 = vpow.pop %v2649
        %v2651 = vmul.f32 %v2614, 1.442695
        %v2652 = vpow.pop %v2651
        %v2653 = vmul.f32 %v2615, 1.442695
        %v2654 = vpow.pop %v2653
        %v2655 = vmul.f32 %v2616, 1.442695
        %v2656 = vpow.pop %v2655
        %v2657 = vmul.f32 %v2617, 1.442695
        %v2658 = vpow.pop %v2657
        %v2659 = vmul.f32 %v2618, 1.442695
        %v2660 = vpow.pop %v2659
        %v2661 = vmul.f32 %v2619, 1.442695
        %v2662 = vpow.pop %v2661
        %v2663 = vmul.f32 %v2620, 1.442695
        %v2664 = vpow.pop %v2663
        %v2665 = vmul.f32 %v2621, 1.442695
        %v2666 = vpow.pop %v2665
        %v2667 = vmul.f32 %v2622, 1.442695
        %v2668 = vpow.pop %v2667
        %v2669 = vmul.f32 %v2623, 1.442695
        %v2670 = vpow.pop %v2669
        %v2671 = vmul.f32 %v2624, 1.442695
        %v2672 = vpow.pop %v2671
        %v2673 = vmul.f32 %v2625, 1.442695
        %v2674 = vpow.pop %v2673
        %v2675 = vmul.f32 %v2626, 1.442695
        %v2676 = vpow.pop %v2675
        %v2677 = vmul.f32 %v2627, 1.442695
        %v2678 = vpow.pop %v2677
        %v2679 = vmul.f32 %v2628, 1.442695
        %v2680 = vpow.pop %v2679
        %v2681 = vmul.f32 %v2629, 1.442695
        %v2682 = vpow.pop %v2681
        %v2683 = vmul.f32 %v2630, 1.442695
        %v2684 = vpow.pop %v2683
        %v2685 = vmul.f32 %v2631, 1.442695
        %v2686 = vpow.pop %v2685
        %v2687 = vmul.f32 %v2632, 1.442695
        %v2688 = vpow.pop %v2687
        %v2689 = vmul.f32 %v2633, 1.442695
        %v2690 = vpow.pop %v2689
        %v2691 = vmul.f32 %v2634, 1.442695
        %v2692 = vpow.pop %v2691
        %v2693 = vmul.f32 %v2635, 1.442695
        %v2694 = vpow.pop %v2693
        %v2695 = vmul.f32 %v2636, 1.442695
        %v2696 = vpow.pop %v2695
        %v2697 = vmul.f32 %v2637, 1.442695
        %v2698 = vpow.pop %v2697
        %v2699 = vmul.f32 %v2638, 1.442695
        %v2700 = vpow.pop %v2699
        %v2701 = vmul.f32 %v2639, 1.442695
        %v2702 = vpow.pop %v2701
        %v2703 = vmul.f32 %v2640, 1.442695
        %v2704 = vpow.pop %v2703
        %v2705 = vsel %vm2220, %v2642, 0.0
        %v2706 = vsel %vm2220, %v2644, 0.0
        %v2707 = vsel %vm2220, %v2646, 0.0
        %v2708 = vsel %vm2220, %v2648, 0.0
        %v2709 = vsel %vm2220, %v2650, 0.0
        %v2710 = vsel %vm2220, %v2652, 0.0
        %v2711 = vsel %vm2220, %v2654, 0.0
        %v2712 = vsel %vm2220, %v2656, 0.0
        %v2713 = vsel %vm2220, %v2658, 0.0
        %v2714 = vsel %vm2220, %v2660, 0.0
        %v2715 = vsel %vm2220, %v2662, 0.0
        %v2716 = vsel %vm2220, %v2664, 0.0
        %v2717 = vsel %vm2220, %v2666, 0.0
        %v2718 = vsel %vm2220, %v2668, 0.0
        %v2719 = vsel %vm2220, %v2670, 0.0
        %v2720 = vsel %vm2220, %v2672, 0.0
        %v2721 = vsel %vm2220, %v2674, 0.0
        %v2722 = vsel %vm2220, %v2676, 0.0
        %v2723 = vsel %vm2220, %v2678, 0.0
        %v2724 = vsel %vm2220, %v2680, 0.0
        %v2725 = vsel %vm2220, %v2682, 0.0
        %v2726 = vsel %vm2220, %v2684, 0.0
        %v2727 = vsel %vm2220, %v2686, 0.0
        %v2728 = vsel %vm2220, %v2688, 0.0
        %v2729 = vsel %vm2220, %v2690, 0.0
        %v2730 = vsel %vm2220, %v2692, 0.0
        %v2731 = vsel %vm2220, %v2694, 0.0
        %v2732 = vsel %vm2220, %v2696, 0.0
        %v2733 = vsel %vm2220, %v2698, 0.0
        %v2734 = vsel %vm2220, %v2700, 0.0
        %v2735 = vsel %vm2220, %v2702, 0.0
        %v2736 = vsel %vm2220, %v2704, 0.0
        %2737 = vadd.xlane.f32.xlu0 %v2705
        %v2738 = vpop.xlane.xlu0 %2737
        %2739 = vadd.xlane.f32.xlu0 %v2706
        %v2740 = vpop.xlane.xlu0 %2739
        %2741 = vadd.xlane.f32.xlu0 %v2707
        %v2742 = vpop.xlane.xlu0 %2741
        %2743 = vadd.xlane.f32.xlu0 %v2708
        %v2744 = vpop.xlane.xlu0 %2743
        %2745 = vadd.xlane.f32.xlu0 %v2709
        %v2746 = vpop.xlane.xlu0 %2745
        %2747 = vadd.xlane.f32.xlu0 %v2710
        %v2748 = vpop.xlane.xlu0 %2747
        %2749 = vadd.xlane.f32.xlu0 %v2711
        %v2750 = vpop.xlane.xlu0 %2749
        %2751 = vadd.xlane.f32.xlu0 %v2712
        %v2752 = vpop.xlane.xlu0 %2751
        %2753 = vadd.xlane.f32.xlu0 %v2713
        %v2754 = vpop.xlane.xlu0 %2753
        %2755 = vadd.xlane.f32.xlu0 %v2714
        %v2756 = vpop.xlane.xlu0 %2755
        %2757 = vadd.xlane.f32.xlu0 %v2715
        %v2758 = vpop.xlane.xlu0 %2757
        %2759 = vadd.xlane.f32.xlu0 %v2716
        %v2760 = vpop.xlane.xlu0 %2759
        %2761 = vadd.xlane.f32.xlu0 %v2717
        %v2762 = vpop.xlane.xlu0 %2761
        %2763 = vadd.xlane.f32.xlu0 %v2718
        %v2764 = vpop.xlane.xlu0 %2763
        %2765 = vadd.xlane.f32.xlu0 %v2719
        %v2766 = vpop.xlane.xlu0 %2765
        %2767 = vadd.xlane.f32.xlu0 %v2720
        %v2768 = vpop.xlane.xlu0 %2767
        %2769 = vadd.xlane.f32.xlu0 %v2721
        %v2770 = vpop.xlane.xlu0 %2769
        %2771 = vadd.xlane.f32.xlu0 %v2722
        %v2772 = vpop.xlane.xlu0 %2771
        %2773 = vadd.xlane.f32.xlu0 %v2723
        %v2774 = vpop.xlane.xlu0 %2773
        %2775 = vadd.xlane.f32.xlu0 %v2724
        %v2776 = vpop.xlane.xlu0 %2775
        %2777 = vadd.xlane.f32.xlu0 %v2725
        %v2778 = vpop.xlane.xlu0 %2777
        %2779 = vadd.xlane.f32.xlu0 %v2726
        %v2780 = vpop.xlane.xlu0 %2779
        %2781 = vadd.xlane.f32.xlu0 %v2727
        %v2782 = vpop.xlane.xlu0 %2781
        %2783 = vadd.xlane.f32.xlu0 %v2728
        %v2784 = vpop.xlane.xlu0 %2783
        %2785 = vadd.xlane.f32.xlu0 %v2729
        %v2786 = vpop.xlane.xlu0 %2785
        %2787 = vadd.xlane.f32.xlu0 %v2730
        %v2788 = vpop.xlane.xlu0 %2787
        %2789 = vadd.xlane.f32.xlu0 %v2731
        %v2790 = vpop.xlane.xlu0 %2789
        %2791 = vadd.xlane.f32.xlu0 %v2732
        %v2792 = vpop.xlane.xlu0 %2791
        %2793 = vadd.xlane.f32.xlu0 %v2733
        %v2794 = vpop.xlane.xlu0 %2793
        %2795 = vadd.xlane.f32.xlu0 %v2734
        %v2796 = vpop.xlane.xlu0 %2795
        %2797 = vadd.xlane.f32.xlu0 %v2735
        %v2798 = vpop.xlane.xlu0 %2797
        %2799 = vadd.xlane.f32.xlu0 %v2736
        %v2800 = vpop.xlane.xlu0 %2799
        %v2801 = vrcp.pop %v2738
        %v2802 = vrcp.pop %v2740
        %v2803 = vrcp.pop %v2742
        %v2804 = vrcp.pop %v2744
        %v2805 = vrcp.pop %v2746
        %v2806 = vrcp.pop %v2748
        %v2807 = vrcp.pop %v2750
        %v2808 = vrcp.pop %v2752
        %v2809 = vrcp.pop %v2754
        %v2810 = vrcp.pop %v2756
        %v2811 = vrcp.pop %v2758
        %v2812 = vrcp.pop %v2760
        %v2813 = vrcp.pop %v2762
        %v2814 = vrcp.pop %v2764
        %v2815 = vrcp.pop %v2766
        %v2816 = vrcp.pop %v2768
        %v2817 = vrcp.pop %v2770
        %v2818 = vrcp.pop %v2772
        %v2819 = vrcp.pop %v2774
        %v2820 = vrcp.pop %v2776
        %v2821 = vrcp.pop %v2778
        %v2822 = vrcp.pop %v2780
        %v2823 = vrcp.pop %v2782
        %v2824 = vrcp.pop %v2784
        %v2825 = vrcp.pop %v2786
        %v2826 = vrcp.pop %v2788
        %v2827 = vrcp.pop %v2790
        %v2828 = vrcp.pop %v2792
        %v2829 = vrcp.pop %v2794
        %v2830 = vrcp.pop %v2796
        %v2831 = vrcp.pop %v2798
        %v2832 = vrcp.pop %v2800
        %v2833 = vsel %vm2220, %v2801, 0.0
        %v2834 = vsel %vm2220, %v2802, 0.0
        %v2835 = vsel %vm2220, %v2803, 0.0
        %v2836 = vsel %vm2220, %v2804, 0.0
        %v2837 = vsel %vm2220, %v2805, 0.0
        %v2838 = vsel %vm2220, %v2806, 0.0
        %v2839 = vsel %vm2220, %v2807, 0.0
        %v2840 = vsel %vm2220, %v2808, 0.0
        %v2841 = vsel %vm2220, %v2809, 0.0
        %v2842 = vsel %vm2220, %v2810, 0.0
        %v2843 = vsel %vm2220, %v2811, 0.0
        %v2844 = vsel %vm2220, %v2812, 0.0
        %v2845 = vsel %vm2220, %v2813, 0.0
        %v2846 = vsel %vm2220, %v2814, 0.0
        %v2847 = vsel %vm2220, %v2815, 0.0
        %v2848 = vsel %vm2220, %v2816, 0.0
        %v2849 = vsel %vm2220, %v2817, 0.0
        %v2850 = vsel %vm2220, %v2818, 0.0
        %v2851 = vsel %vm2220, %v2819, 0.0
        %v2852 = vsel %vm2220, %v2820, 0.0
        %v2853 = vsel %vm2220, %v2821, 0.0
        %v2854 = vsel %vm2220, %v2822, 0.0
        %v2855 = vsel %vm2220, %v2823, 0.0
        %v2856 = vsel %vm2220, %v2824, 0.0
        %v2857 = vsel %vm2220, %v2825, 0.0
        %v2858 = vsel %vm2220, %v2826, 0.0
        %v2859 = vsel %vm2220, %v2827, 0.0
        %v2860 = vsel %vm2220, %v2828, 0.0
        %v2861 = vsel %vm2220, %v2829, 0.0
        %v2862 = vsel %vm2220, %v2830, 0.0
        %v2863 = vsel %vm2220, %v2831, 0.0
        %v2864 = vsel %vm2220, %v2832, 0.0
        %v2865 = vsel %vm2350, %v2642, 0.0
        %v2866 = vsel %vm2350, %v2644, 0.0
        %v2867 = vsel %vm2350, %v2646, 0.0
        %v2868 = vsel %vm2350, %v2648, 0.0
        %v2869 = vsel %vm2350, %v2650, 0.0
        %v2870 = vsel %vm2350, %v2652, 0.0
        %v2871 = vsel %vm2350, %v2654, 0.0
        %v2872 = vsel %vm2350, %v2656, 0.0
        %v2873 = vsel %vm2350, %v2658, 0.0
        %v2874 = vsel %vm2350, %v2660, 0.0
        %v2875 = vsel %vm2350, %v2662, 0.0
        %v2876 = vsel %vm2350, %v2664, 0.0
        %v2877 = vsel %vm2350, %v2666, 0.0
        %v2878 = vsel %vm2350, %v2668, 0.0
        %v2879 = vsel %vm2350, %v2670, 0.0
        %v2880 = vsel %vm2350, %v2672, 0.0
        %v2881 = vsel %vm2350, %v2674, 0.0
        %v2882 = vsel %vm2350, %v2676, 0.0
        %v2883 = vsel %vm2350, %v2678, 0.0
        %v2884 = vsel %vm2350, %v2680, 0.0
        %v2885 = vsel %vm2350, %v2682, 0.0
        %v2886 = vsel %vm2350, %v2684, 0.0
        %v2887 = vsel %vm2350, %v2686, 0.0
        %v2888 = vsel %vm2350, %v2688, 0.0
        %v2889 = vsel %vm2350, %v2690, 0.0
        %v2890 = vsel %vm2350, %v2692, 0.0
        %v2891 = vsel %vm2350, %v2694, 0.0
        %v2892 = vsel %vm2350, %v2696, 0.0
        %v2893 = vsel %vm2350, %v2698, 0.0
        %v2894 = vsel %vm2350, %v2700, 0.0
        %v2895 = vsel %vm2350, %v2702, 0.0
        %v2896 = vsel %vm2350, %v2704, 0.0
        %2897 = vadd.xlane.f32.xlu0 %v2865
        %v2898 = vpop.xlane.xlu0 %2897
        %2899 = vadd.xlane.f32.xlu0 %v2866
        %v2900 = vpop.xlane.xlu0 %2899
        %2901 = vadd.xlane.f32.xlu0 %v2867
        %v2902 = vpop.xlane.xlu0 %2901
        %2903 = vadd.xlane.f32.xlu0 %v2868
        %v2904 = vpop.xlane.xlu0 %2903
        %2905 = vadd.xlane.f32.xlu0 %v2869
        %v2906 = vpop.xlane.xlu0 %2905
        %2907 = vadd.xlane.f32.xlu0 %v2870
        %v2908 = vpop.xlane.xlu0 %2907
        %2909 = vadd.xlane.f32.xlu0 %v2871
        %v2910 = vpop.xlane.xlu0 %2909
        %2911 = vadd.xlane.f32.xlu0 %v2872
        %v2912 = vpop.xlane.xlu0 %2911
        %2913 = vadd.xlane.f32.xlu0 %v2873
        %v2914 = vpop.xlane.xlu0 %2913
        %2915 = vadd.xlane.f32.xlu0 %v2874
        %v2916 = vpop.xlane.xlu0 %2915
        %2917 = vadd.xlane.f32.xlu0 %v2875
        %v2918 = vpop.xlane.xlu0 %2917
        %2919 = vadd.xlane.f32.xlu0 %v2876
        %v2920 = vpop.xlane.xlu0 %2919
        %2921 = vadd.xlane.f32.xlu0 %v2877
        %v2922 = vpop.xlane.xlu0 %2921
        %2923 = vadd.xlane.f32.xlu0 %v2878
        %v2924 = vpop.xlane.xlu0 %2923
        %2925 = vadd.xlane.f32.xlu0 %v2879
        %v2926 = vpop.xlane.xlu0 %2925
        %2927 = vadd.xlane.f32.xlu0 %v2880
        %v2928 = vpop.xlane.xlu0 %2927
        %2929 = vadd.xlane.f32.xlu0 %v2881
        %v2930 = vpop.xlane.xlu0 %2929
        %2931 = vadd.xlane.f32.xlu0 %v2882
        %v2932 = vpop.xlane.xlu0 %2931
        %2933 = vadd.xlane.f32.xlu0 %v2883
        %v2934 = vpop.xlane.xlu0 %2933
        %2935 = vadd.xlane.f32.xlu0 %v2884
        %v2936 = vpop.xlane.xlu0 %2935
        %2937 = vadd.xlane.f32.xlu0 %v2885
        %v2938 = vpop.xlane.xlu0 %2937
        %2939 = vadd.xlane.f32.xlu0 %v2886
        %v2940 = vpop.xlane.xlu0 %2939
        %2941 = vadd.xlane.f32.xlu0 %v2887
        %v2942 = vpop.xlane.xlu0 %2941
        %2943 = vadd.xlane.f32.xlu0 %v2888
        %v2944 = vpop.xlane.xlu0 %2943
        %2945 = vadd.xlane.f32.xlu0 %v2889
        %v2946 = vpop.xlane.xlu0 %2945
        %2947 = vadd.xlane.f32.xlu0 %v2890
        %v2948 = vpop.xlane.xlu0 %2947
        %2949 = vadd.xlane.f32.xlu0 %v2891
        %v2950 = vpop.xlane.xlu0 %2949
        %2951 = vadd.xlane.f32.xlu0 %v2892
        %v2952 = vpop.xlane.xlu0 %2951
        %2953 = vadd.xlane.f32.xlu0 %v2893
        %v2954 = vpop.xlane.xlu0 %2953
        %2955 = vadd.xlane.f32.xlu0 %v2894
        %v2956 = vpop.xlane.xlu0 %2955
        %2957 = vadd.xlane.f32.xlu0 %v2895
        %v2958 = vpop.xlane.xlu0 %2957
        %2959 = vadd.xlane.f32.xlu0 %v2896
        %v2960 = vpop.xlane.xlu0 %2959
        %v2961 = vrcp.pop %v2898
        %v2962 = vrcp.pop %v2900
        %v2963 = vrcp.pop %v2902
        %v2964 = vrcp.pop %v2904
        %v2965 = vrcp.pop %v2906
        %v2966 = vrcp.pop %v2908
        %v2967 = vrcp.pop %v2910
        %v2968 = vrcp.pop %v2912
        %v2969 = vrcp.pop %v2914
        %v2970 = vrcp.pop %v2916
        %v2971 = vrcp.pop %v2918
        %v2972 = vrcp.pop %v2920
        %v2973 = vrcp.pop %v2922
        %v2974 = vrcp.pop %v2924
        %v2975 = vrcp.pop %v2926
        %v2976 = vrcp.pop %v2928
        %v2977 = vrcp.pop %v2930
        %v2978 = vrcp.pop %v2932
        %v2979 = vrcp.pop %v2934
        %v2980 = vrcp.pop %v2936
        %v2981 = vrcp.pop %v2938
        %v2982 = vrcp.pop %v2940
        %v2983 = vrcp.pop %v2942
        %v2984 = vrcp.pop %v2944
        %v2985 = vrcp.pop %v2946
        %v2986 = vrcp.pop %v2948
        %v2987 = vrcp.pop %v2950
        %v2988 = vrcp.pop %v2952
        %v2989 = vrcp.pop %v2954
        %v2990 = vrcp.pop %v2956
        %v2991 = vrcp.pop %v2958
        %v2992 = vrcp.pop %v2960
        %v2993 = vsel %vm2350, %v2961, %v2833
        %v2994 = vsel %vm2350, %v2962, %v2834
        %v2995 = vsel %vm2350, %v2963, %v2835
        %v2996 = vsel %vm2350, %v2964, %v2836
        %v2997 = vsel %vm2350, %v2965, %v2837
        %v2998 = vsel %vm2350, %v2966, %v2838
        %v2999 = vsel %vm2350, %v2967, %v2839
        %v3000 = vsel %vm2350, %v2968, %v2840
        %v3001 = vsel %vm2350, %v2969, %v2841
        %v3002 = vsel %vm2350, %v2970, %v2842
        %v3003 = vsel %vm2350, %v2971, %v2843
        %v3004 = vsel %vm2350, %v2972, %v2844
        %v3005 = vsel %vm2350, %v2973, %v2845
        %v3006 = vsel %vm2350, %v2974, %v2846
        %v3007 = vsel %vm2350, %v2975, %v2847
        %v3008 = vsel %vm2350, %v2976, %v2848
        %v3009 = vsel %vm2350, %v2977, %v2849
        %v3010 = vsel %vm2350, %v2978, %v2850
        %v3011 = vsel %vm2350, %v2979, %v2851
        %v3012 = vsel %vm2350, %v2980, %v2852
        %v3013 = vsel %vm2350, %v2981, %v2853
        %v3014 = vsel %vm2350, %v2982, %v2854
        %v3015 = vsel %vm2350, %v2983, %v2855
        %v3016 = vsel %vm2350, %v2984, %v2856
        %v3017 = vsel %vm2350, %v2985, %v2857
        %v3018 = vsel %vm2350, %v2986, %v2858
        %v3019 = vsel %vm2350, %v2987, %v2859
        %v3020 = vsel %vm2350, %v2988, %v2860
        %v3021 = vsel %vm2350, %v2989, %v2861
        %v3022 = vsel %vm2350, %v2990, %v2862
        %v3023 = vsel %vm2350, %v2991, %v2863
        %v3024 = vsel %vm2350, %v2992, %v2864
        %v3025 = vsel %vm2480, %v2642, 0.0
        %v3026 = vsel %vm2480, %v2644, 0.0
        %v3027 = vsel %vm2480, %v2646, 0.0
        %v3028 = vsel %vm2480, %v2648, 0.0
        %v3029 = vsel %vm2480, %v2650, 0.0
        %v3030 = vsel %vm2480, %v2652, 0.0
        %v3031 = vsel %vm2480, %v2654, 0.0
        %v3032 = vsel %vm2480, %v2656, 0.0
        %v3033 = vsel %vm2480, %v2658, 0.0
        %v3034 = vsel %vm2480, %v2660, 0.0
        %v3035 = vsel %vm2480, %v2662, 0.0
        %v3036 = vsel %vm2480, %v2664, 0.0
        %v3037 = vsel %vm2480, %v2666, 0.0
        %v3038 = vsel %vm2480, %v2668, 0.0
        %v3039 = vsel %vm2480, %v2670, 0.0
        %v3040 = vsel %vm2480, %v2672, 0.0
        %v3041 = vsel %vm2480, %v2674, 0.0
        %v3042 = vsel %vm2480, %v2676, 0.0
        %v3043 = vsel %vm2480, %v2678, 0.0
        %v3044 = vsel %vm2480, %v2680, 0.0
        %v3045 = vsel %vm2480, %v2682, 0.0
        %v3046 = vsel %vm2480, %v2684, 0.0
        %v3047 = vsel %vm2480, %v2686, 0.0
        %v3048 = vsel %vm2480, %v2688, 0.0
        %v3049 = vsel %vm2480, %v2690, 0.0
        %v3050 = vsel %vm2480, %v2692, 0.0
        %v3051 = vsel %vm2480, %v2694, 0.0
        %v3052 = vsel %vm2480, %v2696, 0.0
        %v3053 = vsel %vm2480, %v2698, 0.0
        %v3054 = vsel %vm2480, %v2700, 0.0
        %v3055 = vsel %vm2480, %v2702, 0.0
        %v3056 = vsel %vm2480, %v2704, 0.0
        %3057 = vadd.xlane.f32.xlu0 %v3025
        %v3058 = vpop.xlane.xlu0 %3057
        %3059 = vadd.xlane.f32.xlu0 %v3026
        %v3060 = vpop.xlane.xlu0 %3059
        %3061 = vadd.xlane.f32.xlu0 %v3027
        %v3062 = vpop.xlane.xlu0 %3061
        %3063 = vadd.xlane.f32.xlu0 %v3028
        %v3064 = vpop.xlane.xlu0 %3063
        %3065 = vadd.xlane.f32.xlu0 %v3029
        %v3066 = vpop.xlane.xlu0 %3065
        %3067 = vadd.xlane.f32.xlu0 %v3030
        %v3068 = vpop.xlane.xlu0 %3067
        %3069 = vadd.xlane.f32.xlu0 %v3031
        %v3070 = vpop.xlane.xlu0 %3069
        %3071 = vadd.xlane.f32.xlu0 %v3032
        %v3072 = vpop.xlane.xlu0 %3071
        %3073 = vadd.xlane.f32.xlu0 %v3033
        %v3074 = vpop.xlane.xlu0 %3073
        %3075 = vadd.xlane.f32.xlu0 %v3034
        %v3076 = vpop.xlane.xlu0 %3075
        %3077 = vadd.xlane.f32.xlu0 %v3035
        %v3078 = vpop.xlane.xlu0 %3077
        %3079 = vadd.xlane.f32.xlu0 %v3036
        %v3080 = vpop.xlane.xlu0 %3079
        %3081 = vadd.xlane.f32.xlu0 %v3037
        %v3082 = vpop.xlane.xlu0 %3081
        %3083 = vadd.xlane.f32.xlu0 %v3038
        %v3084 = vpop.xlane.xlu0 %3083
        %3085 = vadd.xlane.f32.xlu0 %v3039
        %v3086 = vpop.xlane.xlu0 %3085
        %3087 = vadd.xlane.f32.xlu0 %v3040
        %v3088 = vpop.xlane.xlu0 %3087
        %3089 = vadd.xlane.f32.xlu0 %v3041
        %v3090 = vpop.xlane.xlu0 %3089
        %3091 = vadd.xlane.f32.xlu0 %v3042
        %v3092 = vpop.xlane.xlu0 %3091
        %3093 = vadd.xlane.f32.xlu0 %v3043
        %v3094 = vpop.xlane.xlu0 %3093
        %3095 = vadd.xlane.f32.xlu0 %v3044
        %v3096 = vpop.xlane.xlu0 %3095
        %3097 = vadd.xlane.f32.xlu0 %v3045
        %v3098 = vpop.xlane.xlu0 %3097
        %3099 = vadd.xlane.f32.xlu0 %v3046
        %v3100 = vpop.xlane.xlu0 %3099
        %3101 = vadd.xlane.f32.xlu0 %v3047
        %v3102 = vpop.xlane.xlu0 %3101
        %3103 = vadd.xlane.f32.xlu0 %v3048
        %v3104 = vpop.xlane.xlu0 %3103
        %3105 = vadd.xlane.f32.xlu0 %v3049
        %v3106 = vpop.xlane.xlu0 %3105
        %3107 = vadd.xlane.f32.xlu0 %v3050
        %v3108 = vpop.xlane.xlu0 %3107
        %3109 = vadd.xlane.f32.xlu0 %v3051
        %v3110 = vpop.xlane.xlu0 %3109
        %3111 = vadd.xlane.f32.xlu0 %v3052
        %v3112 = vpop.xlane.xlu0 %3111
        %3113 = vadd.xlane.f32.xlu0 %v3053
        %v3114 = vpop.xlane.xlu0 %3113
        %3115 = vadd.xlane.f32.xlu0 %v3054
        %v3116 = vpop.xlane.xlu0 %3115
        %3117 = vadd.xlane.f32.xlu0 %v3055
        %v3118 = vpop.xlane.xlu0 %3117
        %3119 = vadd.xlane.f32.xlu0 %v3056
        %v3120 = vpop.xlane.xlu0 %3119
        %v3121 = vrcp.pop %v3058
        %v3122 = vrcp.pop %v3060
        %v3123 = vrcp.pop %v3062
        %v3124 = vrcp.pop %v3064
        %v3125 = vrcp.pop %v3066
        %v3126 = vrcp.pop %v3068
        %v3127 = vrcp.pop %v3070
        %v3128 = vrcp.pop %v3072
        %v3129 = vrcp.pop %v3074
        %v3130 = vrcp.pop %v3076
        %v3131 = vrcp.pop %v3078
        %v3132 = vrcp.pop %v3080
        %v3133 = vrcp.pop %v3082
        %v3134 = vrcp.pop %v3084
        %v3135 = vrcp.pop %v3086
        %v3136 = vrcp.pop %v3088
        %v3137 = vrcp.pop %v3090
        %v3138 = vrcp.pop %v3092
        %v3139 = vrcp.pop %v3094
        %v3140 = vrcp.pop %v3096
        %v3141 = vrcp.pop %v3098
        %v3142 = vrcp.pop %v3100
        %v3143 = vrcp.pop %v3102
        %v3144 = vrcp.pop %v3104
        %v3145 = vrcp.pop %v3106
        %v3146 = vrcp.pop %v3108
        %v3147 = vrcp.pop %v3110
        %v3148 = vrcp.pop %v3112
        %v3149 = vrcp.pop %v3114
        %v3150 = vrcp.pop %v3116
        %v3151 = vrcp.pop %v3118
        %v3152 = vrcp.pop %v3120
        %v3153 = vsel %vm2480, %v3121, %v2993
        %v3154 = vsel %vm2480, %v3122, %v2994
        %v3155 = vsel %vm2480, %v3123, %v2995
        %v3156 = vsel %vm2480, %v3124, %v2996
        %v3157 = vsel %vm2480, %v3125, %v2997
        %v3158 = vsel %vm2480, %v3126, %v2998
        %v3159 = vsel %vm2480, %v3127, %v2999
        %v3160 = vsel %vm2480, %v3128, %v3000
        %v3161 = vsel %vm2480, %v3129, %v3001
        %v3162 = vsel %vm2480, %v3130, %v3002
        %v3163 = vsel %vm2480, %v3131, %v3003
        %v3164 = vsel %vm2480, %v3132, %v3004
        %v3165 = vsel %vm2480, %v3133, %v3005
        %v3166 = vsel %vm2480, %v3134, %v3006
        %v3167 = vsel %vm2480, %v3135, %v3007
        %v3168 = vsel %vm2480, %v3136, %v3008
        %v3169 = vsel %vm2480, %v3137, %v3009
        %v3170 = vsel %vm2480, %v3138, %v3010
        %v3171 = vsel %vm2480, %v3139, %v3011
        %v3172 = vsel %vm2480, %v3140, %v3012
        %v3173 = vsel %vm2480, %v3141, %v3013
        %v3174 = vsel %vm2480, %v3142, %v3014
        %v3175 = vsel %vm2480, %v3143, %v3015
        %v3176 = vsel %vm2480, %v3144, %v3016
        %v3177 = vsel %vm2480, %v3145, %v3017
        %v3178 = vsel %vm2480, %v3146, %v3018
        %v3179 = vsel %vm2480, %v3147, %v3019
        %v3180 = vsel %vm2480, %v3148, %v3020
        %v3181 = vsel %vm2480, %v3149, %v3021
        %v3182 = vsel %vm2480, %v3150, %v3022
        %v3183 = vsel %vm2480, %v3151, %v3023
        %v3184 = vsel %vm2480, %v3152, %v3024
        %v3185 = vmul.f32 %v2642, %v3153
        %v3186 = vmul.f32 %v2644, %v3154
        %v3187 = vmul.f32 %v2646, %v3155
        %v3188 = vmul.f32 %v2648, %v3156
        %v3189 = vmul.f32 %v2650, %v3157
        %v3190 = vmul.f32 %v2652, %v3158
        %v3191 = vmul.f32 %v2654, %v3159
        %v3192 = vmul.f32 %v2656, %v3160
        %v3193 = vmul.f32 %v2658, %v3161
        %v3194 = vmul.f32 %v2660, %v3162
        %v3195 = vmul.f32 %v2662, %v3163
        %v3196 = vmul.f32 %v2664, %v3164
        %v3197 = vmul.f32 %v2666, %v3165
        %v3198 = vmul.f32 %v2668, %v3166
        %v3199 = vmul.f32 %v2670, %v3167
        %v3200 = vmul.f32 %v2672, %v3168
        %v3201 = vmul.f32 %v2674, %v3169
        %v3202 = vmul.f32 %v2676, %v3170
        %v3203 = vmul.f32 %v2678, %v3171
        %v3204 = vmul.f32 %v2680, %v3172
        %v3205 = vmul.f32 %v2682, %v3173
        %v3206 = vmul.f32 %v2684, %v3174
        %v3207 = vmul.f32 %v2686, %v3175
        %v3208 = vmul.f32 %v2688, %v3176
        %v3209 = vmul.f32 %v2690, %v3177
        %v3210 = vmul.f32 %v2692, %v3178
        %v3211 = vmul.f32 %v2694, %v3179
        %v3212 = vmul.f32 %v2696, %v3180
        %v3213 = vmul.f32 %v2698, %v3181
        %v3214 = vmul.f32 %v2700, %v3182
        %v3215 = vmul.f32 %v2702, %v3183
        %v3216 = vmul.f32 %v2704, %v3184
        %3217 = vst [vmem:[%s245] sm:$0xff] %v3185
        %3218 = vst [vmem:[%s245 + $0x8] sm:$0xff] %v3186
        %3219 = vst [vmem:[%s245 + $0x10] sm:$0xff] %v3187
        %3220 = vst [vmem:[%s245 + $0x18] sm:$0xff] %v3188
        %3221 = vst [vmem:[%s245 + $0x20] sm:$0xff] %v3189
        %3222 = vst [vmem:[%s245 + $0x28] sm:$0xff] %v3190
        %3223 = vst [vmem:[%s245 + $0x30] sm:$0xff] %v3191
        %3224 = vst [vmem:[%s245 + $0x38] sm:$0xff] %v3192
        %3225 = vst [vmem:[%s245 + $0x40] sm:$0xff] %v3193
        %3226 = vst [vmem:[%s245 + $0x48] sm:$0xff] %v3194
        %3227 = vst [vmem:[%s245 + $0x50] sm:$0xff] %v3195
        %3228 = vst [vmem:[%s245 + $0x58] sm:$0xff] %v3196
        %3229 = vst [vmem:[%s245 + $0x60] sm:$0xff] %v3197
        %3230 = vst [vmem:[%s245 + $0x68] sm:$0xff] %v3198
        %3231 = vst [vmem:[%s245 + $0x70] sm:$0xff] %v3199
        %3232 = vst [vmem:[%s245 + $0x78] sm:$0xff] %v3200
        %3233 = vst [vmem:[%s245 + $0x80] sm:$0xff] %v3201
        %3234 = vst [vmem:[%s245 + $0x88] sm:$0xff] %v3202
        %3235 = vst [vmem:[%s245 + $0x90] sm:$0xff] %v3203
        %3236 = vst [vmem:[%s245 + $0x98] sm:$0xff] %v3204
        %3237 = vst [vmem:[%s245 + $0xa0] sm:$0xff] %v3205
        %3238 = vst [vmem:[%s245 + $0xa8] sm:$0xff] %v3206
        %3239 = vst [vmem:[%s245 + $0xb0] sm:$0xff] %v3207
        %3240 = vst [vmem:[%s245 + $0xb8] sm:$0xff] %v3208
        %3241 = vst [vmem:[%s245 + $0xc0] sm:$0xff] %v3209
        %3242 = vst [vmem:[%s245 + $0xc8] sm:$0xff] %v3210
        %3243 = vst [vmem:[%s245 + $0xd0] sm:$0xff] %v3211
        %3244 = vst [vmem:[%s245 + $0xd8] sm:$0xff] %v3212
        %3245 = vst [vmem:[%s245 + $0xe0] sm:$0xff] %v3213
        %3246 = vst [vmem:[%s245 + $0xe8] sm:$0xff] %v3214
        %3247 = vst [vmem:[%s245 + $0xf0] sm:$0xff] %v3215
        %3248 = vst [vmem:[%s245 + $0xf8] sm:$0xff] %v3216
        %s3249 = sand.u32 %s138, 1
        %s3250 = scalar_lea.sflag [#allocation4], %s3249
        %s3251 = sand.u32 %s138, 1
        %s3252 = smul.addr %s3251, 256
        %s3253 = scalar_lea.vmem [#allocation5], %s3252
        // Predicated region
        $region45: #{tpu_custom_call.1} parent=39 // pred_check
          %p3254 = pneg %p148
        $region46: #{tpu_custom_call.1} parent=39 // pred_check_branch
          %3256 = sbr.rel (%p3254) target = $region48
        $region47: #{tpu_custom_call.1} parent=39 // pred_region
          %s3257 = smul.u32 32, %s20
          %s3258 = ssub.s32 38, %s3257
          %p3259 = scmp.lt.s32.totalorder %s3258, 32
          %s3260 = scalar_select %p3259, %s3258, 32
          %s3261 = smul.u32 128, %s3260
          %s3263 = ssub.s32 4096, %s3261
          %3264 = vsyncadd %s3250, %s3263
          %p3265 = scmp.ne.s32.totalorder 0, %s3261
          %s3266 = smul.addr %s3257, 128
          %s3267 = scalar_lea.hbm %s5, %s3266
          %s3268 = smul.u32 8, %s3260
          %s3269 = sshll.u32 %s3253, 4
          %s3270 = int_to_ptr.vmem [resolvable:$true] %s3269
          %s3271 = sshll.u32 %s3268, 4
          %3275 = dma.vmem_to_hbm [thread:$0]  (%p3265), %s3270, %s3271, %s3267, %s3250, 128, 128, 8
        $region48: #{tpu_custom_call.1} parent=39 // pred_fallthru
          _
      $region40: #{tpu_custom_call.1} parent=5 // pred_fallthru
        _
      %p3276 = scmp.le.s32.totalorder 2, %s15
      // Predicated region
      $region49: #{tpu_custom_call.1} parent=5 // pred_check
        %p3277 = pneg %p3276
      $region50: #{tpu_custom_call.1} parent=5 // pred_check_branch
        %3279 = sbr.rel (%p3277) target = $region52
      $region51: #{tpu_custom_call.1} parent=5 // pred_region
        %s3280 = ssub.s32 %s15, 2
        // Predicated region
        $region53: #{tpu_custom_call.1} parent=51 // pred_check
          %p3281 = pneg %p154
        $region54: #{tpu_custom_call.1} parent=51 // pred_check_branch
          %3283 = sbr.rel (%p3281) target = $region56
        $region55: #{tpu_custom_call.1} parent=51 // pred_region
          %s3284 = sand.u32 %s139, 1
          %s3285 = scalar_lea.sflag [#allocation4], %s3284
          %s3286 = sand.u32 %s139, 1
          %s3287 = smul.addr %s3286, 256
          %s3288 = scalar_lea.vmem [#allocation5], %s3287
          %3289 = dma.done %s3285, 4096
        $region56: #{tpu_custom_call.1} parent=51 // pred_fallthru
          _
      $region52: #{tpu_custom_call.1} parent=5 // pred_fallthru
        _
    $region6: #{tpu_custom_call.1} parent=1 // loop_footer
      %s19 = sadd.s32 1, %s15
    $region7: #{tpu_custom_call.1} parent=1 // loop_footer_branch
      %14 = sbr.rel target = $region3
    $region8: #{tpu_custom_call.1} parent=1 // loop_exit
      _
    %3290 = vsyncpa [#allocation3], 1
    %s3291 = scalar_lea.sflag [#allocation3], 1
    %3292 = vsyncpa %s3291, 1
    %3293 = vsyncpa [#allocation4], 1
    %s3294 = scalar_lea.sflag [#allocation4], 1
    %3295 = vsyncpa %s3294, 1

// kernel: tpu_custom_call.1
$region0: #{tpu_custom_call.1}
  #allocation0 [shape = 'u32[]', space=smem, size = 0x4, offset = 0x4, fixed_abs, tag = 'smem constant byte address 0x4 - core index']
  #allocation1 [shape = 'u32[144,128]{1,0:T(1,128)}', space=vmem, size = 0x12000, scoped, tag = 'internal scratch']
  %s0 = inlined_call_operand.vmem [shape: f32[300,32], index: 0, kind: input, shape index: {}]
  %s1 = inlined_call_operand.hbm [shape: bf16[32,768], index: 1, kind: input, shape index: {}]
  %s2 = inlined_call_operand.vmem [shape: f32[1,768], index: 2, kind: input, shape index: {}]
  %s3 = inlined_call_operand.vmem [shape: bf16[768,128], index: 3, kind: input, shape index: {}]
  %s4 = inlined_call_operand.vmem [shape: f32[1,128], index: 4, kind: input, shape index: {}]
  %s5 = inlined_call_operand.hbm [shape: f32[300,128], index: 5, kind: output, shape index: {}]
  %s6 = sld [smem:[#allocation0]]
  $region57: #{tpu_custom_call.1} parent=0
    _
  %s8 = ssub.s32 1, %s6
  %s9 = scalar_select 0, %s8, %s6
  $region1: #{tpu_custom_call.1} parent=0
    #allocation2 [shape = 'u8[49152]{0}', space=vmem, size = 0xc000, scoped, tag = 'input window, operand 1, single buffered']
    #allocation3 [shape = 's32[2]{0}', space=sflag, size = 0x8, scoped, tag = 'scoped memory for tpu_custom_call.1']
    #allocation4 [shape = 's32[2]{0}', space=sflag, size = 0x8, scoped, tag = 'scoped memory for tpu_custom_call.1']
    #allocation5 [shape = 'u8[262144]{0}', space=vmem, size = 0x40000, scoped, tag = 'output window, operand 0']
    %10 = vsyncpa [#allocation3], 0
    %11 = vsyncpa [#allocation4], 0
    %s12 = scalar_lea.sflag [#allocation4], 1
    %13 = vsyncpa %s12, 0
    loop: start=0, step=1, limit=4
    $region2: #{tpu_custom_call.1} parent=1 // loop_pre_header
      _
    $region3: #{tpu_custom_call.1} parent=1 // loop_header
      %s15 = sphi 0, %s19
      %p16 = scmp.ge.s32.totalorder %s15, 4
      %s25 = sphi 0, %s27
      %s28 = sphi 0, %s25
      %s29 = sphi 0, %s28
      %s45 = sphi 0, %s29
      %s49 = sphi 0, %s49
      %s51 = sphi 0, %s49
      %s52 = sphi 0, %s51
      %s66 = sphi 0, %s52
      %s70 = sphi 0, %s70
      %s72 = sphi 0, %s70
      %s73 = sphi 0, %s72
      %s87 = sphi 0, %s73
      %s91 = sphi 0, %s91
      %s93 = sphi 0, %s91
      %s94 = sphi 0, %s93
      %s108 = sphi 0, %s94
      %s112 = sphi 0, %s112
      %s114 = sphi 0, %s112
      %s115 = sphi 0, %s114
      %s129 = sphi 0, %s115
      %s135 = sphi 0, %s137
      %s138 = sphi 0, %s135
      %s139 = sphi 0, %s138
      %s155 = sphi 0, %s139
    $region4: #{tpu_custom_call.1} parent=1 // loop_header_branch
      %18 = sbr.rel (%p16) target = $region8
    $region5: #{tpu_custom_call.1} parent=1 // loop_body
      %s20 = ssub.s32 %s15, 1
      %s21 = ssub.s32 %s15, 2
      %s22 = sadd.s32 %s15, 1
      %s23 = ssub.s32 %s15, %s22
      %p24 = scmp.eq.s32.totalorder %s23, 0
      %s26 = sadd.s32 %s25, 1
      %s27 = scalar_select %p24, %s25, %s26
      %p30 = pneg %p24
      %p31 = scmp.eq.s32.totalorder %s15, 1
      %p32 = por %p30, %p31
      %p33 = scmp.ne.s32.totalorder %s25, %s28
      %p34 = scmp.eq.s32.totalorder %s15, 0
      %p35 = por %p33, %p34
      %p36 = scmp.ne.s32.totalorder %s25, %s28
      %p37 = scmp.eq.s32.totalorder %s20, 1
      %p38 = por %p36, %p37
      %p39 = scmp.ne.s32.totalorder %s28, %s29
      %p40 = scmp.eq.s32.totalorder %s20, 0
      %p41 = por %p39, %p40
      %p42 = scmp.ne.s32.totalorder %s28, %s29
      %p43 = scmp.eq.s32.totalorder %s21, 1
      %p44 = por %p42, %p43
      %p46 = scmp.ne.s32.totalorder %s29, %s45
      %p47 = scmp.eq.s32.totalorder %s21, 0
      %p48 = por %p46, %p47
      %s50 = sadd.s32 %s49, 1
      %p53 = scmp.eq.s32.totalorder %s15, 1
      %p54 = scmp.ne.s32.totalorder %s49, %s51
      %p55 = scmp.eq.s32.totalorder %s15, 0
      %p56 = por %p54, %p55
      %p57 = scmp.ne.s32.totalorder %s49, %s51
      %p58 = scmp.eq.s32.totalorder %s20, 1
      %p59 = por %p57, %p58
      %p60 = scmp.ne.s32.totalorder %s51, %s52
      %p61 = scmp.eq.s32.totalorder %s20, 0
      %p62 = por %p60, %p61
      %p63 = scmp.ne.s32.totalorder %s51, %s52
      %p64 = scmp.eq.s32.totalorder %s21, 1
      %p65 = por %p63, %p64
      %p67 = scmp.ne.s32.totalorder %s52, %s66
      %p68 = scmp.eq.s32.totalorder %s21, 0
      %p69 = por %p67, %p68
      %s71 = sadd.s32 %s70, 1
      %p74 = scmp.eq.s32.totalorder %s15, 1
      %p75 = scmp.ne.s32.totalorder %s70, %s72
      %p76 = scmp.eq.s32.totalorder %s15, 0
      %p77 = por %p75, %p76
      %p78 = scmp.ne.s32.totalorder %s70, %s72
      %p79 = scmp.eq.s32.totalorder %s20, 1
      %p80 = por %p78, %p79
      %p81 = scmp.ne.s32.totalorder %s72, %s73
      %p82 = scmp.eq.s32.totalorder %s20, 0
      %p83 = por %p81, %p82
      %p84 = scmp.ne.s32.totalorder %s72, %s73
      %p85 = scmp.eq.s32.totalorder %s21, 1
      %p86 = por %p84, %p85
      %p88 = scmp.ne.s32.totalorder %s73, %s87
      %p89 = scmp.eq.s32.totalorder %s21, 0
      %p90 = por %p88, %p89
      %s92 = sadd.s32 %s91, 1
      %p95 = scmp.eq.s32.totalorder %s15, 1
      %p96 = scmp.ne.s32.totalorder %s91, %s93
      %p97 = scmp.eq.s32.totalorder %s15, 0
      %p98 = por %p96, %p97
      %p99 = scmp.ne.s32.totalorder %s91, %s93
      %p100 = scmp.eq.s32.totalorder %s20, 1
      %p101 = por %p99, %p100
      %p102 = scmp.ne.s32.totalorder %s93, %s94
      %p103 = scmp.eq.s32.totalorder %s20, 0
      %p104 = por %p102, %p103
      %p105 = scmp.ne.s32.totalorder %s93, %s94
      %p106 = scmp.eq.s32.totalorder %s21, 1
      %p107 = por %p105, %p106
      %p109 = scmp.ne.s32.totalorder %s94, %s108
      %p110 = scmp.eq.s32.totalorder %s21, 0
      %p111 = por %p109, %p110
      %s113 = sadd.s32 %s112, 1
      %p116 = scmp.eq.s32.totalorder %s15, 1
      %p117 = scmp.ne.s32.totalorder %s112, %s114
      %p118 = scmp.eq.s32.totalorder %s15, 0
      %p119 = por %p117, %p118
      %p120 = scmp.ne.s32.totalorder %s112, %s114
      %p121 = scmp.eq.s32.totalorder %s20, 1
      %p122 = por %p120, %p121
      %p123 = scmp.ne.s32.totalorder %s114, %s115
      %p124 = scmp.eq.s32.totalorder %s20, 0
      %p125 = por %p123, %p124
      %p126 = scmp.ne.s32.totalorder %s114, %s115
      %p127 = scmp.eq.s32.totalorder %s21, 1
      %p128 = por %p126, %p127
      %p130 = scmp.ne.s32.totalorder %s115, %s129
      %p131 = scmp.eq.s32.totalorder %s21, 0
      %p132 = por %p130, %p131
      %s133 = ssub.s32 %s15, %s22
      %p134 = scmp.eq.s32.totalorder %s133, 0
      %s136 = sadd.s32 %s135, 1
      %s137 = scalar_select %p134, %s135, %s136
      %p140 = pneg %p134
      %p141 = scmp.eq.s32.totalorder %s15, 1
      %p142 = por %p140, %p141
      %p143 = scmp.ne.s32.totalorder %s135, %s138
      %p144 = scmp.eq.s32.totalorder %s15, 0
      %p145 = por %p143, %p144
      %p146 = scmp.ne.s32.totalorder %s135, %s138
      %p147 = scmp.eq.s32.totalorder %s20, 1
      %p148 = por %p146, %p147
      %p149 = scmp.ne.s32.totalorder %s138, %s139
      %p150 = scmp.eq.s32.totalorder %s20, 0
      %p151 = por %p149, %p150
      %p152 = scmp.ne.s32.totalorder %s138, %s139
      %p153 = scmp.eq.s32.totalorder %s21, 1
      %p154 = por %p152, %p153
      %p156 = scmp.ne.s32.totalorder %s139, %s155
      %p157 = scmp.eq.s32.totalorder %s21, 0
      %p158 = por %p156, %p157
      %p159 = scmp.le.s32.totalorder 1, %s15
      %p160 = scmp.lt.s32.totalorder %s15, 3
      %p161 = pnand %p159, %p160
      %p162 = pneg %p161
      // Predicated region
      $region9: #{tpu_custom_call.1} parent=5 // pred_check
        _
      $region10: #{tpu_custom_call.1} parent=5 // pred_check_branch
        %164 = sbr.rel (%p161) target = $region12
      $region11: #{tpu_custom_call.1} parent=5 // pred_region
        %s165 = ssub.s32 %s15, 1
        // Predicated region
        $region13: #{tpu_custom_call.1} parent=11 // pred_check
          %p166 = pneg %p62
        $region14: #{tpu_custom_call.1} parent=11 // pred_check_branch
          %168 = sbr.rel (%p166) target = $region16
        $region15: #{tpu_custom_call.1} parent=11 // pred_region
          %s170 = ssub.s32 1536, 1536
          %171 = vsyncadd [#allocation3], %s170
          %s172 = sshll.u32 [#allocation2], 4
          %s173 = int_to_ptr.vmem [resolvable:$true] %s172
          %178 = dma.hbm_to_vmem [thread:$0]  %s1, 1536, %s173, [#allocation3], 384, 384, 24
        $region16: #{tpu_custom_call.1} parent=11 // pred_fallthru
          _
        // Predicated region
        $region17: #{tpu_custom_call.1} parent=11 // pred_check
          %p179 = pneg %p83
        $region18: #{tpu_custom_call.1} parent=11 // pred_check_branch
          %181 = sbr.rel (%p179) target = $region20
        $region19: #{tpu_custom_call.1} parent=11 // pred_region
          _
        $region20: #{tpu_custom_call.1} parent=11 // pred_fallthru
          _
        // Predicated region
        $region21: #{tpu_custom_call.1} parent=11 // pred_check
          %p182 = pneg %p104
        $region22: #{tpu_custom_call.1} parent=11 // pred_check_branch
          %184 = sbr.rel (%p182) target = $region24
        $region23: #{tpu_custom_call.1} parent=11 // pred_region
          _
        $region24: #{tpu_custom_call.1} parent=11 // pred_fallthru
          _
        // Predicated region
        $region25: #{tpu_custom_call.1} parent=11 // pred_check
          %p185 = pneg %p125
        $region26: #{tpu_custom_call.1} parent=11 // pred_check_branch
          %187 = sbr.rel (%p185) target = $region28
        $region27: #{tpu_custom_call.1} parent=11 // pred_region
          _
        $region28: #{tpu_custom_call.1} parent=11 // pred_fallthru
          _
      $region12: #{tpu_custom_call.1} parent=5 // pred_fallthru
        _
      %p188 = scmp.lt.s32.totalorder %s15, 2
      // Predicated region
      $region29: #{tpu_custom_call.1} parent=5 // pred_check
        %p189 = pneg %p188
      $region30: #{tpu_custom_call.1} parent=5 // pred_check_branch
        %191 = sbr.rel (%p189) target = $region32
      $region31: #{tpu_custom_call.1} parent=5 // pred_region
        // Predicated region
        $region33: #{tpu_custom_call.1} parent=31 // pred_check
          %p192 = pneg %p35
        $region34: #{tpu_custom_call.1} parent=31 // pred_check_branch
          %194 = sbr.rel (%p192) target = $region36
        $region35: #{tpu_custom_call.1} parent=31 // pred_region
          %s195 = smul.u32 32, %s15
          %s196 = ssub.s32 38, %s195
          %p197 = scmp.lt.s32.totalorder %s196, 32
          %s198 = scalar_select %p197, %s196, 32
          %s199 = smul.u32 128, %s198
          %p200 = scmp.lt.s32.totalorder %s195, 37
          %s201 = scalar_select %p200, %s195, 37
          %s202 = smul.addr %s201, 8
          %s203 = scalar_lea.vmem %s0, %s202
          %s204 = smul.u32 32, %s15
          %s205 = ssub.s32 38, %s204
          %p206 = scmp.lt.s32.totalorder %s205, 32
          %s207 = scalar_select %p206, %s205, 32
          %s208 = smul.u32 128, %s207
        $region36: #{tpu_custom_call.1} parent=31 // pred_fallthru
          _
      $region32: #{tpu_custom_call.1} parent=5 // pred_fallthru
        _
      %p209 = scmp.le.s32.totalorder 1, %s15
      %p210 = scmp.lt.s32.totalorder %s15, 3
      %p211 = pnand %p209, %p210
      %p212 = pneg %p211
      // Predicated region
      $region37: #{tpu_custom_call.1} parent=5 // pred_check
        _
      $region38: #{tpu_custom_call.1} parent=5 // pred_check_branch
        %214 = sbr.rel (%p211) target = $region40
      $region39: #{tpu_custom_call.1} parent=5 // pred_region
        %s215 = ssub.s32 %s15, 1
        // Predicated region
        $region41: #{tpu_custom_call.1} parent=39 // pred_check
          %p216 = pneg %p62
        $region42: #{tpu_custom_call.1} parent=39 // pred_check_branch
          %218 = sbr.rel (%p216) target = $region44
        $region43: #{tpu_custom_call.1} parent=39 // pred_region
          %219 = dma.done [#allocation3], 1536
        $region44: #{tpu_custom_call.1} parent=39 // pred_fallthru
          _
        %s220 = smul.u32 32, %s20
        %s221 = ssub.s32 38, %s220
        %p222 = scmp.lt.s32.totalorder %s221, 32
        %s223 = scalar_select %p222, %s221, 32
        %s224 = smul.u32 128, %s223
        %p225 = scmp.lt.s32.totalorder %s220, 37
        %s226 = scalar_select %p225, %s220, 37
        %s227 = smul.addr %s226, 8
        %s228 = scalar_lea.vmem %s0, %s227
        %p229 = pneg %p41
        %p230 = pneg %p38
        %p231 = pneg %p62
        %p232 = pneg %p59
        %p233 = pneg %p83
        %p234 = pneg %p80
        %p235 = pneg %p104
        %p236 = pneg %p101
        %p237 = pneg %p125
        %p238 = pneg %p122
        %p239 = pneg %p151
        %p240 = pneg %p148
        %s241 = sand.u32 %s138, 1
        %s242 = scalar_lea.sflag [#allocation4], %s241
        %s243 = sand.u32 %s138, 1
        %s244 = smul.addr %s243, 256
        %s245 = scalar_lea.vmem [#allocation5], %s244
        %s246 = smul.u32 32, %s20
        %s247 = ssub.s32 38, %s246
        %p248 = scmp.lt.s32.totalorder %s247, 32
        %s249 = scalar_select %p248, %s247, 32
        %s250 = smul.u32 128, %s249
        %p251 = scmp.lt.s32.totalorder %s246, 37
        %s252 = scalar_select %p251, %s246, 37
        %s253 = smul.addr %s252, 8
        %s254 = scalar_lea.vmem %s0, %s253
        %s255 = smul.u32 32, %s20
        %s256 = ssub.s32 38, %s255
        %p257 = scmp.lt.s32.totalorder %s256, 32
        %s258 = scalar_select %p257, %s256, 32
        %s259 = smul.u32 128, %s258
        %s260 = smul.u32 32, %s20
        %s261 = ssub.s32 38, %s260
        %p262 = scmp.lt.s32.totalorder %s261, 32
        %s263 = scalar_select %p262, %s261, 32
        %s264 = smul.u32 128, %s263
        %v266 = vld [vmem:[%s254] sm:$0xff]
        %v267 = vld [vmem:[%s254 + $0x8] sm:$0xff]
        %v268 = vld [vmem:[%s254 + $0x10] sm:$0xff]
        %v269 = vld [vmem:[%s254 + $0x18] sm:$0xff]
        %v270 = vld [vmem:[%s254 + $0x20] sm:$0xff]
        %v271 = vld [vmem:[%s254 + $0x28] sm:$0xff]
        %v272 = vld [vmem:[%s254 + $0x30] sm:$0xff]
        %v273 = vld [vmem:[%s254 + $0x38] sm:$0xff]
        %v274 = vld [vmem:[%s254 + $0x40] sm:$0xff]
        %v275 = vld [vmem:[%s254 + $0x48] sm:$0xff]
        %v276 = vld [vmem:[%s254 + $0x50] sm:$0xff]
        %v277 = vld [vmem:[%s254 + $0x58] sm:$0xff]
        %v278 = vld [vmem:[%s254 + $0x60] sm:$0xff]
        %v279 = vld [vmem:[%s254 + $0x68] sm:$0xff]
        %v280 = vld [vmem:[%s254 + $0x70] sm:$0xff]
        %v281 = vld [vmem:[%s254 + $0x78] sm:$0xff]
        %v282 = vld [vmem:[%s254 + $0x80] sm:$0xff]
        %v283 = vld [vmem:[%s254 + $0x88] sm:$0xff]
        %v284 = vld [vmem:[%s254 + $0x90] sm:$0xff]
        %v285 = vld [vmem:[%s254 + $0x98] sm:$0xff]
        %v286 = vld [vmem:[%s254 + $0xa0] sm:$0xff]
        %v287 = vld [vmem:[%s254 + $0xa8] sm:$0xff]
        %v288 = vld [vmem:[%s254 + $0xb0] sm:$0xff]
        %v289 = vld [vmem:[%s254 + $0xb8] sm:$0xff]
        %v290 = vld [vmem:[%s254 + $0xc0] sm:$0xff]
        %v291 = vld [vmem:[%s254 + $0xc8] sm:$0xff]
        %v292 = vld [vmem:[%s254 + $0xd0] sm:$0xff]
        %v293 = vld [vmem:[%s254 + $0xd8] sm:$0xff]
        %v294 = vld [vmem:[%s254 + $0xe0] sm:$0xff]
        %v295 = vld [vmem:[%s254 + $0xe8] sm:$0xff]
        %v296 = vld [vmem:[%s254 + $0xf0] sm:$0xff]
        %v297 = vld [vmem:[%s254 + $0xf8] sm:$0xff]
        %v298 = vpack.c.bf16 %v267, %v266
        %v299 = vpack.c.bf16 %v269, %v268
        %v300 = vpack.c.bf16 %v271, %v270
        %v301 = vpack.c.bf16 %v273, %v272
        %v302 = vpack.c.bf16 %v275, %v274
        %v303 = vpack.c.bf16 %v277, %v276
        %v304 = vpack.c.bf16 %v279, %v278
        %v305 = vpack.c.bf16 %v281, %v280
        %v306 = vpack.c.bf16 %v283, %v282
        %v307 = vpack.c.bf16 %v285, %v284
        %v308 = vpack.c.bf16 %v287, %v286
        %v309 = vpack.c.bf16 %v289, %v288
        %v310 = vpack.c.bf16 %v291, %v290
        %v311 = vpack.c.bf16 %v293, %v292
        %v312 = vpack.c.bf16 %v295, %v294
        %v313 = vpack.c.bf16 %v297, %v296
        %v314 = vld [vmem:[#allocation2] sm:$0xff]
        %v315 = vld [vmem:[#allocation2 + $0x8] sm:$0xff]
        %v316 = vld [vmem:[#allocation2 + $0x10] sm:$0xff]
        %v317 = vld [vmem:[#allocation2 + $0x18] sm:$0xff]
        %v318 = vld [vmem:[#allocation2 + $0x20] sm:$0xff]
        %v319 = vld [vmem:[#allocation2 + $0x28] sm:$0xff]
        %v320 = vld [vmem:[#allocation2 + $0x30] sm:$0xff]
        %v321 = vld [vmem:[#allocation2 + $0x38] sm:$0xff]
        %v322 = vld [vmem:[#allocation2 + $0x40] sm:$0xff]
        %v323 = vld [vmem:[#allocation2 + $0x48] sm:$0xff]
        %v324 = vld [vmem:[#allocation2 + $0x50] sm:$0xff]
        %v325 = vld [vmem:[#allocation2 + $0x58] sm:$0xff]
        %v326 = vld [vmem:[%s2] sm:$0x3f]
        %v328 = vlaneseq
        %v329 = vshrl.u32 %v328, 7
        %v330 = vsub.s32 0, %v329
        %v331 = vrot.slane %v326, %v330
        %v332 = vlaneseq
        %v333 = vshrl.u32 %v332, 7
        %v334 = vsub.s32 1, %v333
        %v335 = vrot.slane %v326, %v334
        %v336 = vlaneseq
        %v337 = vshrl.u32 %v336, 7
        %v338 = vsub.s32 2, %v337
        %v339 = vrot.slane %v326, %v338
        %v340 = vlaneseq
        %v341 = vshrl.u32 %v340, 7
        %v342 = vsub.s32 3, %v341
        %v343 = vrot.slane %v326, %v342
        %v344 = vlaneseq
        %v345 = vshrl.u32 %v344, 7
        %v346 = vsub.s32 4, %v345
        %v347 = vrot.slane %v326, %v346
        %v348 = vlaneseq
        %v349 = vshrl.u32 %v348, 7
        %v350 = vsub.s32 5, %v349
        %v351 = vrot.slane %v326, %v350
        %v370 = vunpack.c.l.b16 %v314
        %v371 = vunpack.c.h.b16 %v314
        %v372 = vunpack.c.l.b16 %v315
        %v373 = vunpack.c.h.b16 %v315
        %v374 = vunpack.c.l.b16 %v316
        %v375 = vunpack.c.h.b16 %v316
        %v376 = vunpack.c.l.b16 %v317
        %v377 = vunpack.c.h.b16 %v317
        %v378 = vunpack.c.l.b16 %v318
        %v379 = vunpack.c.h.b16 %v318
        %v380 = vunpack.c.l.b16 %v319
        %v381 = vunpack.c.h.b16 %v319
        %v382 = vunpack.c.l.b16 %v320
        %v383 = vunpack.c.h.b16 %v320
        %v384 = vunpack.c.l.b16 %v321
        %v385 = vunpack.c.h.b16 %v321
        %v386 = vunpack.c.l.b16 %v322
        %v387 = vunpack.c.h.b16 %v322
        %v388 = vunpack.c.l.b16 %v323
        %v389 = vunpack.c.h.b16 %v323
        %v390 = vunpack.c.l.b16 %v324
        %v391 = vunpack.c.h.b16 %v324
        %v392 = vunpack.c.l.b16 %v325
        %v393 = vunpack.c.h.b16 %v325
        %v394 = vpack.c.b16 %v376, %v370
        %v395 = vpack.c.b16 %v377, %v371
        %v396 = vpack.c.b16 %v378, %v372
        %v397 = vpack.c.b16 %v379, %v373
        %v398 = vpack.c.b16 %v380, %v374
        %v399 = vpack.c.b16 %v381, %v375
        %v400 = vpack.c.b16 %v388, %v382
        %v401 = vpack.c.b16 %v389, %v383
        %v402 = vpack.c.b16 %v390, %v384
        %v403 = vpack.c.b16 %v391, %v385
        %v404 = vpack.c.b16 %v392, %v386
        %v405 = vpack.c.b16 %v393, %v387
        %vm418 = vcmask 261120
        %v420 = vsel %vm418, %v298, 0
        %v423 = vsel %vm418, %v299, 0
        %v426 = vsel %vm418, %v300, 0
        %v429 = vsel %vm418, %v301, 0
        %v432 = vsel %vm418, %v302, 0
        %v435 = vsel %vm418, %v303, 0
        %v438 = vsel %vm418, %v304, 0
        %v441 = vsel %vm418, %v305, 0
        %v444 = vsel %vm418, %v306, 0
        %v447 = vsel %vm418, %v307, 0
        %v450 = vsel %vm418, %v308, 0
        %v453 = vsel %vm418, %v309, 0
        %v456 = vsel %vm418, %v310, 0
        %v459 = vsel %vm418, %v311, 0
        %v462 = vsel %vm418, %v312, 0
        %v465 = vsel %vm418, %v313, 0
        %467 = vmatprep.subr.bf16.mxu0 %v395
        %468 = vmatpush1.bf16.msra.mxu0 %v394
        %469 = vmatprep.subr.bf16.mxu0 %v401
        %470 = vmatpush1.bf16.msra.mxu0 %v400
        %471 = vmatprep.subr.bf16.mxu0 0
        %472 = vmatpush1.bf16.msra.mxu0 0
        %473 = vmatprep.subr.bf16.mxu0 0
        %474 = vmatpush1.bf16.msra.mxu0 0
        %475 = vmatprep.subr.bf16.mxu0 0
        %476 = vmatpush1.bf16.msra.mxu0 0
        %477 = vmatprep.subr.bf16.mxu0 0
        %478 = vmatpush1.bf16.msra.mxu0 0
        %479 = vmatprep.subr.bf16.mxu0 0
        %480 = vmatpush1.bf16.msra.mxu0 0
        %481 = vmatprep.subr.bf16.mxu0 0
        %482 = vmatpush1.bf16.msra.mxu0 0
        %483 = vmatprep.subr.bf16.mxu0 0
        %484 = vmatpush1.bf16.msra.mxu0 0
        %485 = vmatprep.subr.bf16.mxu0 0
        %486 = vmatpush1.bf16.msra.mxu0 0
        %487 = vmatprep.subr.bf16.mxu0 0
        %488 = vmatpush1.bf16.msra.mxu0 0
        %489 = vmatprep.subr.bf16.mxu0 0
        %490 = vmatpush1.bf16.msra.mxu0 0
        %491 = vmatprep.subr.bf16.mxu0 0
        %492 = vmatpush1.bf16.msra.mxu0 0
        %493 = vmatprep.subr.bf16.mxu0 0
        %494 = vmatpush1.bf16.msra.mxu0 0
        %495 = vmatprep.subr.bf16.mxu0 0
        %496 = vmatpush1.bf16.msra.mxu0 0
        %497 = vmatprep.subr.bf16.mxu0 0
        %498 = vmatpush1.bf16.msra.mxu0 0
        %499 = vmatprep.mubr.bf16.mxu0 0
        %500 = vmatmul.mubr.bf16.gmra.mrb[0].mxu0 %v420
        %v501 = vpop.f32.mrb[0].mxu0
        %v502 = vadd.f32 %v331, %v501
        %v503 = vpop.f32.mrb[0].mxu0
        %v504 = vadd.f32 %v335, %v503
        %v505 = vpop.f32.mrb[0].mxu0
        %v506 = vadd.f32 %v331, %v505
        %v507 = vpop.f32.mrb[0].mxu0
        %v508 = vadd.f32 %v335, %v507
        %509 = vmatprep.mubr.bf16.mxu0 0
        %510 = vmatmul.mubr.bf16.gmra.mrb[0].mxu0 %v423
        %v511 = vpop.f32.mrb[0].mxu0
        %v512 = vadd.f32 %v331, %v511
        %v513 = vpop.f32.mrb[0].mxu0
        %v514 = vadd.f32 %v335, %v513
        %v515 = vpop.f32.mrb[0].mxu0
        %v516 = vadd.f32 %v331, %v515
        %v517 = vpop.f32.mrb[0].mxu0
        %v518 = vadd.f32 %v335, %v517
        %519 = vmatprep.mubr.bf16.mxu0 0
        %520 = vmatmul.mubr.bf16.gmra.mrb[0].mxu0 %v426
        %v521 = vpop.f32.mrb[0].mxu0
        %v522 = vadd.f32 %v331, %v521
        %v523 = vpop.f32.mrb[0].mxu0
        %v524 = vadd.f32 %v335, %v523
        %v525 = vpop.f32.mrb[0].mxu0
        %v526 = vadd.f32 %v331, %v525
        %v527 = vpop.f32.mrb[0].mxu0
        %v528 = vadd.f32 %v335, %v527
        %529 = vmatprep.mubr.bf16.mxu0 0
        %530 = vmatmul.mubr.bf16.gmra.mrb[0].mxu0 %v429
        %v531 = vpop.f32.mrb[0].mxu0
        %v532 = vadd.f32 %v331, %v531
        %v533 = vpop.f32.mrb[0].mxu0
        %v534 = vadd.f32 %v335, %v533
        %v535 = vpop.f32.mrb[0].mxu0
        %v536 = vadd.f32 %v331, %v535
        %v537 = vpop.f32.mrb[0].mxu0
        %v538 = vadd.f32 %v335, %v537
        %539 = vmatprep.mubr.bf16.mxu0 0
        %540 = vmatmul.mubr.bf16.gmra.mrb[0].mxu0 %v432
        %v541 = vpop.f32.mrb[0].mxu0
        %v542 = vadd.f32 %v331, %v541
        %v543 = vpop.f32.mrb[0].mxu0
        %v544 = vadd.f32 %v335, %v543
        %v545 = vpop.f32.mrb[0].mxu0
        %v546 = vadd.f32 %v331, %v545
        %v547 = vpop.f32.mrb[0].mxu0
        %v548 = vadd.f32 %v335, %v547
        %549 = vmatprep.mubr.bf16.mxu0 0
        %550 = vmatmul.mubr.bf16.gmra.mrb[0].mxu0 %v435
        %v551 = vpop.f32.mrb[0].mxu0
        %v552 = vadd.f32 %v331, %v551
        %v553 = vpop.f32.mrb[0].mxu0
        %v554 = vadd.f32 %v335, %v553
        %v555 = vpop.f32.mrb[0].mxu0
        %v556 = vadd.f32 %v331, %v555
        %v557 = vpop.f32.mrb[0].mxu0
        %v558 = vadd.f32 %v335, %v557
        %559 = vmatprep.mubr.bf16.mxu0 0
        %560 = vmatmul.mubr.bf16.gmra.mrb[0].mxu0 %v438
        %v561 = vpop.f32.mrb[0].mxu0
        %v562 = vadd.f32 %v331, %v561
        %v563 = vpop.f32.mrb[0].mxu0
        %v564 = vadd.f32 %v335, %v563
        %v565 = vpop.f32.mrb[0].mxu0
        %v566 = vadd.f32 %v331, %v565
        %v567 = vpop.f32.mrb[0].mxu0
        %v568 = vadd.f32 %v335, %v567
        %569 = vmatprep.mubr.bf16.mxu0 0
        %570 = vmatmul.mubr.bf16.gmra.mrb[0].mxu0 %v441
        %v571 = vpop.f32.mrb[0].mxu0
        %v572 = vadd.f32 %v331, %v571
        %v573 = vpop.f32.mrb[0].mxu0
        %v574 = vadd.f32 %v335, %v573
        %v575 = vpop.f32.mrb[0].mxu0
        %v576 = vadd.f32 %v331, %v575
        %v577 = vpop.f32.mrb[0].mxu0
        %v578 = vadd.f32 %v335, %v577
        %579 = vmatprep.mubr.bf16.mxu0 0
        %580 = vmatmul.mubr.bf16.gmra.mrb[0].mxu0 %v444
        %v581 = vpop.f32.mrb[0].mxu0
        %v582 = vadd.f32 %v331, %v581
        %v583 = vpop.f32.mrb[0].mxu0
        %v584 = vadd.f32 %v335, %v583
        %v585 = vpop.f32.mrb[0].mxu0
        %v586 = vadd.f32 %v331, %v585
        %v587 = vpop.f32.mrb[0].mxu0
        %v588 = vadd.f32 %v335, %v587
        %589 = vmatprep.mubr.bf16.mxu0 0
        %590 = vmatmul.mubr.bf16.gmra.mrb[0].mxu0 %v447
        %v591 = vpop.f32.mrb[0].mxu0
        %v592 = vadd.f32 %v331, %v591
        %v593 = vpop.f32.mrb[0].mxu0
        %v594 = vadd.f32 %v335, %v593
        %v595 = vpop.f32.mrb[0].mxu0
        %v596 = vadd.f32 %v331, %v595
        %v597 = vpop.f32.mrb[0].mxu0
        %v598 = vadd.f32 %v335, %v597
        %599 = vmatprep.mubr.bf16.mxu0 0
        %600 = vmatmul.mubr.bf16.gmra.mrb[0].mxu0 %v450
        %v601 = vpop.f32.mrb[0].mxu0
        %v602 = vadd.f32 %v331, %v601
        %v603 = vpop.f32.mrb[0].mxu0
        %v604 = vadd.f32 %v335, %v603
        %v605 = vpop.f32.mrb[0].mxu0
        %v606 = vadd.f32 %v331, %v605
        %v607 = vpop.f32.mrb[0].mxu0
        %v608 = vadd.f32 %v335, %v607
        %609 = vmatprep.mubr.bf16.mxu0 0
        %610 = vmatmul.mubr.bf16.gmra.mrb[0].mxu0 %v453
        %v611 = vpop.f32.mrb[0].mxu0
        %v612 = vadd.f32 %v331, %v611
        %v613 = vpop.f32.mrb[0].mxu0
        %v614 = vadd.f32 %v335, %v613
        %v615 = vpop.f32.mrb[0].mxu0
        %v616 = vadd.f32 %v331, %v615
        %v617 = vpop.f32.mrb[0].mxu0
        %v618 = vadd.f32 %v335, %v617
        %619 = vmatprep.mubr.bf16.mxu0 0
        %620 = vmatmul.mubr.bf16.gmra.mrb[0].mxu0 %v456
        %v621 = vpop.f32.mrb[0].mxu0
        %v622 = vadd.f32 %v331, %v621
        %v623 = vpop.f32.mrb[0].mxu0
        %v624 = vadd.f32 %v335, %v623
        %v625 = vpop.f32.mrb[0].mxu0
        %v626 = vadd.f32 %v331, %v625
        %v627 = vpop.f32.mrb[0].mxu0
        %v628 = vadd.f32 %v335, %v627
        %629 = vmatprep.mubr.bf16.mxu0 0
        %630 = vmatmul.mubr.bf16.gmra.mrb[0].mxu0 %v459
        %v631 = vpop.f32.mrb[0].mxu0
        %v632 = vadd.f32 %v331, %v631
        %v633 = vpop.f32.mrb[0].mxu0
        %v634 = vadd.f32 %v335, %v633
        %v635 = vpop.f32.mrb[0].mxu0
        %v636 = vadd.f32 %v331, %v635
        %v637 = vpop.f32.mrb[0].mxu0
        %v638 = vadd.f32 %v335, %v637
        %639 = vmatprep.mubr.bf16.mxu0 0
        %640 = vmatmul.mubr.bf16.gmra.mrb[0].mxu0 %v462
        %v641 = vpop.f32.mrb[0].mxu0
        %v642 = vadd.f32 %v331, %v641
        %v643 = vpop.f32.mrb[0].mxu0
        %v644 = vadd.f32 %v335, %v643
        %v645 = vpop.f32.mrb[0].mxu0
        %v646 = vadd.f32 %v331, %v645
        %v647 = vpop.f32.mrb[0].mxu0
        %v648 = vadd.f32 %v335, %v647
        %649 = vmatprep.mubr.bf16.mxu0 0
        %650 = vmatmul.mubr.bf16.gmra.mrb[0].mxu0 %v465
        %v651 = vpop.f32.mrb[0].mxu0
        %v652 = vadd.f32 %v331, %v651
        %v653 = vpop.f32.mrb[0].mxu0
        %v654 = vadd.f32 %v335, %v653
        %v655 = vpop.f32.mrb[0].mxu0
        %v656 = vadd.f32 %v331, %v655
        %v657 = vpop.f32.mrb[0].mxu0
        %v658 = vadd.f32 %v335, %v657
        %659 = vdwg.mxu0
        %660 = vmatprep.subr.bf16.mxu0 %v397
        %661 = vmatpush1.bf16.msra.mxu0 %v396
        %662 = vmatprep.subr.bf16.mxu0 %v403
        %663 = vmatpush1.bf16.msra.mxu0 %v402
        %664 = vmatprep.subr.bf16.mxu0 0
        %665 = vmatpush1.bf16.msra.mxu0 0
        %666 = vmatprep.subr.bf16.mxu0 0
        %667 = vmatpush1.bf16.msra.mxu0 0
        %668 = vmatprep.subr.bf16.mxu0 0
        %669 = vmatpush1.bf16.msra.mxu0 0
        %670 = vmatprep.subr.bf16.mxu0 0
        %671 = vmatpush1.bf16.msra.mxu0 0
        %672 = vmatprep.subr.bf16.mxu0 0
        %673 = vmatpush1.bf16.msra.mxu0 0
        %674 = vmatprep.subr.bf16.mxu0 0
        %675 = vmatpush1.bf16.msra.mxu0 0
        %676 = vmatprep.subr.bf16.mxu0 0
        %677 = vmatpush1.bf16.msra.mxu0 0
        %678 = vmatprep.subr.bf16.mxu0 0
        %679 = vmatpush1.bf16.msra.mxu0 0
        %680 = vmatprep.subr.bf16.mxu0 0
        %681 = vmatpush1.bf16.msra.mxu0 0
        %682 = vmatprep.subr.bf16.mxu0 0
        %683 = vmatpush1.bf16.msra.mxu0 0
        %684 = vmatprep.subr.bf16.mxu0 0
        %685 = vmatpush1.bf16.msra.mxu0 0
        %686 = vmatprep.subr.bf16.mxu0 0
        %687 = vmatpush1.bf16.msra.mxu0 0
        %688 = vmatprep.subr.bf16.mxu0 0
        %689 = vmatpush1.bf16.msra.mxu0 0
        %690 = vmatprep.subr.bf16.mxu0 0
        %691 = vmatpush1.bf16.msra.mxu0 0
        %692 = vmatprep.mubr.bf16.mxu0 0
        %693 = vmatmul.mubr.bf16.gmra.mrb[0].mxu0 %v420
        %v694 = vpop.f32.mrb[0].mxu0
        %v695 = vadd.f32 %v339, %v694
        %v696 = vpop.f32.mrb[0].mxu0
        %v697 = vadd.f32 %v343, %v696
        %v698 = vpop.f32.mrb[0].mxu0
        %v699 = vadd.f32 %v339, %v698
        %v700 = vpop.f32.mrb[0].mxu0
        %v701 = vadd.f32 %v343, %v700
        %702 = vmatprep.mubr.bf16.mxu0 0
        %703 = vmatmul.mubr.bf16.gmra.mrb[0].mxu0 %v423
        %v704 = vpop.f32.mrb[0].mxu0
        %v705 = vadd.f32 %v339, %v704
        %v706 = vpop.f32.mrb[0].mxu0
        %v707 = vadd.f32 %v343, %v706
        %v708 = vpop.f32.mrb[0].mxu0
        %v709 = vadd.f32 %v339, %v708
        %v710 = vpop.f32.mrb[0].mxu0
        %v711 = vadd.f32 %v343, %v710
        %712 = vmatprep.mubr.bf16.mxu0 0
        %713 = vmatmul.mubr.bf16.gmra.mrb[0].mxu0 %v426
        %v714 = vpop.f32.mrb[0].mxu0
        %v715 = vadd.f32 %v339, %v714
        %v716 = vpop.f32.mrb[0].mxu0
        %v717 = vadd.f32 %v343, %v716
        %v718 = vpop.f32.mrb[0].mxu0
        %v719 = vadd.f32 %v339, %v718
        %v720 = vpop.f32.mrb[0].mxu0
        %v721 = vadd.f32 %v343, %v720
        %722 = vmatprep.mubr.bf16.mxu0 0
        %723 = vmatmul.mubr.bf16.gmra.mrb[0].mxu0 %v429
        %v724 = vpop.f32.mrb[0].mxu0
        %v725 = vadd.f32 %v339, %v724
        %v726 = vpop.f32.mrb[0].mxu0
        %v727 = vadd.f32 %v343, %v726
        %v728 = vpop.f32.mrb[0].mxu0
        %v729 = vadd.f32 %v339, %v728
        %v730 = vpop.f32.mrb[0].mxu0
        %v731 = vadd.f32 %v343, %v730
        %732 = vmatprep.mubr.bf16.mxu0 0
        %733 = vmatmul.mubr.bf16.gmra.mrb[0].mxu0 %v432
        %v734 = vpop.f32.mrb[0].mxu0
        %v735 = vadd.f32 %v339, %v734
        %v736 = vpop.f32.mrb[0].mxu0
        %v737 = vadd.f32 %v343, %v736
        %v738 = vpop.f32.mrb[0].mxu0
        %v739 = vadd.f32 %v339, %v738
        %v740 = vpop.f32.mrb[0].mxu0
        %v741 = vadd.f32 %v343, %v740
        %742 = vmatprep.mubr.bf16.mxu0 0
        %743 = vmatmul.mubr.bf16.gmra.mrb[0].mxu0 %v435
        %v744 = vpop.f32.mrb[0].mxu0
        %v745 = vadd.f32 %v339, %v744
        %v746 = vpop.f32.mrb[0].mxu0
        %v747 = vadd.f32 %v343, %v746
        %v748 = vpop.f32.mrb[0].mxu0
        %v749 = vadd.f32 %v339, %v748
        %v750 = vpop.f32.mrb[0].mxu0
        %v751 = vadd.f32 %v343, %v750
        %752 = vmatprep.mubr.bf16.mxu0 0
        %753 = vmatmul.mubr.bf16.gmra.mrb[0].mxu0 %v438
        %v754 = vpop.f32.mrb[0].mxu0
        %v755 = vadd.f32 %v339, %v754
        %v756 = vpop.f32.mrb[0].mxu0
        %v757 = vadd.f32 %v343, %v756
        %v758 = vpop.f32.mrb[0].mxu0
        %v759 = vadd.f32 %v339, %v758
        %v760 = vpop.f32.mrb[0].mxu0
        %v761 = vadd.f32 %v343, %v760
        %762 = vmatprep.mubr.bf16.mxu0 0
        %763 = vmatmul.mubr.bf16.gmra.mrb[0].mxu0 %v441
        %v764 = vpop.f32.mrb[0].mxu0
        %v765 = vadd.f32 %v339, %v764
        %v766 = vpop.f32.mrb[0].mxu0
        %v767 = vadd.f32 %v343, %v766
        %v768 = vpop.f32.mrb[0].mxu0
        %v769 = vadd.f32 %v339, %v768
        %v770 = vpop.f32.mrb[0].mxu0
        %v771 = vadd.f32 %v343, %v770
        %772 = vmatprep.mubr.bf16.mxu0 0
        %773 = vmatmul.mubr.bf16.gmra.mrb[0].mxu0 %v444
        %v774 = vpop.f32.mrb[0].mxu0
        %v775 = vadd.f32 %v339, %v774
        %v776 = vpop.f32.mrb[0].mxu0
        %v777 = vadd.f32 %v343, %v776
        %v778 = vpop.f32.mrb[0].mxu0
        %v779 = vadd.f32 %v339, %v778
        %v780 = vpop.f32.mrb[0].mxu0
        %v781 = vadd.f32 %v343, %v780
        %782 = vmatprep.mubr.bf16.mxu0 0
        %783 = vmatmul.mubr.bf16.gmra.mrb[0].mxu0 %v447
        %v784 = vpop.f32.mrb[0].mxu0
        %v785 = vadd.f32 %v339, %v784
        %v786 = vpop.f32.mrb[0].mxu0
        %v787 = vadd.f32 %v343, %v786
        %v788 = vpop.f32.mrb[0].mxu0
        %v789 = vadd.f32 %v339, %v788
        %v790 = vpop.f32.mrb[0].mxu0
        %v791 = vadd.f32 %v343, %v790
        %792 = vmatprep.mubr.bf16.mxu0 0
        %793 = vmatmul.mubr.bf16.gmra.mrb[0].mxu0 %v450
        %v794 = vpop.f32.mrb[0].mxu0
        %v795 = vadd.f32 %v339, %v794
        %v796 = vpop.f32.mrb[0].mxu0
        %v797 = vadd.f32 %v343, %v796
        %v798 = vpop.f32.mrb[0].mxu0
        %v799 = vadd.f32 %v339, %v798
        %v800 = vpop.f32.mrb[0].mxu0
        %v801 = vadd.f32 %v343, %v800
        %802 = vmatprep.mubr.bf16.mxu0 0
        %803 = vmatmul.mubr.bf16.gmra.mrb[0].mxu0 %v453
        %v804 = vpop.f32.mrb[0].mxu0
        %v805 = vadd.f32 %v339, %v804
        %v806 = vpop.f32.mrb[0].mxu0
        %v807 = vadd.f32 %v343, %v806
        %v808 = vpop.f32.mrb[0].mxu0
        %v809 = vadd.f32 %v339, %v808
        %v810 = vpop.f32.mrb[0].mxu0
        %v811 = vadd.f32 %v343, %v810
        %812 = vmatprep.mubr.bf16.mxu0 0
        %813 = vmatmul.mubr.bf16.gmra.mrb[0].mxu0 %v456
        %v814 = vpop.f32.mrb[0].mxu0
        %v815 = vadd.f32 %v339, %v814
        %v816 = vpop.f32.mrb[0].mxu0
        %v817 = vadd.f32 %v343, %v816
        %v818 = vpop.f32.mrb[0].mxu0
        %v819 = vadd.f32 %v339, %v818
        %v820 = vpop.f32.mrb[0].mxu0
        %v821 = vadd.f32 %v343, %v820
        %822 = vmatprep.mubr.bf16.mxu0 0
        %823 = vmatmul.mubr.bf16.gmra.mrb[0].mxu0 %v459
        %v824 = vpop.f32.mrb[0].mxu0
        %v825 = vadd.f32 %v339, %v824
        %v826 = vpop.f32.mrb[0].mxu0
        %v827 = vadd.f32 %v343, %v826
        %v828 = vpop.f32.mrb[0].mxu0
        %v829 = vadd.f32 %v339, %v828
        %v830 = vpop.f32.mrb[0].mxu0
        %v831 = vadd.f32 %v343, %v830
        %832 = vmatprep.mubr.bf16.mxu0 0
        %833 = vmatmul.mubr.bf16.gmra.mrb[0].mxu0 %v462
        %v834 = vpop.f32.mrb[0].mxu0
        %v835 = vadd.f32 %v339, %v834
        %v836 = vpop.f32.mrb[0].mxu0
        %v837 = vadd.f32 %v343, %v836
        %v838 = vpop.f32.mrb[0].mxu0
        %v839 = vadd.f32 %v339, %v838
        %v840 = vpop.f32.mrb[0].mxu0
        %v841 = vadd.f32 %v343, %v840
        %842 = vmatprep.mubr.bf16.mxu0 0
        %843 = vmatmul.mubr.bf16.gmra.mrb[0].mxu0 %v465
        %v844 = vpop.f32.mrb[0].mxu0
        %v845 = vadd.f32 %v339, %v844
        %v846 = vpop.f32.mrb[0].mxu0
        %v847 = vadd.f32 %v343, %v846
        %v848 = vpop.f32.mrb[0].mxu0
        %v849 = vadd.f32 %v339, %v848
        %v850 = vpop.f32.mrb[0].mxu0
        %v851 = vadd.f32 %v343, %v850
        %852 = vdwg.mxu0
        %853 = vmatprep.subr.bf16.mxu0 %v399
        %854 = vmatpush1.bf16.msra.mxu0 %v398
        %855 = vmatprep.subr.bf16.mxu0 %v405
        %856 = vmatpush1.bf16.msra.mxu0 %v404
        %857 = vmatprep.subr.bf16.mxu0 0
        %858 = vmatpush1.bf16.msra.mxu0 0
        %859 = vmatprep.subr.bf16.mxu0 0
        %860 = vmatpush1.bf16.msra.mxu0 0
        %861 = vmatprep.subr.bf16.mxu0 0
        %862 = vmatpush1.bf16.msra.mxu0 0
        %863 = vmatprep.subr.bf16.mxu0 0
        %864 = vmatpush1.bf16.msra.mxu0 0
        %865 = vmatprep.subr.bf16.mxu0 0
        %866 = vmatpush1.bf16.msra.mxu0 0
        %867 = vmatprep.subr.bf16.mxu0 0
        %868 = vmatpush1.bf16.msra.mxu0 0
        %869 = vmatprep.subr.bf16.mxu0 0
        %870 = vmatpush1.bf16.msra.mxu0 0
        %871 = vmatprep.subr.bf16.mxu0 0
        %872 = vmatpush1.bf16.msra.mxu0 0
        %873 = vmatprep.subr.bf16.mxu0 0
        %874 = vmatpush1.bf16.msra.mxu0 0
        %875 = vmatprep.subr.bf16.mxu0 0
        %876 = vmatpush1.bf16.msra.mxu0 0
        %877 = vmatprep.subr.bf16.mxu0 0
        %878 = vmatpush1.bf16.msra.mxu0 0
        %879 = vmatprep.subr.bf16.mxu0 0
        %880 = vmatpush1.bf16.msra.mxu0 0
        %881 = vmatprep.subr.bf16.mxu0 0
        %882 = vmatpush1.bf16.msra.mxu0 0
        %883 = vmatprep.subr.bf16.mxu0 0
        %884 = vmatpush1.bf16.msra.mxu0 0
        %885 = vmatprep.mubr.bf16.mxu0 0
        %886 = vmatmul.mubr.bf16.gmra.mrb[0].mxu0 %v420
        %v887 = vpop.f32.mrb[0].mxu0
        %v888 = vadd.f32 %v347, %v887
        %v889 = vpop.f32.mrb[0].mxu0
        %v890 = vadd.f32 %v351, %v889
        %v891 = vpop.f32.mrb[0].mxu0
        %v892 = vadd.f32 %v347, %v891
        %v893 = vpop.f32.mrb[0].mxu0
        %v894 = vadd.f32 %v351, %v893
        %895 = vmatprep.mubr.bf16.mxu0 0
        %896 = vmatmul.mubr.bf16.gmra.mrb[0].mxu0 %v423
        %v897 = vpop.f32.mrb[0].mxu0
        %v898 = vadd.f32 %v347, %v897
        %v899 = vpop.f32.mrb[0].mxu0
        %v900 = vadd.f32 %v351, %v899
        %v901 = vpop.f32.mrb[0].mxu0
        %v902 = vadd.f32 %v347, %v901
        %v903 = vpop.f32.mrb[0].mxu0
        %v904 = vadd.f32 %v351, %v903
        %905 = vmatprep.mubr.bf16.mxu0 0
        %906 = vmatmul.mubr.bf16.gmra.mrb[0].mxu0 %v426
        %v907 = vpop.f32.mrb[0].mxu0
        %v908 = vadd.f32 %v347, %v907
        %v909 = vpop.f32.mrb[0].mxu0
        %v910 = vadd.f32 %v351, %v909
        %v911 = vpop.f32.mrb[0].mxu0
        %v912 = vadd.f32 %v347, %v911
        %v913 = vpop.f32.mrb[0].mxu0
        %v914 = vadd.f32 %v351, %v913
        %915 = vmatprep.mubr.bf16.mxu0 0
        %916 = vmatmul.mubr.bf16.gmra.mrb[0].mxu0 %v429
        %v917 = vpop.f32.mrb[0].mxu0
        %v918 = vadd.f32 %v347, %v917
        %v919 = vpop.f32.mrb[0].mxu0
        %v920 = vadd.f32 %v351, %v919
        %v921 = vpop.f32.mrb[0].mxu0
        %v922 = vadd.f32 %v347, %v921
        %v923 = vpop.f32.mrb[0].mxu0
        %v924 = vadd.f32 %v351, %v923
        %925 = vmatprep.mubr.bf16.mxu0 0
        %926 = vmatmul.mubr.bf16.gmra.mrb[0].mxu0 %v432
        %v927 = vpop.f32.mrb[0].mxu0
        %v928 = vadd.f32 %v347, %v927
        %v929 = vpop.f32.mrb[0].mxu0
        %v930 = vadd.f32 %v351, %v929
        %v931 = vpop.f32.mrb[0].mxu0
        %v932 = vadd.f32 %v347, %v931
        %v933 = vpop.f32.mrb[0].mxu0
        %v934 = vadd.f32 %v351, %v933
        %935 = vmatprep.mubr.bf16.mxu0 0
        %936 = vmatmul.mubr.bf16.gmra.mrb[0].mxu0 %v435
        %v937 = vpop.f32.mrb[0].mxu0
        %v938 = vadd.f32 %v347, %v937
        %v939 = vpop.f32.mrb[0].mxu0
        %v940 = vadd.f32 %v351, %v939
        %v941 = vpop.f32.mrb[0].mxu0
        %v942 = vadd.f32 %v347, %v941
        %v943 = vpop.f32.mrb[0].mxu0
        %v944 = vadd.f32 %v351, %v943
        %945 = vmatprep.mubr.bf16.mxu0 0
        %946 = vmatmul.mubr.bf16.gmra.mrb[0].mxu0 %v438
        %v947 = vpop.f32.mrb[0].mxu0
        %v948 = vadd.f32 %v347, %v947
        %v949 = vpop.f32.mrb[0].mxu0
        %v950 = vadd.f32 %v351, %v949
        %v951 = vpop.f32.mrb[0].mxu0
        %v952 = vadd.f32 %v347, %v951
        %v953 = vpop.f32.mrb[0].mxu0
        %v954 = vadd.f32 %v351, %v953
        %955 = vmatprep.mubr.bf16.mxu0 0
        %956 = vmatmul.mubr.bf16.gmra.mrb[0].mxu0 %v441
        %v957 = vpop.f32.mrb[0].mxu0
        %v958 = vadd.f32 %v347, %v957
        %v959 = vpop.f32.mrb[0].mxu0
        %v960 = vadd.f32 %v351, %v959
        %v961 = vpop.f32.mrb[0].mxu0
        %v962 = vadd.f32 %v347, %v961
        %v963 = vpop.f32.mrb[0].mxu0
        %v964 = vadd.f32 %v351, %v963
        %965 = vmatprep.mubr.bf16.mxu0 0
        %966 = vmatmul.mubr.bf16.gmra.mrb[0].mxu0 %v444
        %v967 = vpop.f32.mrb[0].mxu0
        %v968 = vadd.f32 %v347, %v967
        %v969 = vpop.f32.mrb[0].mxu0
        %v970 = vadd.f32 %v351, %v969
        %v971 = vpop.f32.mrb[0].mxu0
        %v972 = vadd.f32 %v347, %v971
        %v973 = vpop.f32.mrb[0].mxu0
        %v974 = vadd.f32 %v351, %v973
        %975 = vmatprep.mubr.bf16.mxu0 0
        %976 = vmatmul.mubr.bf16.gmra.mrb[0].mxu0 %v447
        %v977 = vpop.f32.mrb[0].mxu0
        %v978 = vadd.f32 %v347, %v977
        %v979 = vpop.f32.mrb[0].mxu0
        %v980 = vadd.f32 %v351, %v979
        %v981 = vpop.f32.mrb[0].mxu0
        %v982 = vadd.f32 %v347, %v981
        %v983 = vpop.f32.mrb[0].mxu0
        %v984 = vadd.f32 %v351, %v983
        %985 = vmatprep.mubr.bf16.mxu0 0
        %986 = vmatmul.mubr.bf16.gmra.mrb[0].mxu0 %v450
        %v987 = vpop.f32.mrb[0].mxu0
        %v988 = vadd.f32 %v347, %v987
        %v989 = vpop.f32.mrb[0].mxu0
        %v990 = vadd.f32 %v351, %v989
        %v991 = vpop.f32.mrb[0].mxu0
        %v992 = vadd.f32 %v347, %v991
        %v993 = vpop.f32.mrb[0].mxu0
        %v994 = vadd.f32 %v351, %v993
        %995 = vmatprep.mubr.bf16.mxu0 0
        %996 = vmatmul.mubr.bf16.gmra.mrb[0].mxu0 %v453
        %v997 = vpop.f32.mrb[0].mxu0
        %v998 = vadd.f32 %v347, %v997
        %v999 = vpop.f32.mrb[0].mxu0
        %v1000 = vadd.f32 %v351, %v999
        %v1001 = vpop.f32.mrb[0].mxu0
        %v1002 = vadd.f32 %v347, %v1001
        %v1003 = vpop.f32.mrb[0].mxu0
        %v1004 = vadd.f32 %v351, %v1003
        %1005 = vmatprep.mubr.bf16.mxu0 0
        %1006 = vmatmul.mubr.bf16.gmra.mrb[0].mxu0 %v456
        %v1007 = vpop.f32.mrb[0].mxu0
        %v1008 = vadd.f32 %v347, %v1007
        %v1009 = vpop.f32.mrb[0].mxu0
        %v1010 = vadd.f32 %v351, %v1009
        %v1011 = vpop.f32.mrb[0].mxu0
        %v1012 = vadd.f32 %v347, %v1011
        %v1013 = vpop.f32.mrb[0].mxu0
        %v1014 = vadd.f32 %v351, %v1013
        %1015 = vmatprep.mubr.bf16.mxu0 0
        %1016 = vmatmul.mubr.bf16.gmra.mrb[0].mxu0 %v459
        %v1017 = vpop.f32.mrb[0].mxu0
        %v1018 = vadd.f32 %v347, %v1017
        %v1019 = vpop.f32.mrb[0].mxu0
        %v1020 = vadd.f32 %v351, %v1019
        %v1021 = vpop.f32.mrb[0].mxu0
        %v1022 = vadd.f32 %v347, %v1021
        %v1023 = vpop.f32.mrb[0].mxu0
        %v1024 = vadd.f32 %v351, %v1023
        %1025 = vmatprep.mubr.bf16.mxu0 0
        %1026 = vmatmul.mubr.bf16.gmra.mrb[0].mxu0 %v462
        %v1027 = vpop.f32.mrb[0].mxu0
        %v1028 = vadd.f32 %v347, %v1027
        %v1029 = vpop.f32.mrb[0].mxu0
        %v1030 = vadd.f32 %v351, %v1029
        %v1031 = vpop.f32.mrb[0].mxu0
        %v1032 = vadd.f32 %v347, %v1031
        %v1033 = vpop.f32.mrb[0].mxu0
        %v1034 = vadd.f32 %v351, %v1033
        %1035 = vmatprep.mubr.bf16.mxu0 0
        %1036 = vmatmul.mubr.bf16.gmra.mrb[0].mxu0 %v465
        %v1037 = vpop.f32.mrb[0].mxu0
        %v1038 = vadd.f32 %v347, %v1037
        %v1039 = vpop.f32.mrb[0].mxu0
        %v1040 = vadd.f32 %v351, %v1039
        %v1041 = vpop.f32.mrb[0].mxu0
        %v1042 = vadd.f32 %v347, %v1041
        %v1043 = vpop.f32.mrb[0].mxu0
        %v1044 = vadd.f32 %v351, %v1043
        %1045 = vdwg.mxu0
        %v1046 = vmax.f32 %v502, 0.0
        %v1047 = vmax.f32 %v504, 0.0
        %v1048 = vmax.f32 %v695, 0.0
        %v1049 = vmax.f32 %v697, 0.0
        %v1050 = vmax.f32 %v888, 0.0
        %v1051 = vmax.f32 %v890, 0.0
        %v1052 = vmax.f32 %v506, 0.0
        %v1053 = vmax.f32 %v508, 0.0
        %v1054 = vmax.f32 %v699, 0.0
        %v1055 = vmax.f32 %v701, 0.0
        %v1056 = vmax.f32 %v892, 0.0
        %v1057 = vmax.f32 %v894, 0.0
        %v1058 = vmax.f32 %v512, 0.0
        %v1059 = vmax.f32 %v514, 0.0
        %v1060 = vmax.f32 %v705, 0.0
        %v1061 = vmax.f32 %v707, 0.0
        %v1062 = vmax.f32 %v898, 0.0
        %v1063 = vmax.f32 %v900, 0.0
        %v1064 = vmax.f32 %v516, 0.0
        %v1065 = vmax.f32 %v518, 0.0
        %v1066 = vmax.f32 %v709, 0.0
        %v1067 = vmax.f32 %v711, 0.0
        %v1068 = vmax.f32 %v902, 0.0
        %v1069 = vmax.f32 %v904, 0.0
        %v1070 = vmax.f32 %v522, 0.0
        %v1071 = vmax.f32 %v524, 0.0
        %v1072 = vmax.f32 %v715, 0.0
        %v1073 = vmax.f32 %v717, 0.0
        %v1074 = vmax.f32 %v908, 0.0
        %v1075 = vmax.f32 %v910, 0.0
        %v1076 = vmax.f32 %v526, 0.0
        %v1077 = vmax.f32 %v528, 0.0
        %v1078 = vmax.f32 %v719, 0.0
        %v1079 = vmax.f32 %v721, 0.0
        %v1080 = vmax.f32 %v912, 0.0
        %v1081 = vmax.f32 %v914, 0.0
        %v1082 = vmax.f32 %v532, 0.0
        %v1083 = vmax.f32 %v534, 0.0
        %v1084 = vmax.f32 %v725, 0.0
        %v1085 = vmax.f32 %v727, 0.0
        %v1086 = vmax.f32 %v918, 0.0
        %v1087 = vmax.f32 %v920, 0.0
        %v1088 = vmax.f32 %v536, 0.0
        %v1089 = vmax.f32 %v538, 0.0
        %v1090 = vmax.f32 %v729, 0.0
        %v1091 = vmax.f32 %v731, 0.0
        %v1092 = vmax.f32 %v922, 0.0
        %v1093 = vmax.f32 %v924, 0.0
        %v1094 = vmax.f32 %v542, 0.0
        %v1095 = vmax.f32 %v544, 0.0
        %v1096 = vmax.f32 %v735, 0.0
        %v1097 = vmax.f32 %v737, 0.0
        %v1098 = vmax.f32 %v928, 0.0
        %v1099 = vmax.f32 %v930, 0.0
        %v1100 = vmax.f32 %v546, 0.0
        %v1101 = vmax.f32 %v548, 0.0
        %v1102 = vmax.f32 %v739, 0.0
        %v1103 = vmax.f32 %v741, 0.0
        %v1104 = vmax.f32 %v932, 0.0
        %v1105 = vmax.f32 %v934, 0.0
        %v1106 = vmax.f32 %v552, 0.0
        %v1107 = vmax.f32 %v554, 0.0
        %v1108 = vmax.f32 %v745, 0.0
        %v1109 = vmax.f32 %v747, 0.0
        %v1110 = vmax.f32 %v938, 0.0
        %v1111 = vmax.f32 %v940, 0.0
        %v1112 = vmax.f32 %v556, 0.0
        %v1113 = vmax.f32 %v558, 0.0
        %v1114 = vmax.f32 %v749, 0.0
        %v1115 = vmax.f32 %v751, 0.0
        %v1116 = vmax.f32 %v942, 0.0
        %v1117 = vmax.f32 %v944, 0.0
        %v1118 = vmax.f32 %v562, 0.0
        %v1119 = vmax.f32 %v564, 0.0
        %v1120 = vmax.f32 %v755, 0.0
        %v1121 = vmax.f32 %v757, 0.0
        %v1122 = vmax.f32 %v948, 0.0
        %v1123 = vmax.f32 %v950, 0.0
        %v1124 = vmax.f32 %v566, 0.0
        %v1125 = vmax.f32 %v568, 0.0
        %v1126 = vmax.f32 %v759, 0.0
        %v1127 = vmax.f32 %v761, 0.0
        %v1128 = vmax.f32 %v952, 0.0
        %v1129 = vmax.f32 %v954, 0.0
        %v1130 = vmax.f32 %v572, 0.0
        %v1131 = vmax.f32 %v574, 0.0
        %v1132 = vmax.f32 %v765, 0.0
        %v1133 = vmax.f32 %v767, 0.0
        %v1134 = vmax.f32 %v958, 0.0
        %v1135 = vmax.f32 %v960, 0.0
        %v1136 = vmax.f32 %v576, 0.0
        %v1137 = vmax.f32 %v578, 0.0
        %v1138 = vmax.f32 %v769, 0.0
        %v1139 = vmax.f32 %v771, 0.0
        %v1140 = vmax.f32 %v962, 0.0
        %v1141 = vmax.f32 %v964, 0.0
        %v1142 = vmax.f32 %v582, 0.0
        %v1143 = vmax.f32 %v584, 0.0
        %v1144 = vmax.f32 %v775, 0.0
        %v1145 = vmax.f32 %v777, 0.0
        %v1146 = vmax.f32 %v968, 0.0
        %v1147 = vmax.f32 %v970, 0.0
        %v1148 = vmax.f32 %v586, 0.0
        %v1149 = vmax.f32 %v588, 0.0
        %v1150 = vmax.f32 %v779, 0.0
        %v1151 = vmax.f32 %v781, 0.0
        %v1152 = vmax.f32 %v972, 0.0
        %v1153 = vmax.f32 %v974, 0.0
        %v1154 = vmax.f32 %v592, 0.0
        %v1155 = vmax.f32 %v594, 0.0
        %v1156 = vmax.f32 %v785, 0.0
        %v1157 = vmax.f32 %v787, 0.0
        %v1158 = vmax.f32 %v978, 0.0
        %v1159 = vmax.f32 %v980, 0.0
        %v1160 = vmax.f32 %v596, 0.0
        %v1161 = vmax.f32 %v598, 0.0
        %v1162 = vmax.f32 %v789, 0.0
        %v1163 = vmax.f32 %v791, 0.0
        %v1164 = vmax.f32 %v982, 0.0
        %v1165 = vmax.f32 %v984, 0.0
        %v1166 = vmax.f32 %v602, 0.0
        %v1167 = vmax.f32 %v604, 0.0
        %v1168 = vmax.f32 %v795, 0.0
        %v1169 = vmax.f32 %v797, 0.0
        %v1170 = vmax.f32 %v988, 0.0
        %v1171 = vmax.f32 %v990, 0.0
        %v1172 = vmax.f32 %v606, 0.0
        %v1173 = vmax.f32 %v608, 0.0
        %v1174 = vmax.f32 %v799, 0.0
        %v1175 = vmax.f32 %v801, 0.0
        %v1176 = vmax.f32 %v992, 0.0
        %v1177 = vmax.f32 %v994, 0.0
        %v1178 = vmax.f32 %v612, 0.0
        %v1179 = vmax.f32 %v614, 0.0
        %v1180 = vmax.f32 %v805, 0.0
        %v1181 = vmax.f32 %v807, 0.0
        %v1182 = vmax.f32 %v998, 0.0
        %v1183 = vmax.f32 %v1000, 0.0
        %v1184 = vmax.f32 %v616, 0.0
        %v1185 = vmax.f32 %v618, 0.0
        %v1186 = vmax.f32 %v809, 0.0
        %v1187 = vmax.f32 %v811, 0.0
        %v1188 = vmax.f32 %v1002, 0.0
        %v1189 = vmax.f32 %v1004, 0.0
        %v1190 = vmax.f32 %v622, 0.0
        %v1191 = vmax.f32 %v624, 0.0
        %v1192 = vmax.f32 %v815, 0.0
        %v1193 = vmax.f32 %v817, 0.0
        %v1194 = vmax.f32 %v1008, 0.0
        %v1195 = vmax.f32 %v1010, 0.0
        %v1196 = vmax.f32 %v626, 0.0
        %v1197 = vmax.f32 %v628, 0.0
        %v1198 = vmax.f32 %v819, 0.0
        %v1199 = vmax.f32 %v821, 0.0
        %v1200 = vmax.f32 %v1012, 0.0
        %v1201 = vmax.f32 %v1014, 0.0
        %v1202 = vmax.f32 %v632, 0.0
        %v1203 = vmax.f32 %v634, 0.0
        %v1204 = vmax.f32 %v825, 0.0
        %v1205 = vmax.f32 %v827, 0.0
        %v1206 = vmax.f32 %v1018, 0.0
        %v1207 = vmax.f32 %v1020, 0.0
        %v1208 = vmax.f32 %v636, 0.0
        %v1209 = vmax.f32 %v638, 0.0
        %v1210 = vmax.f32 %v829, 0.0
        %v1211 = vmax.f32 %v831, 0.0
        %v1212 = vmax.f32 %v1022, 0.0
        %v1213 = vmax.f32 %v1024, 0.0
        %v1214 = vmax.f32 %v642, 0.0
        %v1215 = vmax.f32 %v644, 0.0
        %v1216 = vmax.f32 %v835, 0.0
        %v1217 = vmax.f32 %v837, 0.0
        %v1218 = vmax.f32 %v1028, 0.0
        %v1219 = vmax.f32 %v1030, 0.0
        %v1220 = vmax.f32 %v646, 0.0
        %v1221 = vmax.f32 %v648, 0.0
        %v1222 = vmax.f32 %v839, 0.0
        %v1223 = vmax.f32 %v841, 0.0
        %v1224 = vmax.f32 %v1032, 0.0
        %v1225 = vmax.f32 %v1034, 0.0
        %v1226 = vmax.f32 %v652, 0.0
        %v1227 = vmax.f32 %v654, 0.0
        %v1228 = vmax.f32 %v845, 0.0
        %v1229 = vmax.f32 %v847, 0.0
        %v1230 = vmax.f32 %v1038, 0.0
        %v1231 = vmax.f32 %v1040, 0.0
        %v1232 = vmax.f32 %v656, 0.0
        %v1233 = vmax.f32 %v658, 0.0
        %v1234 = vmax.f32 %v849, 0.0
        %v1235 = vmax.f32 %v851, 0.0
        %v1236 = vmax.f32 %v1042, 0.0
        %v1237 = vmax.f32 %v1044, 0.0
        %v1238 = vpack.c.bf16 %v1052, %v1046
        %v1239 = vpack.c.bf16 %v1053, %v1047
        %v1240 = vpack.c.bf16 %v1054, %v1048
        %v1241 = vpack.c.bf16 %v1055, %v1049
        %v1242 = vpack.c.bf16 %v1056, %v1050
        %v1243 = vpack.c.bf16 %v1057, %v1051
        %v1244 = vpack.c.bf16 %v1064, %v1058
        %v1245 = vpack.c.bf16 %v1065, %v1059
        %v1246 = vpack.c.bf16 %v1066, %v1060
        %v1247 = vpack.c.bf16 %v1067, %v1061
        %v1248 = vpack.c.bf16 %v1068, %v1062
        %v1249 = vpack.c.bf16 %v1069, %v1063
        %v1250 = vpack.c.bf16 %v1076, %v1070
        %v1251 = vpack.c.bf16 %v1077, %v1071
        %v1252 = vpack.c.bf16 %v1078, %v1072
        %v1253 = vpack.c.bf16 %v1079, %v1073
        %v1254 = vpack.c.bf16 %v1080, %v1074
        %v1255 = vpack.c.bf16 %v1081, %v1075
        %v1256 = vpack.c.bf16 %v1088, %v1082
        %v1257 = vpack.c.bf16 %v1089, %v1083
        %v1258 = vpack.c.bf16 %v1090, %v1084
        %v1259 = vpack.c.bf16 %v1091, %v1085
        %v1260 = vpack.c.bf16 %v1092, %v1086
        %v1261 = vpack.c.bf16 %v1093, %v1087
        %v1262 = vpack.c.bf16 %v1100, %v1094
        %v1263 = vpack.c.bf16 %v1101, %v1095
        %v1264 = vpack.c.bf16 %v1102, %v1096
        %v1265 = vpack.c.bf16 %v1103, %v1097
        %v1266 = vpack.c.bf16 %v1104, %v1098
        %v1267 = vpack.c.bf16 %v1105, %v1099
        %v1268 = vpack.c.bf16 %v1112, %v1106
        %v1269 = vpack.c.bf16 %v1113, %v1107
        %v1270 = vpack.c.bf16 %v1114, %v1108
        %v1271 = vpack.c.bf16 %v1115, %v1109
        %v1272 = vpack.c.bf16 %v1116, %v1110
        %v1273 = vpack.c.bf16 %v1117, %v1111
        %v1274 = vpack.c.bf16 %v1124, %v1118
        %v1275 = vpack.c.bf16 %v1125, %v1119
        %v1276 = vpack.c.bf16 %v1126, %v1120
        %v1277 = vpack.c.bf16 %v1127, %v1121
        %v1278 = vpack.c.bf16 %v1128, %v1122
        %v1279 = vpack.c.bf16 %v1129, %v1123
        %v1280 = vpack.c.bf16 %v1136, %v1130
        %v1281 = vpack.c.bf16 %v1137, %v1131
        %v1282 = vpack.c.bf16 %v1138, %v1132
        %v1283 = vpack.c.bf16 %v1139, %v1133
        %v1284 = vpack.c.bf16 %v1140, %v1134
        %v1285 = vpack.c.bf16 %v1141, %v1135
        %v1286 = vpack.c.bf16 %v1148, %v1142
        %v1287 = vpack.c.bf16 %v1149, %v1143
        %v1288 = vpack.c.bf16 %v1150, %v1144
        %v1289 = vpack.c.bf16 %v1151, %v1145
        %v1290 = vpack.c.bf16 %v1152, %v1146
        %v1291 = vpack.c.bf16 %v1153, %v1147
        %v1292 = vpack.c.bf16 %v1160, %v1154
        %v1293 = vpack.c.bf16 %v1161, %v1155
        %v1294 = vpack.c.bf16 %v1162, %v1156
        %v1295 = vpack.c.bf16 %v1163, %v1157
        %v1296 = vpack.c.bf16 %v1164, %v1158
        %v1297 = vpack.c.bf16 %v1165, %v1159
        %v1298 = vpack.c.bf16 %v1172, %v1166
        %v1299 = vpack.c.bf16 %v1173, %v1167
        %v1300 = vpack.c.bf16 %v1174, %v1168
        %v1301 = vpack.c.bf16 %v1175, %v1169
        %v1302 = vpack.c.bf16 %v1176, %v1170
        %v1303 = vpack.c.bf16 %v1177, %v1171
        %v1304 = vpack.c.bf16 %v1184, %v1178
        %v1305 = vpack.c.bf16 %v1185, %v1179
        %v1306 = vpack.c.bf16 %v1186, %v1180
        %v1307 = vpack.c.bf16 %v1187, %v1181
        %v1308 = vpack.c.bf16 %v1188, %v1182
        %v1309 = vpack.c.bf16 %v1189, %v1183
        %v1310 = vpack.c.bf16 %v1196, %v1190
        %v1311 = vpack.c.bf16 %v1197, %v1191
        %v1312 = vpack.c.bf16 %v1198, %v1192
        %v1313 = vpack.c.bf16 %v1199, %v1193
        %v1314 = vpack.c.bf16 %v1200, %v1194
        %v1315 = vpack.c.bf16 %v1201, %v1195
        %v1316 = vpack.c.bf16 %v1208, %v1202
        %v1317 = vpack.c.bf16 %v1209, %v1203
        %v1318 = vpack.c.bf16 %v1210, %v1204
        %v1319 = vpack.c.bf16 %v1211, %v1205
        %v1320 = vpack.c.bf16 %v1212, %v1206
        %v1321 = vpack.c.bf16 %v1213, %v1207
        %v1322 = vpack.c.bf16 %v1220, %v1214
        %v1323 = vpack.c.bf16 %v1221, %v1215
        %v1324 = vpack.c.bf16 %v1222, %v1216
        %v1325 = vpack.c.bf16 %v1223, %v1217
        %v1326 = vpack.c.bf16 %v1224, %v1218
        %v1327 = vpack.c.bf16 %v1225, %v1219
        %v1328 = vpack.c.bf16 %v1232, %v1226
        %v1329 = vpack.c.bf16 %v1233, %v1227
        %v1330 = vpack.c.bf16 %v1234, %v1228
        %v1331 = vpack.c.bf16 %v1235, %v1229
        %v1332 = vpack.c.bf16 %v1236, %v1230
        %v1333 = vpack.c.bf16 %v1237, %v1231
        %v1334 = vld [vmem:[%s3] sm:$0xf]
        %v1335 = vld [vmem:[%s3 + $0x4] sm:$0xf]
        %v1336 = vld [vmem:[%s3 + $0x8] sm:$0xf]
        %v1337 = vld [vmem:[%s3 + $0xc] sm:$0xf]
        %v1338 = vld [vmem:[%s3 + $0x10] sm:$0xf]
        %v1339 = vld [vmem:[%s3 + $0x14] sm:$0xf]
        %v1340 = vld [vmem:[%s3 + $0x18] sm:$0xf]
        %v1341 = vld [vmem:[%s3 + $0x1c] sm:$0xf]
        %v1342 = vld [vmem:[%s3 + $0x20] sm:$0xf]
        %v1343 = vld [vmem:[%s3 + $0x24] sm:$0xf]
        %v1344 = vld [vmem:[%s3 + $0x28] sm:$0xf]
        %v1345 = vld [vmem:[%s3 + $0x2c] sm:$0xf]
        %v1346 = vld [vmem:[%s3 + $0x30] sm:$0xf]
        %v1347 = vld [vmem:[%s3 + $0x34] sm:$0xf]
        %v1348 = vld [vmem:[%s3 + $0x38] sm:$0xf]
        %v1349 = vld [vmem:[%s3 + $0x3c] sm:$0xf]
        %v1350 = vld [vmem:[%s3 + $0x40] sm:$0xf]
        %v1351 = vld [vmem:[%s3 + $0x44] sm:$0xf]
        %v1352 = vld [vmem:[%s3 + $0x48] sm:$0xf]
        %v1353 = vld [vmem:[%s3 + $0x4c] sm:$0xf]
        %v1354 = vld [vmem:[%s3 + $0x50] sm:$0xf]
        %v1355 = vld [vmem:[%s3 + $0x54] sm:$0xf]
        %v1356 = vld [vmem:[%s3 + $0x58] sm:$0xf]
        %v1357 = vld [vmem:[%s3 + $0x5c] sm:$0xf]
        %v1358 = vld [vmem:[%s3 + $0x60] sm:$0xf]
        %v1359 = vld [vmem:[%s3 + $0x64] sm:$0xf]
        %v1360 = vld [vmem:[%s3 + $0x68] sm:$0xf]
        %v1361 = vld [vmem:[%s3 + $0x6c] sm:$0xf]
        %v1362 = vld [vmem:[%s3 + $0x70] sm:$0xf]
        %v1363 = vld [vmem:[%s3 + $0x74] sm:$0xf]
        %v1364 = vld [vmem:[%s3 + $0x78] sm:$0xf]
        %v1365 = vld [vmem:[%s3 + $0x7c] sm:$0xf]
        %v1366 = vld [vmem:[%s3 + $0x80] sm:$0xf]
        %v1367 = vld [vmem:[%s3 + $0x84] sm:$0xf]
        %v1368 = vld [vmem:[%s3 + $0x88] sm:$0xf]
        %v1369 = vld [vmem:[%s3 + $0x8c] sm:$0xf]
        %v1370 = vld [vmem:[%s3 + $0x90] sm:$0xf]
        %v1371 = vld [vmem:[%s3 + $0x94] sm:$0xf]
        %v1372 = vld [vmem:[%s3 + $0x98] sm:$0xf]
        %v1373 = vld [vmem:[%s3 + $0x9c] sm:$0xf]
        %v1374 = vld [vmem:[%s3 + $0xa0] sm:$0xf]
        %v1375 = vld [vmem:[%s3 + $0xa4] sm:$0xf]
        %v1376 = vld [vmem:[%s3 + $0xa8] sm:$0xf]
        %v1377 = vld [vmem:[%s3 + $0xac] sm:$0xf]
        %v1378 = vld [vmem:[%s3 + $0xb0] sm:$0xf]
        %v1379 = vld [vmem:[%s3 + $0xb4] sm:$0xf]
        %v1380 = vld [vmem:[%s3 + $0xb8] sm:$0xf]
        %v1381 = vld [vmem:[%s3 + $0xbc] sm:$0xf]
        %v1382 = vld [vmem:[%s3 + $0xc0] sm:$0xf]
        %v1383 = vld [vmem:[%s3 + $0xc4] sm:$0xf]
        %v1384 = vld [vmem:[%s3 + $0xc8] sm:$0xf]
        %v1385 = vld [vmem:[%s3 + $0xcc] sm:$0xf]
        %v1386 = vld [vmem:[%s3 + $0xd0] sm:$0xf]
        %v1387 = vld [vmem:[%s3 + $0xd4] sm:$0xf]
        %v1388 = vld [vmem:[%s3 + $0xd8] sm:$0xf]
        %v1389 = vld [vmem:[%s3 + $0xdc] sm:$0xf]
        %v1390 = vld [vmem:[%s3 + $0xe0] sm:$0xf]
        %v1391 = vld [vmem:[%s3 + $0xe4] sm:$0xf]
        %v1392 = vld [vmem:[%s3 + $0xe8] sm:$0xf]
        %v1393 = vld [vmem:[%s3 + $0xec] sm:$0xf]
        %v1394 = vld [vmem:[%s3 + $0xf0] sm:$0xf]
        %v1395 = vld [vmem:[%s3 + $0xf4] sm:$0xf]
        %v1396 = vld [vmem:[%s3 + $0xf8] sm:$0xf]
        %v1397 = vld [vmem:[%s3 + $0xfc] sm:$0xf]
        %v1398 = vld [vmem:[%s3 + $0x100] sm:$0xf]
        %v1399 = vld [vmem:[%s3 + $0x104] sm:$0xf]
        %v1400 = vld [vmem:[%s3 + $0x108] sm:$0xf]
        %v1401 = vld [vmem:[%s3 + $0x10c] sm:$0xf]
        %v1402 = vld [vmem:[%s3 + $0x110] sm:$0xf]
        %v1403 = vld [vmem:[%s3 + $0x114] sm:$0xf]
        %v1404 = vld [vmem:[%s3 + $0x118] sm:$0xf]
        %v1405 = vld [vmem:[%s3 + $0x11c] sm:$0xf]
        %v1406 = vld [vmem:[%s3 + $0x120] sm:$0xf]
        %v1407 = vld [vmem:[%s3 + $0x124] sm:$0xf]
        %v1408 = vld [vmem:[%s3 + $0x128] sm:$0xf]
        %v1409 = vld [vmem:[%s3 + $0x12c] sm:$0xf]
        %v1410 = vld [vmem:[%s3 + $0x130] sm:$0xf]
        %v1411 = vld [vmem:[%s3 + $0x134] sm:$0xf]
        %v1412 = vld [vmem:[%s3 + $0x138] sm:$0xf]
        %v1413 = vld [vmem:[%s3 + $0x13c] sm:$0xf]
        %v1414 = vld [vmem:[%s3 + $0x140] sm:$0xf]
        %v1415 = vld [vmem:[%s3 + $0x144] sm:$0xf]
        %v1416 = vld [vmem:[%s3 + $0x148] sm:$0xf]
        %v1417 = vld [vmem:[%s3 + $0x14c] sm:$0xf]
        %v1418 = vld [vmem:[%s3 + $0x150] sm:$0xf]
        %v1419 = vld [vmem:[%s3 + $0x154] sm:$0xf]
        %v1420 = vld [vmem:[%s3 + $0x158] sm:$0xf]
        %v1421 = vld [vmem:[%s3 + $0x15c] sm:$0xf]
        %v1422 = vld [vmem:[%s3 + $0x160] sm:$0xf]
        %v1423 = vld [vmem:[%s3 + $0x164] sm:$0xf]
        %v1424 = vld [vmem:[%s3 + $0x168] sm:$0xf]
        %v1425 = vld [vmem:[%s3 + $0x16c] sm:$0xf]
        %v1426 = vld [vmem:[%s3 + $0x170] sm:$0xf]
        %v1427 = vld [vmem:[%s3 + $0x174] sm:$0xf]
        %v1428 = vld [vmem:[%s3 + $0x178] sm:$0xf]
        %v1429 = vld [vmem:[%s3 + $0x17c] sm:$0xf]
        %v1430 = vld [vmem:[%s4] sm:$0x1]
        %v1432 = vlaneseq
        %v1433 = vshrl.u32 %v1432, 7
        %v1434 = vsub.s32 0, %v1433
        %v1435 = vrot.slane %v1430, %v1434
        %v1533 = vunpack.c.l.b16 %v1334
        %v1534 = vunpack.c.l.b16 %v1335
        %v1535 = vunpack.c.l.b16 %v1336
        %v1536 = vunpack.c.l.b16 %v1337
        %v1537 = vunpack.c.l.b16 %v1338
        %v1538 = vunpack.c.l.b16 %v1339
        %v1539 = vunpack.c.l.b16 %v1340
        %v1540 = vunpack.c.l.b16 %v1341
        %v1541 = vunpack.c.l.b16 %v1342
        %v1542 = vunpack.c.l.b16 %v1343
        %v1543 = vunpack.c.l.b16 %v1344
        %v1544 = vunpack.c.l.b16 %v1345
        %v1545 = vunpack.c.l.b16 %v1346
        %v1546 = vunpack.c.l.b16 %v1347
        %v1547 = vunpack.c.l.b16 %v1348
        %v1548 = vunpack.c.l.b16 %v1349
        %v1549 = vunpack.c.l.b16 %v1350
        %v1550 = vunpack.c.l.b16 %v1351
        %v1551 = vunpack.c.l.b16 %v1352
        %v1552 = vunpack.c.l.b16 %v1353
        %v1553 = vunpack.c.l.b16 %v1354
        %v1554 = vunpack.c.l.b16 %v1355
        %v1555 = vunpack.c.l.b16 %v1356
        %v1556 = vunpack.c.l.b16 %v1357
        %v1557 = vunpack.c.l.b16 %v1358
        %v1558 = vunpack.c.l.b16 %v1359
        %v1559 = vunpack.c.l.b16 %v1360
        %v1560 = vunpack.c.l.b16 %v1361
        %v1561 = vunpack.c.l.b16 %v1362
        %v1562 = vunpack.c.l.b16 %v1363
        %v1563 = vunpack.c.l.b16 %v1364
        %v1564 = vunpack.c.l.b16 %v1365
        %v1565 = vunpack.c.l.b16 %v1366
        %v1566 = vunpack.c.l.b16 %v1367
        %v1567 = vunpack.c.l.b16 %v1368
        %v1568 = vunpack.c.l.b16 %v1369
        %v1569 = vunpack.c.l.b16 %v1370
        %v1570 = vunpack.c.l.b16 %v1371
        %v1571 = vunpack.c.l.b16 %v1372
        %v1572 = vunpack.c.l.b16 %v1373
        %v1573 = vunpack.c.l.b16 %v1374
        %v1574 = vunpack.c.l.b16 %v1375
        %v1575 = vunpack.c.l.b16 %v1376
        %v1576 = vunpack.c.l.b16 %v1377
        %v1577 = vunpack.c.l.b16 %v1378
        %v1578 = vunpack.c.l.b16 %v1379
        %v1579 = vunpack.c.l.b16 %v1380
        %v1580 = vunpack.c.l.b16 %v1381
        %v1581 = vunpack.c.l.b16 %v1382
        %v1582 = vunpack.c.l.b16 %v1383
        %v1583 = vunpack.c.l.b16 %v1384
        %v1584 = vunpack.c.l.b16 %v1385
        %v1585 = vunpack.c.l.b16 %v1386
        %v1586 = vunpack.c.l.b16 %v1387
        %v1587 = vunpack.c.l.b16 %v1388
        %v1588 = vunpack.c.l.b16 %v1389
        %v1589 = vunpack.c.l.b16 %v1390
        %v1590 = vunpack.c.l.b16 %v1391
        %v1591 = vunpack.c.l.b16 %v1392
        %v1592 = vunpack.c.l.b16 %v1393
        %v1593 = vunpack.c.l.b16 %v1394
        %v1594 = vunpack.c.l.b16 %v1395
        %v1595 = vunpack.c.l.b16 %v1396
        %v1596 = vunpack.c.l.b16 %v1397
        %v1597 = vunpack.c.l.b16 %v1398
        %v1598 = vunpack.c.l.b16 %v1399
        %v1599 = vunpack.c.l.b16 %v1400
        %v1600 = vunpack.c.l.b16 %v1401
        %v1601 = vunpack.c.l.b16 %v1402
        %v1602 = vunpack.c.l.b16 %v1403
        %v1603 = vunpack.c.l.b16 %v1404
        %v1604 = vunpack.c.l.b16 %v1405
        %v1605 = vunpack.c.l.b16 %v1406
        %v1606 = vunpack.c.l.b16 %v1407
        %v1607 = vunpack.c.l.b16 %v1408
        %v1608 = vunpack.c.l.b16 %v1409
        %v1609 = vunpack.c.l.b16 %v1410
        %v1610 = vunpack.c.l.b16 %v1411
        %v1611 = vunpack.c.l.b16 %v1412
        %v1612 = vunpack.c.l.b16 %v1413
        %v1613 = vunpack.c.l.b16 %v1414
        %v1614 = vunpack.c.l.b16 %v1415
        %v1615 = vunpack.c.l.b16 %v1416
        %v1616 = vunpack.c.l.b16 %v1417
        %v1617 = vunpack.c.l.b16 %v1418
        %v1618 = vunpack.c.l.b16 %v1419
        %v1619 = vunpack.c.l.b16 %v1420
        %v1620 = vunpack.c.l.b16 %v1421
        %v1621 = vunpack.c.l.b16 %v1422
        %v1622 = vunpack.c.l.b16 %v1423
        %v1623 = vunpack.c.l.b16 %v1424
        %v1624 = vunpack.c.l.b16 %v1425
        %v1625 = vunpack.c.l.b16 %v1426
        %v1626 = vunpack.c.l.b16 %v1427
        %v1627 = vunpack.c.l.b16 %v1428
        %v1628 = vunpack.c.l.b16 %v1429
        %v1629 = vpack.c.b16 %v1534, %v1533
        %v1630 = vpack.c.b16 %v1536, %v1535
        %v1631 = vpack.c.b16 %v1538, %v1537
        %v1632 = vpack.c.b16 %v1540, %v1539
        %v1633 = vpack.c.b16 %v1542, %v1541
        %v1634 = vpack.c.b16 %v1544, %v1543
        %v1635 = vpack.c.b16 %v1546, %v1545
        %v1636 = vpack.c.b16 %v1548, %v1547
        %v1637 = vpack.c.b16 %v1550, %v1549
        %v1638 = vpack.c.b16 %v1552, %v1551
        %v1639 = vpack.c.b16 %v1554, %v1553
        %v1640 = vpack.c.b16 %v1556, %v1555
        %v1641 = vpack.c.b16 %v1558, %v1557
        %v1642 = vpack.c.b16 %v1560, %v1559
        %v1643 = vpack.c.b16 %v1562, %v1561
        %v1644 = vpack.c.b16 %v1564, %v1563
        %v1645 = vpack.c.b16 %v1566, %v1565
        %v1646 = vpack.c.b16 %v1568, %v1567
        %v1647 = vpack.c.b16 %v1570, %v1569
        %v1648 = vpack.c.b16 %v1572, %v1571
        %v1649 = vpack.c.b16 %v1574, %v1573
        %v1650 = vpack.c.b16 %v1576, %v1575
        %v1651 = vpack.c.b16 %v1578, %v1577
        %v1652 = vpack.c.b16 %v1580, %v1579
        %v1653 = vpack.c.b16 %v1582, %v1581
        %v1654 = vpack.c.b16 %v1584, %v1583
        %v1655 = vpack.c.b16 %v1586, %v1585
        %v1656 = vpack.c.b16 %v1588, %v1587
        %v1657 = vpack.c.b16 %v1590, %v1589
        %v1658 = vpack.c.b16 %v1592, %v1591
        %v1659 = vpack.c.b16 %v1594, %v1593
        %v1660 = vpack.c.b16 %v1596, %v1595
        %v1661 = vpack.c.b16 %v1598, %v1597
        %v1662 = vpack.c.b16 %v1600, %v1599
        %v1663 = vpack.c.b16 %v1602, %v1601
        %v1664 = vpack.c.b16 %v1604, %v1603
        %v1665 = vpack.c.b16 %v1606, %v1605
        %v1666 = vpack.c.b16 %v1608, %v1607
        %v1667 = vpack.c.b16 %v1610, %v1609
        %v1668 = vpack.c.b16 %v1612, %v1611
        %v1669 = vpack.c.b16 %v1614, %v1613
        %v1670 = vpack.c.b16 %v1616, %v1615
        %v1671 = vpack.c.b16 %v1618, %v1617
        %v1672 = vpack.c.b16 %v1620, %v1619
        %v1673 = vpack.c.b16 %v1622, %v1621
        %v1674 = vpack.c.b16 %v1624, %v1623
        %v1675 = vpack.c.b16 %v1626, %v1625
        %v1676 = vpack.c.b16 %v1628, %v1627
        %1725 = vmatprep.subr.bf16.mxu0 0
        %1726 = vmatpush1.bf16.msra.mxu0 %v1629
        %1727 = vmatprep.subr.bf16.mxu0 0
        %1728 = vmatpush1.bf16.msra.mxu0 %v1630
        %1729 = vmatprep.subr.bf16.mxu0 0
        %1730 = vmatpush1.bf16.msra.mxu0 %v1631
        %1731 = vmatprep.subr.bf16.mxu0 0
        %1732 = vmatpush1.bf16.msra.mxu0 %v1632
        %1733 = vmatprep.subr.bf16.mxu0 0
        %1734 = vmatpush1.bf16.msra.mxu0 %v1633
        %1735 = vmatprep.subr.bf16.mxu0 0
        %1736 = vmatpush1.bf16.msra.mxu0 %v1634
        %1737 = vmatprep.subr.bf16.mxu0 0
        %1738 = vmatpush1.bf16.msra.mxu0 %v1635
        %1739 = vmatprep.subr.bf16.mxu0 0
        %1740 = vmatpush1.bf16.msra.mxu0 %v1636
        %1741 = vmatprep.subr.bf16.mxu0 0
        %1742 = vmatpush1.bf16.msra.mxu0 %v1637
        %1743 = vmatprep.subr.bf16.mxu0 0
        %1744 = vmatpush1.bf16.msra.mxu0 %v1638
        %1745 = vmatprep.subr.bf16.mxu0 0
        %1746 = vmatpush1.bf16.msra.mxu0 %v1639
        %1747 = vmatprep.subr.bf16.mxu0 0
        %1748 = vmatpush1.bf16.msra.mxu0 %v1640
        %1749 = vmatprep.subr.bf16.mxu0 0
        %1750 = vmatpush1.bf16.msra.mxu0 %v1641
        %1751 = vmatprep.subr.bf16.mxu0 0
        %1752 = vmatpush1.bf16.msra.mxu0 %v1642
        %1753 = vmatprep.subr.bf16.mxu0 0
        %1754 = vmatpush1.bf16.msra.mxu0 %v1643
        %1755 = vmatprep.subr.bf16.mxu0 0
        %1756 = vmatpush1.bf16.msra.mxu0 %v1644
        %1757 = vmatprep.mubr.bf16.mxu0 %v1239
        %1758 = vmatmul.mubr.bf16.gmra.mrb[0].mxu0 %v1238
        %v1759 = vpop.f32.mrb[0].mxu0
        %v1760 = vadd.f32 %v1435, %v1759
        %v1761 = vpop.f32.mrb[0].mxu0
        %v1762 = vpop.f32.mrb[0].mxu0
        %v1763 = vadd.f32 %v1435, %v1762
        %v1764 = vpop.f32.mrb[0].mxu0
        %1765 = vmatprep.mubr.bf16.mxu0 %v1245
        %1766 = vmatmul.mubr.bf16.gmra.mrb[0].mxu0 %v1244
        %v1767 = vpop.f32.mrb[0].mxu0
        %v1768 = vadd.f32 %v1435, %v1767
        %v1769 = vpop.f32.mrb[0].mxu0
        %v1770 = vpop.f32.mrb[0].mxu0
        %v1771 = vadd.f32 %v1435, %v1770
        %v1772 = vpop.f32.mrb[0].mxu0
        %1773 = vmatprep.mubr.bf16.mxu0 %v1251
        %1774 = vmatmul.mubr.bf16.gmra.mrb[0].mxu0 %v1250
        %v1775 = vpop.f32.mrb[0].mxu0
        %v1776 = vadd.f32 %v1435, %v1775
        %v1777 = vpop.f32.mrb[0].mxu0
        %v1778 = vpop.f32.mrb[0].mxu0
        %v1779 = vadd.f32 %v1435, %v1778
        %v1780 = vpop.f32.mrb[0].mxu0
        %1781 = vmatprep.mubr.bf16.mxu0 %v1257
        %1782 = vmatmul.mubr.bf16.gmra.mrb[0].mxu0 %v1256
        %v1783 = vpop.f32.mrb[0].mxu0
        %v1784 = vadd.f32 %v1435, %v1783
        %v1785 = vpop.f32.mrb[0].mxu0
        %v1786 = vpop.f32.mrb[0].mxu0
        %v1787 = vadd.f32 %v1435, %v1786
        %v1788 = vpop.f32.mrb[0].mxu0
        %1789 = vmatprep.mubr.bf16.mxu0 %v1263
        %1790 = vmatmul.mubr.bf16.gmra.mrb[0].mxu0 %v1262
        %v1791 = vpop.f32.mrb[0].mxu0
        %v1792 = vadd.f32 %v1435, %v1791
        %v1793 = vpop.f32.mrb[0].mxu0
        %v1794 = vpop.f32.mrb[0].mxu0
        %v1795 = vadd.f32 %v1435, %v1794
        %v1796 = vpop.f32.mrb[0].mxu0
        %1797 = vmatprep.mubr.bf16.mxu0 %v1269
        %1798 = vmatmul.mubr.bf16.gmra.mrb[0].mxu0 %v1268
        %v1799 = vpop.f32.mrb[0].mxu0
        %v1800 = vadd.f32 %v1435, %v1799
        %v1801 = vpop.f32.mrb[0].mxu0
        %v1802 = vpop.f32.mrb[0].mxu0
        %v1803 = vadd.f32 %v1435, %v1802
        %v1804 = vpop.f32.mrb[0].mxu0
        %1805 = vmatprep.mubr.bf16.mxu0 %v1275
        %1806 = vmatmul.mubr.bf16.gmra.mrb[0].mxu0 %v1274
        %v1807 = vpop.f32.mrb[0].mxu0
        %v1808 = vadd.f32 %v1435, %v1807
        %v1809 = vpop.f32.mrb[0].mxu0
        %v1810 = vpop.f32.mrb[0].mxu0
        %v1811 = vadd.f32 %v1435, %v1810
        %v1812 = vpop.f32.mrb[0].mxu0
        %1813 = vmatprep.mubr.bf16.mxu0 %v1281
        %1814 = vmatmul.mubr.bf16.gmra.mrb[0].mxu0 %v1280
        %v1815 = vpop.f32.mrb[0].mxu0
        %v1816 = vadd.f32 %v1435, %v1815
        %v1817 = vpop.f32.mrb[0].mxu0
        %v1818 = vpop.f32.mrb[0].mxu0
        %v1819 = vadd.f32 %v1435, %v1818
        %v1820 = vpop.f32.mrb[0].mxu0
        %1821 = vmatprep.mubr.bf16.mxu0 %v1287
        %1822 = vmatmul.mubr.bf16.gmra.mrb[0].mxu0 %v1286
        %v1823 = vpop.f32.mrb[0].mxu0
        %v1824 = vadd.f32 %v1435, %v1823
        %v1825 = vpop.f32.mrb[0].mxu0
        %v1826 = vpop.f32.mrb[0].mxu0
        %v1827 = vadd.f32 %v1435, %v1826
        %v1828 = vpop.f32.mrb[0].mxu0
        %1829 = vmatprep.mubr.bf16.mxu0 %v1293
        %1830 = vmatmul.mubr.bf16.gmra.mrb[0].mxu0 %v1292
        %v1831 = vpop.f32.mrb[0].mxu0
        %v1832 = vadd.f32 %v1435, %v1831
        %v1833 = vpop.f32.mrb[0].mxu0
        %v1834 = vpop.f32.mrb[0].mxu0
        %v1835 = vadd.f32 %v1435, %v1834
        %v1836 = vpop.f32.mrb[0].mxu0
        %1837 = vmatprep.mubr.bf16.mxu0 %v1299
        %1838 = vmatmul.mubr.bf16.gmra.mrb[0].mxu0 %v1298
        %v1839 = vpop.f32.mrb[0].mxu0
        %v1840 = vadd.f32 %v1435, %v1839
        %v1841 = vpop.f32.mrb[0].mxu0
        %v1842 = vpop.f32.mrb[0].mxu0
        %v1843 = vadd.f32 %v1435, %v1842
        %v1844 = vpop.f32.mrb[0].mxu0
        %1845 = vmatprep.mubr.bf16.mxu0 %v1305
        %1846 = vmatmul.mubr.bf16.gmra.mrb[0].mxu0 %v1304
        %v1847 = vpop.f32.mrb[0].mxu0
        %v1848 = vadd.f32 %v1435, %v1847
        %v1849 = vpop.f32.mrb[0].mxu0
        %v1850 = vpop.f32.mrb[0].mxu0
        %v1851 = vadd.f32 %v1435, %v1850
        %v1852 = vpop.f32.mrb[0].mxu0
        %1853 = vmatprep.mubr.bf16.mxu0 %v1311
        %1854 = vmatmul.mubr.bf16.gmra.mrb[0].mxu0 %v1310
        %v1855 = vpop.f32.mrb[0].mxu0
        %v1856 = vadd.f32 %v1435, %v1855
        %v1857 = vpop.f32.mrb[0].mxu0
        %v1858 = vpop.f32.mrb[0].mxu0
        %v1859 = vadd.f32 %v1435, %v1858
        %v1860 = vpop.f32.mrb[0].mxu0
        %1861 = vmatprep.mubr.bf16.mxu0 %v1317
        %1862 = vmatmul.mubr.bf16.gmra.mrb[0].mxu0 %v1316
        %v1863 = vpop.f32.mrb[0].mxu0
        %v1864 = vadd.f32 %v1435, %v1863
        %v1865 = vpop.f32.mrb[0].mxu0
        %v1866 = vpop.f32.mrb[0].mxu0
        %v1867 = vadd.f32 %v1435, %v1866
        %v1868 = vpop.f32.mrb[0].mxu0
        %1869 = vmatprep.mubr.bf16.mxu0 %v1323
        %1870 = vmatmul.mubr.bf16.gmra.mrb[0].mxu0 %v1322
        %v1871 = vpop.f32.mrb[0].mxu0
        %v1872 = vadd.f32 %v1435, %v1871
        %v1873 = vpop.f32.mrb[0].mxu0
        %v1874 = vpop.f32.mrb[0].mxu0
        %v1875 = vadd.f32 %v1435, %v1874
        %v1876 = vpop.f32.mrb[0].mxu0
        %1877 = vmatprep.mubr.bf16.mxu0 %v1329
        %1878 = vmatmul.mubr.bf16.gmra.mrb[0].mxu0 %v1328
        %v1879 = vpop.f32.mrb[0].mxu0
        %v1880 = vadd.f32 %v1435, %v1879
        %v1881 = vpop.f32.mrb[0].mxu0
        %v1882 = vpop.f32.mrb[0].mxu0
        %v1883 = vadd.f32 %v1435, %v1882
        %v1884 = vpop.f32.mrb[0].mxu0
        %1885 = vdwg.mxu0
        %1886 = vmatprep.subr.bf16.mxu0 0
        %1887 = vmatpush1.bf16.msra.mxu0 %v1645
        %1888 = vmatprep.subr.bf16.mxu0 0
        %1889 = vmatpush1.bf16.msra.mxu0 %v1646
        %1890 = vmatprep.subr.bf16.mxu0 0
        %1891 = vmatpush1.bf16.msra.mxu0 %v1647
        %1892 = vmatprep.subr.bf16.mxu0 0
        %1893 = vmatpush1.bf16.msra.mxu0 %v1648
        %1894 = vmatprep.subr.bf16.mxu0 0
        %1895 = vmatpush1.bf16.msra.mxu0 %v1649
        %1896 = vmatprep.subr.bf16.mxu0 0
        %1897 = vmatpush1.bf16.msra.mxu0 %v1650
        %1898 = vmatprep.subr.bf16.mxu0 0
        %1899 = vmatpush1.bf16.msra.mxu0 %v1651
        %1900 = vmatprep.subr.bf16.mxu0 0
        %1901 = vmatpush1.bf16.msra.mxu0 %v1652
        %1902 = vmatprep.subr.bf16.mxu0 0
        %1903 = vmatpush1.bf16.msra.mxu0 %v1653
        %1904 = vmatprep.subr.bf16.mxu0 0
        %1905 = vmatpush1.bf16.msra.mxu0 %v1654
        %1906 = vmatprep.subr.bf16.mxu0 0
        %1907 = vmatpush1.bf16.msra.mxu0 %v1655
        %1908 = vmatprep.subr.bf16.mxu0 0
        %1909 = vmatpush1.bf16.msra.mxu0 %v1656
        %1910 = vmatprep.subr.bf16.mxu0 0
        %1911 = vmatpush1.bf16.msra.mxu0 %v1657
        %1912 = vmatprep.subr.bf16.mxu0 0
        %1913 = vmatpush1.bf16.msra.mxu0 %v1658
        %1914 = vmatprep.subr.bf16.mxu0 0
        %1915 = vmatpush1.bf16.msra.mxu0 %v1659
        %1916 = vmatprep.subr.bf16.mxu0 0
        %1917 = vmatpush1.bf16.msra.mxu0 %v1660
        %1918 = vmatprep.mubr.bf16.mxu0 %v1241
        %1919 = vmatmul.mubr.bf16.gmra.mrb[0].mxu0 %v1240
        %v1920 = vpop.f32.mrb[0].mxu0
        %v1921 = vadd.f32 %v1760, %v1920
        %v1922 = vpop.f32.mrb[0].mxu0
        %v1923 = vpop.f32.mrb[0].mxu0
        %v1924 = vadd.f32 %v1763, %v1923
        %v1925 = vpop.f32.mrb[0].mxu0
        %1926 = vmatprep.mubr.bf16.mxu0 %v1247
        %1927 = vmatmul.mubr.bf16.gmra.mrb[0].mxu0 %v1246
        %v1928 = vpop.f32.mrb[0].mxu0
        %v1929 = vadd.f32 %v1768, %v1928
        %v1930 = vpop.f32.mrb[0].mxu0
        %v1931 = vpop.f32.mrb[0].mxu0
        %v1932 = vadd.f32 %v1771, %v1931
        %v1933 = vpop.f32.mrb[0].mxu0
        %1934 = vmatprep.mubr.bf16.mxu0 %v1253
        %1935 = vmatmul.mubr.bf16.gmra.mrb[0].mxu0 %v1252
        %v1936 = vpop.f32.mrb[0].mxu0
        %v1937 = vadd.f32 %v1776, %v1936
        %v1938 = vpop.f32.mrb[0].mxu0
        %v1939 = vpop.f32.mrb[0].mxu0
        %v1940 = vadd.f32 %v1779, %v1939
        %v1941 = vpop.f32.mrb[0].mxu0
        %1942 = vmatprep.mubr.bf16.mxu0 %v1259
        %1943 = vmatmul.mubr.bf16.gmra.mrb[0].mxu0 %v1258
        %v1944 = vpop.f32.mrb[0].mxu0
        %v1945 = vadd.f32 %v1784, %v1944
        %v1946 = vpop.f32.mrb[0].mxu0
        %v1947 = vpop.f32.mrb[0].mxu0
        %v1948 = vadd.f32 %v1787, %v1947
        %v1949 = vpop.f32.mrb[0].mxu0
        %1950 = vmatprep.mubr.bf16.mxu0 %v1265
        %1951 = vmatmul.mubr.bf16.gmra.mrb[0].mxu0 %v1264
        %v1952 = vpop.f32.mrb[0].mxu0
        %v1953 = vadd.f32 %v1792, %v1952
        %v1954 = vpop.f32.mrb[0].mxu0
        %v1955 = vpop.f32.mrb[0].mxu0
        %v1956 = vadd.f32 %v1795, %v1955
        %v1957 = vpop.f32.mrb[0].mxu0
        %1958 = vmatprep.mubr.bf16.mxu0 %v1271
        %1959 = vmatmul.mubr.bf16.gmra.mrb[0].mxu0 %v1270
        %v1960 = vpop.f32.mrb[0].mxu0
        %v1961 = vadd.f32 %v1800, %v1960
        %v1962 = vpop.f32.mrb[0].mxu0
        %v1963 = vpop.f32.mrb[0].mxu0
        %v1964 = vadd.f32 %v1803, %v1963
        %v1965 = vpop.f32.mrb[0].mxu0
        %1966 = vmatprep.mubr.bf16.mxu0 %v1277
        %1967 = vmatmul.mubr.bf16.gmra.mrb[0].mxu0 %v1276
        %v1968 = vpop.f32.mrb[0].mxu0
        %v1969 = vadd.f32 %v1808, %v1968
        %v1970 = vpop.f32.mrb[0].mxu0
        %v1971 = vpop.f32.mrb[0].mxu0
        %v1972 = vadd.f32 %v1811, %v1971
        %v1973 = vpop.f32.mrb[0].mxu0
        %1974 = vmatprep.mubr.bf16.mxu0 %v1283
        %1975 = vmatmul.mubr.bf16.gmra.mrb[0].mxu0 %v1282
        %v1976 = vpop.f32.mrb[0].mxu0
        %v1977 = vadd.f32 %v1816, %v1976
        %v1978 = vpop.f32.mrb[0].mxu0
        %v1979 = vpop.f32.mrb[0].mxu0
        %v1980 = vadd.f32 %v1819, %v1979
        %v1981 = vpop.f32.mrb[0].mxu0
        %1982 = vmatprep.mubr.bf16.mxu0 %v1289
        %1983 = vmatmul.mubr.bf16.gmra.mrb[0].mxu0 %v1288
        %v1984 = vpop.f32.mrb[0].mxu0
        %v1985 = vadd.f32 %v1824, %v1984
        %v1986 = vpop.f32.mrb[0].mxu0
        %v1987 = vpop.f32.mrb[0].mxu0
        %v1988 = vadd.f32 %v1827, %v1987
        %v1989 = vpop.f32.mrb[0].mxu0
        %1990 = vmatprep.mubr.bf16.mxu0 %v1295
        %1991 = vmatmul.mubr.bf16.gmra.mrb[0].mxu0 %v1294
        %v1992 = vpop.f32.mrb[0].mxu0
        %v1993 = vadd.f32 %v1832, %v1992
        %v1994 = vpop.f32.mrb[0].mxu0
        %v1995 = vpop.f32.mrb[0].mxu0
        %v1996 = vadd.f32 %v1835, %v1995
        %v1997 = vpop.f32.mrb[0].mxu0
        %1998 = vmatprep.mubr.bf16.mxu0 %v1301
        %1999 = vmatmul.mubr.bf16.gmra.mrb[0].mxu0 %v1300
        %v2000 = vpop.f32.mrb[0].mxu0
        %v2001 = vadd.f32 %v1840, %v2000
        %v2002 = vpop.f32.mrb[0].mxu0
        %v2003 = vpop.f32.mrb[0].mxu0
        %v2004 = vadd.f32 %v1843, %v2003
        %v2005 = vpop.f32.mrb[0].mxu0
        %2006 = vmatprep.mubr.bf16.mxu0 %v1307
        %2007 = vmatmul.mubr.bf16.gmra.mrb[0].mxu0 %v1306
        %v2008 = vpop.f32.mrb[0].mxu0
        %v2009 = vadd.f32 %v1848, %v2008
        %v2010 = vpop.f32.mrb[0].mxu0
        %v2011 = vpop.f32.mrb[0].mxu0
        %v2012 = vadd.f32 %v1851, %v2011
        %v2013 = vpop.f32.mrb[0].mxu0
        %2014 = vmatprep.mubr.bf16.mxu0 %v1313
        %2015 = vmatmul.mubr.bf16.gmra.mrb[0].mxu0 %v1312
        %v2016 = vpop.f32.mrb[0].mxu0
        %v2017 = vadd.f32 %v1856, %v2016
        %v2018 = vpop.f32.mrb[0].mxu0
        %v2019 = vpop.f32.mrb[0].mxu0
        %v2020 = vadd.f32 %v1859, %v2019
        %v2021 = vpop.f32.mrb[0].mxu0
        %2022 = vmatprep.mubr.bf16.mxu0 %v1319
        %2023 = vmatmul.mubr.bf16.gmra.mrb[0].mxu0 %v1318
        %v2024 = vpop.f32.mrb[0].mxu0
        %v2025 = vadd.f32 %v1864, %v2024
        %v2026 = vpop.f32.mrb[0].mxu0
        %v2027 = vpop.f32.mrb[0].mxu0
        %v2028 = vadd.f32 %v1867, %v2027
        %v2029 = vpop.f32.mrb[0].mxu0
        %2030 = vmatprep.mubr.bf16.mxu0 %v1325
        %2031 = vmatmul.mubr.bf16.gmra.mrb[0].mxu0 %v1324
        %v2032 = vpop.f32.mrb[0].mxu0
        %v2033 = vadd.f32 %v1872, %v2032
        %v2034 = vpop.f32.mrb[0].mxu0
        %v2035 = vpop.f32.mrb[0].mxu0
        %v2036 = vadd.f32 %v1875, %v2035
        %v2037 = vpop.f32.mrb[0].mxu0
        %2038 = vmatprep.mubr.bf16.mxu0 %v1331
        %2039 = vmatmul.mubr.bf16.gmra.mrb[0].mxu0 %v1330
        %v2040 = vpop.f32.mrb[0].mxu0
        %v2041 = vadd.f32 %v1880, %v2040
        %v2042 = vpop.f32.mrb[0].mxu0
        %v2043 = vpop.f32.mrb[0].mxu0
        %v2044 = vadd.f32 %v1883, %v2043
        %v2045 = vpop.f32.mrb[0].mxu0
        %2046 = vdwg.mxu0
        %2047 = vmatprep.subr.bf16.mxu0 0
        %2048 = vmatpush1.bf16.msra.mxu0 %v1661
        %2049 = vmatprep.subr.bf16.mxu0 0
        %2050 = vmatpush1.bf16.msra.mxu0 %v1662
        %2051 = vmatprep.subr.bf16.mxu0 0
        %2052 = vmatpush1.bf16.msra.mxu0 %v1663
        %2053 = vmatprep.subr.bf16.mxu0 0
        %2054 = vmatpush1.bf16.msra.mxu0 %v1664
        %2055 = vmatprep.subr.bf16.mxu0 0
        %2056 = vmatpush1.bf16.msra.mxu0 %v1665
        %2057 = vmatprep.subr.bf16.mxu0 0
        %2058 = vmatpush1.bf16.msra.mxu0 %v1666
        %2059 = vmatprep.subr.bf16.mxu0 0
        %2060 = vmatpush1.bf16.msra.mxu0 %v1667
        %2061 = vmatprep.subr.bf16.mxu0 0
        %2062 = vmatpush1.bf16.msra.mxu0 %v1668
        %2063 = vmatprep.subr.bf16.mxu0 0
        %2064 = vmatpush1.bf16.msra.mxu0 %v1669
        %2065 = vmatprep.subr.bf16.mxu0 0
        %2066 = vmatpush1.bf16.msra.mxu0 %v1670
        %2067 = vmatprep.subr.bf16.mxu0 0
        %2068 = vmatpush1.bf16.msra.mxu0 %v1671
        %2069 = vmatprep.subr.bf16.mxu0 0
        %2070 = vmatpush1.bf16.msra.mxu0 %v1672
        %2071 = vmatprep.subr.bf16.mxu0 0
        %2072 = vmatpush1.bf16.msra.mxu0 %v1673
        %2073 = vmatprep.subr.bf16.mxu0 0
        %2074 = vmatpush1.bf16.msra.mxu0 %v1674
        %2075 = vmatprep.subr.bf16.mxu0 0
        %2076 = vmatpush1.bf16.msra.mxu0 %v1675
        %2077 = vmatprep.subr.bf16.mxu0 0
        %2078 = vmatpush1.bf16.msra.mxu0 %v1676
        %2079 = vmatprep.mubr.bf16.mxu0 %v1243
        %2080 = vmatmul.mubr.bf16.gmra.mrb[0].mxu0 %v1242
        %v2081 = vpop.f32.mrb[0].mxu0
        %v2082 = vadd.f32 %v1921, %v2081
        %v2083 = vpop.f32.mrb[0].mxu0
        %v2084 = vpop.f32.mrb[0].mxu0
        %v2085 = vadd.f32 %v1924, %v2084
        %v2086 = vpop.f32.mrb[0].mxu0
        %2087 = vmatprep.mubr.bf16.mxu0 %v1249
        %2088 = vmatmul.mubr.bf16.gmra.mrb[0].mxu0 %v1248
        %v2089 = vpop.f32.mrb[0].mxu0
        %v2090 = vadd.f32 %v1929, %v2089
        %v2091 = vpop.f32.mrb[0].mxu0
        %v2092 = vpop.f32.mrb[0].mxu0
        %v2093 = vadd.f32 %v1932, %v2092
        %v2094 = vpop.f32.mrb[0].mxu0
        %2095 = vmatprep.mubr.bf16.mxu0 %v1255
        %2096 = vmatmul.mubr.bf16.gmra.mrb[0].mxu0 %v1254
        %v2097 = vpop.f32.mrb[0].mxu0
        %v2098 = vadd.f32 %v1937, %v2097
        %v2099 = vpop.f32.mrb[0].mxu0
        %v2100 = vpop.f32.mrb[0].mxu0
        %v2101 = vadd.f32 %v1940, %v2100
        %v2102 = vpop.f32.mrb[0].mxu0
        %2103 = vmatprep.mubr.bf16.mxu0 %v1261
        %2104 = vmatmul.mubr.bf16.gmra.mrb[0].mxu0 %v1260
        %v2105 = vpop.f32.mrb[0].mxu0
        %v2106 = vadd.f32 %v1945, %v2105
        %v2107 = vpop.f32.mrb[0].mxu0
        %v2108 = vpop.f32.mrb[0].mxu0
        %v2109 = vadd.f32 %v1948, %v2108
        %v2110 = vpop.f32.mrb[0].mxu0
        %2111 = vmatprep.mubr.bf16.mxu0 %v1267
        %2112 = vmatmul.mubr.bf16.gmra.mrb[0].mxu0 %v1266
        %v2113 = vpop.f32.mrb[0].mxu0
        %v2114 = vadd.f32 %v1953, %v2113
        %v2115 = vpop.f32.mrb[0].mxu0
        %v2116 = vpop.f32.mrb[0].mxu0
        %v2117 = vadd.f32 %v1956, %v2116
        %v2118 = vpop.f32.mrb[0].mxu0
        %2119 = vmatprep.mubr.bf16.mxu0 %v1273
        %2120 = vmatmul.mubr.bf16.gmra.mrb[0].mxu0 %v1272
        %v2121 = vpop.f32.mrb[0].mxu0
        %v2122 = vadd.f32 %v1961, %v2121
        %v2123 = vpop.f32.mrb[0].mxu0
        %v2124 = vpop.f32.mrb[0].mxu0
        %v2125 = vadd.f32 %v1964, %v2124
        %v2126 = vpop.f32.mrb[0].mxu0
        %2127 = vmatprep.mubr.bf16.mxu0 %v1279
        %2128 = vmatmul.mubr.bf16.gmra.mrb[0].mxu0 %v1278
        %v2129 = vpop.f32.mrb[0].mxu0
        %v2130 = vadd.f32 %v1969, %v2129
        %v2131 = vpop.f32.mrb[0].mxu0
        %v2132 = vpop.f32.mrb[0].mxu0
        %v2133 = vadd.f32 %v1972, %v2132
        %v2134 = vpop.f32.mrb[0].mxu0
        %2135 = vmatprep.mubr.bf16.mxu0 %v1285
        %2136 = vmatmul.mubr.bf16.gmra.mrb[0].mxu0 %v1284
        %v2137 = vpop.f32.mrb[0].mxu0
        %v2138 = vadd.f32 %v1977, %v2137
        %v2139 = vpop.f32.mrb[0].mxu0
        %v2140 = vpop.f32.mrb[0].mxu0
        %v2141 = vadd.f32 %v1980, %v2140
        %v2142 = vpop.f32.mrb[0].mxu0
        %2143 = vmatprep.mubr.bf16.mxu0 %v1291
        %2144 = vmatmul.mubr.bf16.gmra.mrb[0].mxu0 %v1290
        %v2145 = vpop.f32.mrb[0].mxu0
        %v2146 = vadd.f32 %v1985, %v2145
        %v2147 = vpop.f32.mrb[0].mxu0
        %v2148 = vpop.f32.mrb[0].mxu0
        %v2149 = vadd.f32 %v1988, %v2148
        %v2150 = vpop.f32.mrb[0].mxu0
        %2151 = vmatprep.mubr.bf16.mxu0 %v1297
        %2152 = vmatmul.mubr.bf16.gmra.mrb[0].mxu0 %v1296
        %v2153 = vpop.f32.mrb[0].mxu0
        %v2154 = vadd.f32 %v1993, %v2153
        %v2155 = vpop.f32.mrb[0].mxu0
        %v2156 = vpop.f32.mrb[0].mxu0
        %v2157 = vadd.f32 %v1996, %v2156
        %v2158 = vpop.f32.mrb[0].mxu0
        %2159 = vmatprep.mubr.bf16.mxu0 %v1303
        %2160 = vmatmul.mubr.bf16.gmra.mrb[0].mxu0 %v1302
        %v2161 = vpop.f32.mrb[0].mxu0
        %v2162 = vadd.f32 %v2001, %v2161
        %v2163 = vpop.f32.mrb[0].mxu0
        %v2164 = vpop.f32.mrb[0].mxu0
        %v2165 = vadd.f32 %v2004, %v2164
        %v2166 = vpop.f32.mrb[0].mxu0
        %2167 = vmatprep.mubr.bf16.mxu0 %v1309
        %2168 = vmatmul.mubr.bf16.gmra.mrb[0].mxu0 %v1308
        %v2169 = vpop.f32.mrb[0].mxu0
        %v2170 = vadd.f32 %v2009, %v2169
        %v2171 = vpop.f32.mrb[0].mxu0
        %v2172 = vpop.f32.mrb[0].mxu0
        %v2173 = vadd.f32 %v2012, %v2172
        %v2174 = vpop.f32.mrb[0].mxu0
        %2175 = vmatprep.mubr.bf16.mxu0 %v1315
        %2176 = vmatmul.mubr.bf16.gmra.mrb[0].mxu0 %v1314
        %v2177 = vpop.f32.mrb[0].mxu0
        %v2178 = vadd.f32 %v2017, %v2177
        %v2179 = vpop.f32.mrb[0].mxu0
        %v2180 = vpop.f32.mrb[0].mxu0
        %v2181 = vadd.f32 %v2020, %v2180
        %v2182 = vpop.f32.mrb[0].mxu0
        %2183 = vmatprep.mubr.bf16.mxu0 %v1321
        %2184 = vmatmul.mubr.bf16.gmra.mrb[0].mxu0 %v1320
        %v2185 = vpop.f32.mrb[0].mxu0
        %v2186 = vadd.f32 %v2025, %v2185
        %v2187 = vpop.f32.mrb[0].mxu0
        %v2188 = vpop.f32.mrb[0].mxu0
        %v2189 = vadd.f32 %v2028, %v2188
        %v2190 = vpop.f32.mrb[0].mxu0
        %2191 = vmatprep.mubr.bf16.mxu0 %v1327
        %2192 = vmatmul.mubr.bf16.gmra.mrb[0].mxu0 %v1326
        %v2193 = vpop.f32.mrb[0].mxu0
        %v2194 = vadd.f32 %v2033, %v2193
        %v2195 = vpop.f32.mrb[0].mxu0
        %v2196 = vpop.f32.mrb[0].mxu0
        %v2197 = vadd.f32 %v2036, %v2196
        %v2198 = vpop.f32.mrb[0].mxu0
        %2199 = vmatprep.mubr.bf16.mxu0 %v1333
        %2200 = vmatmul.mubr.bf16.gmra.mrb[0].mxu0 %v1332
        %v2201 = vpop.f32.mrb[0].mxu0
        %v2202 = vadd.f32 %v2041, %v2201
        %v2203 = vpop.f32.mrb[0].mxu0
        %v2204 = vpop.f32.mrb[0].mxu0
        %v2205 = vadd.f32 %v2044, %v2204
        %v2206 = vpop.f32.mrb[0].mxu0
        %2207 = vdwg.mxu0
        %v2208 = vlaneseq
        %v2209 = vand.u32 %v2208, 127
        %vm2210 = vcmp.ge.s32.totalorder %v2209, 0
        %vm2211 = vcmp.lt.s32.totalorder %v2209, 8
        %vm2212 = vmand %vm2210, %vm2211
        %vm2213 = vcmp.ge.s32.totalorder %v2209, 8
        %vm2214 = vcmp.lt.s32.totalorder %v2209, 15
        %vm2215 = vmand %vm2213, %vm2214
        %vm2216 = vcmp.ge.s32.totalorder %v2209, 15
        %vm2217 = vcmp.lt.s32.totalorder %v2209, 25
        %vm2218 = vmand %vm2216, %vm2217
        %v2219 = vsel %vm2212, 1, 0
        %vm2220 = vcmp.eq.s32.totalorder %v2219, 1
        %v2221 = vsel %vm2220, %v2082, -inf
        %v2222 = vsel %vm2220, %v2085, -inf
        %v2223 = vsel %vm2220, %v2090, -inf
        %v2224 = vsel %vm2220, %v2093, -inf
        %v2225 = vsel %vm2220, %v2098, -inf
        %v2226 = vsel %vm2220, %v2101, -inf
        %v2227 = vsel %vm2220, %v2106, -inf
        %v2228 = vsel %vm2220, %v2109, -inf
        %v2229 = vsel %vm2220, %v2114, -inf
        %v2230 = vsel %vm2220, %v2117, -inf
        %v2231 = vsel %vm2220, %v2122, -inf
        %v2232 = vsel %vm2220, %v2125, -inf
        %v2233 = vsel %vm2220, %v2130, -inf
        %v2234 = vsel %vm2220, %v2133, -inf
        %v2235 = vsel %vm2220, %v2138, -inf
        %v2236 = vsel %vm2220, %v2141, -inf
        %v2237 = vsel %vm2220, %v2146, -inf
        %v2238 = vsel %vm2220, %v2149, -inf
        %v2239 = vsel %vm2220, %v2154, -inf
        %v2240 = vsel %vm2220, %v2157, -inf
        %v2241 = vsel %vm2220, %v2162, -inf
        %v2242 = vsel %vm2220, %v2165, -inf
        %v2243 = vsel %vm2220, %v2170, -inf
        %v2244 = vsel %vm2220, %v2173, -inf
        %v2245 = vsel %vm2220, %v2178, -inf
        %v2246 = vsel %vm2220, %v2181, -inf
        %v2247 = vsel %vm2220, %v2186, -inf
        %v2248 = vsel %vm2220, %v2189, -inf
        %v2249 = vsel %vm2220, %v2194, -inf
        %v2250 = vsel %vm2220, %v2197, -inf
        %v2251 = vsel %vm2220, %v2202, -inf
        %v2252 = vsel %vm2220, %v2205, -inf
        %2253 = vmax.xlane.f32.xlu0 %v2221
        %v2254 = vpop.xlane.xlu0 %2253
        %2255 = vmax.xlane.f32.xlu0 %v2222
        %v2256 = vpop.xlane.xlu0 %2255
        %2257 = vmax.xlane.f32.xlu0 %v2223
        %v2258 = vpop.xlane.xlu0 %2257
        %2259 = vmax.xlane.f32.xlu0 %v2224
        %v2260 = vpop.xlane.xlu0 %2259
        %2261 = vmax.xlane.f32.xlu0 %v2225
        %v2262 = vpop.xlane.xlu0 %2261
        %2263 = vmax.xlane.f32.xlu0 %v2226
        %v2264 = vpop.xlane.xlu0 %2263
        %2265 = vmax.xlane.f32.xlu0 %v2227
        %v2266 = vpop.xlane.xlu0 %2265
        %2267 = vmax.xlane.f32.xlu0 %v2228
        %v2268 = vpop.xlane.xlu0 %2267
        %2269 = vmax.xlane.f32.xlu0 %v2229
        %v2270 = vpop.xlane.xlu0 %2269
        %2271 = vmax.xlane.f32.xlu0 %v2230
        %v2272 = vpop.xlane.xlu0 %2271
        %2273 = vmax.xlane.f32.xlu0 %v2231
        %v2274 = vpop.xlane.xlu0 %2273
        %2275 = vmax.xlane.f32.xlu0 %v2232
        %v2276 = vpop.xlane.xlu0 %2275
        %2277 = vmax.xlane.f32.xlu0 %v2233
        %v2278 = vpop.xlane.xlu0 %2277
        %2279 = vmax.xlane.f32.xlu0 %v2234
        %v2280 = vpop.xlane.xlu0 %2279
        %2281 = vmax.xlane.f32.xlu0 %v2235
        %v2282 = vpop.xlane.xlu0 %2281
        %2283 = vmax.xlane.f32.xlu0 %v2236
        %v2284 = vpop.xlane.xlu0 %2283
        %2285 = vmax.xlane.f32.xlu0 %v2237
        %v2286 = vpop.xlane.xlu0 %2285
        %2287 = vmax.xlane.f32.xlu0 %v2238
        %v2288 = vpop.xlane.xlu0 %2287
        %2289 = vmax.xlane.f32.xlu0 %v2239
        %v2290 = vpop.xlane.xlu0 %2289
        %2291 = vmax.xlane.f32.xlu0 %v2240
        %v2292 = vpop.xlane.xlu0 %2291
        %2293 = vmax.xlane.f32.xlu0 %v2241
        %v2294 = vpop.xlane.xlu0 %2293
        %2295 = vmax.xlane.f32.xlu0 %v2242
        %v2296 = vpop.xlane.xlu0 %2295
        %2297 = vmax.xlane.f32.xlu0 %v2243
        %v2298 = vpop.xlane.xlu0 %2297
        %2299 = vmax.xlane.f32.xlu0 %v2244
        %v2300 = vpop.xlane.xlu0 %2299
        %2301 = vmax.xlane.f32.xlu0 %v2245
        %v2302 = vpop.xlane.xlu0 %2301
        %2303 = vmax.xlane.f32.xlu0 %v2246
        %v2304 = vpop.xlane.xlu0 %2303
        %2305 = vmax.xlane.f32.xlu0 %v2247
        %v2306 = vpop.xlane.xlu0 %2305
        %2307 = vmax.xlane.f32.xlu0 %v2248
        %v2308 = vpop.xlane.xlu0 %2307
        %2309 = vmax.xlane.f32.xlu0 %v2249
        %v2310 = vpop.xlane.xlu0 %2309
        %2311 = vmax.xlane.f32.xlu0 %v2250
        %v2312 = vpop.xlane.xlu0 %2311
        %2313 = vmax.xlane.f32.xlu0 %v2251
        %v2314 = vpop.xlane.xlu0 %2313
        %2315 = vmax.xlane.f32.xlu0 %v2252
        %v2316 = vpop.xlane.xlu0 %2315
        %v2317 = vsel %vm2220, %v2254, 0.0
        %v2318 = vsel %vm2220, %v2256, 0.0
        %v2319 = vsel %vm2220, %v2258, 0.0
        %v2320 = vsel %vm2220, %v2260, 0.0
        %v2321 = vsel %vm2220, %v2262, 0.0
        %v2322 = vsel %vm2220, %v2264, 0.0
        %v2323 = vsel %vm2220, %v2266, 0.0
        %v2324 = vsel %vm2220, %v2268, 0.0
        %v2325 = vsel %vm2220, %v2270, 0.0
        %v2326 = vsel %vm2220, %v2272, 0.0
        %v2327 = vsel %vm2220, %v2274, 0.0
        %v2328 = vsel %vm2220, %v2276, 0.0
        %v2329 = vsel %vm2220, %v2278, 0.0
        %v2330 = vsel %vm2220, %v2280, 0.0
        %v2331 = vsel %vm2220, %v2282, 0.0
        %v2332 = vsel %vm2220, %v2284, 0.0
        %v2333 = vsel %vm2220, %v2286, 0.0
        %v2334 = vsel %vm2220, %v2288, 0.0
        %v2335 = vsel %vm2220, %v2290, 0.0
        %v2336 = vsel %vm2220, %v2292, 0.0
        %v2337 = vsel %vm2220, %v2294, 0.0
        %v2338 = vsel %vm2220, %v2296, 0.0
        %v2339 = vsel %vm2220, %v2298, 0.0
        %v2340 = vsel %vm2220, %v2300, 0.0
        %v2341 = vsel %vm2220, %v2302, 0.0
        %v2342 = vsel %vm2220, %v2304, 0.0
        %v2343 = vsel %vm2220, %v2306, 0.0
        %v2344 = vsel %vm2220, %v2308, 0.0
        %v2345 = vsel %vm2220, %v2310, 0.0
        %v2346 = vsel %vm2220, %v2312, 0.0
        %v2347 = vsel %vm2220, %v2314, 0.0
        %v2348 = vsel %vm2220, %v2316, 0.0
        %v2349 = vsel %vm2215, 1, 0
        %vm2350 = vcmp.eq.s32.totalorder %v2349, 1
        %v2351 = vsel %vm2350, %v2082, -inf
        %v2352 = vsel %vm2350, %v2085, -inf
        %v2353 = vsel %vm2350, %v2090, -inf
        %v2354 = vsel %vm2350, %v2093, -inf
        %v2355 = vsel %vm2350, %v2098, -inf
        %v2356 = vsel %vm2350, %v2101, -inf
        %v2357 = vsel %vm2350, %v2106, -inf
        %v2358 = vsel %vm2350, %v2109, -inf
        %v2359 = vsel %vm2350, %v2114, -inf
        %v2360 = vsel %vm2350, %v2117, -inf
        %v2361 = vsel %vm2350, %v2122, -inf
        %v2362 = vsel %vm2350, %v2125, -inf
        %v2363 = vsel %vm2350, %v2130, -inf
        %v2364 = vsel %vm2350, %v2133, -inf
        %v2365 = vsel %vm2350, %v2138, -inf
        %v2366 = vsel %vm2350, %v2141, -inf
        %v2367 = vsel %vm2350, %v2146, -inf
        %v2368 = vsel %vm2350, %v2149, -inf
        %v2369 = vsel %vm2350, %v2154, -inf
        %v2370 = vsel %vm2350, %v2157, -inf
        %v2371 = vsel %vm2350, %v2162, -inf
        %v2372 = vsel %vm2350, %v2165, -inf
        %v2373 = vsel %vm2350, %v2170, -inf
        %v2374 = vsel %vm2350, %v2173, -inf
        %v2375 = vsel %vm2350, %v2178, -inf
        %v2376 = vsel %vm2350, %v2181, -inf
        %v2377 = vsel %vm2350, %v2186, -inf
        %v2378 = vsel %vm2350, %v2189, -inf
        %v2379 = vsel %vm2350, %v2194, -inf
        %v2380 = vsel %vm2350, %v2197, -inf
        %v2381 = vsel %vm2350, %v2202, -inf
        %v2382 = vsel %vm2350, %v2205, -inf
        %2383 = vmax.xlane.f32.xlu0 %v2351
        %v2384 = vpop.xlane.xlu0 %2383
        %2385 = vmax.xlane.f32.xlu0 %v2352
        %v2386 = vpop.xlane.xlu0 %2385
        %2387 = vmax.xlane.f32.xlu0 %v2353
        %v2388 = vpop.xlane.xlu0 %2387
        %2389 = vmax.xlane.f32.xlu0 %v2354
        %v2390 = vpop.xlane.xlu0 %2389
        %2391 = vmax.xlane.f32.xlu0 %v2355
        %v2392 = vpop.xlane.xlu0 %2391
        %2393 = vmax.xlane.f32.xlu0 %v2356
        %v2394 = vpop.xlane.xlu0 %2393
        %2395 = vmax.xlane.f32.xlu0 %v2357
        %v2396 = vpop.xlane.xlu0 %2395
        %2397 = vmax.xlane.f32.xlu0 %v2358
        %v2398 = vpop.xlane.xlu0 %2397
        %2399 = vmax.xlane.f32.xlu0 %v2359
        %v2400 = vpop.xlane.xlu0 %2399
        %2401 = vmax.xlane.f32.xlu0 %v2360
        %v2402 = vpop.xlane.xlu0 %2401
        %2403 = vmax.xlane.f32.xlu0 %v2361
        %v2404 = vpop.xlane.xlu0 %2403
        %2405 = vmax.xlane.f32.xlu0 %v2362
        %v2406 = vpop.xlane.xlu0 %2405
        %2407 = vmax.xlane.f32.xlu0 %v2363
        %v2408 = vpop.xlane.xlu0 %2407
        %2409 = vmax.xlane.f32.xlu0 %v2364
        %v2410 = vpop.xlane.xlu0 %2409
        %2411 = vmax.xlane.f32.xlu0 %v2365
        %v2412 = vpop.xlane.xlu0 %2411
        %2413 = vmax.xlane.f32.xlu0 %v2366
        %v2414 = vpop.xlane.xlu0 %2413
        %2415 = vmax.xlane.f32.xlu0 %v2367
        %v2416 = vpop.xlane.xlu0 %2415
        %2417 = vmax.xlane.f32.xlu0 %v2368
        %v2418 = vpop.xlane.xlu0 %2417
        %2419 = vmax.xlane.f32.xlu0 %v2369
        %v2420 = vpop.xlane.xlu0 %2419
        %2421 = vmax.xlane.f32.xlu0 %v2370
        %v2422 = vpop.xlane.xlu0 %2421
        %2423 = vmax.xlane.f32.xlu0 %v2371
        %v2424 = vpop.xlane.xlu0 %2423
        %2425 = vmax.xlane.f32.xlu0 %v2372
        %v2426 = vpop.xlane.xlu0 %2425
        %2427 = vmax.xlane.f32.xlu0 %v2373
        %v2428 = vpop.xlane.xlu0 %2427
        %2429 = vmax.xlane.f32.xlu0 %v2374
        %v2430 = vpop.xlane.xlu0 %2429
        %2431 = vmax.xlane.f32.xlu0 %v2375
        %v2432 = vpop.xlane.xlu0 %2431
        %2433 = vmax.xlane.f32.xlu0 %v2376
        %v2434 = vpop.xlane.xlu0 %2433
        %2435 = vmax.xlane.f32.xlu0 %v2377
        %v2436 = vpop.xlane.xlu0 %2435
        %2437 = vmax.xlane.f32.xlu0 %v2378
        %v2438 = vpop.xlane.xlu0 %2437
        %2439 = vmax.xlane.f32.xlu0 %v2379
        %v2440 = vpop.xlane.xlu0 %2439
        %2441 = vmax.xlane.f32.xlu0 %v2380
        %v2442 = vpop.xlane.xlu0 %2441
        %2443 = vmax.xlane.f32.xlu0 %v2381
        %v2444 = vpop.xlane.xlu0 %2443
        %2445 = vmax.xlane.f32.xlu0 %v2382
        %v2446 = vpop.xlane.xlu0 %2445
        %v2447 = vsel %vm2350, %v2384, %v2317
        %v2448 = vsel %vm2350, %v2386, %v2318
        %v2449 = vsel %vm2350, %v2388, %v2319
        %v2450 = vsel %vm2350, %v2390, %v2320
        %v2451 = vsel %vm2350, %v2392, %v2321
        %v2452 = vsel %vm2350, %v2394, %v2322
        %v2453 = vsel %vm2350, %v2396, %v2323
        %v2454 = vsel %vm2350, %v2398, %v2324
        %v2455 = vsel %vm2350, %v2400, %v2325
        %v2456 = vsel %vm2350, %v2402, %v2326
        %v2457 = vsel %vm2350, %v2404, %v2327
        %v2458 = vsel %vm2350, %v2406, %v2328
        %v2459 = vsel %vm2350, %v2408, %v2329
        %v2460 = vsel %vm2350, %v2410, %v2330
        %v2461 = vsel %vm2350, %v2412, %v2331
        %v2462 = vsel %vm2350, %v2414, %v2332
        %v2463 = vsel %vm2350, %v2416, %v2333
        %v2464 = vsel %vm2350, %v2418, %v2334
        %v2465 = vsel %vm2350, %v2420, %v2335
        %v2466 = vsel %vm2350, %v2422, %v2336
        %v2467 = vsel %vm2350, %v2424, %v2337
        %v2468 = vsel %vm2350, %v2426, %v2338
        %v2469 = vsel %vm2350, %v2428, %v2339
        %v2470 = vsel %vm2350, %v2430, %v2340
        %v2471 = vsel %vm2350, %v2432, %v2341
        %v2472 = vsel %vm2350, %v2434, %v2342
        %v2473 = vsel %vm2350, %v2436, %v2343
        %v2474 = vsel %vm2350, %v2438, %v2344
        %v2475 = vsel %vm2350, %v2440, %v2345
        %v2476 = vsel %vm2350, %v2442, %v2346
        %v2477 = vsel %vm2350, %v2444, %v2347
        %v2478 = vsel %vm2350, %v2446, %v2348
        %v2479 = vsel %vm2218, 1, 0
        %vm2480 = vcmp.eq.s32.totalorder %v2479, 1
        %v2481 = vsel %vm2480, %v2082, -inf
        %v2482 = vsel %vm2480, %v2085, -inf
        %v2483 = vsel %vm2480, %v2090, -inf
        %v2484 = vsel %vm2480, %v2093, -inf
        %v2485 = vsel %vm2480, %v2098, -inf
        %v2486 = vsel %vm2480, %v2101, -inf
        %v2487 = vsel %vm2480, %v2106, -inf
        %v2488 = vsel %vm2480, %v2109, -inf
        %v2489 = vsel %vm2480, %v2114, -inf
        %v2490 = vsel %vm2480, %v2117, -inf
        %v2491 = vsel %vm2480, %v2122, -inf
        %v2492 = vsel %vm2480, %v2125, -inf
        %v2493 = vsel %vm2480, %v2130, -inf
        %v2494 = vsel %vm2480, %v2133, -inf
        %v2495 = vsel %vm2480, %v2138, -inf
        %v2496 = vsel %vm2480, %v2141, -inf
        %v2497 = vsel %vm2480, %v2146, -inf
        %v2498 = vsel %vm2480, %v2149, -inf
        %v2499 = vsel %vm2480, %v2154, -inf
        %v2500 = vsel %vm2480, %v2157, -inf
        %v2501 = vsel %vm2480, %v2162, -inf
        %v2502 = vsel %vm2480, %v2165, -inf
        %v2503 = vsel %vm2480, %v2170, -inf
        %v2504 = vsel %vm2480, %v2173, -inf
        %v2505 = vsel %vm2480, %v2178, -inf
        %v2506 = vsel %vm2480, %v2181, -inf
        %v2507 = vsel %vm2480, %v2186, -inf
        %v2508 = vsel %vm2480, %v2189, -inf
        %v2509 = vsel %vm2480, %v2194, -inf
        %v2510 = vsel %vm2480, %v2197, -inf
        %v2511 = vsel %vm2480, %v2202, -inf
        %v2512 = vsel %vm2480, %v2205, -inf
        %2513 = vmax.xlane.f32.xlu0 %v2481
        %v2514 = vpop.xlane.xlu0 %2513
        %2515 = vmax.xlane.f32.xlu0 %v2482
        %v2516 = vpop.xlane.xlu0 %2515
        %2517 = vmax.xlane.f32.xlu0 %v2483
        %v2518 = vpop.xlane.xlu0 %2517
        %2519 = vmax.xlane.f32.xlu0 %v2484
        %v2520 = vpop.xlane.xlu0 %2519
        %2521 = vmax.xlane.f32.xlu0 %v2485
        %v2522 = vpop.xlane.xlu0 %2521
        %2523 = vmax.xlane.f32.xlu0 %v2486
        %v2524 = vpop.xlane.xlu0 %2523
        %2525 = vmax.xlane.f32.xlu0 %v2487
        %v2526 = vpop.xlane.xlu0 %2525
        %2527 = vmax.xlane.f32.xlu0 %v2488
        %v2528 = vpop.xlane.xlu0 %2527
        %2529 = vmax.xlane.f32.xlu0 %v2489
        %v2530 = vpop.xlane.xlu0 %2529
        %2531 = vmax.xlane.f32.xlu0 %v2490
        %v2532 = vpop.xlane.xlu0 %2531
        %2533 = vmax.xlane.f32.xlu0 %v2491
        %v2534 = vpop.xlane.xlu0 %2533
        %2535 = vmax.xlane.f32.xlu0 %v2492
        %v2536 = vpop.xlane.xlu0 %2535
        %2537 = vmax.xlane.f32.xlu0 %v2493
        %v2538 = vpop.xlane.xlu0 %2537
        %2539 = vmax.xlane.f32.xlu0 %v2494
        %v2540 = vpop.xlane.xlu0 %2539
        %2541 = vmax.xlane.f32.xlu0 %v2495
        %v2542 = vpop.xlane.xlu0 %2541
        %2543 = vmax.xlane.f32.xlu0 %v2496
        %v2544 = vpop.xlane.xlu0 %2543
        %2545 = vmax.xlane.f32.xlu0 %v2497
        %v2546 = vpop.xlane.xlu0 %2545
        %2547 = vmax.xlane.f32.xlu0 %v2498
        %v2548 = vpop.xlane.xlu0 %2547
        %2549 = vmax.xlane.f32.xlu0 %v2499
        %v2550 = vpop.xlane.xlu0 %2549
        %2551 = vmax.xlane.f32.xlu0 %v2500
        %v2552 = vpop.xlane.xlu0 %2551
        %2553 = vmax.xlane.f32.xlu0 %v2501
        %v2554 = vpop.xlane.xlu0 %2553
        %2555 = vmax.xlane.f32.xlu0 %v2502
        %v2556 = vpop.xlane.xlu0 %2555
        %2557 = vmax.xlane.f32.xlu0 %v2503
        %v2558 = vpop.xlane.xlu0 %2557
        %2559 = vmax.xlane.f32.xlu0 %v2504
        %v2560 = vpop.xlane.xlu0 %2559
        %2561 = vmax.xlane.f32.xlu0 %v2505
        %v2562 = vpop.xlane.xlu0 %2561
        %2563 = vmax.xlane.f32.xlu0 %v2506
        %v2564 = vpop.xlane.xlu0 %2563
        %2565 = vmax.xlane.f32.xlu0 %v2507
        %v2566 = vpop.xlane.xlu0 %2565
        %2567 = vmax.xlane.f32.xlu0 %v2508
        %v2568 = vpop.xlane.xlu0 %2567
        %2569 = vmax.xlane.f32.xlu0 %v2509
        %v2570 = vpop.xlane.xlu0 %2569
        %2571 = vmax.xlane.f32.xlu0 %v2510
        %v2572 = vpop.xlane.xlu0 %2571
        %2573 = vmax.xlane.f32.xlu0 %v2511
        %v2574 = vpop.xlane.xlu0 %2573
        %2575 = vmax.xlane.f32.xlu0 %v2512
        %v2576 = vpop.xlane.xlu0 %2575
        %v2577 = vsel %vm2480, %v2514, %v2447
        %v2578 = vsel %vm2480, %v2516, %v2448
        %v2579 = vsel %vm2480, %v2518, %v2449
        %v2580 = vsel %vm2480, %v2520, %v2450
        %v2581 = vsel %vm2480, %v2522, %v2451
        %v2582 = vsel %vm2480, %v2524, %v2452
        %v2583 = vsel %vm2480, %v2526, %v2453
        %v2584 = vsel %vm2480, %v2528, %v2454
        %v2585 = vsel %vm2480, %v2530, %v2455
        %v2586 = vsel %vm2480, %v2532, %v2456
        %v2587 = vsel %vm2480, %v2534, %v2457
        %v2588 = vsel %vm2480, %v2536, %v2458
        %v2589 = vsel %vm2480, %v2538, %v2459
        %v2590 = vsel %vm2480, %v2540, %v2460
        %v2591 = vsel %vm2480, %v2542, %v2461
        %v2592 = vsel %vm2480, %v2544, %v2462
        %v2593 = vsel %vm2480, %v2546, %v2463
        %v2594 = vsel %vm2480, %v2548, %v2464
        %v2595 = vsel %vm2480, %v2550, %v2465
        %v2596 = vsel %vm2480, %v2552, %v2466
        %v2597 = vsel %vm2480, %v2554, %v2467
        %v2598 = vsel %vm2480, %v2556, %v2468
        %v2599 = vsel %vm2480, %v2558, %v2469
        %v2600 = vsel %vm2480, %v2560, %v2470
        %v2601 = vsel %vm2480, %v2562, %v2471
        %v2602 = vsel %vm2480, %v2564, %v2472
        %v2603 = vsel %vm2480, %v2566, %v2473
        %v2604 = vsel %vm2480, %v2568, %v2474
        %v2605 = vsel %vm2480, %v2570, %v2475
        %v2606 = vsel %vm2480, %v2572, %v2476
        %v2607 = vsel %vm2480, %v2574, %v2477
        %v2608 = vsel %vm2480, %v2576, %v2478
        %v2609 = vsub.f32 %v2082, %v2577
        %v2610 = vsub.f32 %v2085, %v2578
        %v2611 = vsub.f32 %v2090, %v2579
        %v2612 = vsub.f32 %v2093, %v2580
        %v2613 = vsub.f32 %v2098, %v2581
        %v2614 = vsub.f32 %v2101, %v2582
        %v2615 = vsub.f32 %v2106, %v2583
        %v2616 = vsub.f32 %v2109, %v2584
        %v2617 = vsub.f32 %v2114, %v2585
        %v2618 = vsub.f32 %v2117, %v2586
        %v2619 = vsub.f32 %v2122, %v2587
        %v2620 = vsub.f32 %v2125, %v2588
        %v2621 = vsub.f32 %v2130, %v2589
        %v2622 = vsub.f32 %v2133, %v2590
        %v2623 = vsub.f32 %v2138, %v2591
        %v2624 = vsub.f32 %v2141, %v2592
        %v2625 = vsub.f32 %v2146, %v2593
        %v2626 = vsub.f32 %v2149, %v2594
        %v2627 = vsub.f32 %v2154, %v2595
        %v2628 = vsub.f32 %v2157, %v2596
        %v2629 = vsub.f32 %v2162, %v2597
        %v2630 = vsub.f32 %v2165, %v2598
        %v2631 = vsub.f32 %v2170, %v2599
        %v2632 = vsub.f32 %v2173, %v2600
        %v2633 = vsub.f32 %v2178, %v2601
        %v2634 = vsub.f32 %v2181, %v2602
        %v2635 = vsub.f32 %v2186, %v2603
        %v2636 = vsub.f32 %v2189, %v2604
        %v2637 = vsub.f32 %v2194, %v2605
        %v2638 = vsub.f32 %v2197, %v2606
        %v2639 = vsub.f32 %v2202, %v2607
        %v2640 = vsub.f32 %v2205, %v2608
        %v2641 = vmul.f32 %v2609, 1.442695
        %v2642 = vpow.pop %v2641
        %v2643 = vmul.f32 %v2610, 1.442695
        %v2644 = vpow.pop %v2643
        %v2645 = vmul.f32 %v2611, 1.442695
        %v2646 = vpow.pop %v2645
        %v2647 = vmul.f32 %v2612, 1.442695
        %v2648 = vpow.pop %v2647
        %v2649 = vmul.f32 %v2613, 1.442695
        %v2650 = vpow.pop %v2649
        %v2651 = vmul.f32 %v2614, 1.442695
        %v2652 = vpow.pop %v2651
        %v2653 = vmul.f32 %v2615, 1.442695
        %v2654 = vpow.pop %v2653
        %v2655 = vmul.f32 %v2616, 1.442695
        %v2656 = vpow.pop %v2655
        %v2657 = vmul.f32 %v2617, 1.442695
        %v2658 = vpow.pop %v2657
        %v2659 = vmul.f32 %v2618, 1.442695
        %v2660 = vpow.pop %v2659
        %v2661 = vmul.f32 %v2619, 1.442695
        %v2662 = vpow.pop %v2661
        %v2663 = vmul.f32 %v2620, 1.442695
        %v2664 = vpow.pop %v2663
        %v2665 = vmul.f32 %v2621, 1.442695
        %v2666 = vpow.pop %v2665
        %v2667 = vmul.f32 %v2622, 1.442695
        %v2668 = vpow.pop %v2667
        %v2669 = vmul.f32 %v2623, 1.442695
        %v2670 = vpow.pop %v2669
        %v2671 = vmul.f32 %v2624, 1.442695
        %v2672 = vpow.pop %v2671
        %v2673 = vmul.f32 %v2625, 1.442695
        %v2674 = vpow.pop %v2673
        %v2675 = vmul.f32 %v2626, 1.442695
        %v2676 = vpow.pop %v2675
        %v2677 = vmul.f32 %v2627, 1.442695
        %v2678 = vpow.pop %v2677
        %v2679 = vmul.f32 %v2628, 1.442695
        %v2680 = vpow.pop %v2679
        %v2681 = vmul.f32 %v2629, 1.442695
        %v2682 = vpow.pop %v2681
        %v2683 = vmul.f32 %v2630, 1.442695
        %v2684 = vpow.pop %v2683
        %v2685 = vmul.f32 %v2631, 1.442695
        %v2686 = vpow.pop %v2685
        %v2687 = vmul.f32 %v2632, 1.442695
        %v2688 = vpow.pop %v2687
        %v2689 = vmul.f32 %v2633, 1.442695
        %v2690 = vpow.pop %v2689
        %v2691 = vmul.f32 %v2634, 1.442695
        %v2692 = vpow.pop %v2691
        %v2693 = vmul.f32 %v2635, 1.442695
        %v2694 = vpow.pop %v2693
        %v2695 = vmul.f32 %v2636, 1.442695
        %v2696 = vpow.pop %v2695
        %v2697 = vmul.f32 %v2637, 1.442695
        %v2698 = vpow.pop %v2697
        %v2699 = vmul.f32 %v2638, 1.442695
        %v2700 = vpow.pop %v2699
        %v2701 = vmul.f32 %v2639, 1.442695
        %v2702 = vpow.pop %v2701
        %v2703 = vmul.f32 %v2640, 1.442695
        %v2704 = vpow.pop %v2703
        %v2705 = vsel %vm2220, %v2642, 0.0
        %v2706 = vsel %vm2220, %v2644, 0.0
        %v2707 = vsel %vm2220, %v2646, 0.0
        %v2708 = vsel %vm2220, %v2648, 0.0
        %v2709 = vsel %vm2220, %v2650, 0.0
        %v2710 = vsel %vm2220, %v2652, 0.0
        %v2711 = vsel %vm2220, %v2654, 0.0
        %v2712 = vsel %vm2220, %v2656, 0.0
        %v2713 = vsel %vm2220, %v2658, 0.0
        %v2714 = vsel %vm2220, %v2660, 0.0
        %v2715 = vsel %vm2220, %v2662, 0.0
        %v2716 = vsel %vm2220, %v2664, 0.0
        %v2717 = vsel %vm2220, %v2666, 0.0
        %v2718 = vsel %vm2220, %v2668, 0.0
        %v2719 = vsel %vm2220, %v2670, 0.0
        %v2720 = vsel %vm2220, %v2672, 0.0
        %v2721 = vsel %vm2220, %v2674, 0.0
        %v2722 = vsel %vm2220, %v2676, 0.0
        %v2723 = vsel %vm2220, %v2678, 0.0
        %v2724 = vsel %vm2220, %v2680, 0.0
        %v2725 = vsel %vm2220, %v2682, 0.0
        %v2726 = vsel %vm2220, %v2684, 0.0
        %v2727 = vsel %vm2220, %v2686, 0.0
        %v2728 = vsel %vm2220, %v2688, 0.0
        %v2729 = vsel %vm2220, %v2690, 0.0
        %v2730 = vsel %vm2220, %v2692, 0.0
        %v2731 = vsel %vm2220, %v2694, 0.0
        %v2732 = vsel %vm2220, %v2696, 0.0
        %v2733 = vsel %vm2220, %v2698, 0.0
        %v2734 = vsel %vm2220, %v2700, 0.0
        %v2735 = vsel %vm2220, %v2702, 0.0
        %v2736 = vsel %vm2220, %v2704, 0.0
        %2737 = vadd.xlane.f32.xlu0 %v2705
        %v2738 = vpop.xlane.xlu0 %2737
        %2739 = vadd.xlane.f32.xlu0 %v2706
        %v2740 = vpop.xlane.xlu0 %2739
        %2741 = vadd.xlane.f32.xlu0 %v2707
        %v2742 = vpop.xlane.xlu0 %2741
        %2743 = vadd.xlane.f32.xlu0 %v2708
        %v2744 = vpop.xlane.xlu0 %2743
        %2745 = vadd.xlane.f32.xlu0 %v2709
        %v2746 = vpop.xlane.xlu0 %2745
        %2747 = vadd.xlane.f32.xlu0 %v2710
        %v2748 = vpop.xlane.xlu0 %2747
        %2749 = vadd.xlane.f32.xlu0 %v2711
        %v2750 = vpop.xlane.xlu0 %2749
        %2751 = vadd.xlane.f32.xlu0 %v2712
        %v2752 = vpop.xlane.xlu0 %2751
        %2753 = vadd.xlane.f32.xlu0 %v2713
        %v2754 = vpop.xlane.xlu0 %2753
        %2755 = vadd.xlane.f32.xlu0 %v2714
        %v2756 = vpop.xlane.xlu0 %2755
        %2757 = vadd.xlane.f32.xlu0 %v2715
        %v2758 = vpop.xlane.xlu0 %2757
        %2759 = vadd.xlane.f32.xlu0 %v2716
        %v2760 = vpop.xlane.xlu0 %2759
        %2761 = vadd.xlane.f32.xlu0 %v2717
        %v2762 = vpop.xlane.xlu0 %2761
        %2763 = vadd.xlane.f32.xlu0 %v2718
        %v2764 = vpop.xlane.xlu0 %2763
        %2765 = vadd.xlane.f32.xlu0 %v2719
        %v2766 = vpop.xlane.xlu0 %2765
        %2767 = vadd.xlane.f32.xlu0 %v2720
        %v2768 = vpop.xlane.xlu0 %2767
        %2769 = vadd.xlane.f32.xlu0 %v2721
        %v2770 = vpop.xlane.xlu0 %2769
        %2771 = vadd.xlane.f32.xlu0 %v2722
        %v2772 = vpop.xlane.xlu0 %2771
        %2773 = vadd.xlane.f32.xlu0 %v2723
        %v2774 = vpop.xlane.xlu0 %2773
        %2775 = vadd.xlane.f32.xlu0 %v2724
        %v2776 = vpop.xlane.xlu0 %2775
        %2777 = vadd.xlane.f32.xlu0 %v2725
        %v2778 = vpop.xlane.xlu0 %2777
        %2779 = vadd.xlane.f32.xlu0 %v2726
        %v2780 = vpop.xlane.xlu0 %2779
        %2781 = vadd.xlane.f32.xlu0 %v2727
        %v2782 = vpop.xlane.xlu0 %2781
        %2783 = vadd.xlane.f32.xlu0 %v2728
        %v2784 = vpop.xlane.xlu0 %2783
        %2785 = vadd.xlane.f32.xlu0 %v2729
        %v2786 = vpop.xlane.xlu0 %2785
        %2787 = vadd.xlane.f32.xlu0 %v2730
        %v2788 = vpop.xlane.xlu0 %2787
        %2789 = vadd.xlane.f32.xlu0 %v2731
        %v2790 = vpop.xlane.xlu0 %2789
        %2791 = vadd.xlane.f32.xlu0 %v2732
        %v2792 = vpop.xlane.xlu0 %2791
        %2793 = vadd.xlane.f32.xlu0 %v2733
        %v2794 = vpop.xlane.xlu0 %2793
        %2795 = vadd.xlane.f32.xlu0 %v2734
        %v2796 = vpop.xlane.xlu0 %2795
        %2797 = vadd.xlane.f32.xlu0 %v2735
        %v2798 = vpop.xlane.xlu0 %2797
        %2799 = vadd.xlane.f32.xlu0 %v2736
        %v2800 = vpop.xlane.xlu0 %2799
        %v2801 = vrcp.pop %v2738
        %v2802 = vrcp.pop %v2740
        %v2803 = vrcp.pop %v2742
        %v2804 = vrcp.pop %v2744
        %v2805 = vrcp.pop %v2746
        %v2806 = vrcp.pop %v2748
        %v2807 = vrcp.pop %v2750
        %v2808 = vrcp.pop %v2752
        %v2809 = vrcp.pop %v2754
        %v2810 = vrcp.pop %v2756
        %v2811 = vrcp.pop %v2758
        %v2812 = vrcp.pop %v2760
        %v2813 = vrcp.pop %v2762
        %v2814 = vrcp.pop %v2764
        %v2815 = vrcp.pop %v2766
        %v2816 = vrcp.pop %v2768
        %v2817 = vrcp.pop %v2770
        %v2818 = vrcp.pop %v2772
        %v2819 = vrcp.pop %v2774
        %v2820 = vrcp.pop %v2776
        %v2821 = vrcp.pop %v2778
        %v2822 = vrcp.pop %v2780
        %v2823 = vrcp.pop %v2782
        %v2824 = vrcp.pop %v2784
        %v2825 = vrcp.pop %v2786
        %v2826 = vrcp.pop %v2788
        %v2827 = vrcp.pop %v2790
        %v2828 = vrcp.pop %v2792
        %v2829 = vrcp.pop %v2794
        %v2830 = vrcp.pop %v2796
        %v2831 = vrcp.pop %v2798
        %v2832 = vrcp.pop %v2800
        %v2833 = vsel %vm2220, %v2801, 0.0
        %v2834 = vsel %vm2220, %v2802, 0.0
        %v2835 = vsel %vm2220, %v2803, 0.0
        %v2836 = vsel %vm2220, %v2804, 0.0
        %v2837 = vsel %vm2220, %v2805, 0.0
        %v2838 = vsel %vm2220, %v2806, 0.0
        %v2839 = vsel %vm2220, %v2807, 0.0
        %v2840 = vsel %vm2220, %v2808, 0.0
        %v2841 = vsel %vm2220, %v2809, 0.0
        %v2842 = vsel %vm2220, %v2810, 0.0
        %v2843 = vsel %vm2220, %v2811, 0.0
        %v2844 = vsel %vm2220, %v2812, 0.0
        %v2845 = vsel %vm2220, %v2813, 0.0
        %v2846 = vsel %vm2220, %v2814, 0.0
        %v2847 = vsel %vm2220, %v2815, 0.0
        %v2848 = vsel %vm2220, %v2816, 0.0
        %v2849 = vsel %vm2220, %v2817, 0.0
        %v2850 = vsel %vm2220, %v2818, 0.0
        %v2851 = vsel %vm2220, %v2819, 0.0
        %v2852 = vsel %vm2220, %v2820, 0.0
        %v2853 = vsel %vm2220, %v2821, 0.0
        %v2854 = vsel %vm2220, %v2822, 0.0
        %v2855 = vsel %vm2220, %v2823, 0.0
        %v2856 = vsel %vm2220, %v2824, 0.0
        %v2857 = vsel %vm2220, %v2825, 0.0
        %v2858 = vsel %vm2220, %v2826, 0.0
        %v2859 = vsel %vm2220, %v2827, 0.0
        %v2860 = vsel %vm2220, %v2828, 0.0
        %v2861 = vsel %vm2220, %v2829, 0.0
        %v2862 = vsel %vm2220, %v2830, 0.0
        %v2863 = vsel %vm2220, %v2831, 0.0
        %v2864 = vsel %vm2220, %v2832, 0.0
        %v2865 = vsel %vm2350, %v2642, 0.0
        %v2866 = vsel %vm2350, %v2644, 0.0
        %v2867 = vsel %vm2350, %v2646, 0.0
        %v2868 = vsel %vm2350, %v2648, 0.0
        %v2869 = vsel %vm2350, %v2650, 0.0
        %v2870 = vsel %vm2350, %v2652, 0.0
        %v2871 = vsel %vm2350, %v2654, 0.0
        %v2872 = vsel %vm2350, %v2656, 0.0
        %v2873 = vsel %vm2350, %v2658, 0.0
        %v2874 = vsel %vm2350, %v2660, 0.0
        %v2875 = vsel %vm2350, %v2662, 0.0
        %v2876 = vsel %vm2350, %v2664, 0.0
        %v2877 = vsel %vm2350, %v2666, 0.0
        %v2878 = vsel %vm2350, %v2668, 0.0
        %v2879 = vsel %vm2350, %v2670, 0.0
        %v2880 = vsel %vm2350, %v2672, 0.0
        %v2881 = vsel %vm2350, %v2674, 0.0
        %v2882 = vsel %vm2350, %v2676, 0.0
        %v2883 = vsel %vm2350, %v2678, 0.0
        %v2884 = vsel %vm2350, %v2680, 0.0
        %v2885 = vsel %vm2350, %v2682, 0.0
        %v2886 = vsel %vm2350, %v2684, 0.0
        %v2887 = vsel %vm2350, %v2686, 0.0
        %v2888 = vsel %vm2350, %v2688, 0.0
        %v2889 = vsel %vm2350, %v2690, 0.0
        %v2890 = vsel %vm2350, %v2692, 0.0
        %v2891 = vsel %vm2350, %v2694, 0.0
        %v2892 = vsel %vm2350, %v2696, 0.0
        %v2893 = vsel %vm2350, %v2698, 0.0
        %v2894 = vsel %vm2350, %v2700, 0.0
        %v2895 = vsel %vm2350, %v2702, 0.0
        %v2896 = vsel %vm2350, %v2704, 0.0
        %2897 = vadd.xlane.f32.xlu0 %v2865
        %v2898 = vpop.xlane.xlu0 %2897
        %2899 = vadd.xlane.f32.xlu0 %v2866
        %v2900 = vpop.xlane.xlu0 %2899
        %2901 = vadd.xlane.f32.xlu0 %v2867
        %v2902 = vpop.xlane.xlu0 %2901
        %2903 = vadd.xlane.f32.xlu0 %v2868
        %v2904 = vpop.xlane.xlu0 %2903
        %2905 = vadd.xlane.f32.xlu0 %v2869
        %v2906 = vpop.xlane.xlu0 %2905
        %2907 = vadd.xlane.f32.xlu0 %v2870
        %v2908 = vpop.xlane.xlu0 %2907
        %2909 = vadd.xlane.f32.xlu0 %v2871
        %v2910 = vpop.xlane.xlu0 %2909
        %2911 = vadd.xlane.f32.xlu0 %v2872
        %v2912 = vpop.xlane.xlu0 %2911
        %2913 = vadd.xlane.f32.xlu0 %v2873
        %v2914 = vpop.xlane.xlu0 %2913
        %2915 = vadd.xlane.f32.xlu0 %v2874
        %v2916 = vpop.xlane.xlu0 %2915
        %2917 = vadd.xlane.f32.xlu0 %v2875
        %v2918 = vpop.xlane.xlu0 %2917
        %2919 = vadd.xlane.f32.xlu0 %v2876
        %v2920 = vpop.xlane.xlu0 %2919
        %2921 = vadd.xlane.f32.xlu0 %v2877
        %v2922 = vpop.xlane.xlu0 %2921
        %2923 = vadd.xlane.f32.xlu0 %v2878
        %v2924 = vpop.xlane.xlu0 %2923
        %2925 = vadd.xlane.f32.xlu0 %v2879
        %v2926 = vpop.xlane.xlu0 %2925
        %2927 = vadd.xlane.f32.xlu0 %v2880
        %v2928 = vpop.xlane.xlu0 %2927
        %2929 = vadd.xlane.f32.xlu0 %v2881
        %v2930 = vpop.xlane.xlu0 %2929
        %2931 = vadd.xlane.f32.xlu0 %v2882
        %v2932 = vpop.xlane.xlu0 %2931
        %2933 = vadd.xlane.f32.xlu0 %v2883
        %v2934 = vpop.xlane.xlu0 %2933
        %2935 = vadd.xlane.f32.xlu0 %v2884
        %v2936 = vpop.xlane.xlu0 %2935
        %2937 = vadd.xlane.f32.xlu0 %v2885
        %v2938 = vpop.xlane.xlu0 %2937
        %2939 = vadd.xlane.f32.xlu0 %v2886
        %v2940 = vpop.xlane.xlu0 %2939
        %2941 = vadd.xlane.f32.xlu0 %v2887
        %v2942 = vpop.xlane.xlu0 %2941
        %2943 = vadd.xlane.f32.xlu0 %v2888
        %v2944 = vpop.xlane.xlu0 %2943
        %2945 = vadd.xlane.f32.xlu0 %v2889
        %v2946 = vpop.xlane.xlu0 %2945
        %2947 = vadd.xlane.f32.xlu0 %v2890
        %v2948 = vpop.xlane.xlu0 %2947
        %2949 = vadd.xlane.f32.xlu0 %v2891
        %v2950 = vpop.xlane.xlu0 %2949
        %2951 = vadd.xlane.f32.xlu0 %v2892
        %v2952 = vpop.xlane.xlu0 %2951
        %2953 = vadd.xlane.f32.xlu0 %v2893
        %v2954 = vpop.xlane.xlu0 %2953
        %2955 = vadd.xlane.f32.xlu0 %v2894
        %v2956 = vpop.xlane.xlu0 %2955
        %2957 = vadd.xlane.f32.xlu0 %v2895
        %v2958 = vpop.xlane.xlu0 %2957
        %2959 = vadd.xlane.f32.xlu0 %v2896
        %v2960 = vpop.xlane.xlu0 %2959
        %v2961 = vrcp.pop %v2898
        %v2962 = vrcp.pop %v2900
        %v2963 = vrcp.pop %v2902
        %v2964 = vrcp.pop %v2904
        %v2965 = vrcp.pop %v2906
        %v2966 = vrcp.pop %v2908
        %v2967 = vrcp.pop %v2910
        %v2968 = vrcp.pop %v2912
        %v2969 = vrcp.pop %v2914
        %v2970 = vrcp.pop %v2916
        %v2971 = vrcp.pop %v2918
        %v2972 = vrcp.pop %v2920
        %v2973 = vrcp.pop %v2922
        %v2974 = vrcp.pop %v2924
        %v2975 = vrcp.pop %v2926
        %v2976 = vrcp.pop %v2928
        %v2977 = vrcp.pop %v2930
        %v2978 = vrcp.pop %v2932
        %v2979 = vrcp.pop %v2934
        %v2980 = vrcp.pop %v2936
        %v2981 = vrcp.pop %v2938
        %v2982 = vrcp.pop %v2940
        %v2983 = vrcp.pop %v2942
        %v2984 = vrcp.pop %v2944
        %v2985 = vrcp.pop %v2946
        %v2986 = vrcp.pop %v2948
        %v2987 = vrcp.pop %v2950
        %v2988 = vrcp.pop %v2952
        %v2989 = vrcp.pop %v2954
        %v2990 = vrcp.pop %v2956
        %v2991 = vrcp.pop %v2958
        %v2992 = vrcp.pop %v2960
        %v2993 = vsel %vm2350, %v2961, %v2833
        %v2994 = vsel %vm2350, %v2962, %v2834
        %v2995 = vsel %vm2350, %v2963, %v2835
        %v2996 = vsel %vm2350, %v2964, %v2836
        %v2997 = vsel %vm2350, %v2965, %v2837
        %v2998 = vsel %vm2350, %v2966, %v2838
        %v2999 = vsel %vm2350, %v2967, %v2839
        %v3000 = vsel %vm2350, %v2968, %v2840
        %v3001 = vsel %vm2350, %v2969, %v2841
        %v3002 = vsel %vm2350, %v2970, %v2842
        %v3003 = vsel %vm2350, %v2971, %v2843
        %v3004 = vsel %vm2350, %v2972, %v2844
        %v3005 = vsel %vm2350, %v2973, %v2845
        %v3006 = vsel %vm2350, %v2974, %v2846
        %v3007 = vsel %vm2350, %v2975, %v2847
        %v3008 = vsel %vm2350, %v2976, %v2848
        %v3009 = vsel %vm2350, %v2977, %v2849
        %v3010 = vsel %vm2350, %v2978, %v2850
        %v3011 = vsel %vm2350, %v2979, %v2851
        %v3012 = vsel %vm2350, %v2980, %v2852
        %v3013 = vsel %vm2350, %v2981, %v2853
        %v3014 = vsel %vm2350, %v2982, %v2854
        %v3015 = vsel %vm2350, %v2983, %v2855
        %v3016 = vsel %vm2350, %v2984, %v2856
        %v3017 = vsel %vm2350, %v2985, %v2857
        %v3018 = vsel %vm2350, %v2986, %v2858
        %v3019 = vsel %vm2350, %v2987, %v2859
        %v3020 = vsel %vm2350, %v2988, %v2860
        %v3021 = vsel %vm2350, %v2989, %v2861
        %v3022 = vsel %vm2350, %v2990, %v2862
        %v3023 = vsel %vm2350, %v2991, %v2863
        %v3024 = vsel %vm2350, %v2992, %v2864
        %v3025 = vsel %vm2480, %v2642, 0.0
        %v3026 = vsel %vm2480, %v2644, 0.0
        %v3027 = vsel %vm2480, %v2646, 0.0
        %v3028 = vsel %vm2480, %v2648, 0.0
        %v3029 = vsel %vm2480, %v2650, 0.0
        %v3030 = vsel %vm2480, %v2652, 0.0
        %v3031 = vsel %vm2480, %v2654, 0.0
        %v3032 = vsel %vm2480, %v2656, 0.0
        %v3033 = vsel %vm2480, %v2658, 0.0
        %v3034 = vsel %vm2480, %v2660, 0.0
        %v3035 = vsel %vm2480, %v2662, 0.0
        %v3036 = vsel %vm2480, %v2664, 0.0
        %v3037 = vsel %vm2480, %v2666, 0.0
        %v3038 = vsel %vm2480, %v2668, 0.0
        %v3039 = vsel %vm2480, %v2670, 0.0
        %v3040 = vsel %vm2480, %v2672, 0.0
        %v3041 = vsel %vm2480, %v2674, 0.0
        %v3042 = vsel %vm2480, %v2676, 0.0
        %v3043 = vsel %vm2480, %v2678, 0.0
        %v3044 = vsel %vm2480, %v2680, 0.0
        %v3045 = vsel %vm2480, %v2682, 0.0
        %v3046 = vsel %vm2480, %v2684, 0.0
        %v3047 = vsel %vm2480, %v2686, 0.0
        %v3048 = vsel %vm2480, %v2688, 0.0
        %v3049 = vsel %vm2480, %v2690, 0.0
        %v3050 = vsel %vm2480, %v2692, 0.0
        %v3051 = vsel %vm2480, %v2694, 0.0
        %v3052 = vsel %vm2480, %v2696, 0.0
        %v3053 = vsel %vm2480, %v2698, 0.0
        %v3054 = vsel %vm2480, %v2700, 0.0
        %v3055 = vsel %vm2480, %v2702, 0.0
        %v3056 = vsel %vm2480, %v2704, 0.0
        %3057 = vadd.xlane.f32.xlu0 %v3025
        %v3058 = vpop.xlane.xlu0 %3057
        %3059 = vadd.xlane.f32.xlu0 %v3026
        %v3060 = vpop.xlane.xlu0 %3059
        %3061 = vadd.xlane.f32.xlu0 %v3027
        %v3062 = vpop.xlane.xlu0 %3061
        %3063 = vadd.xlane.f32.xlu0 %v3028
        %v3064 = vpop.xlane.xlu0 %3063
        %3065 = vadd.xlane.f32.xlu0 %v3029
        %v3066 = vpop.xlane.xlu0 %3065
        %3067 = vadd.xlane.f32.xlu0 %v3030
        %v3068 = vpop.xlane.xlu0 %3067
        %3069 = vadd.xlane.f32.xlu0 %v3031
        %v3070 = vpop.xlane.xlu0 %3069
        %3071 = vadd.xlane.f32.xlu0 %v3032
        %v3072 = vpop.xlane.xlu0 %3071
        %3073 = vadd.xlane.f32.xlu0 %v3033
        %v3074 = vpop.xlane.xlu0 %3073
        %3075 = vadd.xlane.f32.xlu0 %v3034
        %v3076 = vpop.xlane.xlu0 %3075
        %3077 = vadd.xlane.f32.xlu0 %v3035
        %v3078 = vpop.xlane.xlu0 %3077
        %3079 = vadd.xlane.f32.xlu0 %v3036
        %v3080 = vpop.xlane.xlu0 %3079
        %3081 = vadd.xlane.f32.xlu0 %v3037
        %v3082 = vpop.xlane.xlu0 %3081
        %3083 = vadd.xlane.f32.xlu0 %v3038
        %v3084 = vpop.xlane.xlu0 %3083
        %3085 = vadd.xlane.f32.xlu0 %v3039
        %v3086 = vpop.xlane.xlu0 %3085
        %3087 = vadd.xlane.f32.xlu0 %v3040
        %v3088 = vpop.xlane.xlu0 %3087
        %3089 = vadd.xlane.f32.xlu0 %v3041
        %v3090 = vpop.xlane.xlu0 %3089
        %3091 = vadd.xlane.f32.xlu0 %v3042
        %v3092 = vpop.xlane.xlu0 %3091
        %3093 = vadd.xlane.f32.xlu0 %v3043
        %v3094 = vpop.xlane.xlu0 %3093
        %3095 = vadd.xlane.f32.xlu0 %v3044
        %v3096 = vpop.xlane.xlu0 %3095
        %3097 = vadd.xlane.f32.xlu0 %v3045
        %v3098 = vpop.xlane.xlu0 %3097
        %3099 = vadd.xlane.f32.xlu0 %v3046
        %v3100 = vpop.xlane.xlu0 %3099
        %3101 = vadd.xlane.f32.xlu0 %v3047
        %v3102 = vpop.xlane.xlu0 %3101
        %3103 = vadd.xlane.f32.xlu0 %v3048
        %v3104 = vpop.xlane.xlu0 %3103
        %3105 = vadd.xlane.f32.xlu0 %v3049
        %v3106 = vpop.xlane.xlu0 %3105
        %3107 = vadd.xlane.f32.xlu0 %v3050
        %v3108 = vpop.xlane.xlu0 %3107
        %3109 = vadd.xlane.f32.xlu0 %v3051
        %v3110 = vpop.xlane.xlu0 %3109
        %3111 = vadd.xlane.f32.xlu0 %v3052
        %v3112 = vpop.xlane.xlu0 %3111
        %3113 = vadd.xlane.f32.xlu0 %v3053
        %v3114 = vpop.xlane.xlu0 %3113
        %3115 = vadd.xlane.f32.xlu0 %v3054
        %v3116 = vpop.xlane.xlu0 %3115
        %3117 = vadd.xlane.f32.xlu0 %v3055
        %v3118 = vpop.xlane.xlu0 %3117
        %3119 = vadd.xlane.f32.xlu0 %v3056
        %v3120 = vpop.xlane.xlu0 %3119
        %v3121 = vrcp.pop %v3058
        %v3122 = vrcp.pop %v3060
        %v3123 = vrcp.pop %v3062
        %v3124 = vrcp.pop %v3064
        %v3125 = vrcp.pop %v3066
        %v3126 = vrcp.pop %v3068
        %v3127 = vrcp.pop %v3070
        %v3128 = vrcp.pop %v3072
        %v3129 = vrcp.pop %v3074
        %v3130 = vrcp.pop %v3076
        %v3131 = vrcp.pop %v3078
        %v3132 = vrcp.pop %v3080
        %v3133 = vrcp.pop %v3082
        %v3134 = vrcp.pop %v3084
        %v3135 = vrcp.pop %v3086
        %v3136 = vrcp.pop %v3088
        %v3137 = vrcp.pop %v3090
        %v3138 = vrcp.pop %v3092
        %v3139 = vrcp.pop %v3094
        %v3140 = vrcp.pop %v3096
        %v3141 = vrcp.pop %v3098
        %v3142 = vrcp.pop %v3100
        %v3143 = vrcp.pop %v3102
        %v3144 = vrcp.pop %v3104
        %v3145 = vrcp.pop %v3106
        %v3146 = vrcp.pop %v3108
        %v3147 = vrcp.pop %v3110
        %v3148 = vrcp.pop %v3112
        %v3149 = vrcp.pop %v3114
        %v3150 = vrcp.pop %v3116
        %v3151 = vrcp.pop %v3118
        %v3152 = vrcp.pop %v3120
        %v3153 = vsel %vm2480, %v3121, %v2993
        %v3154 = vsel %vm2480, %v3122, %v2994
        %v3155 = vsel %vm2480, %v3123, %v2995
        %v3156 = vsel %vm2480, %v3124, %v2996
        %v3157 = vsel %vm2480, %v3125, %v2997
        %v3158 = vsel %vm2480, %v3126, %v2998
        %v3159 = vsel %vm2480, %v3127, %v2999
        %v3160 = vsel %vm2480, %v3128, %v3000
        %v3161 = vsel %vm2480, %v3129, %v3001
        %v3162 = vsel %vm2480, %v3130, %v3002
        %v3163 = vsel %vm2480, %v3131, %v3003
        %v3164 = vsel %vm2480, %v3132, %v3004
        %v3165 = vsel %vm2480, %v3133, %v3005
        %v3166 = vsel %vm2480, %v3134, %v3006
        %v3167 = vsel %vm2480, %v3135, %v3007
        %v3168 = vsel %vm2480, %v3136, %v3008
        %v3169 = vsel %vm2480, %v3137, %v3009
        %v3170 = vsel %vm2480, %v3138, %v3010
        %v3171 = vsel %vm2480, %v3139, %v3011
        %v3172 = vsel %vm2480, %v3140, %v3012
        %v3173 = vsel %vm2480, %v3141, %v3013
        %v3174 = vsel %vm2480, %v3142, %v3014
        %v3175 = vsel %vm2480, %v3143, %v3015
        %v3176 = vsel %vm2480, %v3144, %v3016
        %v3177 = vsel %vm2480, %v3145, %v3017
        %v3178 = vsel %vm2480, %v3146, %v3018
        %v3179 = vsel %vm2480, %v3147, %v3019
        %v3180 = vsel %vm2480, %v3148, %v3020
        %v3181 = vsel %vm2480, %v3149, %v3021
        %v3182 = vsel %vm2480, %v3150, %v3022
        %v3183 = vsel %vm2480, %v3151, %v3023
        %v3184 = vsel %vm2480, %v3152, %v3024
        %v3185 = vmul.f32 %v2642, %v3153
        %v3186 = vmul.f32 %v2644, %v3154
        %v3187 = vmul.f32 %v2646, %v3155
        %v3188 = vmul.f32 %v2648, %v3156
        %v3189 = vmul.f32 %v2650, %v3157
        %v3190 = vmul.f32 %v2652, %v3158
        %v3191 = vmul.f32 %v2654, %v3159
        %v3192 = vmul.f32 %v2656, %v3160
        %v3193 = vmul.f32 %v2658, %v3161
        %v3194 = vmul.f32 %v2660, %v3162
        %v3195 = vmul.f32 %v2662, %v3163
        %v3196 = vmul.f32 %v2664, %v3164
        %v3197 = vmul.f32 %v2666, %v3165
        %v3198 = vmul.f32 %v2668, %v3166
        %v3199 = vmul.f32 %v2670, %v3167
        %v3200 = vmul.f32 %v2672, %v3168
        %v3201 = vmul.f32 %v2674, %v3169
        %v3202 = vmul.f32 %v2676, %v3170
        %v3203 = vmul.f32 %v2678, %v3171
        %v3204 = vmul.f32 %v2680, %v3172
        %v3205 = vmul.f32 %v2682, %v3173
        %v3206 = vmul.f32 %v2684, %v3174
        %v3207 = vmul.f32 %v2686, %v3175
        %v3208 = vmul.f32 %v2688, %v3176
        %v3209 = vmul.f32 %v2690, %v3177
        %v3210 = vmul.f32 %v2692, %v3178
        %v3211 = vmul.f32 %v2694, %v3179
        %v3212 = vmul.f32 %v2696, %v3180
        %v3213 = vmul.f32 %v2698, %v3181
        %v3214 = vmul.f32 %v2700, %v3182
        %v3215 = vmul.f32 %v2702, %v3183
        %v3216 = vmul.f32 %v2704, %v3184
        %3217 = vst [vmem:[%s245] sm:$0xff] %v3185
        %3218 = vst [vmem:[%s245 + $0x8] sm:$0xff] %v3186
        %3219 = vst [vmem:[%s245 + $0x10] sm:$0xff] %v3187
        %3220 = vst [vmem:[%s245 + $0x18] sm:$0xff] %v3188
        %3221 = vst [vmem:[%s245 + $0x20] sm:$0xff] %v3189
        %3222 = vst [vmem:[%s245 + $0x28] sm:$0xff] %v3190
        %3223 = vst [vmem:[%s245 + $0x30] sm:$0xff] %v3191
        %3224 = vst [vmem:[%s245 + $0x38] sm:$0xff] %v3192
        %3225 = vst [vmem:[%s245 + $0x40] sm:$0xff] %v3193
        %3226 = vst [vmem:[%s245 + $0x48] sm:$0xff] %v3194
        %3227 = vst [vmem:[%s245 + $0x50] sm:$0xff] %v3195
        %3228 = vst [vmem:[%s245 + $0x58] sm:$0xff] %v3196
        %3229 = vst [vmem:[%s245 + $0x60] sm:$0xff] %v3197
        %3230 = vst [vmem:[%s245 + $0x68] sm:$0xff] %v3198
        %3231 = vst [vmem:[%s245 + $0x70] sm:$0xff] %v3199
        %3232 = vst [vmem:[%s245 + $0x78] sm:$0xff] %v3200
        %3233 = vst [vmem:[%s245 + $0x80] sm:$0xff] %v3201
        %3234 = vst [vmem:[%s245 + $0x88] sm:$0xff] %v3202
        %3235 = vst [vmem:[%s245 + $0x90] sm:$0xff] %v3203
        %3236 = vst [vmem:[%s245 + $0x98] sm:$0xff] %v3204
        %3237 = vst [vmem:[%s245 + $0xa0] sm:$0xff] %v3205
        %3238 = vst [vmem:[%s245 + $0xa8] sm:$0xff] %v3206
        %3239 = vst [vmem:[%s245 + $0xb0] sm:$0xff] %v3207
        %3240 = vst [vmem:[%s245 + $0xb8] sm:$0xff] %v3208
        %3241 = vst [vmem:[%s245 + $0xc0] sm:$0xff] %v3209
        %3242 = vst [vmem:[%s245 + $0xc8] sm:$0xff] %v3210
        %3243 = vst [vmem:[%s245 + $0xd0] sm:$0xff] %v3211
        %3244 = vst [vmem:[%s245 + $0xd8] sm:$0xff] %v3212
        %3245 = vst [vmem:[%s245 + $0xe0] sm:$0xff] %v3213
        %3246 = vst [vmem:[%s245 + $0xe8] sm:$0xff] %v3214
        %3247 = vst [vmem:[%s245 + $0xf0] sm:$0xff] %v3215
        %3248 = vst [vmem:[%s245 + $0xf8] sm:$0xff] %v3216
        %s3249 = sand.u32 %s138, 1
        %s3250 = scalar_lea.sflag [#allocation4], %s3249
        %s3251 = sand.u32 %s138, 1
        %s3252 = smul.addr %s3251, 256
        %s3253 = scalar_lea.vmem [#allocation5], %s3252
        // Predicated region
        $region45: #{tpu_custom_call.1} parent=39 // pred_check
          %p3254 = pneg %p148
        $region46: #{tpu_custom_call.1} parent=39 // pred_check_branch
          %3256 = sbr.rel (%p3254) target = $region48
        $region47: #{tpu_custom_call.1} parent=39 // pred_region
          %s3257 = smul.u32 32, %s20
          %s3258 = ssub.s32 38, %s3257
          %p3259 = scmp.lt.s32.totalorder %s3258, 32
          %s3260 = scalar_select %p3259, %s3258, 32
          %s3261 = smul.u32 128, %s3260
          %s3263 = ssub.s32 4096, %s3261
          %3264 = vsyncadd %s3250, %s3263
          %p3265 = scmp.ne.s32.totalorder 0, %s3261
          %s3266 = smul.addr %s3257, 128
          %s3267 = scalar_lea.hbm %s5, %s3266
          %s3268 = smul.u32 8, %s3260
          %s3269 = sshll.u32 %s3253, 4
          %s3270 = int_to_ptr.vmem [resolvable:$true] %s3269
          %s3271 = sshll.u32 %s3268, 4
          %3275 = dma.vmem_to_hbm [thread:$0]  (%p3265), %s3270, %s3271, %s3267, %s3250, 128, 128, 8
        $region48: #{tpu_custom_call.1} parent=39 // pred_fallthru
          _
      $region40: #{tpu_custom_call.1} parent=5 // pred_fallthru
        _
      %p3276 = scmp.le.s32.totalorder 2, %s15
      // Predicated region
      $region49: #{tpu_custom_call.1} parent=5 // pred_check
        %p3277 = pneg %p3276
      $region50: #{tpu_custom_call.1} parent=5 // pred_check_branch
        %3279 = sbr.rel (%p3277) target = $region52
      $region51: #{tpu_custom_call.1} parent=5 // pred_region
        %s3280 = ssub.s32 %s15, 2
        // Predicated region
        $region53: #{tpu_custom_call.1} parent=51 // pred_check
          %p3281 = pneg %p154
        $region54: #{tpu_custom_call.1} parent=51 // pred_check_branch
          %3283 = sbr.rel (%p3281) target = $region56
        $region55: #{tpu_custom_call.1} parent=51 // pred_region
          %s3284 = sand.u32 %s139, 1
          %s3285 = scalar_lea.sflag [#allocation4], %s3284
          %s3286 = sand.u32 %s139, 1
          %s3287 = smul.addr %s3286, 256
          %s3288 = scalar_lea.vmem [#allocation5], %s3287
          %3289 = dma.done %s3285, 4096
        $region56: #{tpu_custom_call.1} parent=51 // pred_fallthru
          _
      $region52: #{tpu_custom_call.1} parent=5 // pred_fallthru
        _
    $region6: #{tpu_custom_call.1} parent=1 // loop_footer
      %s19 = sadd.s32 1, %s15
    $region7: #{tpu_custom_call.1} parent=1 // loop_footer_branch
      %14 = sbr.rel target = $region3
    $region8: #{tpu_custom_call.1} parent=1 // loop_exit
      _
    %3290 = vsyncpa [#allocation3], 1
    %s3291 = scalar_lea.sflag [#allocation3], 1
    %3292 = vsyncpa %s3291, 1
    %3293 = vsyncpa [#allocation4], 1
    %s3294 = scalar_lea.sflag [#allocation4], 1
    %3295 = vsyncpa %s3294, 1

</llo_original>
